<compile_context>
chip_gen: v7x
topology: tpu7x:2x2x1
jax: 0.10.0
libtpu: 0.0.40
codegen_flags: <defaults>
</compile_context>

<pallas_src>
import functools
import math

import jax
import jax.numpy as jnp
from jax.experimental import pallas as pl
from jax.experimental.pallas import tpu as pltpu

BN_EPS = 1e-5


# ----------------------------------------------------------------------------
# Pallas kernels
# ----------------------------------------------------------------------------
def _first_block_kernel(x_ref, w_ref, b_ref, o_ref, scr, *, Ho, Wo):
    """First block: 3x3 conv stride-2 pad-1 + BN + ReLU on space-to-depth input.

    x_ref : (1, Ho, Wo, 4*Cin)  space-to-depth packed input
    w_ref : (4, 4*Cin, Cout)    one K=4*Cin weight per (row-shift, col-shift) source block
    b_ref : (1, Cout)
    scr   : (1, Ho+1, Wo+1, 4*Cin) VMEM scratch, zero-padded on top/left
    """
    scr[...] = jnp.zeros_like(scr)
    scr[:, 1:, 1:, :] = x_ref[...]
    acc = None
    for idx in range(4):
        ri, ci = divmod(idx, 2)
        blk = scr[:, ri:ri + Ho, ci:ci + Wo, :]
        t = jnp.einsum('nhwc,cd->nhwd', blk, w_ref[idx],
                       preferred_element_type=jnp.float32)
        acc = t if acc is None else acc + t
    o_ref[...] = jnp.maximum(acc + b_ref[...], 0.0)


def _unit_s1_kernel(x_ref, w1_ref, b1_ref, w2_ref, b2_ref, w3_ref, b3_ref,
                    o_ref, scr, *, H, W):
    """Fused non-reduce BasicUnit (stride 1): pw1+ReLU -> dw3x3 -> pw3 -> +x -> ReLU.

    Channel shuffle and BN scales are folded into the weights at init time.
    scr: (1, H+2, W+2, mid) zero-padded VMEM scratch holding the pw1 output.
    """
    x = x_ref[...]                                                  # (1,H,W,C)
    y1 = jnp.einsum('nhwc,cd->nhwd', x, w1_ref[...],
                    preferred_element_type=jnp.float32)
    y1 = jnp.maximum(y1 + b1_ref[...], 0.0)                         # (1,H,W,mid)

    scr[...] = jnp.zeros_like(scr)
    scr[:, 1:H + 1, 1:W + 1, :] = y1

    acc = None
    for k in range(9):
        dy, dx = k // 3, k % 3
        tap = scr[:, dy:dy + H, dx:dx + W, :] * w2_ref[k]
        acc = tap if acc is None else acc + tap
    dw = acc + b2_ref[...]                                          # (1,H,W,mid)

    z = jnp.einsum('nhwd,de->nhwe', dw, w3_ref[...],
                   preferred_element_type=jnp.float32)
    o_ref[...] = jnp.maximum(z + b3_ref[...] + x, 0.0)


def _unit_reduce_kernel(x_ref, w1_ref, b1_ref, w2_ref, b2_ref, w3_ref, b3_ref,
                        o_ref, yscr, xscr, *, Ho, Wo, mid, cin):
    """Fused reduce BasicUnit (stride 2) on a space-to-depth packed input.

    x_ref : (1, Ho, Wo, 4*cin)   x[n,2i+a,2j+b,c] == x_ref[n,i,j,(2a+b)*cin + c]
    w1_ref: (4*cin, 4*mid)       block-diagonal replicated pw1 weight (shuffle+BN folded)
    The stride-2 3x3 depthwise conv and 3x3/s2 avgpool become 9 unit-shift taps of the
    4 parity planes, evaluated directly at output resolution.
    """
    x = x_ref[...]                                                  # (1,Ho,Wo,4cin)
    y1 = jnp.einsum('nhwc,cd->nhwd', x, w1_ref[...],
                    preferred_element_type=jnp.float32)
    y1 = jnp.maximum(y1 + b1_ref[...], 0.0)                         # (1,Ho,Wo,4mid)

    yscr[...] = jnp.zeros_like(yscr)
    yscr[:, 1:, 1:, :] = y1
    xscr[...] = jnp.zeros_like(xscr)
    xscr[:, 1:, 1:, :] = x
    yv = yscr[...]
    xv = xscr[...]

    acc = None
    pool = None
    for k in range(9):
        dy, dx = k // 3, k % 3
        ri = 0 if dy == 0 else 1          # row shift into the top-left zero pad
        ci = 0 if dx == 0 else 1
        a = 0 if dy == 1 else 1           # row parity of the source plane
        b = 0 if dx == 1 else 1
        p = 2 * a + b
        ytap = yv[:, ri:ri + Ho, ci:ci + Wo, p * mid:(p + 1) * mid] * w2_ref[k]
        xtap = xv[:, ri:ri + Ho, ci:ci + Wo, p * cin:(p + 1) * cin]
        acc = ytap if acc is None else acc + ytap
        pool = xtap if pool is None else pool + xtap
    dw = acc + b2_ref[...]                                          # (1,Ho,Wo,mid)
    pooled = pool * (1.0 / 9.0)                                     # avgpool(3,2,1)

    z = jnp.einsum('nhwd,de->nhwe', dw, w3_ref[...],
                   preferred_element_type=jnp.float32) + b3_ref[...]
    o_ref[...] = jnp.maximum(jnp.concatenate([z, pooled], axis=-1), 0.0)


def _head_kernel(x_ref, w_ref, b_ref, o_ref):
    # x: (N, H*W, C), w: (C, n_classes), b: (1, n_classes)
    pooled = jnp.mean(x_ref[...], axis=1)
    o_ref[...] = jnp.dot(pooled, w_ref[...],
                         preferred_element_type=jnp.float32) + b_ref[...]


# ----------------------------------------------------------------------------
# Kernel wrappers
# ----------------------------------------------------------------------------
_PARALLEL = pltpu.CompilerParams(dimension_semantics=("parallel",))


def space_to_depth2(x):
    """(N, H, W, C) -> (N, H/2, W/2, 4C); block (a,b) goes to channels [(2a+b)*C : ...]."""
    N, H, W, C = x.shape
    x = x.reshape(N, H // 2, 2, W // 2, 2, C)
    x = x.transpose(0, 1, 3, 2, 4, 5)
    return x.reshape(N, H // 2, W // 2, 4 * C)


def first_block_op(x_s2d, w_st, bias):
    N, Ho, Wo, C4 = x_s2d.shape
    Cout = w_st.shape[-1]
    return pl.pallas_call(
        functools.partial(_first_block_kernel, Ho=Ho, Wo=Wo),
        grid=(N,),
        in_specs=[
            pl.BlockSpec((1, Ho, Wo, C4), lambda n: (n, 0, 0, 0)),
            pl.BlockSpec((4, C4, Cout), lambda n: (0, 0, 0)),
            pl.BlockSpec((1, Cout), lambda n: (0, 0)),
        ],
        out_specs=pl.BlockSpec((1, Ho, Wo, Cout), lambda n: (n, 0, 0, 0)),
        out_shape=jax.ShapeDtypeStruct((N, Ho, Wo, Cout), jnp.float32),
        scratch_shapes=[pltpu.VMEM((1, Ho + 1, Wo + 1, C4), jnp.float32)],
        compiler_params=_PARALLEL,
    )(x_s2d, w_st, bias.reshape(1, Cout))


def unit_s1_op(x, p):
    N, H, W, C = x.shape
    mid = p['w1'].shape[1]
    return pl.pallas_call(
        functools.partial(_unit_s1_kernel, H=H, W=W),
        grid=(N,),
        in_specs=[
            pl.BlockSpec((1, H, W, C), lambda n: (n, 0, 0, 0)),
            pl.BlockSpec((C, mid), lambda n: (0, 0)),
            pl.BlockSpec((1, mid), lambda n: (0, 0)),
            pl.BlockSpec((9, mid), lambda n: (0, 0)),
            pl.BlockSpec((1, mid), lambda n: (0, 0)),
            pl.BlockSpec((mid, C), lambda n: (0, 0)),
            pl.BlockSpec((1, C), lambda n: (0, 0)),
        ],
        out_specs=pl.BlockSpec((1, H, W, C), lambda n: (n, 0, 0, 0)),
        out_shape=jax.ShapeDtypeStruct((N, H, W, C), jnp.float32),
        scratch_shapes=[pltpu.VMEM((1, H + 2, W + 2, mid), jnp.float32)],
        compiler_params=_PARALLEL,
    )(x, p['w1'], p['b1'], p['w2'], p['b2'], p['w3'], p['b3'])


def unit_reduce_op(x, p):
    N, H, W, Cin = x.shape
    Ho, Wo = H // 2, W // 2
    x_s2d = space_to_depth2(x)
    mid = p['w2'].shape[1]
    ce = p['w3'].shape[1]                 # out_channels - in_channels
    Cout = ce + Cin
    return pl.pallas_call(
        functools.partial(_unit_reduce_kernel, Ho=Ho, Wo=Wo, mid=mid, cin=Cin),
        grid=(N,),
        in_specs=[
            pl.BlockSpec((1, Ho, Wo, 4 * Cin), lambda n: (n, 0, 0, 0)),
            pl.BlockSpec((4 * Cin, 4 * mid), lambda n: (0, 0)),
            pl.BlockSpec((1, 4 * mid), lambda n: (0, 0)),
            pl.BlockSpec((9, mid), lambda n: (0, 0)),
            pl.BlockSpec((1, mid), lambda n: (0, 0)),
            pl.BlockSpec((mid, ce), lambda n: (0, 0)),
            pl.BlockSpec((1, ce), lambda n: (0, 0)),
        ],
        out_specs=pl.BlockSpec((1, Ho, Wo, Cout), lambda n: (n, 0, 0, 0)),
        out_shape=jax.ShapeDtypeStruct((N, Ho, Wo, Cout), jnp.float32),
        scratch_shapes=[pltpu.VMEM((1, Ho + 1, Wo + 1, 4 * mid), jnp.float32),
                        pltpu.VMEM((1, Ho + 1, Wo + 1, 4 * Cin), jnp.float32)],
        compiler_params=_PARALLEL,
    )(x_s2d, p['w1s2d'], p['b1s2d'], p['w2'], p['b2'], p['w3'], p['b3'])


def head_op(x, fc_w, fc_b):
    N, H, W, C = x.shape
    x3 = x.reshape(N, H * W, C)
    return pl.pallas_call(
        _head_kernel,
        out_shape=jax.ShapeDtypeStruct((N, fc_w.shape[1]), jnp.float32),
    )(x3, fc_w, fc_b.reshape(1, -1))


# ----------------------------------------------------------------------------
# Parameter construction (BN / channel-shuffle / stride-2 packing folded at init)
# ----------------------------------------------------------------------------
_BN_SCALE = 1.0 / math.sqrt(1.0 + BN_EPS)   # eval-mode BN: gamma=1,beta=0,mean=0,var=1


def _shuffle_perm(C, n_groups):
    # channel_shuffle: shuffled[a*g + b] = y[b*c + a]
    c = C // n_groups
    return jnp.array([b * c + a for a in range(c) for b in range(n_groups)], jnp.int32)


def _make_pw_weight(key, cin, cout, groups):
    """Dense (cin, cout) weight with block-diagonal structure == grouped 1x1 conv."""
    cin_g, cout_g = cin // groups, cout // groups
    std = math.sqrt(2.0 / cout)                # kaiming_normal, fan_out, k=1x1
    w = jnp.zeros((cin, cout), jnp.float32)
    keys = jax.random.split(key, groups)
    for g in range(groups):
        blk = std * jax.random.normal(keys[g], (cin_g, cout_g), jnp.float32)
        w = w.at[g * cin_g:(g + 1) * cin_g, g * cout_g:(g + 1) * cout_g].set(blk)
    return w


def _block_diag4(w):
    cin, cout = w.shape
    out = jnp.zeros((4 * cin, 4 * cout), w.dtype)
    for i in range(4):
        out = out.at[i * cin:(i + 1) * cin, i * cout:(i + 1) * cout].set(w)
    return out


def init_first_block(key):
    """Injected `first_block`: Conv2d(3,24,3,s=2,p=1,bias=False)+BN+ReLU, BN folded,
    repacked into 4 K=4*Cin weights matching the space-to-depth tap decomposition."""
    cin, cout = 3, 24
    std = math.sqrt(2.0 / (cout * 9))
    w_full = std * jax.random.normal(key, (3, 3, cin, cout), jnp.float32) * _BN_SCALE
    w_st = jnp.zeros((4, 4 * cin, cout), jnp.float32)
    for dy in range(3):
        for dx in range(3):
            ri = 0 if dy == 0 else 1
            ci = 0 if dx == 0 else 1
            a = 0 if dy == 1 else 1
            b = 0 if dx == 1 else 1
            p = 2 * a + b
            idx = 2 * ri + ci
            w_st = w_st.at[idx, p * cin:(p + 1) * cin, :].set(w_full[dy, dx])
    return dict(w=w_st, b=jnp.zeros((cout,), jnp.float32))


def init_basic_unit(key, in_c, out_c, n_groups, reduce):
    mid = out_c // 4
    out_eff = out_c - in_c if reduce else out_c
    g1 = 1 if in_c == 24 else n_groups
    k1, k2, k3 = jax.random.split(key, 3)

    # conv1 (grouped 1x1) + BN1 folded; channel shuffle folded into the output columns.
    w1 = _make_pw_weight(k1, in_c, mid, g1) * _BN_SCALE
    b1 = jnp.zeros((mid,), jnp.float32)
    perm = _shuffle_perm(mid, n_groups)
    w1 = w1[:, perm]
    b1 = b1[perm]

    # conv2 (depthwise 3x3) + BN2 folded.
    std2 = math.sqrt(2.0 / (mid * 9))
    w2 = std2 * jax.random.normal(k2, (9, mid), jnp.float32) * _BN_SCALE
    b2 = jnp.zeros((mid,), jnp.float32)

    # conv3 (grouped 1x1) + BN3 folded.
    w3 = _make_pw_weight(k3, mid, out_eff, n_groups) * _BN_SCALE
    b3 = jnp.zeros((out_eff,), jnp.float32)

    p = dict(w2=w2, b2=b2.reshape(1, -1), w3=w3, b3=b3.reshape(1, -1))
    if reduce:
        # Space-to-depth packed pw1: block-diag replicate over the 4 parity planes.
        p['w1s2d'] = _block_diag4(w1)
        p['b1s2d'] = jnp.tile(b1, 4).reshape(1, -1)
    else:
        p['w1'] = w1
        p['b1'] = b1.reshape(1, -1)
    return p


def init_shufflenet(key, n_blocks, hidden_channels, n_groups, n_classes):
    keys = jax.random.split(key, 7)
    first = init_first_block(keys[0])
    stage_io = [(24, hidden_channels),
                (hidden_channels, hidden_channels * 2),
                (hidden_channels * 2, hidden_channels * 4)]
    stages = []
    for si, (ic, oc) in enumerate(stage_io):
        bkeys = jax.random.split(keys[1 + si], n_blocks[si])
        blocks = [init_basic_unit(bkeys[0], ic, oc, n_groups, True)]
        for bi in range(1, n_blocks[si]):
            blocks.append(init_basic_unit(bkeys[bi], oc, oc, n_groups, False))
        stages.append(blocks)
    fan_in = hidden_channels * 4
    bound = 1.0 / math.sqrt(fan_in)
    fc_w = jax.random.uniform(keys[4], (fan_in, n_classes), jnp.float32, -bound, bound)
    fc_b = jax.random.uniform(keys[5], (n_classes,), jnp.float32, -bound, bound)
    return dict(first=first, stages=stages, fc_w=fc_w, fc_b=fc_b)


# ----------------------------------------------------------------------------
# Forward pass
# ----------------------------------------------------------------------------
def shufflenet_fwd(x_nchw, params):
    # accept NCHW like PyTorch, compute in NHWC
    x = jnp.transpose(x_nchw, (0, 2, 3, 1)).astype(jnp.float32)
    x = space_to_depth2(x)                                   # pack for stride-2 first conv
    f = params['first']
    x = first_block_op(x, f['w'], f['b'])                    # (N, H/2, W/2, 24)
    for stage in params['stages']:
        for blk in stage:
            if 'w1s2d' in blk:                               # reduce (stride-2) unit
                x = unit_reduce_op(x, blk)
            else:
                x = unit_s1_op(x, blk)
    return head_op(x, params['fc_w'], params['fc_b'])


# ----------------------------------------------------------------------------
if __name__ == "__main__":
    key = jax.random.PRNGKey(0)
    n_blocks = [2, 2, 2]
    hidden_channels = 32
    n_groups = 2
    n_classes = 10

    params = init_shufflenet(key, n_blocks, hidden_channels, n_groups, n_classes)
    x = jax.random.normal(jax.random.PRNGKey(0), (2, 3, 32, 32), jnp.float32)

    fwd = jax.jit(shufflenet_fwd)
    out = fwd(x, params)
    out = jax.block_until_ready(out)
    assert out.shape == (2, n_classes), out.shape
    assert bool(jnp.all(jnp.isfinite(out)))
    print("KERNEL_OK")
</pallas_src>

<mosaic_0001>
module attributes {stable_mosaic.version = 11 : i64} {
  func.func @_first_block_kernel(%arg0: i32, %arg1: memref<1x16x16x12xf32, #tpu.memory_space<vmem>>, %arg2: memref<4x12x24xf32, #tpu.memory_space<vmem>>, %arg3: memref<1x24xf32, #tpu.memory_space<vmem>>, %arg4: memref<1x16x16x24xf32, #tpu.memory_space<vmem>>, %arg5: memref<1x17x17x12xf32, #tpu.memory_space<vmem>>) attributes {dimension_semantics = [#tpu.dimension_semantics<parallel>], iteration_bounds = array<i64: 2>, scalar_prefetch = 0 : i64, scratch_operands = 1 : i64, tpu.core_type = #tpu.core_type<tc>, window_params = [{transform_indices = @transform_0, window_bounds = array<i64: 1, 16, 16, 12>}, {pipeline_mode = #tpu.pipeline_mode<synchronous>, transform_indices = @transform_1, window_bounds = array<i64: 4, 12, 24>}, {pipeline_mode = #tpu.pipeline_mode<synchronous>, transform_indices = @transform_2, window_bounds = array<i64: 1, 24>}, {transform_indices = @transform_3, window_bounds = array<i64: 1, 16, 16, 24>}]} {
    %cst = arith.constant 0.000000e+00 : f32
    %0 = vector.broadcast %cst : f32 to vector<1x17x17x12xf32>
    %c0 = arith.constant 0 : index
    %c0_0 = arith.constant 0 : index
    %c0_1 = arith.constant 0 : index
    %c0_2 = arith.constant 0 : index
    %1 = vector.load %arg5[%c0, %c0_0, %c0_1, %c0_2] : memref<1x17x17x12xf32, #tpu.memory_space<vmem>>, vector<1x17x17x12xf32>
    tpu.vector_store %arg5[%c0, %c0_0, %c0_1, %c0_2], %0 {strides = array<i32>} : memref<1x17x17x12xf32, #tpu.memory_space<vmem>>, vector<1x17x17x12xf32>,
    %c0_3 = arith.constant 0 : index
    %c0_4 = arith.constant 0 : index
    %c0_5 = arith.constant 0 : index
    %c0_6 = arith.constant 0 : index
    %2 = vector.load %arg1[%c0_3, %c0_4, %c0_5, %c0_6] : memref<1x16x16x12xf32, #tpu.memory_space<vmem>>, vector<1x16x16x12xf32>
    %c0_7 = arith.constant 0 : index
    %c1 = arith.constant 1 : index
    %c1_8 = arith.constant 1 : index
    %c0_9 = arith.constant 0 : index
    %3 = vector.load %arg5[%c0_7, %c1, %c1_8, %c0_9] : memref<1x17x17x12xf32, #tpu.memory_space<vmem>>, vector<1x16x16x12xf32>
    tpu.vector_store %arg5[%c0_7, %c1, %c1_8, %c0_9], %2 {strides = array<i32>} : memref<1x17x17x12xf32, #tpu.memory_space<vmem>>, vector<1x16x16x12xf32>,
    %c0_10 = arith.constant 0 : index
    %c0_11 = arith.constant 0 : index
    %c0_12 = arith.constant 0 : index
    %c0_13 = arith.constant 0 : index
    %4 = vector.load %arg5[%c0_10, %c0_11, %c0_12, %c0_13] : memref<1x17x17x12xf32, #tpu.memory_space<vmem>>, vector<1x16x16x12xf32>
    %c0_14 = arith.constant 0 : index
    %c0_15 = arith.constant 0 : index
    %c0_16 = arith.constant 0 : index
    %5 = vector.load %arg2[%c0_14, %c0_15, %c0_16] : memref<4x12x24xf32, #tpu.memory_space<vmem>>, vector<1x12x24xf32>
    %6 = vector.shape_cast %5 : vector<1x12x24xf32> to vector<12x24xf32>
    "tpu.trace_start"() <{level = 10 : i32, message = "nhwc,cd->nhwd"}> : () -> ()
    %cst_17 = arith.constant dense<0.000000e+00> : vector<1x16x16x24xf32>
    %7 = tpu.matmul %4, %6, %cst_17 {dimension_numbers = #tpu.dot_dimension_numbers<[3], [0], [0, 1, 2], [1], [0, 0, 0, 1, 0, 2, 1, 1], [], []>} : vector<1x16x16x12xf32>, vector<12x24xf32>, vector<1x16x16x24xf32> -> vector<1x16x16x24xf32>
    "tpu.trace_stop"() : () -> ()
    %c0_18 = arith.constant 0 : index
    %c0_19 = arith.constant 0 : index
    %c1_20 = arith.constant 1 : index
    %c0_21 = arith.constant 0 : index
    %8 = vector.load %arg5[%c0_18, %c0_19, %c1_20, %c0_21] : memref<1x17x17x12xf32, #tpu.memory_space<vmem>>, vector<1x16x16x12xf32>
    %c1_22 = arith.constant 1 : index
    %c0_23 = arith.constant 0 : index
    %c0_24 = arith.constant 0 : index
    %9 = vector.load %arg2[%c1_22, %c0_23, %c0_24] : memref<4x12x24xf32, #tpu.memory_space<vmem>>, vector<1x12x24xf32>
    %10 = vector.shape_cast %9 : vector<1x12x24xf32> to vector<12x24xf32>
    "tpu.trace_start"() <{level = 10 : i32, message = "nhwc,cd->nhwd"}> : () -> ()
    %cst_25 = arith.constant dense<0.000000e+00> : vector<1x16x16x24xf32>
    %11 = tpu.matmul %8, %10, %cst_25 {dimension_numbers = #tpu.dot_dimension_numbers<[3], [0], [0, 1, 2], [1], [0, 0, 0, 1, 0, 2, 1, 1], [], []>} : vector<1x16x16x12xf32>, vector<12x24xf32>, vector<1x16x16x24xf32> -> vector<1x16x16x24xf32>
    "tpu.trace_stop"() : () -> ()
    %12 = arith.addf %7, %11 : vector<1x16x16x24xf32>
    %c0_26 = arith.constant 0 : index
    %c1_27 = arith.constant 1 : index
    %c0_28 = arith.constant 0 : index
    %c0_29 = arith.constant 0 : index
    %13 = vector.load %arg5[%c0_26, %c1_27, %c0_28, %c0_29] : memref<1x17x17x12xf32, #tpu.memory_space<vmem>>, vector<1x16x16x12xf32>
    %c2 = arith.constant 2 : index
    %c0_30 = arith.constant 0 : index
    %c0_31 = arith.constant 0 : index
    %14 = vector.load %arg2[%c2, %c0_30, %c0_31] : memref<4x12x24xf32, #tpu.memory_space<vmem>>, vector<1x12x24xf32>
    %15 = vector.shape_cast %14 : vector<1x12x24xf32> to vector<12x24xf32>
    "tpu.trace_start"() <{level = 10 : i32, message = "nhwc,cd->nhwd"}> : () -> ()
    %cst_32 = arith.constant dense<0.000000e+00> : vector<1x16x16x24xf32>
    %16 = tpu.matmul %13, %15, %cst_32 {dimension_numbers = #tpu.dot_dimension_numbers<[3], [0], [0, 1, 2], [1], [0, 0, 0, 1, 0, 2, 1, 1], [], []>} : vector<1x16x16x12xf32>, vector<12x24xf32>, vector<1x16x16x24xf32> -> vector<1x16x16x24xf32>
    "tpu.trace_stop"() : () -> ()
    %17 = arith.addf %12, %16 : vector<1x16x16x24xf32>
    %c0_33 = arith.constant 0 : index
    %c1_34 = arith.constant 1 : index
    %c1_35 = arith.constant 1 : index
    %c0_36 = arith.constant 0 : index
    %18 = vector.load %arg5[%c0_33, %c1_34, %c1_35, %c0_36] : memref<1x17x17x12xf32, #tpu.memory_space<vmem>>, vector<1x16x16x12xf32>
    %c3 = arith.constant 3 : index
    %c0_37 = arith.constant 0 : index
    %c0_38 = arith.constant 0 : index
    %19 = vector.load %arg2[%c3, %c0_37, %c0_38] : memref<4x12x24xf32, #tpu.memory_space<vmem>>, vector<1x12x24xf32>
    %20 = vector.shape_cast %19 : vector<1x12x24xf32> to vector<12x24xf32>
    "tpu.trace_start"() <{level = 10 : i32, message = "nhwc,cd->nhwd"}> : () -> ()
    %cst_39 = arith.constant dense<0.000000e+00> : vector<1x16x16x24xf32>
    %21 = tpu.matmul %18, %20, %cst_39 {dimension_numbers = #tpu.dot_dimension_numbers<[3], [0], [0, 1, 2], [1], [0, 0, 0, 1, 0, 2, 1, 1], [], []>} : vector<1x16x16x12xf32>, vector<12x24xf32>, vector<1x16x16x24xf32> -> vector<1x16x16x24xf32>
    "tpu.trace_stop"() : () -> ()
    %22 = arith.addf %17, %21 : vector<1x16x16x24xf32>
    %c0_40 = arith.constant 0 : index
    %c0_41 = arith.constant 0 : index
    %23 = vector.load %arg3[%c0_40, %c0_41] : memref<1x24xf32, #tpu.memory_space<vmem>>, vector<1x24xf32>
    %24 = vector.shape_cast %23 : vector<1x24xf32> to vector<1x1x1x24xf32>
    %25 = vector.broadcast %24 : vector<1x1x1x24xf32> to vector<1x16x16x24xf32>
    %26 = arith.addf %22, %25 : vector<1x16x16x24xf32>
    %cst_42 = arith.constant 0.000000e+00 : f32
    %27 = vector.broadcast %cst_42 : f32 to vector<1x16x16x24xf32>
    %28 = arith.maximumf %26, %27 : vector<1x16x16x24xf32>
    %c0_43 = arith.constant 0 : index
    %c0_44 = arith.constant 0 : index
    %c0_45 = arith.constant 0 : index
    %c0_46 = arith.constant 0 : index
    %29 = vector.load %arg4[%c0_43, %c0_44, %c0_45, %c0_46] : memref<1x16x16x24xf32, #tpu.memory_space<vmem>>, vector<1x16x16x24xf32>
    tpu.vector_store %arg4[%c0_43, %c0_44, %c0_45, %c0_46], %28 {strides = array<i32>} : memref<1x16x16x24xf32, #tpu.memory_space<vmem>>, vector<1x16x16x24xf32>,
    return
  }
  func.func @transform_0(%arg0: i32) -> (i32, i32, i32, i32) {
    %c0_i32 = arith.constant 0 : i32
    %c0_i32_0 = arith.constant 0 : i32
    %c0_i32_1 = arith.constant 0 : i32
    %c0_i32_2 = arith.constant 0 : i32
    return %arg0, %c0_i32, %c0_i32_0, %c0_i32_1 : i32, i32, i32, i32
  }
  func.func @transform_1(%arg0: i32) -> (i32, i32, i32) {
    %c0_i32 = arith.constant 0 : i32
    %c0_i32_0 = arith.constant 0 : i32
    %c0_i32_1 = arith.constant 0 : i32
    %c0_i32_2 = arith.constant 0 : i32
    return %c0_i32, %c0_i32_0, %c0_i32_1 : i32, i32, i32
  }
  func.func @transform_2(%arg0: i32) -> (i32, i32) {
    %c0_i32 = arith.constant 0 : i32
    %c0_i32_0 = arith.constant 0 : i32
    %c0_i32_1 = arith.constant 0 : i32
    return %c0_i32, %c0_i32_0 : i32, i32
  }
  func.func @transform_3(%arg0: i32) -> (i32, i32, i32, i32) {
    %c0_i32 = arith.constant 0 : i32
    %c0_i32_0 = arith.constant 0 : i32
    %c0_i32_1 = arith.constant 0 : i32
    %c0_i32_2 = arith.constant 0 : i32
    return %arg0, %c0_i32, %c0_i32_0, %c0_i32_1 : i32, i32, i32, i32
  }
}

module attributes {stable_mosaic.version = 11 : i64} {
  func.func @_unit_reduce_kernel(%arg0: i32, %arg1: memref<1x8x8x96xf32, #tpu.memory_space<vmem>>, %arg2: memref<96x32xf32, #tpu.memory_space<vmem>>, %arg3: memref<1x32xf32, #tpu.memory_space<vmem>>, %arg4: memref<9x8xf32, #tpu.memory_space<vmem>>, %arg5: memref<1x8xf32, #tpu.memory_space<vmem>>, %arg6: memref<8x8xf32, #tpu.memory_space<vmem>>, %arg7: memref<1x8xf32, #tpu.memory_space<vmem>>, %arg8: memref<1x8x8x32xf32, #tpu.memory_space<vmem>>, %arg9: memref<1x9x9x32xf32, #tpu.memory_space<vmem>>, %arg10: memref<1x9x9x96xf32, #tpu.memory_space<vmem>>) attributes {dimension_semantics = [#tpu.dimension_semantics<parallel>], iteration_bounds = array<i64: 2>, scalar_prefetch = 0 : i64, scratch_operands = 2 : i64, tpu.core_type = #tpu.core_type<tc>, window_params = [{transform_indices = @transform_0, window_bounds = array<i64: 1, 8, 8, 96>}, {pipeline_mode = #tpu.pipeline_mode<synchronous>, transform_indices = @transform_1, window_bounds = array<i64: 96, 32>}, {pipeline_mode = #tpu.pipeline_mode<synchronous>, transform_indices = @transform_2, window_bounds = array<i64: 1, 32>}, {pipeline_mode = #tpu.pipeline_mode<synchronous>, transform_indices = @transform_3, window_bounds = array<i64: 9, 8>}, {pipeline_mode = #tpu.pipeline_mode<synchronous>, transform_indices = @transform_4, window_bounds = array<i64: 1, 8>}, {pipeline_mode = #tpu.pipeline_mode<synchronous>, transform_indices = @transform_5, window_bounds = array<i64: 8, 8>}, {pipeline_mode = #tpu.pipeline_mode<synchronous>, transform_indices = @transform_6, window_bounds = array<i64: 1, 8>}, {transform_indices = @transform_7, window_bounds = array<i64: 1, 8, 8, 32>}]} {
    %c0 = arith.constant 0 : index
    %c0_0 = arith.constant 0 : index
    %c0_1 = arith.constant 0 : index
    %c0_2 = arith.constant 0 : index
    %0 = vector.load %arg1[%c0, %c0_0, %c0_1, %c0_2] : memref<1x8x8x96xf32, #tpu.memory_space<vmem>>, vector<1x8x8x96xf32>
    %c0_3 = arith.constant 0 : index
    %c0_4 = arith.constant 0 : index
    %1 = vector.load %arg2[%c0_3, %c0_4] : memref<96x32xf32, #tpu.memory_space<vmem>>, vector<96x32xf32>
    "tpu.trace_start"() <{level = 10 : i32, message = "nhwc,cd->nhwd"}> : () -> ()
    %cst = arith.constant dense<0.000000e+00> : vector<1x8x8x32xf32>
    %2 = tpu.matmul %0, %1, %cst {dimension_numbers = #tpu.dot_dimension_numbers<[3], [0], [0, 1, 2], [1], [0, 0, 0, 1, 0, 2, 1, 1], [], []>} : vector<1x8x8x96xf32>, vector<96x32xf32>, vector<1x8x8x32xf32> -> vector<1x8x8x32xf32>
    "tpu.trace_stop"() : () -> ()
    %c0_5 = arith.constant 0 : index
    %c0_6 = arith.constant 0 : index
    %3 = vector.load %arg3[%c0_5, %c0_6] : memref<1x32xf32, #tpu.memory_space<vmem>>, vector<1x32xf32>
    %4 = vector.shape_cast %3 : vector<1x32xf32> to vector<1x1x1x32xf32>
    %5 = vector.broadcast %4 : vector<1x1x1x32xf32> to vector<1x8x8x32xf32>
    %6 = arith.addf %2, %5 : vector<1x8x8x32xf32>
    %cst_7 = arith.constant 0.000000e+00 : f32
    %7 = vector.broadcast %cst_7 : f32 to vector<1x8x8x32xf32>
    %8 = arith.maximumf %6, %7 : vector<1x8x8x32xf32>
    %cst_8 = arith.constant 0.000000e+00 : f32
    %9 = vector.broadcast %cst_8 : f32 to vector<1x9x9x32xf32>
    %c0_9 = arith.constant 0 : index
    %c0_10 = arith.constant 0 : index
    %c0_11 = arith.constant 0 : index
    %c0_12 = arith.constant 0 : index
    %10 = vector.load %arg9[%c0_9, %c0_10, %c0_11, %c0_12] : memref<1x9x9x32xf32, #tpu.memory_space<vmem>>, vector<1x9x9x32xf32>
    tpu.vector_store %arg9[%c0_9, %c0_10, %c0_11, %c0_12], %9 {strides = array<i32>} : memref<1x9x9x32xf32, #tpu.memory_space<vmem>>, vector<1x9x9x32xf32>,
    %c0_13 = arith.constant 0 : index
    %c1 = arith.constant 1 : index
    %c1_14 = arith.constant 1 : index
    %c0_15 = arith.constant 0 : index
    %11 = vector.load %arg9[%c0_13, %c1, %c1_14, %c0_15] : memref<1x9x9x32xf32, #tpu.memory_space<vmem>>, vector<1x8x8x32xf32>
    tpu.vector_store %arg9[%c0_13, %c1, %c1_14, %c0_15], %8 {strides = array<i32>} : memref<1x9x9x32xf32, #tpu.memory_space<vmem>>, vector<1x8x8x32xf32>,
    %cst_16 = arith.constant 0.000000e+00 : f32
    %12 = vector.broadcast %cst_16 : f32 to vector<1x9x9x96xf32>
    %c0_17 = arith.constant 0 : index
    %c0_18 = arith.constant 0 : index
    %c0_19 = arith.constant 0 : index
    %c0_20 = arith.constant 0 : index
    %13 = vector.load %arg10[%c0_17, %c0_18, %c0_19, %c0_20] : memref<1x9x9x96xf32, #tpu.memory_space<vmem>>, vector<1x9x9x96xf32>
    tpu.vector_store %arg10[%c0_17, %c0_18, %c0_19, %c0_20], %12 {strides = array<i32>} : memref<1x9x9x96xf32, #tpu.memory_space<vmem>>, vector<1x9x9x96xf32>,
    %c0_21 = arith.constant 0 : index
    %c1_22 = arith.constant 1 : index
    %c1_23 = arith.constant 1 : index
    %c0_24 = arith.constant 0 : index
    %14 = vector.load %arg10[%c0_21, %c1_22, %c1_23, %c0_24] : memref<1x9x9x96xf32, #tpu.memory_space<vmem>>, vector<1x8x8x96xf32>
    tpu.vector_store %arg10[%c0_21, %c1_22, %c1_23, %c0_24], %0 {strides = array<i32>} : memref<1x9x9x96xf32, #tpu.memory_space<vmem>>, vector<1x8x8x96xf32>,
    %c0_25 = arith.constant 0 : index
    %c0_26 = arith.constant 0 : index
    %c0_27 = arith.constant 0 : index
    %c0_28 = arith.constant 0 : index
    %15 = vector.load %arg9[%c0_25, %c0_26, %c0_27, %c0_28] : memref<1x9x9x32xf32, #tpu.memory_space<vmem>>, vector<1x9x9x32xf32>
    %c0_29 = arith.constant 0 : index
    %c0_30 = arith.constant 0 : index
    %c0_31 = arith.constant 0 : index
    %c0_32 = arith.constant 0 : index
    %16 = vector.load %arg10[%c0_29, %c0_30, %c0_31, %c0_32] : memref<1x9x9x96xf32, #tpu.memory_space<vmem>>, vector<1x9x9x96xf32>
    %17 = vector.extract_strided_slice %15 {offsets = [0, 0, 0, 24], sizes = [1, 8, 8, 8], strides = [1, 1, 1, 1]} : vector<1x9x9x32xf32> to vector<1x8x8x8xf32>
    %c0_33 = arith.constant 0 : index
    %c0_34 = arith.constant 0 : index
    %18 = vector.load %arg4[%c0_33, %c0_34] : memref<9x8xf32, #tpu.memory_space<vmem>>, vector<1x8xf32>
    %19 = vector.shape_cast %18 : vector<1x8xf32> to vector<8xf32>
    %20 = vector.shape_cast %19 : vector<8xf32> to vector<1x1x1x8xf32>
    %21 = vector.broadcast %20 : vector<1x1x1x8xf32> to vector<1x8x8x8xf32>
    %22 = arith.mulf %17, %21 : vector<1x8x8x8xf32>
    %23 = vector.extract_strided_slice %16 {offsets = [0, 0, 0, 72], sizes = [1, 8, 8, 24], strides = [1, 1, 1, 1]} : vector<1x9x9x96xf32> to vector<1x8x8x24xf32>
    %24 = vector.extract_strided_slice %15 {offsets = [0, 0, 1, 16], sizes = [1, 8, 8, 8], strides = [1, 1, 1, 1]} : vector<1x9x9x32xf32> to vector<1x8x8x8xf32>
    %c1_35 = arith.constant 1 : index
    %c0_36 = arith.constant 0 : index
    %25 = vector.load %arg4[%c1_35, %c0_36] : memref<9x8xf32, #tpu.memory_space<vmem>>, vector<1x8xf32>
    %26 = vector.shape_cast %25 : vector<1x8xf32> to vector<8xf32>
    %27 = vector.shape_cast %26 : vector<8xf32> to vector<1x1x1x8xf32>
    %28 = vector.broadcast %27 : vector<1x1x1x8xf32> to vector<1x8x8x8xf32>
    %29 = arith.mulf %24, %28 : vector<1x8x8x8xf32>
    %30 = vector.extract_strided_slice %16 {offsets = [0, 0, 1, 48], sizes = [1, 8, 8, 24], strides = [1, 1, 1, 1]} : vector<1x9x9x96xf32> to vector<1x8x8x24xf32>
    %31 = arith.addf %22, %29 : vector<1x8x8x8xf32>
    %32 = arith.addf %23, %30 : vector<1x8x8x24xf32>
    %33 = vector.extract_strided_slice %15 {offsets = [0, 0, 1, 24], sizes = [1, 8, 8, 8], strides = [1, 1, 1, 1]} : vector<1x9x9x32xf32> to vector<1x8x8x8xf32>
    %c2 = arith.constant 2 : index
    %c0_37 = arith.constant 0 : index
    %34 = vector.load %arg4[%c2, %c0_37] : memref<9x8xf32, #tpu.memory_space<vmem>>, vector<1x8xf32>
    %35 = vector.shape_cast %34 : vector<1x8xf32> to vector<8xf32>
    %36 = vector.shape_cast %35 : vector<8xf32> to vector<1x1x1x8xf32>
    %37 = vector.broadcast %36 : vector<1x1x1x8xf32> to vector<1x8x8x8xf32>
    %38 = arith.mulf %33, %37 : vector<1x8x8x8xf32>
    %39 = vector.extract_strided_slice %16 {offsets = [0, 0, 1, 72], sizes = [1, 8, 8, 24], strides = [1, 1, 1, 1]} : vector<1x9x9x96xf32> to vector<1x8x8x24xf32>
    %40 = arith.addf %31, %38 : vector<1x8x8x8xf32>
    %41 = arith.addf %32, %39 : vector<1x8x8x24xf32>
    %42 = vector.extract_strided_slice %15 {offsets = [0, 1, 0, 8], sizes = [1, 8, 8, 8], strides = [1, 1, 1, 1]} : vector<1x9x9x32xf32> to vector<1x8x8x8xf32>
    %c3 = arith.constant 3 : index
    %c0_38 = arith.constant 0 : index
    %43 = vector.load %arg4[%c3, %c0_38] : memref<9x8xf32, #tpu.memory_space<vmem>>, vector<1x8xf32>
    %44 = vector.shape_cast %43 : vector<1x8xf32> to vector<8xf32>
    %45 = vector.shape_cast %44 : vector<8xf32> to vector<1x1x1x8xf32>
    %46 = vector.broadcast %45 : vector<1x1x1x8xf32> to vector<1x8x8x8xf32>
    %47 = arith.mulf %42, %46 : vector<1x8x8x8xf32>
    %48 = vector.extract_strided_slice %16 {offsets = [0, 1, 0, 24], sizes = [1, 8, 8, 24], strides = [1, 1, 1, 1]} : vector<1x9x9x96xf32> to vector<1x8x8x24xf32>
    %49 = arith.addf %40, %47 : vector<1x8x8x8xf32>
    %50 = arith.addf %41, %48 : vector<1x8x8x24xf32>
    %51 = vector.extract_strided_slice %15 {offsets = [0, 1, 1, 0], sizes = [1, 8, 8, 8], strides = [1, 1, 1, 1]} : vector<1x9x9x32xf32> to vector<1x8x8x8xf32>
    %c4 = arith.constant 4 : index
    %c0_39 = arith.constant 0 : index
    %52 = vector.load %arg4[%c4, %c0_39] : memref<9x8xf32, #tpu.memory_space<vmem>>, vector<1x8xf32>
    %53 = vector.shape_cast %52 : vector<1x8xf32> to vector<8xf32>
    %54 = vector.shape_cast %53 : vector<8xf32> to vector<1x1x1x8xf32>
    %55 = vector.broadcast %54 : vector<1x1x1x8xf32> to vector<1x8x8x8xf32>
    %56 = arith.mulf %51, %55 : vector<1x8x8x8xf32>
    %57 = vector.extract_strided_slice %16 {offsets = [0, 1, 1, 0], sizes = [1, 8, 8, 24], strides = [1, 1, 1, 1]} : vector<1x9x9x96xf32> to vector<1x8x8x24xf32>
    %58 = arith.addf %49, %56 : vector<1x8x8x8xf32>
    %59 = arith.addf %50, %57 : vector<1x8x8x24xf32>
    %60 = vector.extract_strided_slice %15 {offsets = [0, 1, 1, 8], sizes = [1, 8, 8, 8], strides = [1, 1, 1, 1]} : vector<1x9x9x32xf32> to vector<1x8x8x8xf32>
    %c5 = arith.constant 5 : index
    %c0_40 = arith.constant 0 : index
    %61 = vector.load %arg4[%c5, %c0_40] : memref<9x8xf32, #tpu.memory_space<vmem>>, vector<1x8xf32>
    %62 = vector.shape_cast %61 : vector<1x8xf32> to vector<8xf32>
    %63 = vector.shape_cast %62 : vector<8xf32> to vector<1x1x1x8xf32>
    %64 = vector.broadcast %63 : vector<1x1x1x8xf32> to vector<1x8x8x8xf32>
    %65 = arith.mulf %60, %64 : vector<1x8x8x8xf32>
    %66 = vector.extract_strided_slice %16 {offsets = [0, 1, 1, 24], sizes = [1, 8, 8, 24], strides = [1, 1, 1, 1]} : vector<1x9x9x96xf32> to vector<1x8x8x24xf32>
    %67 = arith.addf %58, %65 : vector<1x8x8x8xf32>
    %68 = arith.addf %59, %66 : vector<1x8x8x24xf32>
    %69 = vector.extract_strided_slice %15 {offsets = [0, 1, 0, 24], sizes = [1, 8, 8, 8], strides = [1, 1, 1, 1]} : vector<1x9x9x32xf32> to vector<1x8x8x8xf32>
    %c6 = arith.constant 6 : index
    %c0_41 = arith.constant 0 : index
    %70 = vector.load %arg4[%c6, %c0_41] : memref<9x8xf32, #tpu.memory_space<vmem>>, vector<1x8xf32>
    %71 = vector.shape_cast %70 : vector<1x8xf32> to vector<8xf32>
    %72 = vector.shape_cast %71 : vector<8xf32> to vector<1x1x1x8xf32>
    %73 = vector.broadcast %72 : vector<1x1x1x8xf32> to vector<1x8x8x8xf32>
    %74 = arith.mulf %69, %73 : vector<1x8x8x8xf32>
    %75 = vector.extract_strided_slice %16 {offsets = [0, 1, 0, 72], sizes = [1, 8, 8, 24], strides = [1, 1, 1, 1]} : vector<1x9x9x96xf32> to vector<1x8x8x24xf32>
    %76 = arith.addf %67, %74 : vector<1x8x8x8xf32>
    %77 = arith.addf %68, %75 : vector<1x8x8x24xf32>
    %78 = vector.extract_strided_slice %15 {offsets = [0, 1, 1, 16], sizes = [1, 8, 8, 8], strides = [1, 1, 1, 1]} : vector<1x9x9x32xf32> to vector<1x8x8x8xf32>
    %c7 = arith.constant 7 : index
    %c0_42 = arith.constant 0 : index
    %79 = vector.load %arg4[%c7, %c0_42] : memref<9x8xf32, #tpu.memory_space<vmem>>, vector<1x8xf32>
    %80 = vector.shape_cast %79 : vector<1x8xf32> to vector<8xf32>
    %81 = vector.shape_cast %80 : vector<8xf32> to vector<1x1x1x8xf32>
    %82 = vector.broadcast %81 : vector<1x1x1x8xf32> to vector<1x8x8x8xf32>
    %83 = arith.mulf %78, %82 : vector<1x8x8x8xf32>
    %84 = vector.extract_strided_slice %16 {offsets = [0, 1, 1, 48], sizes = [1, 8, 8, 24], strides = [1, 1, 1, 1]} : vector<1x9x9x96xf32> to vector<1x8x8x24xf32>
    %85 = arith.addf %76, %83 : vector<1x8x8x8xf32>
    %86 = arith.addf %77, %84 : vector<1x8x8x24xf32>
    %87 = vector.extract_strided_slice %15 {offsets = [0, 1, 1, 24], sizes = [1, 8, 8, 8], strides = [1, 1, 1, 1]} : vector<1x9x9x32xf32> to vector<1x8x8x8xf32>
    %c8 = arith.constant 8 : index
    %c0_43 = arith.constant 0 : index
    %88 = vector.load %arg4[%c8, %c0_43] : memref<9x8xf32, #tpu.memory_space<vmem>>, vector<1x8xf32>
    %89 = vector.shape_cast %88 : vector<1x8xf32> to vector<8xf32>
    %90 = vector.shape_cast %89 : vector<8xf32> to vector<1x1x1x8xf32>
    %91 = vector.broadcast %90 : vector<1x1x1x8xf32> to vector<1x8x8x8xf32>
    %92 = arith.mulf %87, %91 : vector<1x8x8x8xf32>
    %93 = vector.extract_strided_slice %16 {offsets = [0, 1, 1, 72], sizes = [1, 8, 8, 24], strides = [1, 1, 1, 1]} : vector<1x9x9x96xf32> to vector<1x8x8x24xf32>
    %94 = arith.addf %85, %92 : vector<1x8x8x8xf32>
    %95 = arith.addf %86, %93 : vector<1x8x8x24xf32>
    %c0_44 = arith.constant 0 : index
    %c0_45 = arith.constant 0 : index
    %96 = vector.load %arg5[%c0_44, %c0_45] : memref<1x8xf32, #tpu.memory_space<vmem>>, vector<1x8xf32>
    %97 = vector.shape_cast %96 : vector<1x8xf32> to vector<1x1x1x8xf32>
    %98 = vector.broadcast %97 : vector<1x1x1x8xf32> to vector<1x8x8x8xf32>
    %99 = arith.addf %94, %98 : vector<1x8x8x8xf32>
    %cst_46 = arith.constant 0.111111112 : f32
    %100 = vector.broadcast %cst_46 : f32 to vector<1x8x8x24xf32>
    %101 = arith.mulf %95, %100 : vector<1x8x8x24xf32>
    %c0_47 = arith.constant 0 : index
    %c0_48 = arith.constant 0 : index
    %102 = vector.load %arg6[%c0_47, %c0_48] : memref<8x8xf32, #tpu.memory_space<vmem>>, vector<8x8xf32>
    "tpu.trace_start"() <{level = 10 : i32, message = "nhwd,de->nhwe"}> : () -> ()
    %cst_49 = arith.constant dense<0.000000e+00> : vector<1x8x8x8xf32>
    %103 = tpu.matmul %99, %102, %cst_49 {dimension_numbers = #tpu.dot_dimension_numbers<[3], [0], [0, 1, 2], [1], [0, 0, 0, 1, 0, 2, 1, 1], [], []>} : vector<1x8x8x8xf32>, vector<8x8xf32>, vector<1x8x8x8xf32> -> vector<1x8x8x8xf32>
    "tpu.trace_stop"() : () -> ()
    %c0_50 = arith.constant 0 : index
    %c0_51 = arith.constant 0 : index
    %104 = vector.load %arg7[%c0_50, %c0_51] : memref<1x8xf32, #tpu.memory_space<vmem>>, vector<1x8xf32>
    %105 = vector.shape_cast %104 : vector<1x8xf32> to vector<1x1x1x8xf32>
    %106 = vector.broadcast %105 : vector<1x1x1x8xf32> to vector<1x8x8x8xf32>
    %107 = arith.addf %103, %106 : vector<1x8x8x8xf32>
    %108 = tpu.concatenate %107, %101 in 3 : vector<1x8x8x8xf32>, vector<1x8x8x24xf32> -> vector<1x8x8x32xf32>
    %cst_52 = arith.constant 0.000000e+00 : f32
    %109 = vector.broadcast %cst_52 : f32 to vector<1x8x8x32xf32>
    %110 = arith.maximumf %108, %109 : vector<1x8x8x32xf32>
    %c0_53 = arith.constant 0 : index
    %c0_54 = arith.constant 0 : index
    %c0_55 = arith.constant 0 : index
    %c0_56 = arith.constant 0 : index
    %111 = vector.load %arg8[%c0_53, %c0_54, %c0_55, %c0_56] : memref<1x8x8x32xf32, #tpu.memory_space<vmem>>, vector<1x8x8x32xf32>
    tpu.vector_store %arg8[%c0_53, %c0_54, %c0_55, %c0_56], %110 {strides = array<i32>} : memref<1x8x8x32xf32, #tpu.memory_space<vmem>>, vector<1x8x8x32xf32>,
    return
  }
  func.func @transform_0(%arg0: i32) -> (i32, i32, i32, i32) {
    %c0_i32 = arith.constant 0 : i32
    %c0_i32_0 = arith.constant 0 : i32
    %c0_i32_1 = arith.constant 0 : i32
    %c0_i32_2 = arith.constant 0 : i32
    return %arg0, %c0_i32, %c0_i32_0, %c0_i32_1 : i32, i32, i32, i32
  }
  func.func @transform_1(%arg0: i32) -> (i32, i32) {
    %c0_i32 = arith.constant 0 : i32
    %c0_i32_0 = arith.constant 0 : i32
    %c0_i32_1 = arith.constant 0 : i32
    return %c0_i32, %c0_i32_0 : i32, i32
  }
  func.func @transform_2(%arg0: i32) -> (i32, i32) {
    %c0_i32 = arith.constant 0 : i32
    %c0_i32_0 = arith.constant 0 : i32
    %c0_i32_1 = arith.constant 0 : i32
    return %c0_i32, %c0_i32_0 : i32, i32
  }
  func.func @transform_3(%arg0: i32) -> (i32, i32) {
    %c0_i32 = arith.constant 0 : i32
    %c0_i32_0 = arith.constant 0 : i32
    %c0_i32_1 = arith.constant 0 : i32
    return %c0_i32, %c0_i32_0 : i32, i32
  }
  func.func @transform_4(%arg0: i32) -> (i32, i32) {
    %c0_i32 = arith.constant 0 : i32
    %c0_i32_0 = arith.constant 0 : i32
    %c0_i32_1 = arith.constant 0 : i32
    return %c0_i32, %c0_i32_0 : i32, i32
  }
  func.func @transform_5(%arg0: i32) -> (i32, i32) {
    %c0_i32 = arith.constant 0 : i32
    %c0_i32_0 = arith.constant 0 : i32
    %c0_i32_1 = arith.constant 0 : i32
    return %c0_i32, %c0_i32_0 : i32, i32
  }
  func.func @transform_6(%arg0: i32) -> (i32, i32) {
    %c0_i32 = arith.constant 0 : i32
    %c0_i32_0 = arith.constant 0 : i32
    %c0_i32_1 = arith.constant 0 : i32
    return %c0_i32, %c0_i32_0 : i32, i32
  }
  func.func @transform_7(%arg0: i32) -> (i32, i32, i32, i32) {
    %c0_i32 = arith.constant 0 : i32
    %c0_i32_0 = arith.constant 0 : i32
    %c0_i32_1 = arith.constant 0 : i32
    %c0_i32_2 = arith.constant 0 : i32
    return %arg0, %c0_i32, %c0_i32_0, %c0_i32_1 : i32, i32, i32, i32
  }
}

module attributes {stable_mosaic.version = 11 : i64} {
  func.func @_unit_s1_kernel(%arg0: i32, %arg1: memref<1x8x8x32xf32, #tpu.memory_space<vmem>>, %arg2: memref<32x8xf32, #tpu.memory_space<vmem>>, %arg3: memref<1x8xf32, #tpu.memory_space<vmem>>, %arg4: memref<9x8xf32, #tpu.memory_space<vmem>>, %arg5: memref<1x8xf32, #tpu.memory_space<vmem>>, %arg6: memref<8x32xf32, #tpu.memory_space<vmem>>, %arg7: memref<1x32xf32, #tpu.memory_space<vmem>>, %arg8: memref<1x8x8x32xf32, #tpu.memory_space<vmem>>, %arg9: memref<1x10x10x8xf32, #tpu.memory_space<vmem>>) attributes {dimension_semantics = [#tpu.dimension_semantics<parallel>], iteration_bounds = array<i64: 2>, scalar_prefetch = 0 : i64, scratch_operands = 1 : i64, tpu.core_type = #tpu.core_type<tc>, window_params = [{transform_indices = @transform_0, window_bounds = array<i64: 1, 8, 8, 32>}, {pipeline_mode = #tpu.pipeline_mode<synchronous>, transform_indices = @transform_1, window_bounds = array<i64: 32, 8>}, {pipeline_mode = #tpu.pipeline_mode<synchronous>, transform_indices = @transform_2, window_bounds = array<i64: 1, 8>}, {pipeline_mode = #tpu.pipeline_mode<synchronous>, transform_indices = @transform_3, window_bounds = array<i64: 9, 8>}, {pipeline_mode = #tpu.pipeline_mode<synchronous>, transform_indices = @transform_4, window_bounds = array<i64: 1, 8>}, {pipeline_mode = #tpu.pipeline_mode<synchronous>, transform_indices = @transform_5, window_bounds = array<i64: 8, 32>}, {pipeline_mode = #tpu.pipeline_mode<synchronous>, transform_indices = @transform_6, window_bounds = array<i64: 1, 32>}, {transform_indices = @transform_7, window_bounds = array<i64: 1, 8, 8, 32>}]} {
    %c0 = arith.constant 0 : index
    %c0_0 = arith.constant 0 : index
    %c0_1 = arith.constant 0 : index
    %c0_2 = arith.constant 0 : index
    %0 = vector.load %arg1[%c0, %c0_0, %c0_1, %c0_2] : memref<1x8x8x32xf32, #tpu.memory_space<vmem>>, vector<1x8x8x32xf32>
    %c0_3 = arith.constant 0 : index
    %c0_4 = arith.constant 0 : index
    %1 = vector.load %arg2[%c0_3, %c0_4] : memref<32x8xf32, #tpu.memory_space<vmem>>, vector<32x8xf32>
    "tpu.trace_start"() <{level = 10 : i32, message = "nhwc,cd->nhwd"}> : () -> ()
    %cst = arith.constant dense<0.000000e+00> : vector<1x8x8x8xf32>
    %2 = tpu.matmul %0, %1, %cst {dimension_numbers = #tpu.dot_dimension_numbers<[3], [0], [0, 1, 2], [1], [0, 0, 0, 1, 0, 2, 1, 1], [], []>} : vector<1x8x8x32xf32>, vector<32x8xf32>, vector<1x8x8x8xf32> -> vector<1x8x8x8xf32>
    "tpu.trace_stop"() : () -> ()
    %c0_5 = arith.constant 0 : index
    %c0_6 = arith.constant 0 : index
    %3 = vector.load %arg3[%c0_5, %c0_6] : memref<1x8xf32, #tpu.memory_space<vmem>>, vector<1x8xf32>
    %4 = vector.shape_cast %3 : vector<1x8xf32> to vector<1x1x1x8xf32>
    %5 = vector.broadcast %4 : vector<1x1x1x8xf32> to vector<1x8x8x8xf32>
    %6 = arith.addf %2, %5 : vector<1x8x8x8xf32>
    %cst_7 = arith.constant 0.000000e+00 : f32
    %7 = vector.broadcast %cst_7 : f32 to vector<1x8x8x8xf32>
    %8 = arith.maximumf %6, %7 : vector<1x8x8x8xf32>
    %cst_8 = arith.constant 0.000000e+00 : f32
    %9 = vector.broadcast %cst_8 : f32 to vector<1x10x10x8xf32>
    %c0_9 = arith.constant 0 : index
    %c0_10 = arith.constant 0 : index
    %c0_11 = arith.constant 0 : index
    %c0_12 = arith.constant 0 : index
    %10 = vector.load %arg9[%c0_9, %c0_10, %c0_11, %c0_12] : memref<1x10x10x8xf32, #tpu.memory_space<vmem>>, vector<1x10x10x8xf32>
    tpu.vector_store %arg9[%c0_9, %c0_10, %c0_11, %c0_12], %9 {strides = array<i32>} : memref<1x10x10x8xf32, #tpu.memory_space<vmem>>, vector<1x10x10x8xf32>,
    %c0_13 = arith.constant 0 : index
    %c1 = arith.constant 1 : index
    %c1_14 = arith.constant 1 : index
    %c0_15 = arith.constant 0 : index
    %11 = vector.load %arg9[%c0_13, %c1, %c1_14, %c0_15] : memref<1x10x10x8xf32, #tpu.memory_space<vmem>>, vector<1x8x8x8xf32>
    tpu.vector_store %arg9[%c0_13, %c1, %c1_14, %c0_15], %8 {strides = array<i32>} : memref<1x10x10x8xf32, #tpu.memory_space<vmem>>, vector<1x8x8x8xf32>,
    %c0_16 = arith.constant 0 : index
    %c0_17 = arith.constant 0 : index
    %c0_18 = arith.constant 0 : index
    %c0_19 = arith.constant 0 : index
    %12 = vector.load %arg9[%c0_16, %c0_17, %c0_18, %c0_19] : memref<1x10x10x8xf32, #tpu.memory_space<vmem>>, vector<1x8x8x8xf32>
    %c0_20 = arith.constant 0 : index
    %c0_21 = arith.constant 0 : index
    %13 = vector.load %arg4[%c0_20, %c0_21] : memref<9x8xf32, #tpu.memory_space<vmem>>, vector<1x8xf32>
    %14 = vector.shape_cast %13 : vector<1x8xf32> to vector<8xf32>
    %15 = vector.shape_cast %14 : vector<8xf32> to vector<1x1x1x8xf32>
    %16 = vector.broadcast %15 : vector<1x1x1x8xf32> to vector<1x8x8x8xf32>
    %17 = arith.mulf %12, %16 : vector<1x8x8x8xf32>
    %c0_22 = arith.constant 0 : index
    %c0_23 = arith.constant 0 : index
    %c1_24 = arith.constant 1 : index
    %c0_25 = arith.constant 0 : index
    %18 = vector.load %arg9[%c0_22, %c0_23, %c1_24, %c0_25] : memref<1x10x10x8xf32, #tpu.memory_space<vmem>>, vector<1x8x8x8xf32>
    %c1_26 = arith.constant 1 : index
    %c0_27 = arith.constant 0 : index
    %19 = vector.load %arg4[%c1_26, %c0_27] : memref<9x8xf32, #tpu.memory_space<vmem>>, vector<1x8xf32>
    %20 = vector.shape_cast %19 : vector<1x8xf32> to vector<8xf32>
    %21 = vector.shape_cast %20 : vector<8xf32> to vector<1x1x1x8xf32>
    %22 = vector.broadcast %21 : vector<1x1x1x8xf32> to vector<1x8x8x8xf32>
    %23 = arith.mulf %18, %22 : vector<1x8x8x8xf32>
    %24 = arith.addf %17, %23 : vector<1x8x8x8xf32>
    %c0_28 = arith.constant 0 : index
    %c0_29 = arith.constant 0 : index
    %c2 = arith.constant 2 : index
    %c0_30 = arith.constant 0 : index
    %25 = vector.load %arg9[%c0_28, %c0_29, %c2, %c0_30] : memref<1x10x10x8xf32, #tpu.memory_space<vmem>>, vector<1x8x8x8xf32>
    %c2_31 = arith.constant 2 : index
    %c0_32 = arith.constant 0 : index
    %26 = vector.load %arg4[%c2_31, %c0_32] : memref<9x8xf32, #tpu.memory_space<vmem>>, vector<1x8xf32>
    %27 = vector.shape_cast %26 : vector<1x8xf32> to vector<8xf32>
    %28 = vector.shape_cast %27 : vector<8xf32> to vector<1x1x1x8xf32>
    %29 = vector.broadcast %28 : vector<1x1x1x8xf32> to vector<1x8x8x8xf32>
    %30 = arith.mulf %25, %29 : vector<1x8x8x8xf32>
    %31 = arith.addf %24, %30 : vector<1x8x8x8xf32>
    %c0_33 = arith.constant 0 : index
    %c1_34 = arith.constant 1 : index
    %c0_35 = arith.constant 0 : index
    %c0_36 = arith.constant 0 : index
    %32 = vector.load %arg9[%c0_33, %c1_34, %c0_35, %c0_36] : memref<1x10x10x8xf32, #tpu.memory_space<vmem>>, vector<1x8x8x8xf32>
    %c3 = arith.constant 3 : index
    %c0_37 = arith.constant 0 : index
    %33 = vector.load %arg4[%c3, %c0_37] : memref<9x8xf32, #tpu.memory_space<vmem>>, vector<1x8xf32>
    %34 = vector.shape_cast %33 : vector<1x8xf32> to vector<8xf32>
    %35 = vector.shape_cast %34 : vector<8xf32> to vector<1x1x1x8xf32>
    %36 = vector.broadcast %35 : vector<1x1x1x8xf32> to vector<1x8x8x8xf32>
    %37 = arith.mulf %32, %36 : vector<1x8x8x8xf32>
    %38 = arith.addf %31, %37 : vector<1x8x8x8xf32>
    %c0_38 = arith.constant 0 : index
    %c1_39 = arith.constant 1 : index
    %c1_40 = arith.constant 1 : index
    %c0_41 = arith.constant 0 : index
    %39 = vector.load %arg9[%c0_38, %c1_39, %c1_40, %c0_41] : memref<1x10x10x8xf32, #tpu.memory_space<vmem>>, vector<1x8x8x8xf32>
    %c4 = arith.constant 4 : index
    %c0_42 = arith.constant 0 : index
    %40 = vector.load %arg4[%c4, %c0_42] : memref<9x8xf32, #tpu.memory_space<vmem>>, vector<1x8xf32>
    %41 = vector.shape_cast %40 : vector<1x8xf32> to vector<8xf32>
    %42 = vector.shape_cast %41 : vector<8xf32> to vector<1x1x1x8xf32>
    %43 = vector.broadcast %42 : vector<1x1x1x8xf32> to vector<1x8x8x8xf32>
    %44 = arith.mulf %39, %43 : vector<1x8x8x8xf32>
    %45 = arith.addf %38, %44 : vector<1x8x8x8xf32>
    %c0_43 = arith.constant 0 : index
    %c1_44 = arith.constant 1 : index
    %c2_45 = arith.constant 2 : index
    %c0_46 = arith.constant 0 : index
    %46 = vector.load %arg9[%c0_43, %c1_44, %c2_45, %c0_46] : memref<1x10x10x8xf32, #tpu.memory_space<vmem>>, vector<1x8x8x8xf32>
    %c5 = arith.constant 5 : index
    %c0_47 = arith.constant 0 : index
    %47 = vector.load %arg4[%c5, %c0_47] : memref<9x8xf32, #tpu.memory_space<vmem>>, vector<1x8xf32>
    %48 = vector.shape_cast %47 : vector<1x8xf32> to vector<8xf32>
    %49 = vector.shape_cast %48 : vector<8xf32> to vector<1x1x1x8xf32>
    %50 = vector.broadcast %49 : vector<1x1x1x8xf32> to vector<1x8x8x8xf32>
    %51 = arith.mulf %46, %50 : vector<1x8x8x8xf32>
    %52 = arith.addf %45, %51 : vector<1x8x8x8xf32>
    %c0_48 = arith.constant 0 : index
    %c2_49 = arith.constant 2 : index
    %c0_50 = arith.constant 0 : index
    %c0_51 = arith.constant 0 : index
    %53 = vector.load %arg9[%c0_48, %c2_49, %c0_50, %c0_51] : memref<1x10x10x8xf32, #tpu.memory_space<vmem>>, vector<1x8x8x8xf32>
    %c6 = arith.constant 6 : index
    %c0_52 = arith.constant 0 : index
    %54 = vector.load %arg4[%c6, %c0_52] : memref<9x8xf32, #tpu.memory_space<vmem>>, vector<1x8xf32>
    %55 = vector.shape_cast %54 : vector<1x8xf32> to vector<8xf32>
    %56 = vector.shape_cast %55 : vector<8xf32> to vector<1x1x1x8xf32>
    %57 = vector.broadcast %56 : vector<1x1x1x8xf32> to vector<1x8x8x8xf32>
    %58 = arith.mulf %53, %57 : vector<1x8x8x8xf32>
    %59 = arith.addf %52, %58 : vector<1x8x8x8xf32>
    %c0_53 = arith.constant 0 : index
    %c2_54 = arith.constant 2 : index
    %c1_55 = arith.constant 1 : index
    %c0_56 = arith.constant 0 : index
    %60 = vector.load %arg9[%c0_53, %c2_54, %c1_55, %c0_56] : memref<1x10x10x8xf32, #tpu.memory_space<vmem>>, vector<1x8x8x8xf32>
    %c7 = arith.constant 7 : index
    %c0_57 = arith.constant 0 : index
    %61 = vector.load %arg4[%c7, %c0_57] : memref<9x8xf32, #tpu.memory_space<vmem>>, vector<1x8xf32>
    %62 = vector.shape_cast %61 : vector<1x8xf32> to vector<8xf32>
    %63 = vector.shape_cast %62 : vector<8xf32> to vector<1x1x1x8xf32>
    %64 = vector.broadcast %63 : vector<1x1x1x8xf32> to vector<1x8x8x8xf32>
    %65 = arith.mulf %60, %64 : vector<1x8x8x8xf32>
    %66 = arith.addf %59, %65 : vector<1x8x8x8xf32>
    %c0_58 = arith.constant 0 : index
    %c2_59 = arith.constant 2 : index
    %c2_60 = arith.constant 2 : index
    %c0_61 = arith.constant 0 : index
    %67 = vector.load %arg9[%c0_58, %c2_59, %c2_60, %c0_61] : memref<1x10x10x8xf32, #tpu.memory_space<vmem>>, vector<1x8x8x8xf32>
    %c8 = arith.constant 8 : index
    %c0_62 = arith.constant 0 : index
    %68 = vector.load %arg4[%c8, %c0_62] : memref<9x8xf32, #tpu.memory_space<vmem>>, vector<1x8xf32>
    %69 = vector.shape_cast %68 : vector<1x8xf32> to vector<8xf32>
    %70 = vector.shape_cast %69 : vector<8xf32> to vector<1x1x1x8xf32>
    %71 = vector.broadcast %70 : vector<1x1x1x8xf32> to vector<1x8x8x8xf32>
    %72 = arith.mulf %67, %71 : vector<1x8x8x8xf32>
    %73 = arith.addf %66, %72 : vector<1x8x8x8xf32>
    %c0_63 = arith.constant 0 : index
    %c0_64 = arith.constant 0 : index
    %74 = vector.load %arg5[%c0_63, %c0_64] : memref<1x8xf32, #tpu.memory_space<vmem>>, vector<1x8xf32>
    %75 = vector.shape_cast %74 : vector<1x8xf32> to vector<1x1x1x8xf32>
    %76 = vector.broadcast %75 : vector<1x1x1x8xf32> to vector<1x8x8x8xf32>
    %77 = arith.addf %73, %76 : vector<1x8x8x8xf32>
    %c0_65 = arith.constant 0 : index
    %c0_66 = arith.constant 0 : index
    %78 = vector.load %arg6[%c0_65, %c0_66] : memref<8x32xf32, #tpu.memory_space<vmem>>, vector<8x32xf32>
    "tpu.trace_start"() <{level = 10 : i32, message = "nhwd,de->nhwe"}> : () -> ()
    %cst_67 = arith.constant dense<0.000000e+00> : vector<1x8x8x32xf32>
    %79 = tpu.matmul %77, %78, %cst_67 {dimension_numbers = #tpu.dot_dimension_numbers<[3], [0], [0, 1, 2], [1], [0, 0, 0, 1, 0, 2, 1, 1], [], []>} : vector<1x8x8x8xf32>, vector<8x32xf32>, vector<1x8x8x32xf32> -> vector<1x8x8x32xf32>
    "tpu.trace_stop"() : () -> ()
    %c0_68 = arith.constant 0 : index
    %c0_69 = arith.constant 0 : index
    %80 = vector.load %arg7[%c0_68, %c0_69] : memref<1x32xf32, #tpu.memory_space<vmem>>, vector<1x32xf32>
    %81 = vector.shape_cast %80 : vector<1x32xf32> to vector<1x1x1x32xf32>
    %82 = vector.broadcast %81 : vector<1x1x1x32xf32> to vector<1x8x8x32xf32>
    %83 = arith.addf %79, %82 : vector<1x8x8x32xf32>
    %84 = arith.addf %83, %0 : vector<1x8x8x32xf32>
    %cst_70 = arith.constant 0.000000e+00 : f32
    %85 = vector.broadcast %cst_70 : f32 to vector<1x8x8x32xf32>
    %86 = arith.maximumf %84, %85 : vector<1x8x8x32xf32>
    %c0_71 = arith.constant 0 : index
    %c0_72 = arith.constant 0 : index
    %c0_73 = arith.constant 0 : index
    %c0_74 = arith.constant 0 : index
    %87 = vector.load %arg8[%c0_71, %c0_72, %c0_73, %c0_74] : memref<1x8x8x32xf32, #tpu.memory_space<vmem>>, vector<1x8x8x32xf32>
    tpu.vector_store %arg8[%c0_71, %c0_72, %c0_73, %c0_74], %86 {strides = array<i32>} : memref<1x8x8x32xf32, #tpu.memory_space<vmem>>, vector<1x8x8x32xf32>,
    return
  }
  func.func @transform_0(%arg0: i32) -> (i32, i32, i32, i32) {
    %c0_i32 = arith.constant 0 : i32
    %c0_i32_0 = arith.constant 0 : i32
    %c0_i32_1 = arith.constant 0 : i32
    %c0_i32_2 = arith.constant 0 : i32
    return %arg0, %c0_i32, %c0_i32_0, %c0_i32_1 : i32, i32, i32, i32
  }
  func.func @transform_1(%arg0: i32) -> (i32, i32) {
    %c0_i32 = arith.constant 0 : i32
    %c0_i32_0 = arith.constant 0 : i32
    %c0_i32_1 = arith.constant 0 : i32
    return %c0_i32, %c0_i32_0 : i32, i32
  }
  func.func @transform_2(%arg0: i32) -> (i32, i32) {
    %c0_i32 = arith.constant 0 : i32
    %c0_i32_0 = arith.constant 0 : i32
    %c0_i32_1 = arith.constant 0 : i32
    return %c0_i32, %c0_i32_0 : i32, i32
  }
  func.func @transform_3(%arg0: i32) -> (i32, i32) {
    %c0_i32 = arith.constant 0 : i32
    %c0_i32_0 = arith.constant 0 : i32
    %c0_i32_1 = arith.constant 0 : i32
    return %c0_i32, %c0_i32_0 : i32, i32
  }
  func.func @transform_4(%arg0: i32) -> (i32, i32) {
    %c0_i32 = arith.constant 0 : i32
    %c0_i32_0 = arith.constant 0 : i32
    %c0_i32_1 = arith.constant 0 : i32
    return %c0_i32, %c0_i32_0 : i32, i32
  }
  func.func @transform_5(%arg0: i32) -> (i32, i32) {
    %c0_i32 = arith.constant 0 : i32
    %c0_i32_0 = arith.constant 0 : i32
    %c0_i32_1 = arith.constant 0 : i32
    return %c0_i32, %c0_i32_0 : i32, i32
  }
  func.func @transform_6(%arg0: i32) -> (i32, i32) {
    %c0_i32 = arith.constant 0 : i32
    %c0_i32_0 = arith.constant 0 : i32
    %c0_i32_1 = arith.constant 0 : i32
    return %c0_i32, %c0_i32_0 : i32, i32
  }
  func.func @transform_7(%arg0: i32) -> (i32, i32, i32, i32) {
    %c0_i32 = arith.constant 0 : i32
    %c0_i32_0 = arith.constant 0 : i32
    %c0_i32_1 = arith.constant 0 : i32
    %c0_i32_2 = arith.constant 0 : i32
    return %arg0, %c0_i32, %c0_i32_0, %c0_i32_1 : i32, i32, i32, i32
  }
}

module attributes {stable_mosaic.version = 11 : i64} {
  func.func @_unit_reduce_kernel(%arg0: i32, %arg1: memref<1x4x4x128xf32, #tpu.memory_space<vmem>>, %arg2: memref<128x64xf32, #tpu.memory_space<vmem>>, %arg3: memref<1x64xf32, #tpu.memory_space<vmem>>, %arg4: memref<9x16xf32, #tpu.memory_space<vmem>>, %arg5: memref<1x16xf32, #tpu.memory_space<vmem>>, %arg6: memref<16x32xf32, #tpu.memory_space<vmem>>, %arg7: memref<1x32xf32, #tpu.memory_space<vmem>>, %arg8: memref<1x4x4x64xf32, #tpu.memory_space<vmem>>, %arg9: memref<1x5x5x64xf32, #tpu.memory_space<vmem>>, %arg10: memref<1x5x5x128xf32, #tpu.memory_space<vmem>>) attributes {dimension_semantics = [#tpu.dimension_semantics<parallel>], iteration_bounds = array<i64: 2>, scalar_prefetch = 0 : i64, scratch_operands = 2 : i64, tpu.core_type = #tpu.core_type<tc>, window_params = [{transform_indices = @transform_0, window_bounds = array<i64: 1, 4, 4, 128>}, {pipeline_mode = #tpu.pipeline_mode<synchronous>, transform_indices = @transform_1, window_bounds = array<i64: 128, 64>}, {pipeline_mode = #tpu.pipeline_mode<synchronous>, transform_indices = @transform_2, window_bounds = array<i64: 1, 64>}, {pipeline_mode = #tpu.pipeline_mode<synchronous>, transform_indices = @transform_3, window_bounds = array<i64: 9, 16>}, {pipeline_mode = #tpu.pipeline_mode<synchronous>, transform_indices = @transform_4, window_bounds = array<i64: 1, 16>}, {pipeline_mode = #tpu.pipeline_mode<synchronous>, transform_indices = @transform_5, window_bounds = array<i64: 16, 32>}, {pipeline_mode = #tpu.pipeline_mode<synchronous>, transform_indices = @transform_6, window_bounds = array<i64: 1, 32>}, {transform_indices = @transform_7, window_bounds = array<i64: 1, 4, 4, 64>}]} {
    %c0 = arith.constant 0 : index
    %c0_0 = arith.constant 0 : index
    %c0_1 = arith.constant 0 : index
    %c0_2 = arith.constant 0 : index
    %0 = vector.load %arg1[%c0, %c0_0, %c0_1, %c0_2] : memref<1x4x4x128xf32, #tpu.memory_space<vmem>>, vector<1x4x4x128xf32>
    %c0_3 = arith.constant 0 : index
    %c0_4 = arith.constant 0 : index
    %1 = vector.load %arg2[%c0_3, %c0_4] : memref<128x64xf32, #tpu.memory_space<vmem>>, vector<128x64xf32>
    "tpu.trace_start"() <{level = 10 : i32, message = "nhwc,cd->nhwd"}> : () -> ()
    %cst = arith.constant dense<0.000000e+00> : vector<1x4x4x64xf32>
    %2 = tpu.matmul %0, %1, %cst {dimension_numbers = #tpu.dot_dimension_numbers<[3], [0], [0, 1, 2], [1], [0, 0, 0, 1, 0, 2, 1, 1], [], []>} : vector<1x4x4x128xf32>, vector<128x64xf32>, vector<1x4x4x64xf32> -> vector<1x4x4x64xf32>
    "tpu.trace_stop"() : () -> ()
    %c0_5 = arith.constant 0 : index
    %c0_6 = arith.constant 0 : index
    %3 = vector.load %arg3[%c0_5, %c0_6] : memref<1x64xf32, #tpu.memory_space<vmem>>, vector<1x64xf32>
    %4 = vector.shape_cast %3 : vector<1x64xf32> to vector<1x1x1x64xf32>
    %5 = vector.broadcast %4 : vector<1x1x1x64xf32> to vector<1x4x4x64xf32>
    %6 = arith.addf %2, %5 : vector<1x4x4x64xf32>
    %cst_7 = arith.constant 0.000000e+00 : f32
    %7 = vector.broadcast %cst_7 : f32 to vector<1x4x4x64xf32>
    %8 = arith.maximumf %6, %7 : vector<1x4x4x64xf32>
    %cst_8 = arith.constant 0.000000e+00 : f32
    %9 = vector.broadcast %cst_8 : f32 to vector<1x5x5x64xf32>
    %c0_9 = arith.constant 0 : index
    %c0_10 = arith.constant 0 : index
    %c0_11 = arith.constant 0 : index
    %c0_12 = arith.constant 0 : index
    %10 = vector.load %arg9[%c0_9, %c0_10, %c0_11, %c0_12] : memref<1x5x5x64xf32, #tpu.memory_space<vmem>>, vector<1x5x5x64xf32>
    tpu.vector_store %arg9[%c0_9, %c0_10, %c0_11, %c0_12], %9 {strides = array<i32>} : memref<1x5x5x64xf32, #tpu.memory_space<vmem>>, vector<1x5x5x64xf32>,
    %c0_13 = arith.constant 0 : index
    %c1 = arith.constant 1 : index
    %c1_14 = arith.constant 1 : index
    %c0_15 = arith.constant 0 : index
    %11 = vector.load %arg9[%c0_13, %c1, %c1_14, %c0_15] : memref<1x5x5x64xf32, #tpu.memory_space<vmem>>, vector<1x4x4x64xf32>
    tpu.vector_store %arg9[%c0_13, %c1, %c1_14, %c0_15], %8 {strides = array<i32>} : memref<1x5x5x64xf32, #tpu.memory_space<vmem>>, vector<1x4x4x64xf32>,
    %cst_16 = arith.constant 0.000000e+00 : f32
    %12 = vector.broadcast %cst_16 : f32 to vector<1x5x5x128xf32>
    %c0_17 = arith.constant 0 : index
    %c0_18 = arith.constant 0 : index
    %c0_19 = arith.constant 0 : index
    %c0_20 = arith.constant 0 : index
    %13 = vector.load %arg10[%c0_17, %c0_18, %c0_19, %c0_20] : memref<1x5x5x128xf32, #tpu.memory_space<vmem>>, vector<1x5x5x128xf32>
    tpu.vector_store %arg10[%c0_17, %c0_18, %c0_19, %c0_20], %12 {strides = array<i32>} : memref<1x5x5x128xf32, #tpu.memory_space<vmem>>, vector<1x5x5x128xf32>,
    %c0_21 = arith.constant 0 : index
    %c1_22 = arith.constant 1 : index
    %c1_23 = arith.constant 1 : index
    %c0_24 = arith.constant 0 : index
    %14 = vector.load %arg10[%c0_21, %c1_22, %c1_23, %c0_24] : memref<1x5x5x128xf32, #tpu.memory_space<vmem>>, vector<1x4x4x128xf32>
    tpu.vector_store %arg10[%c0_21, %c1_22, %c1_23, %c0_24], %0 {strides = array<i32>} : memref<1x5x5x128xf32, #tpu.memory_space<vmem>>, vector<1x4x4x128xf32>,
    %c0_25 = arith.constant 0 : index
    %c0_26 = arith.constant 0 : index
    %c0_27 = arith.constant 0 : index
    %c0_28 = arith.constant 0 : index
    %15 = vector.load %arg9[%c0_25, %c0_26, %c0_27, %c0_28] : memref<1x5x5x64xf32, #tpu.memory_space<vmem>>, vector<1x5x5x64xf32>
    %c0_29 = arith.constant 0 : index
    %c0_30 = arith.constant 0 : index
    %c0_31 = arith.constant 0 : index
    %c0_32 = arith.constant 0 : index
    %16 = vector.load %arg10[%c0_29, %c0_30, %c0_31, %c0_32] : memref<1x5x5x128xf32, #tpu.memory_space<vmem>>, vector<1x5x5x128xf32>
    %17 = vector.extract_strided_slice %15 {offsets = [0, 0, 0, 48], sizes = [1, 4, 4, 16], strides = [1, 1, 1, 1]} : vector<1x5x5x64xf32> to vector<1x4x4x16xf32>
    %c0_33 = arith.constant 0 : index
    %c0_34 = arith.constant 0 : index
    %18 = vector.load %arg4[%c0_33, %c0_34] : memref<9x16xf32, #tpu.memory_space<vmem>>, vector<1x16xf32>
    %19 = vector.shape_cast %18 : vector<1x16xf32> to vector<16xf32>
    %20 = vector.shape_cast %19 : vector<16xf32> to vector<1x1x1x16xf32>
    %21 = vector.broadcast %20 : vector<1x1x1x16xf32> to vector<1x4x4x16xf32>
    %22 = arith.mulf %17, %21 : vector<1x4x4x16xf32>
    %23 = vector.extract_strided_slice %16 {offsets = [0, 0, 0, 96], sizes = [1, 4, 4, 32], strides = [1, 1, 1, 1]} : vector<1x5x5x128xf32> to vector<1x4x4x32xf32>
    %24 = vector.extract_strided_slice %15 {offsets = [0, 0, 1, 32], sizes = [1, 4, 4, 16], strides = [1, 1, 1, 1]} : vector<1x5x5x64xf32> to vector<1x4x4x16xf32>
    %c1_35 = arith.constant 1 : index
    %c0_36 = arith.constant 0 : index
    %25 = vector.load %arg4[%c1_35, %c0_36] : memref<9x16xf32, #tpu.memory_space<vmem>>, vector<1x16xf32>
    %26 = vector.shape_cast %25 : vector<1x16xf32> to vector<16xf32>
    %27 = vector.shape_cast %26 : vector<16xf32> to vector<1x1x1x16xf32>
    %28 = vector.broadcast %27 : vector<1x1x1x16xf32> to vector<1x4x4x16xf32>
    %29 = arith.mulf %24, %28 : vector<1x4x4x16xf32>
    %30 = vector.extract_strided_slice %16 {offsets = [0, 0, 1, 64], sizes = [1, 4, 4, 32], strides = [1, 1, 1, 1]} : vector<1x5x5x128xf32> to vector<1x4x4x32xf32>
    %31 = arith.addf %22, %29 : vector<1x4x4x16xf32>
    %32 = arith.addf %23, %30 : vector<1x4x4x32xf32>
    %33 = vector.extract_strided_slice %15 {offsets = [0, 0, 1, 48], sizes = [1, 4, 4, 16], strides = [1, 1, 1, 1]} : vector<1x5x5x64xf32> to vector<1x4x4x16xf32>
    %c2 = arith.constant 2 : index
    %c0_37 = arith.constant 0 : index
    %34 = vector.load %arg4[%c2, %c0_37] : memref<9x16xf32, #tpu.memory_space<vmem>>, vector<1x16xf32>
    %35 = vector.shape_cast %34 : vector<1x16xf32> to vector<16xf32>
    %36 = vector.shape_cast %35 : vector<16xf32> to vector<1x1x1x16xf32>
    %37 = vector.broadcast %36 : vector<1x1x1x16xf32> to vector<1x4x4x16xf32>
    %38 = arith.mulf %33, %37 : vector<1x4x4x16xf32>
    %39 = vector.extract_strided_slice %16 {offsets = [0, 0, 1, 96], sizes = [1, 4, 4, 32], strides = [1, 1, 1, 1]} : vector<1x5x5x128xf32> to vector<1x4x4x32xf32>
    %40 = arith.addf %31, %38 : vector<1x4x4x16xf32>
    %41 = arith.addf %32, %39 : vector<1x4x4x32xf32>
    %42 = vector.extract_strided_slice %15 {offsets = [0, 1, 0, 16], sizes = [1, 4, 4, 16], strides = [1, 1, 1, 1]} : vector<1x5x5x64xf32> to vector<1x4x4x16xf32>
    %c3 = arith.constant 3 : index
    %c0_38 = arith.constant 0 : index
    %43 = vector.load %arg4[%c3, %c0_38] : memref<9x16xf32, #tpu.memory_space<vmem>>, vector<1x16xf32>
    %44 = vector.shape_cast %43 : vector<1x16xf32> to vector<16xf32>
    %45 = vector.shape_cast %44 : vector<16xf32> to vector<1x1x1x16xf32>
    %46 = vector.broadcast %45 : vector<1x1x1x16xf32> to vector<1x4x4x16xf32>
    %47 = arith.mulf %42, %46 : vector<1x4x4x16xf32>
    %48 = vector.extract_strided_slice %16 {offsets = [0, 1, 0, 32], sizes = [1, 4, 4, 32], strides = [1, 1, 1, 1]} : vector<1x5x5x128xf32> to vector<1x4x4x32xf32>
    %49 = arith.addf %40, %47 : vector<1x4x4x16xf32>
    %50 = arith.addf %41, %48 : vector<1x4x4x32xf32>
    %51 = vector.extract_strided_slice %15 {offsets = [0, 1, 1, 0], sizes = [1, 4, 4, 16], strides = [1, 1, 1, 1]} : vector<1x5x5x64xf32> to vector<1x4x4x16xf32>
    %c4 = arith.constant 4 : index
    %c0_39 = arith.constant 0 : index
    %52 = vector.load %arg4[%c4, %c0_39] : memref<9x16xf32, #tpu.memory_space<vmem>>, vector<1x16xf32>
    %53 = vector.shape_cast %52 : vector<1x16xf32> to vector<16xf32>
    %54 = vector.shape_cast %53 : vector<16xf32> to vector<1x1x1x16xf32>
    %55 = vector.broadcast %54 : vector<1x1x1x16xf32> to vector<1x4x4x16xf32>
    %56 = arith.mulf %51, %55 : vector<1x4x4x16xf32>
    %57 = vector.extract_strided_slice %16 {offsets = [0, 1, 1, 0], sizes = [1, 4, 4, 32], strides = [1, 1, 1, 1]} : vector<1x5x5x128xf32> to vector<1x4x4x32xf32>
    %58 = arith.addf %49, %56 : vector<1x4x4x16xf32>
    %59 = arith.addf %50, %57 : vector<1x4x4x32xf32>
    %60 = vector.extract_strided_slice %15 {offsets = [0, 1, 1, 16], sizes = [1, 4, 4, 16], strides = [1, 1, 1, 1]} : vector<1x5x5x64xf32> to vector<1x4x4x16xf32>
    %c5 = arith.constant 5 : index
    %c0_40 = arith.constant 0 : index
    %61 = vector.load %arg4[%c5, %c0_40] : memref<9x16xf32, #tpu.memory_space<vmem>>, vector<1x16xf32>
    %62 = vector.shape_cast %61 : vector<1x16xf32> to vector<16xf32>
    %63 = vector.shape_cast %62 : vector<16xf32> to vector<1x1x1x16xf32>
    %64 = vector.broadcast %63 : vector<1x1x1x16xf32> to vector<1x4x4x16xf32>
    %65 = arith.mulf %60, %64 : vector<1x4x4x16xf32>
    %66 = vector.extract_strided_slice %16 {offsets = [0, 1, 1, 32], sizes = [1, 4, 4, 32], strides = [1, 1, 1, 1]} : vector<1x5x5x128xf32> to vector<1x4x4x32xf32>
    %67 = arith.addf %58, %65 : vector<1x4x4x16xf32>
    %68 = arith.addf %59, %66 : vector<1x4x4x32xf32>
    %69 = vector.extract_strided_slice %15 {offsets = [0, 1, 0, 48], sizes = [1, 4, 4, 16], strides = [1, 1, 1, 1]} : vector<1x5x5x64xf32> to vector<1x4x4x16xf32>
    %c6 = arith.constant 6 : index
    %c0_41 = arith.constant 0 : index
    %70 = vector.load %arg4[%c6, %c0_41] : memref<9x16xf32, #tpu.memory_space<vmem>>, vector<1x16xf32>
    %71 = vector.shape_cast %70 : vector<1x16xf32> to vector<16xf32>
    %72 = vector.shape_cast %71 : vector<16xf32> to vector<1x1x1x16xf32>
    %73 = vector.broadcast %72 : vector<1x1x1x16xf32> to vector<1x4x4x16xf32>
    %74 = arith.mulf %69, %73 : vector<1x4x4x16xf32>
    %75 = vector.extract_strided_slice %16 {offsets = [0, 1, 0, 96], sizes = [1, 4, 4, 32], strides = [1, 1, 1, 1]} : vector<1x5x5x128xf32> to vector<1x4x4x32xf32>
    %76 = arith.addf %67, %74 : vector<1x4x4x16xf32>
    %77 = arith.addf %68, %75 : vector<1x4x4x32xf32>
    %78 = vector.extract_strided_slice %15 {offsets = [0, 1, 1, 32], sizes = [1, 4, 4, 16], strides = [1, 1, 1, 1]} : vector<1x5x5x64xf32> to vector<1x4x4x16xf32>
    %c7 = arith.constant 7 : index
    %c0_42 = arith.constant 0 : index
    %79 = vector.load %arg4[%c7, %c0_42] : memref<9x16xf32, #tpu.memory_space<vmem>>, vector<1x16xf32>
    %80 = vector.shape_cast %79 : vector<1x16xf32> to vector<16xf32>
    %81 = vector.shape_cast %80 : vector<16xf32> to vector<1x1x1x16xf32>
    %82 = vector.broadcast %81 : vector<1x1x1x16xf32> to vector<1x4x4x16xf32>
    %83 = arith.mulf %78, %82 : vector<1x4x4x16xf32>
    %84 = vector.extract_strided_slice %16 {offsets = [0, 1, 1, 64], sizes = [1, 4, 4, 32], strides = [1, 1, 1, 1]} : vector<1x5x5x128xf32> to vector<1x4x4x32xf32>
    %85 = arith.addf %76, %83 : vector<1x4x4x16xf32>
    %86 = arith.addf %77, %84 : vector<1x4x4x32xf32>
    %87 = vector.extract_strided_slice %15 {offsets = [0, 1, 1, 48], sizes = [1, 4, 4, 16], strides = [1, 1, 1, 1]} : vector<1x5x5x64xf32> to vector<1x4x4x16xf32>
    %c8 = arith.constant 8 : index
    %c0_43 = arith.constant 0 : index
    %88 = vector.load %arg4[%c8, %c0_43] : memref<9x16xf32, #tpu.memory_space<vmem>>, vector<1x16xf32>
    %89 = vector.shape_cast %88 : vector<1x16xf32> to vector<16xf32>
    %90 = vector.shape_cast %89 : vector<16xf32> to vector<1x1x1x16xf32>
    %91 = vector.broadcast %90 : vector<1x1x1x16xf32> to vector<1x4x4x16xf32>
    %92 = arith.mulf %87, %91 : vector<1x4x4x16xf32>
    %93 = vector.extract_strided_slice %16 {offsets = [0, 1, 1, 96], sizes = [1, 4, 4, 32], strides = [1, 1, 1, 1]} : vector<1x5x5x128xf32> to vector<1x4x4x32xf32>
    %94 = arith.addf %85, %92 : vector<1x4x4x16xf32>
    %95 = arith.addf %86, %93 : vector<1x4x4x32xf32>
    %c0_44 = arith.constant 0 : index
    %c0_45 = arith.constant 0 : index
    %96 = vector.load %arg5[%c0_44, %c0_45] : memref<1x16xf32, #tpu.memory_space<vmem>>, vector<1x16xf32>
    %97 = vector.shape_cast %96 : vector<1x16xf32> to vector<1x1x1x16xf32>
    %98 = vector.broadcast %97 : vector<1x1x1x16xf32> to vector<1x4x4x16xf32>
    %99 = arith.addf %94, %98 : vector<1x4x4x16xf32>
    %cst_46 = arith.constant 0.111111112 : f32
    %100 = vector.broadcast %cst_46 : f32 to vector<1x4x4x32xf32>
    %101 = arith.mulf %95, %100 : vector<1x4x4x32xf32>
    %c0_47 = arith.constant 0 : index
    %c0_48 = arith.constant 0 : index
    %102 = vector.load %arg6[%c0_47, %c0_48] : memref<16x32xf32, #tpu.memory_space<vmem>>, vector<16x32xf32>
    "tpu.trace_start"() <{level = 10 : i32, message = "nhwd,de->nhwe"}> : () -> ()
    %cst_49 = arith.constant dense<0.000000e+00> : vector<1x4x4x32xf32>
    %103 = tpu.matmul %99, %102, %cst_49 {dimension_numbers = #tpu.dot_dimension_numbers<[3], [0], [0, 1, 2], [1], [0, 0, 0, 1, 0, 2, 1, 1], [], []>} : vector<1x4x4x16xf32>, vector<16x32xf32>, vector<1x4x4x32xf32> -> vector<1x4x4x32xf32>
    "tpu.trace_stop"() : () -> ()
    %c0_50 = arith.constant 0 : index
    %c0_51 = arith.constant 0 : index
    %104 = vector.load %arg7[%c0_50, %c0_51] : memref<1x32xf32, #tpu.memory_space<vmem>>, vector<1x32xf32>
    %105 = vector.shape_cast %104 : vector<1x32xf32> to vector<1x1x1x32xf32>
    %106 = vector.broadcast %105 : vector<1x1x1x32xf32> to vector<1x4x4x32xf32>
    %107 = arith.addf %103, %106 : vector<1x4x4x32xf32>
    %108 = tpu.concatenate %107, %101 in 3 : vector<1x4x4x32xf32>, vector<1x4x4x32xf32> -> vector<1x4x4x64xf32>
    %cst_52 = arith.constant 0.000000e+00 : f32
    %109 = vector.broadcast %cst_52 : f32 to vector<1x4x4x64xf32>
    %110 = arith.maximumf %108, %109 : vector<1x4x4x64xf32>
    %c0_53 = arith.constant 0 : index
    %c0_54 = arith.constant 0 : index
    %c0_55 = arith.constant 0 : index
    %c0_56 = arith.constant 0 : index
    %111 = vector.load %arg8[%c0_53, %c0_54, %c0_55, %c0_56] : memref<1x4x4x64xf32, #tpu.memory_space<vmem>>, vector<1x4x4x64xf32>
    tpu.vector_store %arg8[%c0_53, %c0_54, %c0_55, %c0_56], %110 {strides = array<i32>} : memref<1x4x4x64xf32, #tpu.memory_space<vmem>>, vector<1x4x4x64xf32>,
    return
  }
  func.func @transform_0(%arg0: i32) -> (i32, i32, i32, i32) {
    %c0_i32 = arith.constant 0 : i32
    %c0_i32_0 = arith.constant 0 : i32
    %c0_i32_1 = arith.constant 0 : i32
    %c0_i32_2 = arith.constant 0 : i32
    return %arg0, %c0_i32, %c0_i32_0, %c0_i32_1 : i32, i32, i32, i32
  }
  func.func @transform_1(%arg0: i32) -> (i32, i32) {
    %c0_i32 = arith.constant 0 : i32
    %c0_i32_0 = arith.constant 0 : i32
    %c0_i32_1 = arith.constant 0 : i32
    return %c0_i32, %c0_i32_0 : i32, i32
  }
  func.func @transform_2(%arg0: i32) -> (i32, i32) {
    %c0_i32 = arith.constant 0 : i32
    %c0_i32_0 = arith.constant 0 : i32
    %c0_i32_1 = arith.constant 0 : i32
    return %c0_i32, %c0_i32_0 : i32, i32
  }
  func.func @transform_3(%arg0: i32) -> (i32, i32) {
    %c0_i32 = arith.constant 0 : i32
    %c0_i32_0 = arith.constant 0 : i32
    %c0_i32_1 = arith.constant 0 : i32
    return %c0_i32, %c0_i32_0 : i32, i32
  }
  func.func @transform_4(%arg0: i32) -> (i32, i32) {
    %c0_i32 = arith.constant 0 : i32
    %c0_i32_0 = arith.constant 0 : i32
    %c0_i32_1 = arith.constant 0 : i32
    return %c0_i32, %c0_i32_0 : i32, i32
  }
  func.func @transform_5(%arg0: i32) -> (i32, i32) {
    %c0_i32 = arith.constant 0 : i32
    %c0_i32_0 = arith.constant 0 : i32
    %c0_i32_1 = arith.constant 0 : i32
    return %c0_i32, %c0_i32_0 : i32, i32
  }
  func.func @transform_6(%arg0: i32) -> (i32, i32) {
    %c0_i32 = arith.constant 0 : i32
    %c0_i32_0 = arith.constant 0 : i32
    %c0_i32_1 = arith.constant 0 : i32
    return %c0_i32, %c0_i32_0 : i32, i32
  }
  func.func @transform_7(%arg0: i32) -> (i32, i32, i32, i32) {
    %c0_i32 = arith.constant 0 : i32
    %c0_i32_0 = arith.constant 0 : i32
    %c0_i32_1 = arith.constant 0 : i32
    %c0_i32_2 = arith.constant 0 : i32
    return %arg0, %c0_i32, %c0_i32_0, %c0_i32_1 : i32, i32, i32, i32
  }
}

module attributes {stable_mosaic.version = 11 : i64} {
  func.func @_unit_s1_kernel(%arg0: i32, %arg1: memref<1x4x4x64xf32, #tpu.memory_space<vmem>>, %arg2: memref<64x16xf32, #tpu.memory_space<vmem>>, %arg3: memref<1x16xf32, #tpu.memory_space<vmem>>, %arg4: memref<9x16xf32, #tpu.memory_space<vmem>>, %arg5: memref<1x16xf32, #tpu.memory_space<vmem>>, %arg6: memref<16x64xf32, #tpu.memory_space<vmem>>, %arg7: memref<1x64xf32, #tpu.memory_space<vmem>>, %arg8: memref<1x4x4x64xf32, #tpu.memory_space<vmem>>, %arg9: memref<1x6x6x16xf32, #tpu.memory_space<vmem>>) attributes {dimension_semantics = [#tpu.dimension_semantics<parallel>], iteration_bounds = array<i64: 2>, scalar_prefetch = 0 : i64, scratch_operands = 1 : i64, tpu.core_type = #tpu.core_type<tc>, window_params = [{transform_indices = @transform_0, window_bounds = array<i64: 1, 4, 4, 64>}, {pipeline_mode = #tpu.pipeline_mode<synchronous>, transform_indices = @transform_1, window_bounds = array<i64: 64, 16>}, {pipeline_mode = #tpu.pipeline_mode<synchronous>, transform_indices = @transform_2, window_bounds = array<i64: 1, 16>}, {pipeline_mode = #tpu.pipeline_mode<synchronous>, transform_indices = @transform_3, window_bounds = array<i64: 9, 16>}, {pipeline_mode = #tpu.pipeline_mode<synchronous>, transform_indices = @transform_4, window_bounds = array<i64: 1, 16>}, {pipeline_mode = #tpu.pipeline_mode<synchronous>, transform_indices = @transform_5, window_bounds = array<i64: 16, 64>}, {pipeline_mode = #tpu.pipeline_mode<synchronous>, transform_indices = @transform_6, window_bounds = array<i64: 1, 64>}, {transform_indices = @transform_7, window_bounds = array<i64: 1, 4, 4, 64>}]} {
    %c0 = arith.constant 0 : index
    %c0_0 = arith.constant 0 : index
    %c0_1 = arith.constant 0 : index
    %c0_2 = arith.constant 0 : index
    %0 = vector.load %arg1[%c0, %c0_0, %c0_1, %c0_2] : memref<1x4x4x64xf32, #tpu.memory_space<vmem>>, vector<1x4x4x64xf32>
    %c0_3 = arith.constant 0 : index
    %c0_4 = arith.constant 0 : index
    %1 = vector.load %arg2[%c0_3, %c0_4] : memref<64x16xf32, #tpu.memory_space<vmem>>, vector<64x16xf32>
    "tpu.trace_start"() <{level = 10 : i32, message = "nhwc,cd->nhwd"}> : () -> ()
    %cst = arith.constant dense<0.000000e+00> : vector<1x4x4x16xf32>
    %2 = tpu.matmul %0, %1, %cst {dimension_numbers = #tpu.dot_dimension_numbers<[3], [0], [0, 1, 2], [1], [0, 0, 0, 1, 0, 2, 1, 1], [], []>} : vector<1x4x4x64xf32>, vector<64x16xf32>, vector<1x4x4x16xf32> -> vector<1x4x4x16xf32>
    "tpu.trace_stop"() : () -> ()
    %c0_5 = arith.constant 0 : index
    %c0_6 = arith.constant 0 : index
    %3 = vector.load %arg3[%c0_5, %c0_6] : memref<1x16xf32, #tpu.memory_space<vmem>>, vector<1x16xf32>
    %4 = vector.shape_cast %3 : vector<1x16xf32> to vector<1x1x1x16xf32>
    %5 = vector.broadcast %4 : vector<1x1x1x16xf32> to vector<1x4x4x16xf32>
    %6 = arith.addf %2, %5 : vector<1x4x4x16xf32>
    %cst_7 = arith.constant 0.000000e+00 : f32
    %7 = vector.broadcast %cst_7 : f32 to vector<1x4x4x16xf32>
    %8 = arith.maximumf %6, %7 : vector<1x4x4x16xf32>
    %cst_8 = arith.constant 0.000000e+00 : f32
    %9 = vector.broadcast %cst_8 : f32 to vector<1x6x6x16xf32>
    %c0_9 = arith.constant 0 : index
    %c0_10 = arith.constant 0 : index
    %c0_11 = arith.constant 0 : index
    %c0_12 = arith.constant 0 : index
    %10 = vector.load %arg9[%c0_9, %c0_10, %c0_11, %c0_12] : memref<1x6x6x16xf32, #tpu.memory_space<vmem>>, vector<1x6x6x16xf32>
    tpu.vector_store %arg9[%c0_9, %c0_10, %c0_11, %c0_12], %9 {strides = array<i32>} : memref<1x6x6x16xf32, #tpu.memory_space<vmem>>, vector<1x6x6x16xf32>,
    %c0_13 = arith.constant 0 : index
    %c1 = arith.constant 1 : index
    %c1_14 = arith.constant 1 : index
    %c0_15 = arith.constant 0 : index
    %11 = vector.load %arg9[%c0_13, %c1, %c1_14, %c0_15] : memref<1x6x6x16xf32, #tpu.memory_space<vmem>>, vector<1x4x4x16xf32>
    tpu.vector_store %arg9[%c0_13, %c1, %c1_14, %c0_15], %8 {strides = array<i32>} : memref<1x6x6x16xf32, #tpu.memory_space<vmem>>, vector<1x4x4x16xf32>,
    %c0_16 = arith.constant 0 : index
    %c0_17 = arith.constant 0 : index
    %c0_18 = arith.constant 0 : index
    %c0_19 = arith.constant 0 : index
    %12 = vector.load %arg9[%c0_16, %c0_17, %c0_18, %c0_19] : memref<1x6x6x16xf32, #tpu.memory_space<vmem>>, vector<1x4x4x16xf32>
    %c0_20 = arith.constant 0 : index
    %c0_21 = arith.constant 0 : index
    %13 = vector.load %arg4[%c0_20, %c0_21] : memref<9x16xf32, #tpu.memory_space<vmem>>, vector<1x16xf32>
    %14 = vector.shape_cast %13 : vector<1x16xf32> to vector<16xf32>
    %15 = vector.shape_cast %14 : vector<16xf32> to vector<1x1x1x16xf32>
    %16 = vector.broadcast %15 : vector<1x1x1x16xf32> to vector<1x4x4x16xf32>
    %17 = arith.mulf %12, %16 : vector<1x4x4x16xf32>
    %c0_22 = arith.constant 0 : index
    %c0_23 = arith.constant 0 : index
    %c1_24 = arith.constant 1 : index
    %c0_25 = arith.constant 0 : index
    %18 = vector.load %arg9[%c0_22, %c0_23, %c1_24, %c0_25] : memref<1x6x6x16xf32, #tpu.memory_space<vmem>>, vector<1x4x4x16xf32>
    %c1_26 = arith.constant 1 : index
    %c0_27 = arith.constant 0 : index
    %19 = vector.load %arg4[%c1_26, %c0_27] : memref<9x16xf32, #tpu.memory_space<vmem>>, vector<1x16xf32>
    %20 = vector.shape_cast %19 : vector<1x16xf32> to vector<16xf32>
    %21 = vector.shape_cast %20 : vector<16xf32> to vector<1x1x1x16xf32>
    %22 = vector.broadcast %21 : vector<1x1x1x16xf32> to vector<1x4x4x16xf32>
    %23 = arith.mulf %18, %22 : vector<1x4x4x16xf32>
    %24 = arith.addf %17, %23 : vector<1x4x4x16xf32>
    %c0_28 = arith.constant 0 : index
    %c0_29 = arith.constant 0 : index
    %c2 = arith.constant 2 : index
    %c0_30 = arith.constant 0 : index
    %25 = vector.load %arg9[%c0_28, %c0_29, %c2, %c0_30] : memref<1x6x6x16xf32, #tpu.memory_space<vmem>>, vector<1x4x4x16xf32>
    %c2_31 = arith.constant 2 : index
    %c0_32 = arith.constant 0 : index
    %26 = vector.load %arg4[%c2_31, %c0_32] : memref<9x16xf32, #tpu.memory_space<vmem>>, vector<1x16xf32>
    %27 = vector.shape_cast %26 : vector<1x16xf32> to vector<16xf32>
    %28 = vector.shape_cast %27 : vector<16xf32> to vector<1x1x1x16xf32>
    %29 = vector.broadcast %28 : vector<1x1x1x16xf32> to vector<1x4x4x16xf32>
    %30 = arith.mulf %25, %29 : vector<1x4x4x16xf32>
    %31 = arith.addf %24, %30 : vector<1x4x4x16xf32>
    %c0_33 = arith.constant 0 : index
    %c1_34 = arith.constant 1 : index
    %c0_35 = arith.constant 0 : index
    %c0_36 = arith.constant 0 : index
    %32 = vector.load %arg9[%c0_33, %c1_34, %c0_35, %c0_36] : memref<1x6x6x16xf32, #tpu.memory_space<vmem>>, vector<1x4x4x16xf32>
    %c3 = arith.constant 3 : index
    %c0_37 = arith.constant 0 : index
    %33 = vector.load %arg4[%c3, %c0_37] : memref<9x16xf32, #tpu.memory_space<vmem>>, vector<1x16xf32>
    %34 = vector.shape_cast %33 : vector<1x16xf32> to vector<16xf32>
    %35 = vector.shape_cast %34 : vector<16xf32> to vector<1x1x1x16xf32>
    %36 = vector.broadcast %35 : vector<1x1x1x16xf32> to vector<1x4x4x16xf32>
    %37 = arith.mulf %32, %36 : vector<1x4x4x16xf32>
    %38 = arith.addf %31, %37 : vector<1x4x4x16xf32>
    %c0_38 = arith.constant 0 : index
    %c1_39 = arith.constant 1 : index
    %c1_40 = arith.constant 1 : index
    %c0_41 = arith.constant 0 : index
    %39 = vector.load %arg9[%c0_38, %c1_39, %c1_40, %c0_41] : memref<1x6x6x16xf32, #tpu.memory_space<vmem>>, vector<1x4x4x16xf32>
    %c4 = arith.constant 4 : index
    %c0_42 = arith.constant 0 : index
    %40 = vector.load %arg4[%c4, %c0_42] : memref<9x16xf32, #tpu.memory_space<vmem>>, vector<1x16xf32>
    %41 = vector.shape_cast %40 : vector<1x16xf32> to vector<16xf32>
    %42 = vector.shape_cast %41 : vector<16xf32> to vector<1x1x1x16xf32>
    %43 = vector.broadcast %42 : vector<1x1x1x16xf32> to vector<1x4x4x16xf32>
    %44 = arith.mulf %39, %43 : vector<1x4x4x16xf32>
    %45 = arith.addf %38, %44 : vector<1x4x4x16xf32>
    %c0_43 = arith.constant 0 : index
    %c1_44 = arith.constant 1 : index
    %c2_45 = arith.constant 2 : index
    %c0_46 = arith.constant 0 : index
    %46 = vector.load %arg9[%c0_43, %c1_44, %c2_45, %c0_46] : memref<1x6x6x16xf32, #tpu.memory_space<vmem>>, vector<1x4x4x16xf32>
    %c5 = arith.constant 5 : index
    %c0_47 = arith.constant 0 : index
    %47 = vector.load %arg4[%c5, %c0_47] : memref<9x16xf32, #tpu.memory_space<vmem>>, vector<1x16xf32>
    %48 = vector.shape_cast %47 : vector<1x16xf32> to vector<16xf32>
    %49 = vector.shape_cast %48 : vector<16xf32> to vector<1x1x1x16xf32>
    %50 = vector.broadcast %49 : vector<1x1x1x16xf32> to vector<1x4x4x16xf32>
    %51 = arith.mulf %46, %50 : vector<1x4x4x16xf32>
    %52 = arith.addf %45, %51 : vector<1x4x4x16xf32>
    %c0_48 = arith.constant 0 : index
    %c2_49 = arith.constant 2 : index
    %c0_50 = arith.constant 0 : index
    %c0_51 = arith.constant 0 : index
    %53 = vector.load %arg9[%c0_48, %c2_49, %c0_50, %c0_51] : memref<1x6x6x16xf32, #tpu.memory_space<vmem>>, vector<1x4x4x16xf32>
    %c6 = arith.constant 6 : index
    %c0_52 = arith.constant 0 : index
    %54 = vector.load %arg4[%c6, %c0_52] : memref<9x16xf32, #tpu.memory_space<vmem>>, vector<1x16xf32>
    %55 = vector.shape_cast %54 : vector<1x16xf32> to vector<16xf32>
    %56 = vector.shape_cast %55 : vector<16xf32> to vector<1x1x1x16xf32>
    %57 = vector.broadcast %56 : vector<1x1x1x16xf32> to vector<1x4x4x16xf32>
    %58 = arith.mulf %53, %57 : vector<1x4x4x16xf32>
    %59 = arith.addf %52, %58 : vector<1x4x4x16xf32>
    %c0_53 = arith.constant 0 : index
    %c2_54 = arith.constant 2 : index
    %c1_55 = arith.constant 1 : index
    %c0_56 = arith.constant 0 : index
    %60 = vector.load %arg9[%c0_53, %c2_54, %c1_55, %c0_56] : memref<1x6x6x16xf32, #tpu.memory_space<vmem>>, vector<1x4x4x16xf32>
    %c7 = arith.constant 7 : index
    %c0_57 = arith.constant 0 : index
    %61 = vector.load %arg4[%c7, %c0_57] : memref<9x16xf32, #tpu.memory_space<vmem>>, vector<1x16xf32>
    %62 = vector.shape_cast %61 : vector<1x16xf32> to vector<16xf32>
    %63 = vector.shape_cast %62 : vector<16xf32> to vector<1x1x1x16xf32>
    %64 = vector.broadcast %63 : vector<1x1x1x16xf32> to vector<1x4x4x16xf32>
    %65 = arith.mulf %60, %64 : vector<1x4x4x16xf32>
    %66 = arith.addf %59, %65 : vector<1x4x4x16xf32>
    %c0_58 = arith.constant 0 : index
    %c2_59 = arith.constant 2 : index
    %c2_60 = arith.constant 2 : index
    %c0_61 = arith.constant 0 : index
    %67 = vector.load %arg9[%c0_58, %c2_59, %c2_60, %c0_61] : memref<1x6x6x16xf32, #tpu.memory_space<vmem>>, vector<1x4x4x16xf32>
    %c8 = arith.constant 8 : index
    %c0_62 = arith.constant 0 : index
    %68 = vector.load %arg4[%c8, %c0_62] : memref<9x16xf32, #tpu.memory_space<vmem>>, vector<1x16xf32>
    %69 = vector.shape_cast %68 : vector<1x16xf32> to vector<16xf32>
    %70 = vector.shape_cast %69 : vector<16xf32> to vector<1x1x1x16xf32>
    %71 = vector.broadcast %70 : vector<1x1x1x16xf32> to vector<1x4x4x16xf32>
    %72 = arith.mulf %67, %71 : vector<1x4x4x16xf32>
    %73 = arith.addf %66, %72 : vector<1x4x4x16xf32>
    %c0_63 = arith.constant 0 : index
    %c0_64 = arith.constant 0 : index
    %74 = vector.load %arg5[%c0_63, %c0_64] : memref<1x16xf32, #tpu.memory_space<vmem>>, vector<1x16xf32>
    %75 = vector.shape_cast %74 : vector<1x16xf32> to vector<1x1x1x16xf32>
    %76 = vector.broadcast %75 : vector<1x1x1x16xf32> to vector<1x4x4x16xf32>
    %77 = arith.addf %73, %76 : vector<1x4x4x16xf32>
    %c0_65 = arith.constant 0 : index
    %c0_66 = arith.constant 0 : index
    %78 = vector.load %arg6[%c0_65, %c0_66] : memref<16x64xf32, #tpu.memory_space<vmem>>, vector<16x64xf32>
    "tpu.trace_start"() <{level = 10 : i32, message = "nhwd,de->nhwe"}> : () -> ()
    %cst_67 = arith.constant dense<0.000000e+00> : vector<1x4x4x64xf32>
    %79 = tpu.matmul %77, %78, %cst_67 {dimension_numbers = #tpu.dot_dimension_numbers<[3], [0], [0, 1, 2], [1], [0, 0, 0, 1, 0, 2, 1, 1], [], []>} : vector<1x4x4x16xf32>, vector<16x64xf32>, vector<1x4x4x64xf32> -> vector<1x4x4x64xf32>
    "tpu.trace_stop"() : () -> ()
    %c0_68 = arith.constant 0 : index
    %c0_69 = arith.constant 0 : index
    %80 = vector.load %arg7[%c0_68, %c0_69] : memref<1x64xf32, #tpu.memory_space<vmem>>, vector<1x64xf32>
    %81 = vector.shape_cast %80 : vector<1x64xf32> to vector<1x1x1x64xf32>
    %82 = vector.broadcast %81 : vector<1x1x1x64xf32> to vector<1x4x4x64xf32>
    %83 = arith.addf %79, %82 : vector<1x4x4x64xf32>
    %84 = arith.addf %83, %0 : vector<1x4x4x64xf32>
    %cst_70 = arith.constant 0.000000e+00 : f32
    %85 = vector.broadcast %cst_70 : f32 to vector<1x4x4x64xf32>
    %86 = arith.maximumf %84, %85 : vector<1x4x4x64xf32>
    %c0_71 = arith.constant 0 : index
    %c0_72 = arith.constant 0 : index
    %c0_73 = arith.constant 0 : index
    %c0_74 = arith.constant 0 : index
    %87 = vector.load %arg8[%c0_71, %c0_72, %c0_73, %c0_74] : memref<1x4x4x64xf32, #tpu.memory_space<vmem>>, vector<1x4x4x64xf32>
    tpu.vector_store %arg8[%c0_71, %c0_72, %c0_73, %c0_74], %86 {strides = array<i32>} : memref<1x4x4x64xf32, #tpu.memory_space<vmem>>, vector<1x4x4x64xf32>,
    return
  }
  func.func @transform_0(%arg0: i32) -> (i32, i32, i32, i32) {
    %c0_i32 = arith.constant 0 : i32
    %c0_i32_0 = arith.constant 0 : i32
    %c0_i32_1 = arith.constant 0 : i32
    %c0_i32_2 = arith.constant 0 : i32
    return %arg0, %c0_i32, %c0_i32_0, %c0_i32_1 : i32, i32, i32, i32
  }
  func.func @transform_1(%arg0: i32) -> (i32, i32) {
    %c0_i32 = arith.constant 0 : i32
    %c0_i32_0 = arith.constant 0 : i32
    %c0_i32_1 = arith.constant 0 : i32
    return %c0_i32, %c0_i32_0 : i32, i32
  }
  func.func @transform_2(%arg0: i32) -> (i32, i32) {
    %c0_i32 = arith.constant 0 : i32
    %c0_i32_0 = arith.constant 0 : i32
    %c0_i32_1 = arith.constant 0 : i32
    return %c0_i32, %c0_i32_0 : i32, i32
  }
  func.func @transform_3(%arg0: i32) -> (i32, i32) {
    %c0_i32 = arith.constant 0 : i32
    %c0_i32_0 = arith.constant 0 : i32
    %c0_i32_1 = arith.constant 0 : i32
    return %c0_i32, %c0_i32_0 : i32, i32
  }
  func.func @transform_4(%arg0: i32) -> (i32, i32) {
    %c0_i32 = arith.constant 0 : i32
    %c0_i32_0 = arith.constant 0 : i32
    %c0_i32_1 = arith.constant 0 : i32
    return %c0_i32, %c0_i32_0 : i32, i32
  }
  func.func @transform_5(%arg0: i32) -> (i32, i32) {
    %c0_i32 = arith.constant 0 : i32
    %c0_i32_0 = arith.constant 0 : i32
    %c0_i32_1 = arith.constant 0 : i32
    return %c0_i32, %c0_i32_0 : i32, i32
  }
  func.func @transform_6(%arg0: i32) -> (i32, i32) {
    %c0_i32 = arith.constant 0 : i32
    %c0_i32_0 = arith.constant 0 : i32
    %c0_i32_1 = arith.constant 0 : i32
    return %c0_i32, %c0_i32_0 : i32, i32
  }
  func.func @transform_7(%arg0: i32) -> (i32, i32, i32, i32) {
    %c0_i32 = arith.constant 0 : i32
    %c0_i32_0 = arith.constant 0 : i32
    %c0_i32_1 = arith.constant 0 : i32
    %c0_i32_2 = arith.constant 0 : i32
    return %arg0, %c0_i32, %c0_i32_0, %c0_i32_1 : i32, i32, i32, i32
  }
}

module attributes {stable_mosaic.version = 11 : i64} {
  func.func @_unit_reduce_kernel(%arg0: i32, %arg1: memref<1x2x2x256xf32, #tpu.memory_space<vmem>>, %arg2: memref<256x128xf32, #tpu.memory_space<vmem>>, %arg3: memref<1x128xf32, #tpu.memory_space<vmem>>, %arg4: memref<9x32xf32, #tpu.memory_space<vmem>>, %arg5: memref<1x32xf32, #tpu.memory_space<vmem>>, %arg6: memref<32x64xf32, #tpu.memory_space<vmem>>, %arg7: memref<1x64xf32, #tpu.memory_space<vmem>>, %arg8: memref<1x2x2x128xf32, #tpu.memory_space<vmem>>, %arg9: memref<1x3x3x128xf32, #tpu.memory_space<vmem>>, %arg10: memref<1x3x3x256xf32, #tpu.memory_space<vmem>>) attributes {dimension_semantics = [#tpu.dimension_semantics<parallel>], iteration_bounds = array<i64: 2>, scalar_prefetch = 0 : i64, scratch_operands = 2 : i64, tpu.core_type = #tpu.core_type<tc>, window_params = [{transform_indices = @transform_0, window_bounds = array<i64: 1, 2, 2, 256>}, {pipeline_mode = #tpu.pipeline_mode<synchronous>, transform_indices = @transform_1, window_bounds = array<i64: 256, 128>}, {pipeline_mode = #tpu.pipeline_mode<synchronous>, transform_indices = @transform_2, window_bounds = array<i64: 1, 128>}, {pipeline_mode = #tpu.pipeline_mode<synchronous>, transform_indices = @transform_3, window_bounds = array<i64: 9, 32>}, {pipeline_mode = #tpu.pipeline_mode<synchronous>, transform_indices = @transform_4, window_bounds = array<i64: 1, 32>}, {pipeline_mode = #tpu.pipeline_mode<synchronous>, transform_indices = @transform_5, window_bounds = array<i64: 32, 64>}, {pipeline_mode = #tpu.pipeline_mode<synchronous>, transform_indices = @transform_6, window_bounds = array<i64: 1, 64>}, {transform_indices = @transform_7, window_bounds = array<i64: 1, 2, 2, 128>}]} {
    %c0 = arith.constant 0 : index
    %c0_0 = arith.constant 0 : index
    %c0_1 = arith.constant 0 : index
    %c0_2 = arith.constant 0 : index
    %0 = vector.load %arg1[%c0, %c0_0, %c0_1, %c0_2] : memref<1x2x2x256xf32, #tpu.memory_space<vmem>>, vector<1x2x2x256xf32>
    %c0_3 = arith.constant 0 : index
    %c0_4 = arith.constant 0 : index
    %1 = vector.load %arg2[%c0_3, %c0_4] : memref<256x128xf32, #tpu.memory_space<vmem>>, vector<256x128xf32>
    "tpu.trace_start"() <{level = 10 : i32, message = "nhwc,cd->nhwd"}> : () -> ()
    %cst = arith.constant dense<0.000000e+00> : vector<1x2x2x128xf32>
    %2 = tpu.matmul %0, %1, %cst {dimension_numbers = #tpu.dot_dimension_numbers<[3], [0], [0, 1, 2], [1], [0, 0, 0, 1, 0, 2, 1, 1], [], []>} : vector<1x2x2x256xf32>, vector<256x128xf32>, vector<1x2x2x128xf32> -> vector<1x2x2x128xf32>
    "tpu.trace_stop"() : () -> ()
    %c0_5 = arith.constant 0 : index
    %c0_6 = arith.constant 0 : index
    %3 = vector.load %arg3[%c0_5, %c0_6] : memref<1x128xf32, #tpu.memory_space<vmem>>, vector<1x128xf32>
    %4 = vector.shape_cast %3 : vector<1x128xf32> to vector<1x1x1x128xf32>
    %5 = vector.broadcast %4 : vector<1x1x1x128xf32> to vector<1x2x2x128xf32>
    %6 = arith.addf %2, %5 : vector<1x2x2x128xf32>
    %cst_7 = arith.constant 0.000000e+00 : f32
    %7 = vector.broadcast %cst_7 : f32 to vector<1x2x2x128xf32>
    %8 = arith.maximumf %6, %7 : vector<1x2x2x128xf32>
    %cst_8 = arith.constant 0.000000e+00 : f32
    %9 = vector.broadcast %cst_8 : f32 to vector<1x3x3x128xf32>
    %c0_9 = arith.constant 0 : index
    %c0_10 = arith.constant 0 : index
    %c0_11 = arith.constant 0 : index
    %c0_12 = arith.constant 0 : index
    %10 = vector.load %arg9[%c0_9, %c0_10, %c0_11, %c0_12] : memref<1x3x3x128xf32, #tpu.memory_space<vmem>>, vector<1x3x3x128xf32>
    tpu.vector_store %arg9[%c0_9, %c0_10, %c0_11, %c0_12], %9 {strides = array<i32>} : memref<1x3x3x128xf32, #tpu.memory_space<vmem>>, vector<1x3x3x128xf32>,
    %c0_13 = arith.constant 0 : index
    %c1 = arith.constant 1 : index
    %c1_14 = arith.constant 1 : index
    %c0_15 = arith.constant 0 : index
    %11 = vector.load %arg9[%c0_13, %c1, %c1_14, %c0_15] : memref<1x3x3x128xf32, #tpu.memory_space<vmem>>, vector<1x2x2x128xf32>
    tpu.vector_store %arg9[%c0_13, %c1, %c1_14, %c0_15], %8 {strides = array<i32>} : memref<1x3x3x128xf32, #tpu.memory_space<vmem>>, vector<1x2x2x128xf32>,
    %cst_16 = arith.constant 0.000000e+00 : f32
    %12 = vector.broadcast %cst_16 : f32 to vector<1x3x3x256xf32>
    %c0_17 = arith.constant 0 : index
    %c0_18 = arith.constant 0 : index
    %c0_19 = arith.constant 0 : index
    %c0_20 = arith.constant 0 : index
    %13 = vector.load %arg10[%c0_17, %c0_18, %c0_19, %c0_20] : memref<1x3x3x256xf32, #tpu.memory_space<vmem>>, vector<1x3x3x256xf32>
    tpu.vector_store %arg10[%c0_17, %c0_18, %c0_19, %c0_20], %12 {strides = array<i32>} : memref<1x3x3x256xf32, #tpu.memory_space<vmem>>, vector<1x3x3x256xf32>,
    %c0_21 = arith.constant 0 : index
    %c1_22 = arith.constant 1 : index
    %c1_23 = arith.constant 1 : index
    %c0_24 = arith.constant 0 : index
    %14 = vector.load %arg10[%c0_21, %c1_22, %c1_23, %c0_24] : memref<1x3x3x256xf32, #tpu.memory_space<vmem>>, vector<1x2x2x256xf32>
    tpu.vector_store %arg10[%c0_21, %c1_22, %c1_23, %c0_24], %0 {strides = array<i32>} : memref<1x3x3x256xf32, #tpu.memory_space<vmem>>, vector<1x2x2x256xf32>,
    %c0_25 = arith.constant 0 : index
    %c0_26 = arith.constant 0 : index
    %c0_27 = arith.constant 0 : index
    %c0_28 = arith.constant 0 : index
    %15 = vector.load %arg9[%c0_25, %c0_26, %c0_27, %c0_28] : memref<1x3x3x128xf32, #tpu.memory_space<vmem>>, vector<1x3x3x128xf32>
    %c0_29 = arith.constant 0 : index
    %c0_30 = arith.constant 0 : index
    %c0_31 = arith.constant 0 : index
    %c0_32 = arith.constant 0 : index
    %16 = vector.load %arg10[%c0_29, %c0_30, %c0_31, %c0_32] : memref<1x3x3x256xf32, #tpu.memory_space<vmem>>, vector<1x3x3x256xf32>
    %17 = vector.extract_strided_slice %15 {offsets = [0, 0, 0, 96], sizes = [1, 2, 2, 32], strides = [1, 1, 1, 1]} : vector<1x3x3x128xf32> to vector<1x2x2x32xf32>
    %c0_33 = arith.constant 0 : index
    %c0_34 = arith.constant 0 : index
    %18 = vector.load %arg4[%c0_33, %c0_34] : memref<9x32xf32, #tpu.memory_space<vmem>>, vector<1x32xf32>
    %19 = vector.shape_cast %18 : vector<1x32xf32> to vector<32xf32>
    %20 = vector.shape_cast %19 : vector<32xf32> to vector<1x1x1x32xf32>
    %21 = vector.broadcast %20 : vector<1x1x1x32xf32> to vector<1x2x2x32xf32>
    %22 = arith.mulf %17, %21 : vector<1x2x2x32xf32>
    %23 = vector.extract_strided_slice %16 {offsets = [0, 0, 0, 192], sizes = [1, 2, 2, 64], strides = [1, 1, 1, 1]} : vector<1x3x3x256xf32> to vector<1x2x2x64xf32>
    %24 = vector.extract_strided_slice %15 {offsets = [0, 0, 1, 64], sizes = [1, 2, 2, 32], strides = [1, 1, 1, 1]} : vector<1x3x3x128xf32> to vector<1x2x2x32xf32>
    %c1_35 = arith.constant 1 : index
    %c0_36 = arith.constant 0 : index
    %25 = vector.load %arg4[%c1_35, %c0_36] : memref<9x32xf32, #tpu.memory_space<vmem>>, vector<1x32xf32>
    %26 = vector.shape_cast %25 : vector<1x32xf32> to vector<32xf32>
    %27 = vector.shape_cast %26 : vector<32xf32> to vector<1x1x1x32xf32>
    %28 = vector.broadcast %27 : vector<1x1x1x32xf32> to vector<1x2x2x32xf32>
    %29 = arith.mulf %24, %28 : vector<1x2x2x32xf32>
    %30 = vector.extract_strided_slice %16 {offsets = [0, 0, 1, 128], sizes = [1, 2, 2, 64], strides = [1, 1, 1, 1]} : vector<1x3x3x256xf32> to vector<1x2x2x64xf32>
    %31 = arith.addf %22, %29 : vector<1x2x2x32xf32>
    %32 = arith.addf %23, %30 : vector<1x2x2x64xf32>
    %33 = vector.extract_strided_slice %15 {offsets = [0, 0, 1, 96], sizes = [1, 2, 2, 32], strides = [1, 1, 1, 1]} : vector<1x3x3x128xf32> to vector<1x2x2x32xf32>
    %c2 = arith.constant 2 : index
    %c0_37 = arith.constant 0 : index
    %34 = vector.load %arg4[%c2, %c0_37] : memref<9x32xf32, #tpu.memory_space<vmem>>, vector<1x32xf32>
    %35 = vector.shape_cast %34 : vector<1x32xf32> to vector<32xf32>
    %36 = vector.shape_cast %35 : vector<32xf32> to vector<1x1x1x32xf32>
    %37 = vector.broadcast %36 : vector<1x1x1x32xf32> to vector<1x2x2x32xf32>
    %38 = arith.mulf %33, %37 : vector<1x2x2x32xf32>
    %39 = vector.extract_strided_slice %16 {offsets = [0, 0, 1, 192], sizes = [1, 2, 2, 64], strides = [1, 1, 1, 1]} : vector<1x3x3x256xf32> to vector<1x2x2x64xf32>
    %40 = arith.addf %31, %38 : vector<1x2x2x32xf32>
    %41 = arith.addf %32, %39 : vector<1x2x2x64xf32>
    %42 = vector.extract_strided_slice %15 {offsets = [0, 1, 0, 32], sizes = [1, 2, 2, 32], strides = [1, 1, 1, 1]} : vector<1x3x3x128xf32> to vector<1x2x2x32xf32>
    %c3 = arith.constant 3 : index
    %c0_38 = arith.constant 0 : index
    %43 = vector.load %arg4[%c3, %c0_38] : memref<9x32xf32, #tpu.memory_space<vmem>>, vector<1x32xf32>
    %44 = vector.shape_cast %43 : vector<1x32xf32> to vector<32xf32>
    %45 = vector.shape_cast %44 : vector<32xf32> to vector<1x1x1x32xf32>
    %46 = vector.broadcast %45 : vector<1x1x1x32xf32> to vector<1x2x2x32xf32>
    %47 = arith.mulf %42, %46 : vector<1x2x2x32xf32>
    %48 = vector.extract_strided_slice %16 {offsets = [0, 1, 0, 64], sizes = [1, 2, 2, 64], strides = [1, 1, 1, 1]} : vector<1x3x3x256xf32> to vector<1x2x2x64xf32>
    %49 = arith.addf %40, %47 : vector<1x2x2x32xf32>
    %50 = arith.addf %41, %48 : vector<1x2x2x64xf32>
    %51 = vector.extract_strided_slice %15 {offsets = [0, 1, 1, 0], sizes = [1, 2, 2, 32], strides = [1, 1, 1, 1]} : vector<1x3x3x128xf32> to vector<1x2x2x32xf32>
    %c4 = arith.constant 4 : index
    %c0_39 = arith.constant 0 : index
    %52 = vector.load %arg4[%c4, %c0_39] : memref<9x32xf32, #tpu.memory_space<vmem>>, vector<1x32xf32>
    %53 = vector.shape_cast %52 : vector<1x32xf32> to vector<32xf32>
    %54 = vector.shape_cast %53 : vector<32xf32> to vector<1x1x1x32xf32>
    %55 = vector.broadcast %54 : vector<1x1x1x32xf32> to vector<1x2x2x32xf32>
    %56 = arith.mulf %51, %55 : vector<1x2x2x32xf32>
    %57 = vector.extract_strided_slice %16 {offsets = [0, 1, 1, 0], sizes = [1, 2, 2, 64], strides = [1, 1, 1, 1]} : vector<1x3x3x256xf32> to vector<1x2x2x64xf32>
    %58 = arith.addf %49, %56 : vector<1x2x2x32xf32>
    %59 = arith.addf %50, %57 : vector<1x2x2x64xf32>
    %60 = vector.extract_strided_slice %15 {offsets = [0, 1, 1, 32], sizes = [1, 2, 2, 32], strides = [1, 1, 1, 1]} : vector<1x3x3x128xf32> to vector<1x2x2x32xf32>
    %c5 = arith.constant 5 : index
    %c0_40 = arith.constant 0 : index
    %61 = vector.load %arg4[%c5, %c0_40] : memref<9x32xf32, #tpu.memory_space<vmem>>, vector<1x32xf32>
    %62 = vector.shape_cast %61 : vector<1x32xf32> to vector<32xf32>
    %63 = vector.shape_cast %62 : vector<32xf32> to vector<1x1x1x32xf32>
    %64 = vector.broadcast %63 : vector<1x1x1x32xf32> to vector<1x2x2x32xf32>
    %65 = arith.mulf %60, %64 : vector<1x2x2x32xf32>
    %66 = vector.extract_strided_slice %16 {offsets = [0, 1, 1, 64], sizes = [1, 2, 2, 64], strides = [1, 1, 1, 1]} : vector<1x3x3x256xf32> to vector<1x2x2x64xf32>
    %67 = arith.addf %58, %65 : vector<1x2x2x32xf32>
    %68 = arith.addf %59, %66 : vector<1x2x2x64xf32>
    %69 = vector.extract_strided_slice %15 {offsets = [0, 1, 0, 96], sizes = [1, 2, 2, 32], strides = [1, 1, 1, 1]} : vector<1x3x3x128xf32> to vector<1x2x2x32xf32>
    %c6 = arith.constant 6 : index
    %c0_41 = arith.constant 0 : index
    %70 = vector.load %arg4[%c6, %c0_41] : memref<9x32xf32, #tpu.memory_space<vmem>>, vector<1x32xf32>
    %71 = vector.shape_cast %70 : vector<1x32xf32> to vector<32xf32>
    %72 = vector.shape_cast %71 : vector<32xf32> to vector<1x1x1x32xf32>
    %73 = vector.broadcast %72 : vector<1x1x1x32xf32> to vector<1x2x2x32xf32>
    %74 = arith.mulf %69, %73 : vector<1x2x2x32xf32>
    %75 = vector.extract_strided_slice %16 {offsets = [0, 1, 0, 192], sizes = [1, 2, 2, 64], strides = [1, 1, 1, 1]} : vector<1x3x3x256xf32> to vector<1x2x2x64xf32>
    %76 = arith.addf %67, %74 : vector<1x2x2x32xf32>
    %77 = arith.addf %68, %75 : vector<1x2x2x64xf32>
    %78 = vector.extract_strided_slice %15 {offsets = [0, 1, 1, 64], sizes = [1, 2, 2, 32], strides = [1, 1, 1, 1]} : vector<1x3x3x128xf32> to vector<1x2x2x32xf32>
    %c7 = arith.constant 7 : index
    %c0_42 = arith.constant 0 : index
    %79 = vector.load %arg4[%c7, %c0_42] : memref<9x32xf32, #tpu.memory_space<vmem>>, vector<1x32xf32>
    %80 = vector.shape_cast %79 : vector<1x32xf32> to vector<32xf32>
    %81 = vector.shape_cast %80 : vector<32xf32> to vector<1x1x1x32xf32>
    %82 = vector.broadcast %81 : vector<1x1x1x32xf32> to vector<1x2x2x32xf32>
    %83 = arith.mulf %78, %82 : vector<1x2x2x32xf32>
    %84 = vector.extract_strided_slice %16 {offsets = [0, 1, 1, 128], sizes = [1, 2, 2, 64], strides = [1, 1, 1, 1]} : vector<1x3x3x256xf32> to vector<1x2x2x64xf32>
    %85 = arith.addf %76, %83 : vector<1x2x2x32xf32>
    %86 = arith.addf %77, %84 : vector<1x2x2x64xf32>
    %87 = vector.extract_strided_slice %15 {offsets = [0, 1, 1, 96], sizes = [1, 2, 2, 32], strides = [1, 1, 1, 1]} : vector<1x3x3x128xf32> to vector<1x2x2x32xf32>
    %c8 = arith.constant 8 : index
    %c0_43 = arith.constant 0 : index
    %88 = vector.load %arg4[%c8, %c0_43] : memref<9x32xf32, #tpu.memory_space<vmem>>, vector<1x32xf32>
    %89 = vector.shape_cast %88 : vector<1x32xf32> to vector<32xf32>
    %90 = vector.shape_cast %89 : vector<32xf32> to vector<1x1x1x32xf32>
    %91 = vector.broadcast %90 : vector<1x1x1x32xf32> to vector<1x2x2x32xf32>
    %92 = arith.mulf %87, %91 : vector<1x2x2x32xf32>
    %93 = vector.extract_strided_slice %16 {offsets = [0, 1, 1, 192], sizes = [1, 2, 2, 64], strides = [1, 1, 1, 1]} : vector<1x3x3x256xf32> to vector<1x2x2x64xf32>
    %94 = arith.addf %85, %92 : vector<1x2x2x32xf32>
    %95 = arith.addf %86, %93 : vector<1x2x2x64xf32>
    %c0_44 = arith.constant 0 : index
    %c0_45 = arith.constant 0 : index
    %96 = vector.load %arg5[%c0_44, %c0_45] : memref<1x32xf32, #tpu.memory_space<vmem>>, vector<1x32xf32>
    %97 = vector.shape_cast %96 : vector<1x32xf32> to vector<1x1x1x32xf32>
    %98 = vector.broadcast %97 : vector<1x1x1x32xf32> to vector<1x2x2x32xf32>
    %99 = arith.addf %94, %98 : vector<1x2x2x32xf32>
    %cst_46 = arith.constant 0.111111112 : f32
    %100 = vector.broadcast %cst_46 : f32 to vector<1x2x2x64xf32>
    %101 = arith.mulf %95, %100 : vector<1x2x2x64xf32>
    %c0_47 = arith.constant 0 : index
    %c0_48 = arith.constant 0 : index
    %102 = vector.load %arg6[%c0_47, %c0_48] : memref<32x64xf32, #tpu.memory_space<vmem>>, vector<32x64xf32>
    "tpu.trace_start"() <{level = 10 : i32, message = "nhwd,de->nhwe"}> : () -> ()
    %cst_49 = arith.constant dense<0.000000e+00> : vector<1x2x2x64xf32>
    %103 = tpu.matmul %99, %102, %cst_49 {dimension_numbers = #tpu.dot_dimension_numbers<[3], [0], [0, 1, 2], [1], [0, 0, 0, 1, 0, 2, 1, 1], [], []>} : vector<1x2x2x32xf32>, vector<32x64xf32>, vector<1x2x2x64xf32> -> vector<1x2x2x64xf32>
    "tpu.trace_stop"() : () -> ()
    %c0_50 = arith.constant 0 : index
    %c0_51 = arith.constant 0 : index
    %104 = vector.load %arg7[%c0_50, %c0_51] : memref<1x64xf32, #tpu.memory_space<vmem>>, vector<1x64xf32>
    %105 = vector.shape_cast %104 : vector<1x64xf32> to vector<1x1x1x64xf32>
    %106 = vector.broadcast %105 : vector<1x1x1x64xf32> to vector<1x2x2x64xf32>
    %107 = arith.addf %103, %106 : vector<1x2x2x64xf32>
    %108 = tpu.concatenate %107, %101 in 3 : vector<1x2x2x64xf32>, vector<1x2x2x64xf32> -> vector<1x2x2x128xf32>
    %cst_52 = arith.constant 0.000000e+00 : f32
    %109 = vector.broadcast %cst_52 : f32 to vector<1x2x2x128xf32>
    %110 = arith.maximumf %108, %109 : vector<1x2x2x128xf32>
    %c0_53 = arith.constant 0 : index
    %c0_54 = arith.constant 0 : index
    %c0_55 = arith.constant 0 : index
    %c0_56 = arith.constant 0 : index
    %111 = vector.load %arg8[%c0_53, %c0_54, %c0_55, %c0_56] : memref<1x2x2x128xf32, #tpu.memory_space<vmem>>, vector<1x2x2x128xf32>
    tpu.vector_store %arg8[%c0_53, %c0_54, %c0_55, %c0_56], %110 {strides = array<i32>} : memref<1x2x2x128xf32, #tpu.memory_space<vmem>>, vector<1x2x2x128xf32>,
    return
  }
  func.func @transform_0(%arg0: i32) -> (i32, i32, i32, i32) {
    %c0_i32 = arith.constant 0 : i32
    %c0_i32_0 = arith.constant 0 : i32
    %c0_i32_1 = arith.constant 0 : i32
    %c0_i32_2 = arith.constant 0 : i32
    return %arg0, %c0_i32, %c0_i32_0, %c0_i32_1 : i32, i32, i32, i32
  }
  func.func @transform_1(%arg0: i32) -> (i32, i32) {
    %c0_i32 = arith.constant 0 : i32
    %c0_i32_0 = arith.constant 0 : i32
    %c0_i32_1 = arith.constant 0 : i32
    return %c0_i32, %c0_i32_0 : i32, i32
  }
  func.func @transform_2(%arg0: i32) -> (i32, i32) {
    %c0_i32 = arith.constant 0 : i32
    %c0_i32_0 = arith.constant 0 : i32
    %c0_i32_1 = arith.constant 0 : i32
    return %c0_i32, %c0_i32_0 : i32, i32
  }
  func.func @transform_3(%arg0: i32) -> (i32, i32) {
    %c0_i32 = arith.constant 0 : i32
    %c0_i32_0 = arith.constant 0 : i32
    %c0_i32_1 = arith.constant 0 : i32
    return %c0_i32, %c0_i32_0 : i32, i32
  }
  func.func @transform_4(%arg0: i32) -> (i32, i32) {
    %c0_i32 = arith.constant 0 : i32
    %c0_i32_0 = arith.constant 0 : i32
    %c0_i32_1 = arith.constant 0 : i32
    return %c0_i32, %c0_i32_0 : i32, i32
  }
  func.func @transform_5(%arg0: i32) -> (i32, i32) {
    %c0_i32 = arith.constant 0 : i32
    %c0_i32_0 = arith.constant 0 : i32
    %c0_i32_1 = arith.constant 0 : i32
    return %c0_i32, %c0_i32_0 : i32, i32
  }
  func.func @transform_6(%arg0: i32) -> (i32, i32) {
    %c0_i32 = arith.constant 0 : i32
    %c0_i32_0 = arith.constant 0 : i32
    %c0_i32_1 = arith.constant 0 : i32
    return %c0_i32, %c0_i32_0 : i32, i32
  }
  func.func @transform_7(%arg0: i32) -> (i32, i32, i32, i32) {
    %c0_i32 = arith.constant 0 : i32
    %c0_i32_0 = arith.constant 0 : i32
    %c0_i32_1 = arith.constant 0 : i32
    %c0_i32_2 = arith.constant 0 : i32
    return %arg0, %c0_i32, %c0_i32_0, %c0_i32_1 : i32, i32, i32, i32
  }
}

module attributes {stable_mosaic.version = 11 : i64} {
  func.func @_unit_s1_kernel(%arg0: i32, %arg1: memref<1x2x2x128xf32, #tpu.memory_space<vmem>>, %arg2: memref<128x32xf32, #tpu.memory_space<vmem>>, %arg3: memref<1x32xf32, #tpu.memory_space<vmem>>, %arg4: memref<9x32xf32, #tpu.memory_space<vmem>>, %arg5: memref<1x32xf32, #tpu.memory_space<vmem>>, %arg6: memref<32x128xf32, #tpu.memory_space<vmem>>, %arg7: memref<1x128xf32, #tpu.memory_space<vmem>>, %arg8: memref<1x2x2x128xf32, #tpu.memory_space<vmem>>, %arg9: memref<1x4x4x32xf32, #tpu.memory_space<vmem>>) attributes {dimension_semantics = [#tpu.dimension_semantics<parallel>], iteration_bounds = array<i64: 2>, scalar_prefetch = 0 : i64, scratch_operands = 1 : i64, tpu.core_type = #tpu.core_type<tc>, window_params = [{transform_indices = @transform_0, window_bounds = array<i64: 1, 2, 2, 128>}, {pipeline_mode = #tpu.pipeline_mode<synchronous>, transform_indices = @transform_1, window_bounds = array<i64: 128, 32>}, {pipeline_mode = #tpu.pipeline_mode<synchronous>, transform_indices = @transform_2, window_bounds = array<i64: 1, 32>}, {pipeline_mode = #tpu.pipeline_mode<synchronous>, transform_indices = @transform_3, window_bounds = array<i64: 9, 32>}, {pipeline_mode = #tpu.pipeline_mode<synchronous>, transform_indices = @transform_4, window_bounds = array<i64: 1, 32>}, {pipeline_mode = #tpu.pipeline_mode<synchronous>, transform_indices = @transform_5, window_bounds = array<i64: 32, 128>}, {pipeline_mode = #tpu.pipeline_mode<synchronous>, transform_indices = @transform_6, window_bounds = array<i64: 1, 128>}, {transform_indices = @transform_7, window_bounds = array<i64: 1, 2, 2, 128>}]} {
    %c0 = arith.constant 0 : index
    %c0_0 = arith.constant 0 : index
    %c0_1 = arith.constant 0 : index
    %c0_2 = arith.constant 0 : index
    %0 = vector.load %arg1[%c0, %c0_0, %c0_1, %c0_2] : memref<1x2x2x128xf32, #tpu.memory_space<vmem>>, vector<1x2x2x128xf32>
    %c0_3 = arith.constant 0 : index
    %c0_4 = arith.constant 0 : index
    %1 = vector.load %arg2[%c0_3, %c0_4] : memref<128x32xf32, #tpu.memory_space<vmem>>, vector<128x32xf32>
    "tpu.trace_start"() <{level = 10 : i32, message = "nhwc,cd->nhwd"}> : () -> ()
    %cst = arith.constant dense<0.000000e+00> : vector<1x2x2x32xf32>
    %2 = tpu.matmul %0, %1, %cst {dimension_numbers = #tpu.dot_dimension_numbers<[3], [0], [0, 1, 2], [1], [0, 0, 0, 1, 0, 2, 1, 1], [], []>} : vector<1x2x2x128xf32>, vector<128x32xf32>, vector<1x2x2x32xf32> -> vector<1x2x2x32xf32>
    "tpu.trace_stop"() : () -> ()
    %c0_5 = arith.constant 0 : index
    %c0_6 = arith.constant 0 : index
    %3 = vector.load %arg3[%c0_5, %c0_6] : memref<1x32xf32, #tpu.memory_space<vmem>>, vector<1x32xf32>
    %4 = vector.shape_cast %3 : vector<1x32xf32> to vector<1x1x1x32xf32>
    %5 = vector.broadcast %4 : vector<1x1x1x32xf32> to vector<1x2x2x32xf32>
    %6 = arith.addf %2, %5 : vector<1x2x2x32xf32>
    %cst_7 = arith.constant 0.000000e+00 : f32
    %7 = vector.broadcast %cst_7 : f32 to vector<1x2x2x32xf32>
    %8 = arith.maximumf %6, %7 : vector<1x2x2x32xf32>
    %cst_8 = arith.constant 0.000000e+00 : f32
    %9 = vector.broadcast %cst_8 : f32 to vector<1x4x4x32xf32>
    %c0_9 = arith.constant 0 : index
    %c0_10 = arith.constant 0 : index
    %c0_11 = arith.constant 0 : index
    %c0_12 = arith.constant 0 : index
    %10 = vector.load %arg9[%c0_9, %c0_10, %c0_11, %c0_12] : memref<1x4x4x32xf32, #tpu.memory_space<vmem>>, vector<1x4x4x32xf32>
    tpu.vector_store %arg9[%c0_9, %c0_10, %c0_11, %c0_12], %9 {strides = array<i32>} : memref<1x4x4x32xf32, #tpu.memory_space<vmem>>, vector<1x4x4x32xf32>,
    %c0_13 = arith.constant 0 : index
    %c1 = arith.constant 1 : index
    %c1_14 = arith.constant 1 : index
    %c0_15 = arith.constant 0 : index
    %11 = vector.load %arg9[%c0_13, %c1, %c1_14, %c0_15] : memref<1x4x4x32xf32, #tpu.memory_space<vmem>>, vector<1x2x2x32xf32>
    tpu.vector_store %arg9[%c0_13, %c1, %c1_14, %c0_15], %8 {strides = array<i32>} : memref<1x4x4x32xf32, #tpu.memory_space<vmem>>, vector<1x2x2x32xf32>,
    %c0_16 = arith.constant 0 : index
    %c0_17 = arith.constant 0 : index
    %c0_18 = arith.constant 0 : index
    %c0_19 = arith.constant 0 : index
    %12 = vector.load %arg9[%c0_16, %c0_17, %c0_18, %c0_19] : memref<1x4x4x32xf32, #tpu.memory_space<vmem>>, vector<1x2x2x32xf32>
    %c0_20 = arith.constant 0 : index
    %c0_21 = arith.constant 0 : index
    %13 = vector.load %arg4[%c0_20, %c0_21] : memref<9x32xf32, #tpu.memory_space<vmem>>, vector<1x32xf32>
    %14 = vector.shape_cast %13 : vector<1x32xf32> to vector<32xf32>
    %15 = vector.shape_cast %14 : vector<32xf32> to vector<1x1x1x32xf32>
    %16 = vector.broadcast %15 : vector<1x1x1x32xf32> to vector<1x2x2x32xf32>
    %17 = arith.mulf %12, %16 : vector<1x2x2x32xf32>
    %c0_22 = arith.constant 0 : index
    %c0_23 = arith.constant 0 : index
    %c1_24 = arith.constant 1 : index
    %c0_25 = arith.constant 0 : index
    %18 = vector.load %arg9[%c0_22, %c0_23, %c1_24, %c0_25] : memref<1x4x4x32xf32, #tpu.memory_space<vmem>>, vector<1x2x2x32xf32>
    %c1_26 = arith.constant 1 : index
    %c0_27 = arith.constant 0 : index
    %19 = vector.load %arg4[%c1_26, %c0_27] : memref<9x32xf32, #tpu.memory_space<vmem>>, vector<1x32xf32>
    %20 = vector.shape_cast %19 : vector<1x32xf32> to vector<32xf32>
    %21 = vector.shape_cast %20 : vector<32xf32> to vector<1x1x1x32xf32>
    %22 = vector.broadcast %21 : vector<1x1x1x32xf32> to vector<1x2x2x32xf32>
    %23 = arith.mulf %18, %22 : vector<1x2x2x32xf32>
    %24 = arith.addf %17, %23 : vector<1x2x2x32xf32>
    %c0_28 = arith.constant 0 : index
    %c0_29 = arith.constant 0 : index
    %c2 = arith.constant 2 : index
    %c0_30 = arith.constant 0 : index
    %25 = vector.load %arg9[%c0_28, %c0_29, %c2, %c0_30] : memref<1x4x4x32xf32, #tpu.memory_space<vmem>>, vector<1x2x2x32xf32>
    %c2_31 = arith.constant 2 : index
    %c0_32 = arith.constant 0 : index
    %26 = vector.load %arg4[%c2_31, %c0_32] : memref<9x32xf32, #tpu.memory_space<vmem>>, vector<1x32xf32>
    %27 = vector.shape_cast %26 : vector<1x32xf32> to vector<32xf32>
    %28 = vector.shape_cast %27 : vector<32xf32> to vector<1x1x1x32xf32>
    %29 = vector.broadcast %28 : vector<1x1x1x32xf32> to vector<1x2x2x32xf32>
    %30 = arith.mulf %25, %29 : vector<1x2x2x32xf32>
    %31 = arith.addf %24, %30 : vector<1x2x2x32xf32>
    %c0_33 = arith.constant 0 : index
    %c1_34 = arith.constant 1 : index
    %c0_35 = arith.constant 0 : index
    %c0_36 = arith.constant 0 : index
    %32 = vector.load %arg9[%c0_33, %c1_34, %c0_35, %c0_36] : memref<1x4x4x32xf32, #tpu.memory_space<vmem>>, vector<1x2x2x32xf32>
    %c3 = arith.constant 3 : index
    %c0_37 = arith.constant 0 : index
    %33 = vector.load %arg4[%c3, %c0_37] : memref<9x32xf32, #tpu.memory_space<vmem>>, vector<1x32xf32>
    %34 = vector.shape_cast %33 : vector<1x32xf32> to vector<32xf32>
    %35 = vector.shape_cast %34 : vector<32xf32> to vector<1x1x1x32xf32>
    %36 = vector.broadcast %35 : vector<1x1x1x32xf32> to vector<1x2x2x32xf32>
    %37 = arith.mulf %32, %36 : vector<1x2x2x32xf32>
    %38 = arith.addf %31, %37 : vector<1x2x2x32xf32>
    %c0_38 = arith.constant 0 : index
    %c1_39 = arith.constant 1 : index
    %c1_40 = arith.constant 1 : index
    %c0_41 = arith.constant 0 : index
    %39 = vector.load %arg9[%c0_38, %c1_39, %c1_40, %c0_41] : memref<1x4x4x32xf32, #tpu.memory_space<vmem>>, vector<1x2x2x32xf32>
    %c4 = arith.constant 4 : index
    %c0_42 = arith.constant 0 : index
    %40 = vector.load %arg4[%c4, %c0_42] : memref<9x32xf32, #tpu.memory_space<vmem>>, vector<1x32xf32>
    %41 = vector.shape_cast %40 : vector<1x32xf32> to vector<32xf32>
    %42 = vector.shape_cast %41 : vector<32xf32> to vector<1x1x1x32xf32>
    %43 = vector.broadcast %42 : vector<1x1x1x32xf32> to vector<1x2x2x32xf32>
    %44 = arith.mulf %39, %43 : vector<1x2x2x32xf32>
    %45 = arith.addf %38, %44 : vector<1x2x2x32xf32>
    %c0_43 = arith.constant 0 : index
    %c1_44 = arith.constant 1 : index
    %c2_45 = arith.constant 2 : index
    %c0_46 = arith.constant 0 : index
    %46 = vector.load %arg9[%c0_43, %c1_44, %c2_45, %c0_46] : memref<1x4x4x32xf32, #tpu.memory_space<vmem>>, vector<1x2x2x32xf32>
    %c5 = arith.constant 5 : index
    %c0_47 = arith.constant 0 : index
    %47 = vector.load %arg4[%c5, %c0_47] : memref<9x32xf32, #tpu.memory_space<vmem>>, vector<1x32xf32>
    %48 = vector.shape_cast %47 : vector<1x32xf32> to vector<32xf32>
    %49 = vector.shape_cast %48 : vector<32xf32> to vector<1x1x1x32xf32>
    %50 = vector.broadcast %49 : vector<1x1x1x32xf32> to vector<1x2x2x32xf32>
    %51 = arith.mulf %46, %50 : vector<1x2x2x32xf32>
    %52 = arith.addf %45, %51 : vector<1x2x2x32xf32>
    %c0_48 = arith.constant 0 : index
    %c2_49 = arith.constant 2 : index
    %c0_50 = arith.constant 0 : index
    %c0_51 = arith.constant 0 : index
    %53 = vector.load %arg9[%c0_48, %c2_49, %c0_50, %c0_51] : memref<1x4x4x32xf32, #tpu.memory_space<vmem>>, vector<1x2x2x32xf32>
    %c6 = arith.constant 6 : index
    %c0_52 = arith.constant 0 : index
    %54 = vector.load %arg4[%c6, %c0_52] : memref<9x32xf32, #tpu.memory_space<vmem>>, vector<1x32xf32>
    %55 = vector.shape_cast %54 : vector<1x32xf32> to vector<32xf32>
    %56 = vector.shape_cast %55 : vector<32xf32> to vector<1x1x1x32xf32>
    %57 = vector.broadcast %56 : vector<1x1x1x32xf32> to vector<1x2x2x32xf32>
    %58 = arith.mulf %53, %57 : vector<1x2x2x32xf32>
    %59 = arith.addf %52, %58 : vector<1x2x2x32xf32>
    %c0_53 = arith.constant 0 : index
    %c2_54 = arith.constant 2 : index
    %c1_55 = arith.constant 1 : index
    %c0_56 = arith.constant 0 : index
    %60 = vector.load %arg9[%c0_53, %c2_54, %c1_55, %c0_56] : memref<1x4x4x32xf32, #tpu.memory_space<vmem>>, vector<1x2x2x32xf32>
    %c7 = arith.constant 7 : index
    %c0_57 = arith.constant 0 : index
    %61 = vector.load %arg4[%c7, %c0_57] : memref<9x32xf32, #tpu.memory_space<vmem>>, vector<1x32xf32>
    %62 = vector.shape_cast %61 : vector<1x32xf32> to vector<32xf32>
    %63 = vector.shape_cast %62 : vector<32xf32> to vector<1x1x1x32xf32>
    %64 = vector.broadcast %63 : vector<1x1x1x32xf32> to vector<1x2x2x32xf32>
    %65 = arith.mulf %60, %64 : vector<1x2x2x32xf32>
    %66 = arith.addf %59, %65 : vector<1x2x2x32xf32>
    %c0_58 = arith.constant 0 : index
    %c2_59 = arith.constant 2 : index
    %c2_60 = arith.constant 2 : index
    %c0_61 = arith.constant 0 : index
    %67 = vector.load %arg9[%c0_58, %c2_59, %c2_60, %c0_61] : memref<1x4x4x32xf32, #tpu.memory_space<vmem>>, vector<1x2x2x32xf32>
    %c8 = arith.constant 8 : index
    %c0_62 = arith.constant 0 : index
    %68 = vector.load %arg4[%c8, %c0_62] : memref<9x32xf32, #tpu.memory_space<vmem>>, vector<1x32xf32>
    %69 = vector.shape_cast %68 : vector<1x32xf32> to vector<32xf32>
    %70 = vector.shape_cast %69 : vector<32xf32> to vector<1x1x1x32xf32>
    %71 = vector.broadcast %70 : vector<1x1x1x32xf32> to vector<1x2x2x32xf32>
    %72 = arith.mulf %67, %71 : vector<1x2x2x32xf32>
    %73 = arith.addf %66, %72 : vector<1x2x2x32xf32>
    %c0_63 = arith.constant 0 : index
    %c0_64 = arith.constant 0 : index
    %74 = vector.load %arg5[%c0_63, %c0_64] : memref<1x32xf32, #tpu.memory_space<vmem>>, vector<1x32xf32>
    %75 = vector.shape_cast %74 : vector<1x32xf32> to vector<1x1x1x32xf32>
    %76 = vector.broadcast %75 : vector<1x1x1x32xf32> to vector<1x2x2x32xf32>
    %77 = arith.addf %73, %76 : vector<1x2x2x32xf32>
    %c0_65 = arith.constant 0 : index
    %c0_66 = arith.constant 0 : index
    %78 = vector.load %arg6[%c0_65, %c0_66] : memref<32x128xf32, #tpu.memory_space<vmem>>, vector<32x128xf32>
    "tpu.trace_start"() <{level = 10 : i32, message = "nhwd,de->nhwe"}> : () -> ()
    %cst_67 = arith.constant dense<0.000000e+00> : vector<1x2x2x128xf32>
    %79 = tpu.matmul %77, %78, %cst_67 {dimension_numbers = #tpu.dot_dimension_numbers<[3], [0], [0, 1, 2], [1], [0, 0, 0, 1, 0, 2, 1, 1], [], []>} : vector<1x2x2x32xf32>, vector<32x128xf32>, vector<1x2x2x128xf32> -> vector<1x2x2x128xf32>
    "tpu.trace_stop"() : () -> ()
    %c0_68 = arith.constant 0 : index
    %c0_69 = arith.constant 0 : index
    %80 = vector.load %arg7[%c0_68, %c0_69] : memref<1x128xf32, #tpu.memory_space<vmem>>, vector<1x128xf32>
    %81 = vector.shape_cast %80 : vector<1x128xf32> to vector<1x1x1x128xf32>
    %82 = vector.broadcast %81 : vector<1x1x1x128xf32> to vector<1x2x2x128xf32>
    %83 = arith.addf %79, %82 : vector<1x2x2x128xf32>
    %84 = arith.addf %83, %0 : vector<1x2x2x128xf32>
    %cst_70 = arith.constant 0.000000e+00 : f32
    %85 = vector.broadcast %cst_70 : f32 to vector<1x2x2x128xf32>
    %86 = arith.maximumf %84, %85 : vector<1x2x2x128xf32>
    %c0_71 = arith.constant 0 : index
    %c0_72 = arith.constant 0 : index
    %c0_73 = arith.constant 0 : index
    %c0_74 = arith.constant 0 : index
    %87 = vector.load %arg8[%c0_71, %c0_72, %c0_73, %c0_74] : memref<1x2x2x128xf32, #tpu.memory_space<vmem>>, vector<1x2x2x128xf32>
    tpu.vector_store %arg8[%c0_71, %c0_72, %c0_73, %c0_74], %86 {strides = array<i32>} : memref<1x2x2x128xf32, #tpu.memory_space<vmem>>, vector<1x2x2x128xf32>,
    return
  }
  func.func @transform_0(%arg0: i32) -> (i32, i32, i32, i32) {
    %c0_i32 = arith.constant 0 : i32
    %c0_i32_0 = arith.constant 0 : i32
    %c0_i32_1 = arith.constant 0 : i32
    %c0_i32_2 = arith.constant 0 : i32
    return %arg0, %c0_i32, %c0_i32_0, %c0_i32_1 : i32, i32, i32, i32
  }
  func.func @transform_1(%arg0: i32) -> (i32, i32) {
    %c0_i32 = arith.constant 0 : i32
    %c0_i32_0 = arith.constant 0 : i32
    %c0_i32_1 = arith.constant 0 : i32
    return %c0_i32, %c0_i32_0 : i32, i32
  }
  func.func @transform_2(%arg0: i32) -> (i32, i32) {
    %c0_i32 = arith.constant 0 : i32
    %c0_i32_0 = arith.constant 0 : i32
    %c0_i32_1 = arith.constant 0 : i32
    return %c0_i32, %c0_i32_0 : i32, i32
  }
  func.func @transform_3(%arg0: i32) -> (i32, i32) {
    %c0_i32 = arith.constant 0 : i32
    %c0_i32_0 = arith.constant 0 : i32
    %c0_i32_1 = arith.constant 0 : i32
    return %c0_i32, %c0_i32_0 : i32, i32
  }
  func.func @transform_4(%arg0: i32) -> (i32, i32) {
    %c0_i32 = arith.constant 0 : i32
    %c0_i32_0 = arith.constant 0 : i32
    %c0_i32_1 = arith.constant 0 : i32
    return %c0_i32, %c0_i32_0 : i32, i32
  }
  func.func @transform_5(%arg0: i32) -> (i32, i32) {
    %c0_i32 = arith.constant 0 : i32
    %c0_i32_0 = arith.constant 0 : i32
    %c0_i32_1 = arith.constant 0 : i32
    return %c0_i32, %c0_i32_0 : i32, i32
  }
  func.func @transform_6(%arg0: i32) -> (i32, i32) {
    %c0_i32 = arith.constant 0 : i32
    %c0_i32_0 = arith.constant 0 : i32
    %c0_i32_1 = arith.constant 0 : i32
    return %c0_i32, %c0_i32_0 : i32, i32
  }
  func.func @transform_7(%arg0: i32) -> (i32, i32, i32, i32) {
    %c0_i32 = arith.constant 0 : i32
    %c0_i32_0 = arith.constant 0 : i32
    %c0_i32_1 = arith.constant 0 : i32
    %c0_i32_2 = arith.constant 0 : i32
    return %arg0, %c0_i32, %c0_i32_0, %c0_i32_1 : i32, i32, i32, i32
  }
}

module attributes {stable_mosaic.version = 11 : i64} {
  func.func @_head_kernel(%arg0: memref<2x4x128xf32, #tpu.memory_space<vmem>>, %arg1: memref<128x10xf32, #tpu.memory_space<vmem>>, %arg2: memref<1x10xf32, #tpu.memory_space<vmem>>, %arg3: memref<2x10xf32, #tpu.memory_space<vmem>>) attributes {dimension_semantics = [], scalar_prefetch = 0 : i64, scratch_operands = 0 : i64, tpu.core_type = #tpu.core_type<tc>} {
    %c0 = arith.constant 0 : index
    %c0_0 = arith.constant 0 : index
    %c0_1 = arith.constant 0 : index
    %0 = vector.load %arg0[%c0, %c0_0, %c0_1] : memref<2x4x128xf32, #tpu.memory_space<vmem>>, vector<2x4x128xf32>
    %cst = arith.constant dense<0.000000e+00> : vector<2x128xf32>
    %1 = vector.multi_reduction <add>, %0, %cst [1] : vector<2x4x128xf32> to vector<2x128xf32>
    %cst_2 = arith.constant 4.000000e+00 : f32
    %2 = vector.broadcast %cst_2 : f32 to vector<2x128xf32>
    %3 = arith.divf %1, %2 : vector<2x128xf32>
    %c0_3 = arith.constant 0 : index
    %c0_4 = arith.constant 0 : index
    %4 = vector.load %arg1[%c0_3, %c0_4] : memref<128x10xf32, #tpu.memory_space<vmem>>, vector<128x10xf32>
    %cst_5 = arith.constant dense<0.000000e+00> : vector<2x10xf32>
    %5 = tpu.matmul %3, %4, %cst_5 {dimension_numbers = #tpu.dot_dimension_numbers<[1], [0], [0], [1], [0, 0, 1, 1], [], []>} : vector<2x128xf32>, vector<128x10xf32>, vector<2x10xf32> -> vector<2x10xf32>
    %c0_6 = arith.constant 0 : index
    %c0_7 = arith.constant 0 : index
    %6 = vector.load %arg2[%c0_6, %c0_7] : memref<1x10xf32, #tpu.memory_space<vmem>>, vector<1x10xf32>
    %7 = vector.broadcast %6 : vector<1x10xf32> to vector<2x10xf32>
    %8 = arith.addf %5, %7 : vector<2x10xf32>
    %c0_8 = arith.constant 0 : index
    %c0_9 = arith.constant 0 : index
    %9 = vector.load %arg3[%c0_8, %c0_9] : memref<2x10xf32, #tpu.memory_space<vmem>>, vector<2x10xf32>
    tpu.vector_store %arg3[%c0_8, %c0_9], %8 {strides = array<i32>} : memref<2x10xf32, #tpu.memory_space<vmem>>, vector<2x10xf32>,
    return
  }
}

</mosaic_0001>

<llo_original>
// kernel: shufflenet_fwd.8
$region0: #{shufflenet_fwd.8}
  #allocation0 [shape = 'u32[]', space=smem, size = 0x4, offset = 0x4, fixed_abs, tag = 'smem constant byte address 0x4 - core index']
  #allocation1 [shape = 'u32[144,128]{1,0:T(1,128)}', space=vmem, size = 0x12000, scoped, tag = 'internal scratch']
  #allocation2 [shape = 'f32[1,17,17,12]{3,2,1,0:T(8,128)}', space=vmem, size = 0x33000, scoped, tag = 'scratch operand']
  %s0 = inlined_call_operand.vmem [shape: f32[2,16,16,12], index: 0, kind: input, shape index: {}]
  %s1 = inlined_call_operand.vmem [shape: f32[4,12,24], index: 1, kind: input, shape index: {}]
  %s2 = inlined_call_operand.vmem [shape: f32[1,24], index: 2, kind: input, shape index: {}]
  %s3 = inlined_call_operand.vmem [shape: f32[2,16,16,24], index: 3, kind: output, shape index: {}]
  %s4 = sld [smem:[#allocation0]]
  $region45: #{shufflenet_fwd.8} parent=0
    _
  %s6 = ssub.s32 1, %s4
  %s7 = scalar_select 0, %s6, %s4
  loop: start=0, step=1, limit=4
  $region2: #{shufflenet_fwd.8} parent=0 // loop_pre_header
    _
  $region3: #{shufflenet_fwd.8} parent=0 // loop_header
    %s9 = sphi 0, %s13
    %p10 = scmp.ge.s32.totalorder %s9, 4
    %s19 = sphi 0, %s21
    %s22 = sphi 0, %s19
    %s23 = sphi 0, %s22
    %s39 = sphi 0, %s23
    %s43 = sphi 0, %s43
    %s45 = sphi 0, %s43
    %s46 = sphi 0, %s45
    %s60 = sphi 0, %s46
    %s64 = sphi 0, %s64
    %s66 = sphi 0, %s64
    %s67 = sphi 0, %s66
    %s81 = sphi 0, %s67
    %s87 = sphi 0, %s89
    %s90 = sphi 0, %s87
    %s91 = sphi 0, %s90
    %s107 = sphi 0, %s91
  $region4: #{shufflenet_fwd.8} parent=0 // loop_header_branch
    %12 = sbr.rel (%p10) target = $region8
  $region5: #{shufflenet_fwd.8} parent=0 // loop_body
    %s14 = ssub.s32 %s9, 1
    %s15 = ssub.s32 %s9, 2
    %s16 = sadd.s32 %s9, 1
    %s17 = ssub.s32 %s9, %s16
    %p18 = scmp.eq.s32.totalorder %s17, 0
    %s20 = sadd.s32 %s19, 1
    %s21 = scalar_select %p18, %s19, %s20
    %p24 = pneg %p18
    %p25 = scmp.eq.s32.totalorder %s9, 1
    %p26 = por %p24, %p25
    %p27 = scmp.ne.s32.totalorder %s19, %s22
    %p28 = scmp.eq.s32.totalorder %s9, 0
    %p29 = por %p27, %p28
    %p30 = scmp.ne.s32.totalorder %s19, %s22
    %p31 = scmp.eq.s32.totalorder %s14, 1
    %p32 = por %p30, %p31
    %p33 = scmp.ne.s32.totalorder %s22, %s23
    %p34 = scmp.eq.s32.totalorder %s14, 0
    %p35 = por %p33, %p34
    %p36 = scmp.ne.s32.totalorder %s22, %s23
    %p37 = scmp.eq.s32.totalorder %s15, 1
    %p38 = por %p36, %p37
    %p40 = scmp.ne.s32.totalorder %s23, %s39
    %p41 = scmp.eq.s32.totalorder %s15, 0
    %p42 = por %p40, %p41
    %s44 = sadd.s32 %s43, 1
    %p47 = scmp.eq.s32.totalorder %s9, 1
    %p48 = scmp.ne.s32.totalorder %s43, %s45
    %p49 = scmp.eq.s32.totalorder %s9, 0
    %p50 = por %p48, %p49
    %p51 = scmp.ne.s32.totalorder %s43, %s45
    %p52 = scmp.eq.s32.totalorder %s14, 1
    %p53 = por %p51, %p52
    %p54 = scmp.ne.s32.totalorder %s45, %s46
    %p55 = scmp.eq.s32.totalorder %s14, 0
    %p56 = por %p54, %p55
    %p57 = scmp.ne.s32.totalorder %s45, %s46
    %p58 = scmp.eq.s32.totalorder %s15, 1
    %p59 = por %p57, %p58
    %p61 = scmp.ne.s32.totalorder %s46, %s60
    %p62 = scmp.eq.s32.totalorder %s15, 0
    %p63 = por %p61, %p62
    %s65 = sadd.s32 %s64, 1
    %p68 = scmp.eq.s32.totalorder %s9, 1
    %p69 = scmp.ne.s32.totalorder %s64, %s66
    %p70 = scmp.eq.s32.totalorder %s9, 0
    %p71 = por %p69, %p70
    %p72 = scmp.ne.s32.totalorder %s64, %s66
    %p73 = scmp.eq.s32.totalorder %s14, 1
    %p74 = por %p72, %p73
    %p75 = scmp.ne.s32.totalorder %s66, %s67
    %p76 = scmp.eq.s32.totalorder %s14, 0
    %p77 = por %p75, %p76
    %p78 = scmp.ne.s32.totalorder %s66, %s67
    %p79 = scmp.eq.s32.totalorder %s15, 1
    %p80 = por %p78, %p79
    %p82 = scmp.ne.s32.totalorder %s67, %s81
    %p83 = scmp.eq.s32.totalorder %s15, 0
    %p84 = por %p82, %p83
    %s85 = ssub.s32 %s9, %s16
    %p86 = scmp.eq.s32.totalorder %s85, 0
    %s88 = sadd.s32 %s87, 1
    %s89 = scalar_select %p86, %s87, %s88
    %p92 = pneg %p86
    %p93 = scmp.eq.s32.totalorder %s9, 1
    %p94 = por %p92, %p93
    %p95 = scmp.ne.s32.totalorder %s87, %s90
    %p96 = scmp.eq.s32.totalorder %s9, 0
    %p97 = por %p95, %p96
    %p98 = scmp.ne.s32.totalorder %s87, %s90
    %p99 = scmp.eq.s32.totalorder %s14, 1
    %p100 = por %p98, %p99
    %p101 = scmp.ne.s32.totalorder %s90, %s91
    %p102 = scmp.eq.s32.totalorder %s14, 0
    %p103 = por %p101, %p102
    %p104 = scmp.ne.s32.totalorder %s90, %s91
    %p105 = scmp.eq.s32.totalorder %s15, 1
    %p106 = por %p104, %p105
    %p108 = scmp.ne.s32.totalorder %s91, %s107
    %p109 = scmp.eq.s32.totalorder %s15, 0
    %p110 = por %p108, %p109
    %p111 = scmp.le.s32.totalorder 1, %s9
    %p112 = scmp.lt.s32.totalorder %s9, 3
    %p113 = pnand %p111, %p112
    %p114 = pneg %p113
    // Predicated region
    $region9: #{shufflenet_fwd.8} parent=5 // pred_check
      _
    $region10: #{shufflenet_fwd.8} parent=5 // pred_check_branch
      %116 = sbr.rel (%p113) target = $region12
    $region11: #{shufflenet_fwd.8} parent=5 // pred_region
      %s117 = ssub.s32 %s9, 1
      // Predicated region
      $region13: #{shufflenet_fwd.8} parent=11 // pred_check
        %p118 = pneg %p56
      $region14: #{shufflenet_fwd.8} parent=11 // pred_check_branch
        %120 = sbr.rel (%p118) target = $region16
      $region15: #{shufflenet_fwd.8} parent=11 // pred_region
        _
      $region16: #{shufflenet_fwd.8} parent=11 // pred_fallthru
        _
      // Predicated region
      $region17: #{shufflenet_fwd.8} parent=11 // pred_check
        %p121 = pneg %p77
      $region18: #{shufflenet_fwd.8} parent=11 // pred_check_branch
        %123 = sbr.rel (%p121) target = $region20
      $region19: #{shufflenet_fwd.8} parent=11 // pred_region
        _
      $region20: #{shufflenet_fwd.8} parent=11 // pred_fallthru
        _
    $region12: #{shufflenet_fwd.8} parent=5 // pred_fallthru
      _
    %p124 = scmp.lt.s32.totalorder %s9, 2
    // Predicated region
    $region21: #{shufflenet_fwd.8} parent=5 // pred_check
      %p125 = pneg %p124
    $region22: #{shufflenet_fwd.8} parent=5 // pred_check_branch
      %127 = sbr.rel (%p125) target = $region24
    $region23: #{shufflenet_fwd.8} parent=5 // pred_region
      // Predicated region
      $region25: #{shufflenet_fwd.8} parent=23 // pred_check
        %p128 = pneg %p29
      $region26: #{shufflenet_fwd.8} parent=23 // pred_check_branch
        %130 = sbr.rel (%p128) target = $region28
      $region27: #{shufflenet_fwd.8} parent=23 // pred_region
        %p131 = scmp.lt.s32.totalorder %s9, 1
        %s132 = scalar_select %p131, %s9, 1
        %s133 = smul.addr %s132, 32
        %s134 = smul.addr %s133, 8
        %s135 = scalar_lea.vmem %s0, %s134
      $region28: #{shufflenet_fwd.8} parent=23 // pred_fallthru
        _
    $region24: #{shufflenet_fwd.8} parent=5 // pred_fallthru
      _
    %p136 = scmp.le.s32.totalorder 1, %s9
    %p137 = scmp.lt.s32.totalorder %s9, 3
    %p138 = pnand %p136, %p137
    %p139 = pneg %p138
    // Predicated region
    $region29: #{shufflenet_fwd.8} parent=5 // pred_check
      _
    $region30: #{shufflenet_fwd.8} parent=5 // pred_check_branch
      %141 = sbr.rel (%p138) target = $region32
    $region31: #{shufflenet_fwd.8} parent=5 // pred_region
      %s142 = ssub.s32 %s9, 1
      %p143 = scmp.lt.s32.totalorder %s14, 1
      %s144 = scalar_select %p143, %s14, 1
      %s145 = smul.addr %s144, 32
      %s146 = smul.addr %s145, 8
      %s147 = scalar_lea.vmem %s0, %s146
      %p148 = pneg %p35
      %p149 = pneg %p32
      %p150 = pneg %p56
      %p151 = pneg %p53
      %p152 = pneg %p77
      %p153 = pneg %p74
      %p154 = pneg %p103
      %p155 = pneg %p100
      %p156 = scmp.lt.s32.totalorder %s14, 1
      %s157 = scalar_select %p156, %s14, 1
      %s158 = smul.addr %s157, 32
      %s159 = smul.addr %s158, 8
      %s160 = scalar_lea.vmem %s3, %s159
      %p161 = scmp.lt.s32.totalorder %s14, 1
      %s162 = scalar_select %p161, %s14, 1
      %s163 = smul.addr %s162, 32
      %s164 = smul.addr %s163, 8
      %s165 = scalar_lea.vmem %s0, %s164
      %p166 = scmp.lt.s32.totalorder %s14, 1
      %s167 = scalar_select %p166, %s14, 1
      %s168 = smul.addr %s167, 32
      %s169 = smul.addr %s168, 8
      %s170 = scalar_lea.vmem %s3, %s169
      %vm171 = vcmask 97280
      %172 = vst.msk [vmem:[#allocation2] sm:$0xff] %vm171, 0.0
      %173 = vst.msk [vmem:[#allocation2 + $0x8] sm:$0xff] %vm171, 0.0
      %vm174 = vcmask 90112
      %175 = vst.msk [vmem:[#allocation2 + $0x10] sm:$0x1] %vm174, 0.0
      %176 = vst.msk [vmem:[#allocation2 + $0x18] sm:$0xff] %vm171, 0.0
      %177 = vst.msk [vmem:[#allocation2 + $0x20] sm:$0xff] %vm171, 0.0
      %178 = vst.msk [vmem:[#allocation2 + $0x28] sm:$0x1] %vm174, 0.0
      %179 = vst.msk [vmem:[#allocation2 + $0x30] sm:$0xff] %vm171, 0.0
      %180 = vst.msk [vmem:[#allocation2 + $0x38] sm:$0xff] %vm171, 0.0
      %181 = vst.msk [vmem:[#allocation2 + $0x40] sm:$0x1] %vm174, 0.0
      %182 = vst.msk [vmem:[#allocation2 + $0x48] sm:$0xff] %vm171, 0.0
      %183 = vst.msk [vmem:[#allocation2 + $0x50] sm:$0xff] %vm171, 0.0
      %184 = vst.msk [vmem:[#allocation2 + $0x58] sm:$0x1] %vm174, 0.0
      %185 = vst.msk [vmem:[#allocation2 + $0x60] sm:$0xff] %vm171, 0.0
      %186 = vst.msk [vmem:[#allocation2 + $0x68] sm:$0xff] %vm171, 0.0
      %187 = vst.msk [vmem:[#allocation2 + $0x70] sm:$0x1] %vm174, 0.0
      %188 = vst.msk [vmem:[#allocation2 + $0x78] sm:$0xff] %vm171, 0.0
      %189 = vst.msk [vmem:[#allocation2 + $0x80] sm:$0xff] %vm171, 0.0
      %190 = vst.msk [vmem:[#allocation2 + $0x88] sm:$0x1] %vm174, 0.0
      %191 = vst.msk [vmem:[#allocation2 + $0x90] sm:$0xff] %vm171, 0.0
      %192 = vst.msk [vmem:[#allocation2 + $0x98] sm:$0xff] %vm171, 0.0
      %193 = vst.msk [vmem:[#allocation2 + $0xa0] sm:$0x1] %vm174, 0.0
      %194 = vst.msk [vmem:[#allocation2 + $0xa8] sm:$0xff] %vm171, 0.0
      %195 = vst.msk [vmem:[#allocation2 + $0xb0] sm:$0xff] %vm171, 0.0
      %196 = vst.msk [vmem:[#allocation2 + $0xb8] sm:$0x1] %vm174, 0.0
      %197 = vst.msk [vmem:[#allocation2 + $0xc0] sm:$0xff] %vm171, 0.0
      %198 = vst.msk [vmem:[#allocation2 + $0xc8] sm:$0xff] %vm171, 0.0
      %199 = vst.msk [vmem:[#allocation2 + $0xd0] sm:$0x1] %vm174, 0.0
      %200 = vst.msk [vmem:[#allocation2 + $0xd8] sm:$0xff] %vm171, 0.0
      %201 = vst.msk [vmem:[#allocation2 + $0xe0] sm:$0xff] %vm171, 0.0
      %202 = vst.msk [vmem:[#allocation2 + $0xe8] sm:$0x1] %vm174, 0.0
      %203 = vst.msk [vmem:[#allocation2 + $0xf0] sm:$0xff] %vm171, 0.0
      %204 = vst.msk [vmem:[#allocation2 + $0xf8] sm:$0xff] %vm171, 0.0
      %205 = vst.msk [vmem:[#allocation2 + $0x100] sm:$0x1] %vm174, 0.0
      %206 = vst.msk [vmem:[#allocation2 + $0x108] sm:$0xff] %vm171, 0.0
      %207 = vst.msk [vmem:[#allocation2 + $0x110] sm:$0xff] %vm171, 0.0
      %208 = vst.msk [vmem:[#allocation2 + $0x118] sm:$0x1] %vm174, 0.0
      %209 = vst.msk [vmem:[#allocation2 + $0x120] sm:$0xff] %vm171, 0.0
      %210 = vst.msk [vmem:[#allocation2 + $0x128] sm:$0xff] %vm171, 0.0
      %211 = vst.msk [vmem:[#allocation2 + $0x130] sm:$0x1] %vm174, 0.0
      %212 = vst.msk [vmem:[#allocation2 + $0x138] sm:$0xff] %vm171, 0.0
      %213 = vst.msk [vmem:[#allocation2 + $0x140] sm:$0xff] %vm171, 0.0
      %214 = vst.msk [vmem:[#allocation2 + $0x148] sm:$0x1] %vm174, 0.0
      %215 = vst.msk [vmem:[#allocation2 + $0x150] sm:$0xff] %vm171, 0.0
      %216 = vst.msk [vmem:[#allocation2 + $0x158] sm:$0xff] %vm171, 0.0
      %217 = vst.msk [vmem:[#allocation2 + $0x160] sm:$0x1] %vm174, 0.0
      %218 = vst.msk [vmem:[#allocation2 + $0x168] sm:$0xff] %vm171, 0.0
      %219 = vst.msk [vmem:[#allocation2 + $0x170] sm:$0xff] %vm171, 0.0
      %220 = vst.msk [vmem:[#allocation2 + $0x178] sm:$0x1] %vm174, 0.0
      %221 = vst.msk [vmem:[#allocation2 + $0x180] sm:$0xff] %vm171, 0.0
      %222 = vst.msk [vmem:[#allocation2 + $0x188] sm:$0xff] %vm171, 0.0
      %223 = vst.msk [vmem:[#allocation2 + $0x190] sm:$0x1] %vm174, 0.0
      %v224 = vld [vmem:[%s165] sm:$0xff]
      %v225 = vld [vmem:[%s165 + $0x8] sm:$0xff]
      %v226 = vld [vmem:[%s165 + $0x10] sm:$0xff]
      %v227 = vld [vmem:[%s165 + $0x18] sm:$0xff]
      %v228 = vld [vmem:[%s165 + $0x20] sm:$0xff]
      %v229 = vld [vmem:[%s165 + $0x28] sm:$0xff]
      %v230 = vld [vmem:[%s165 + $0x30] sm:$0xff]
      %v231 = vld [vmem:[%s165 + $0x38] sm:$0xff]
      %v232 = vld [vmem:[%s165 + $0x40] sm:$0xff]
      %v233 = vld [vmem:[%s165 + $0x48] sm:$0xff]
      %v234 = vld [vmem:[%s165 + $0x50] sm:$0xff]
      %v235 = vld [vmem:[%s165 + $0x58] sm:$0xff]
      %v236 = vld [vmem:[%s165 + $0x60] sm:$0xff]
      %v237 = vld [vmem:[%s165 + $0x68] sm:$0xff]
      %v238 = vld [vmem:[%s165 + $0x70] sm:$0xff]
      %v239 = vld [vmem:[%s165 + $0x78] sm:$0xff]
      %v240 = vld [vmem:[%s165 + $0x80] sm:$0xff]
      %v241 = vld [vmem:[%s165 + $0x88] sm:$0xff]
      %v242 = vld [vmem:[%s165 + $0x90] sm:$0xff]
      %v243 = vld [vmem:[%s165 + $0x98] sm:$0xff]
      %v244 = vld [vmem:[%s165 + $0xa0] sm:$0xff]
      %v245 = vld [vmem:[%s165 + $0xa8] sm:$0xff]
      %v246 = vld [vmem:[%s165 + $0xb0] sm:$0xff]
      %v247 = vld [vmem:[%s165 + $0xb8] sm:$0xff]
      %v248 = vld [vmem:[%s165 + $0xc0] sm:$0xff]
      %v249 = vld [vmem:[%s165 + $0xc8] sm:$0xff]
      %v250 = vld [vmem:[%s165 + $0xd0] sm:$0xff]
      %v251 = vld [vmem:[%s165 + $0xd8] sm:$0xff]
      %v252 = vld [vmem:[%s165 + $0xe0] sm:$0xff]
      %v253 = vld [vmem:[%s165 + $0xe8] sm:$0xff]
      %v254 = vld [vmem:[%s165 + $0xf0] sm:$0xff]
      %v255 = vld [vmem:[%s165 + $0xf8] sm:$0xff]
      %s256 = scalar_lea.vmem [#allocation2], 24
      %257 = vst.msk [vmem:[%s256 + $0x1] sm:$0xff] %vm171, %v224
      %258 = vst.msk [vmem:[%s256 + $0x9] sm:$0xff] %vm171, %v225
      %259 = vst.msk [vmem:[%s256 + $0x19] sm:$0xff] %vm171, %v226
      %260 = vst.msk [vmem:[%s256 + $0x21] sm:$0xff] %vm171, %v227
      %261 = vst.msk [vmem:[%s256 + $0x31] sm:$0xff] %vm171, %v228
      %262 = vst.msk [vmem:[%s256 + $0x39] sm:$0xff] %vm171, %v229
      %263 = vst.msk [vmem:[%s256 + $0x49] sm:$0xff] %vm171, %v230
      %264 = vst.msk [vmem:[%s256 + $0x51] sm:$0xff] %vm171, %v231
      %265 = vst.msk [vmem:[%s256 + $0x61] sm:$0xff] %vm171, %v232
      %266 = vst.msk [vmem:[%s256 + $0x69] sm:$0xff] %vm171, %v233
      %267 = vst.msk [vmem:[%s256 + $0x79] sm:$0xff] %vm171, %v234
      %268 = vst.msk [vmem:[%s256 + $0x81] sm:$0xff] %vm171, %v235
      %269 = vst.msk [vmem:[%s256 + $0x91] sm:$0xff] %vm171, %v236
      %270 = vst.msk [vmem:[%s256 + $0x99] sm:$0xff] %vm171, %v237
      %271 = vst.msk [vmem:[%s256 + $0xa9] sm:$0xff] %vm171, %v238
      %272 = vst.msk [vmem:[%s256 + $0xb1] sm:$0xff] %vm171, %v239
      %273 = vst.msk [vmem:[%s256 + $0xc1] sm:$0xff] %vm171, %v240
      %274 = vst.msk [vmem:[%s256 + $0xc9] sm:$0xff] %vm171, %v241
      %275 = vst.msk [vmem:[%s256 + $0xd9] sm:$0xff] %vm171, %v242
      %276 = vst.msk [vmem:[%s256 + $0xe1] sm:$0xff] %vm171, %v243
      %277 = vst.msk [vmem:[%s256 + $0xf1] sm:$0xff] %vm171, %v244
      %278 = vst.msk [vmem:[%s256 + $0xf9] sm:$0xff] %vm171, %v245
      %279 = vst.msk [vmem:[%s256 + $0x109] sm:$0xff] %vm171, %v246
      %280 = vst.msk [vmem:[%s256 + $0x111] sm:$0xff] %vm171, %v247
      %281 = vst.msk [vmem:[%s256 + $0x121] sm:$0xff] %vm171, %v248
      %282 = vst.msk [vmem:[%s256 + $0x129] sm:$0xff] %vm171, %v249
      %283 = vst.msk [vmem:[%s256 + $0x139] sm:$0xff] %vm171, %v250
      %284 = vst.msk [vmem:[%s256 + $0x141] sm:$0xff] %vm171, %v251
      %285 = vst.msk [vmem:[%s256 + $0x151] sm:$0xff] %vm171, %v252
      %286 = vst.msk [vmem:[%s256 + $0x159] sm:$0xff] %vm171, %v253
      %287 = vst.msk [vmem:[%s256 + $0x169] sm:$0xff] %vm171, %v254
      %288 = vst.msk [vmem:[%s256 + $0x171] sm:$0xff] %vm171, %v255
      %v289 = vld [vmem:[#allocation2] sm:$0xff]
      %v290 = vld [vmem:[#allocation2 + $0x8] sm:$0xff]
      %v291 = vld [vmem:[#allocation2 + $0x18] sm:$0xff]
      %v292 = vld [vmem:[#allocation2 + $0x20] sm:$0xff]
      %v293 = vld [vmem:[#allocation2 + $0x30] sm:$0xff]
      %v294 = vld [vmem:[#allocation2 + $0x38] sm:$0xff]
      %v295 = vld [vmem:[#allocation2 + $0x48] sm:$0xff]
      %v296 = vld [vmem:[#allocation2 + $0x50] sm:$0xff]
      %v297 = vld [vmem:[#allocation2 + $0x60] sm:$0xff]
      %v298 = vld [vmem:[#allocation2 + $0x68] sm:$0xff]
      %v299 = vld [vmem:[#allocation2 + $0x78] sm:$0xff]
      %v300 = vld [vmem:[#allocation2 + $0x80] sm:$0xff]
      %v301 = vld [vmem:[#allocation2 + $0x90] sm:$0xff]
      %v302 = vld [vmem:[#allocation2 + $0x98] sm:$0xff]
      %v303 = vld [vmem:[#allocation2 + $0xa8] sm:$0xff]
      %v304 = vld [vmem:[#allocation2 + $0xb0] sm:$0xff]
      %v305 = vld [vmem:[#allocation2 + $0xc0] sm:$0xff]
      %v306 = vld [vmem:[#allocation2 + $0xc8] sm:$0xff]
      %v307 = vld [vmem:[#allocation2 + $0xd8] sm:$0xff]
      %v308 = vld [vmem:[#allocation2 + $0xe0] sm:$0xff]
      %v309 = vld [vmem:[#allocation2 + $0xf0] sm:$0xff]
      %v310 = vld [vmem:[#allocation2 + $0xf8] sm:$0xff]
      %v311 = vld [vmem:[#allocation2 + $0x108] sm:$0xff]
      %v312 = vld [vmem:[#allocation2 + $0x110] sm:$0xff]
      %v313 = vld [vmem:[#allocation2 + $0x120] sm:$0xff]
      %v314 = vld [vmem:[#allocation2 + $0x128] sm:$0xff]
      %v315 = vld [vmem:[#allocation2 + $0x138] sm:$0xff]
      %v316 = vld [vmem:[#allocation2 + $0x140] sm:$0xff]
      %v317 = vld [vmem:[#allocation2 + $0x150] sm:$0xff]
      %v318 = vld [vmem:[#allocation2 + $0x158] sm:$0xff]
      %v319 = vld [vmem:[#allocation2 + $0x168] sm:$0xff]
      %v320 = vld [vmem:[#allocation2 + $0x170] sm:$0xff]
      %v321 = vld [vmem:[%s1] sm:$0xff]
      %v322 = vld [vmem:[%s1 + $0x8] sm:$0xf]
      %v323 = vld [vmem:[#allocation2 + $0x1] sm:$0xff]
      %v324 = vld [vmem:[#allocation2 + $0x9] sm:$0xff]
      %v325 = vld [vmem:[#allocation2 + $0x19] sm:$0xff]
      %v326 = vld [vmem:[#allocation2 + $0x21] sm:$0xff]
      %v327 = vld [vmem:[#allocation2 + $0x31] sm:$0xff]
      %v328 = vld [vmem:[#allocation2 + $0x39] sm:$0xff]
      %v329 = vld [vmem:[#allocation2 + $0x49] sm:$0xff]
      %v330 = vld [vmem:[#allocation2 + $0x51] sm:$0xff]
      %v331 = vld [vmem:[#allocation2 + $0x61] sm:$0xff]
      %v332 = vld [vmem:[#allocation2 + $0x69] sm:$0xff]
      %v333 = vld [vmem:[#allocation2 + $0x79] sm:$0xff]
      %v334 = vld [vmem:[#allocation2 + $0x81] sm:$0xff]
      %v335 = vld [vmem:[#allocation2 + $0x91] sm:$0xff]
      %v336 = vld [vmem:[#allocation2 + $0x99] sm:$0xff]
      %v337 = vld [vmem:[#allocation2 + $0xa9] sm:$0xff]
      %v338 = vld [vmem:[#allocation2 + $0xb1] sm:$0xff]
      %v339 = vld [vmem:[#allocation2 + $0xc1] sm:$0xff]
      %v340 = vld [vmem:[#allocation2 + $0xc9] sm:$0xff]
      %v341 = vld [vmem:[#allocation2 + $0xd9] sm:$0xff]
      %v342 = vld [vmem:[#allocation2 + $0xe1] sm:$0xff]
      %v343 = vld [vmem:[#allocation2 + $0xf1] sm:$0xff]
      %v344 = vld [vmem:[#allocation2 + $0xf9] sm:$0xff]
      %v345 = vld [vmem:[#allocation2 + $0x109] sm:$0xff]
      %v346 = vld [vmem:[#allocation2 + $0x111] sm:$0xff]
      %v347 = vld [vmem:[#allocation2 + $0x121] sm:$0xff]
      %v348 = vld [vmem:[#allocation2 + $0x129] sm:$0xff]
      %v349 = vld [vmem:[#allocation2 + $0x139] sm:$0xff]
      %v350 = vld [vmem:[#allocation2 + $0x141] sm:$0xff]
      %v351 = vld [vmem:[#allocation2 + $0x151] sm:$0xff]
      %v352 = vld [vmem:[#allocation2 + $0x159] sm:$0xff]
      %v353 = vld [vmem:[#allocation2 + $0x169] sm:$0xff]
      %v354 = vld [vmem:[#allocation2 + $0x171] sm:$0xff]
      %s355 = scalar_lea.vmem %s1, 16
      %v356 = vld [vmem:[%s355] sm:$0xff]
      %v357 = vld [vmem:[%s355 + $0x8] sm:$0xf]
      %v359 = vsel %vm171, %v323, 0
      %v362 = vsel %vm171, %v324, 0
      %v365 = vsel %vm171, %v325, 0
      %v368 = vsel %vm171, %v326, 0
      %v371 = vsel %vm171, %v327, 0
      %v374 = vsel %vm171, %v328, 0
      %v377 = vsel %vm171, %v329, 0
      %v380 = vsel %vm171, %v330, 0
      %v383 = vsel %vm171, %v331, 0
      %v386 = vsel %vm171, %v332, 0
      %v389 = vsel %vm171, %v333, 0
      %v392 = vsel %vm171, %v334, 0
      %v395 = vsel %vm171, %v335, 0
      %v398 = vsel %vm171, %v336, 0
      %v401 = vsel %vm171, %v337, 0
      %v404 = vsel %vm171, %v338, 0
      %v407 = vsel %vm171, %v339, 0
      %v410 = vsel %vm171, %v340, 0
      %v413 = vsel %vm171, %v341, 0
      %v416 = vsel %vm171, %v342, 0
      %v419 = vsel %vm171, %v343, 0
      %v422 = vsel %vm171, %v344, 0
      %v425 = vsel %vm171, %v345, 0
      %v428 = vsel %vm171, %v346, 0
      %v431 = vsel %vm171, %v347, 0
      %v434 = vsel %vm171, %v348, 0
      %v437 = vsel %vm171, %v349, 0
      %v440 = vsel %vm171, %v350, 0
      %v443 = vsel %vm171, %v351, 0
      %v446 = vsel %vm171, %v352, 0
      %v449 = vsel %vm171, %v353, 0
      %v452 = vsel %vm171, %v354, 0
      %vm454 = vcmask 1043456
      %v456 = vsel %vm454, %v357, 0
      %458 = vmatprep.subr.mxu0 0.0
      %459 = vmatpush1.msra.mxu0 %v356
      %460 = vmatprep.subr.mxu0 0.0
      %461 = vmatpush1.msra.mxu0 %v456
      %462 = vmatprep.subr.mxu0 0.0
      %463 = vmatpush1.msra.mxu0 0.0
      %464 = vmatprep.subr.mxu0 0.0
      %465 = vmatpush1.msra.mxu0 0.0
      %466 = vmatprep.subr.mxu0 0.0
      %467 = vmatpush1.msra.mxu0 0.0
      %468 = vmatprep.subr.mxu0 0.0
      %469 = vmatpush1.msra.mxu0 0.0
      %470 = vmatprep.subr.mxu0 0.0
      %471 = vmatpush1.msra.mxu0 0.0
      %472 = vmatprep.subr.mxu0 0.0
      %473 = vmatpush1.msra.mxu0 0.0
      %474 = vmatprep.subr.mxu0 0.0
      %475 = vmatpush1.msra.mxu0 0.0
      %476 = vmatprep.subr.mxu0 0.0
      %477 = vmatpush1.msra.mxu0 0.0
      %478 = vmatprep.subr.mxu0 0.0
      %479 = vmatpush1.msra.mxu0 0.0
      %480 = vmatprep.subr.mxu0 0.0
      %481 = vmatpush1.msra.mxu0 0.0
      %482 = vmatprep.subr.mxu0 0.0
      %483 = vmatpush1.msra.mxu0 0.0
      %484 = vmatprep.subr.mxu0 0.0
      %485 = vmatpush1.msra.mxu0 0.0
      %486 = vmatprep.subr.mxu0 0.0
      %487 = vmatpush1.msra.mxu0 0.0
      %488 = vmatprep.subr.mxu0 0.0
      %489 = vmatpush1.msra.mxu0 0.0
      %490 = vmatprep.subr.mxu0 0.0
      %491 = vmatpush1.msra.mxu0 0.0
      %492 = vmatprep.subr.mxu0 0.0
      %493 = vmatpush1.msra.mxu0 0.0
      %494 = vmatprep.subr.mxu0 0.0
      %495 = vmatpush1.msra.mxu0 0.0
      %496 = vmatprep.subr.mxu0 0.0
      %497 = vmatpush1.msra.mxu0 0.0
      %498 = vmatprep.subr.mxu0 0.0
      %499 = vmatpush1.msra.mxu0 0.0
      %500 = vmatprep.subr.mxu0 0.0
      %501 = vmatpush1.msra.mxu0 0.0
      %502 = vmatprep.subr.mxu0 0.0
      %503 = vmatpush1.msra.mxu0 0.0
      %504 = vmatprep.subr.mxu0 0.0
      %505 = vmatpush1.msra.mxu0 0.0
      %506 = vmatprep.subr.mxu0 0.0
      %507 = vmatpush1.msra.mxu0 0.0
      %508 = vmatprep.subr.mxu0 0.0
      %509 = vmatpush1.msra.mxu0 0.0
      %510 = vmatprep.subr.mxu0 0.0
      %511 = vmatpush1.msra.mxu0 0.0
      %512 = vmatprep.subr.mxu0 0.0
      %513 = vmatpush1.msra.mxu0 0.0
      %514 = vmatprep.subr.mxu0 0.0
      %515 = vmatpush1.msra.mxu0 0.0
      %516 = vmatprep.subr.mxu0 0.0
      %517 = vmatpush1.msra.mxu0 0.0
      %518 = vmatprep.subr.mxu0 0.0
      %519 = vmatpush1.msra.mxu0 0.0
      %520 = vmatprep.subr.mxu0 0.0
      %521 = vmatpush1.msra.mxu0 0.0
      %522 = vmatprep.mubr.f32.mxu0 0.0
      %523 = vmatmul.mubr.f32.gmra.mrb[0].mxu0 %v359
      %v524 = vpop.f32.mrb[0].mxu0
      %v525 = vadd.f32 0.0, %v524
      %v526 = vpop.f32.mrb[0].mxu0
      %527 = vmatprep.mubr.f32.mxu0 0.0
      %528 = vmatmul.mubr.f32.gmra.mrb[0].mxu0 %v362
      %v529 = vpop.f32.mrb[0].mxu0
      %v530 = vadd.f32 0.0, %v529
      %v531 = vpop.f32.mrb[0].mxu0
      %532 = vmatprep.mubr.f32.mxu0 0.0
      %533 = vmatmul.mubr.f32.gmra.mrb[0].mxu0 %v365
      %v534 = vpop.f32.mrb[0].mxu0
      %v535 = vadd.f32 0.0, %v534
      %v536 = vpop.f32.mrb[0].mxu0
      %537 = vmatprep.mubr.f32.mxu0 0.0
      %538 = vmatmul.mubr.f32.gmra.mrb[0].mxu0 %v368
      %v539 = vpop.f32.mrb[0].mxu0
      %v540 = vadd.f32 0.0, %v539
      %v541 = vpop.f32.mrb[0].mxu0
      %542 = vmatprep.mubr.f32.mxu0 0.0
      %543 = vmatmul.mubr.f32.gmra.mrb[0].mxu0 %v371
      %v544 = vpop.f32.mrb[0].mxu0
      %v545 = vadd.f32 0.0, %v544
      %v546 = vpop.f32.mrb[0].mxu0
      %547 = vmatprep.mubr.f32.mxu0 0.0
      %548 = vmatmul.mubr.f32.gmra.mrb[0].mxu0 %v374
      %v549 = vpop.f32.mrb[0].mxu0
      %v550 = vadd.f32 0.0, %v549
      %v551 = vpop.f32.mrb[0].mxu0
      %552 = vmatprep.mubr.f32.mxu0 0.0
      %553 = vmatmul.mubr.f32.gmra.mrb[0].mxu0 %v377
      %v554 = vpop.f32.mrb[0].mxu0
      %v555 = vadd.f32 0.0, %v554
      %v556 = vpop.f32.mrb[0].mxu0
      %557 = vmatprep.mubr.f32.mxu0 0.0
      %558 = vmatmul.mubr.f32.gmra.mrb[0].mxu0 %v380
      %v559 = vpop.f32.mrb[0].mxu0
      %v560 = vadd.f32 0.0, %v559
      %v561 = vpop.f32.mrb[0].mxu0
      %562 = vmatprep.mubr.f32.mxu0 0.0
      %563 = vmatmul.mubr.f32.gmra.mrb[0].mxu0 %v383
      %v564 = vpop.f32.mrb[0].mxu0
      %v565 = vadd.f32 0.0, %v564
      %v566 = vpop.f32.mrb[0].mxu0
      %567 = vmatprep.mubr.f32.mxu0 0.0
      %568 = vmatmul.mubr.f32.gmra.mrb[0].mxu0 %v386
      %v569 = vpop.f32.mrb[0].mxu0
      %v570 = vadd.f32 0.0, %v569
      %v571 = vpop.f32.mrb[0].mxu0
      %572 = vmatprep.mubr.f32.mxu0 0.0
      %573 = vmatmul.mubr.f32.gmra.mrb[0].mxu0 %v389
      %v574 = vpop.f32.mrb[0].mxu0
      %v575 = vadd.f32 0.0, %v574
      %v576 = vpop.f32.mrb[0].mxu0
      %577 = vmatprep.mubr.f32.mxu0 0.0
      %578 = vmatmul.mubr.f32.gmra.mrb[0].mxu0 %v392
      %v579 = vpop.f32.mrb[0].mxu0
      %v580 = vadd.f32 0.0, %v579
      %v581 = vpop.f32.mrb[0].mxu0
      %582 = vmatprep.mubr.f32.mxu0 0.0
      %583 = vmatmul.mubr.f32.gmra.mrb[0].mxu0 %v395
      %v584 = vpop.f32.mrb[0].mxu0
      %v585 = vadd.f32 0.0, %v584
      %v586 = vpop.f32.mrb[0].mxu0
      %587 = vmatprep.mubr.f32.mxu0 0.0
      %588 = vmatmul.mubr.f32.gmra.mrb[0].mxu0 %v398
      %v589 = vpop.f32.mrb[0].mxu0
      %v590 = vadd.f32 0.0, %v589
      %v591 = vpop.f32.mrb[0].mxu0
      %592 = vmatprep.mubr.f32.mxu0 0.0
      %593 = vmatmul.mubr.f32.gmra.mrb[0].mxu0 %v401
      %v594 = vpop.f32.mrb[0].mxu0
      %v595 = vadd.f32 0.0, %v594
      %v596 = vpop.f32.mrb[0].mxu0
      %597 = vmatprep.mubr.f32.mxu0 0.0
      %598 = vmatmul.mubr.f32.gmra.mrb[0].mxu0 %v404
      %v599 = vpop.f32.mrb[0].mxu0
      %v600 = vadd.f32 0.0, %v599
      %v601 = vpop.f32.mrb[0].mxu0
      %602 = vmatprep.mubr.f32.mxu0 0.0
      %603 = vmatmul.mubr.f32.gmra.mrb[0].mxu0 %v407
      %v604 = vpop.f32.mrb[0].mxu0
      %v605 = vadd.f32 0.0, %v604
      %v606 = vpop.f32.mrb[0].mxu0
      %607 = vmatprep.mubr.f32.mxu0 0.0
      %608 = vmatmul.mubr.f32.gmra.mrb[0].mxu0 %v410
      %v609 = vpop.f32.mrb[0].mxu0
      %v610 = vadd.f32 0.0, %v609
      %v611 = vpop.f32.mrb[0].mxu0
      %612 = vmatprep.mubr.f32.mxu0 0.0
      %613 = vmatmul.mubr.f32.gmra.mrb[0].mxu0 %v413
      %v614 = vpop.f32.mrb[0].mxu0
      %v615 = vadd.f32 0.0, %v614
      %v616 = vpop.f32.mrb[0].mxu0
      %617 = vmatprep.mubr.f32.mxu0 0.0
      %618 = vmatmul.mubr.f32.gmra.mrb[0].mxu0 %v416
      %v619 = vpop.f32.mrb[0].mxu0
      %v620 = vadd.f32 0.0, %v619
      %v621 = vpop.f32.mrb[0].mxu0
      %622 = vmatprep.mubr.f32.mxu0 0.0
      %623 = vmatmul.mubr.f32.gmra.mrb[0].mxu0 %v419
      %v624 = vpop.f32.mrb[0].mxu0
      %v625 = vadd.f32 0.0, %v624
      %v626 = vpop.f32.mrb[0].mxu0
      %627 = vmatprep.mubr.f32.mxu0 0.0
      %628 = vmatmul.mubr.f32.gmra.mrb[0].mxu0 %v422
      %v629 = vpop.f32.mrb[0].mxu0
      %v630 = vadd.f32 0.0, %v629
      %v631 = vpop.f32.mrb[0].mxu0
      %632 = vmatprep.mubr.f32.mxu0 0.0
      %633 = vmatmul.mubr.f32.gmra.mrb[0].mxu0 %v425
      %v634 = vpop.f32.mrb[0].mxu0
      %v635 = vadd.f32 0.0, %v634
      %v636 = vpop.f32.mrb[0].mxu0
      %637 = vmatprep.mubr.f32.mxu0 0.0
      %638 = vmatmul.mubr.f32.gmra.mrb[0].mxu0 %v428
      %v639 = vpop.f32.mrb[0].mxu0
      %v640 = vadd.f32 0.0, %v639
      %v641 = vpop.f32.mrb[0].mxu0
      %642 = vmatprep.mubr.f32.mxu0 0.0
      %643 = vmatmul.mubr.f32.gmra.mrb[0].mxu0 %v431
      %v644 = vpop.f32.mrb[0].mxu0
      %v645 = vadd.f32 0.0, %v644
      %v646 = vpop.f32.mrb[0].mxu0
      %647 = vmatprep.mubr.f32.mxu0 0.0
      %648 = vmatmul.mubr.f32.gmra.mrb[0].mxu0 %v434
      %v649 = vpop.f32.mrb[0].mxu0
      %v650 = vadd.f32 0.0, %v649
      %v651 = vpop.f32.mrb[0].mxu0
      %652 = vmatprep.mubr.f32.mxu0 0.0
      %653 = vmatmul.mubr.f32.gmra.mrb[0].mxu0 %v437
      %v654 = vpop.f32.mrb[0].mxu0
      %v655 = vadd.f32 0.0, %v654
      %v656 = vpop.f32.mrb[0].mxu0
      %657 = vmatprep.mubr.f32.mxu0 0.0
      %658 = vmatmul.mubr.f32.gmra.mrb[0].mxu0 %v440
      %v659 = vpop.f32.mrb[0].mxu0
      %v660 = vadd.f32 0.0, %v659
      %v661 = vpop.f32.mrb[0].mxu0
      %662 = vmatprep.mubr.f32.mxu0 0.0
      %663 = vmatmul.mubr.f32.gmra.mrb[0].mxu0 %v443
      %v664 = vpop.f32.mrb[0].mxu0
      %v665 = vadd.f32 0.0, %v664
      %v666 = vpop.f32.mrb[0].mxu0
      %667 = vmatprep.mubr.f32.mxu0 0.0
      %668 = vmatmul.mubr.f32.gmra.mrb[0].mxu0 %v446
      %v669 = vpop.f32.mrb[0].mxu0
      %v670 = vadd.f32 0.0, %v669
      %v671 = vpop.f32.mrb[0].mxu0
      %672 = vmatprep.mubr.f32.mxu0 0.0
      %673 = vmatmul.mubr.f32.gmra.mrb[0].mxu0 %v449
      %v674 = vpop.f32.mrb[0].mxu0
      %v675 = vadd.f32 0.0, %v674
      %v676 = vpop.f32.mrb[0].mxu0
      %677 = vmatprep.mubr.f32.mxu0 0.0
      %678 = vmatmul.mubr.f32.gmra.mrb[0].mxu0 %v452
      %v679 = vpop.f32.mrb[0].mxu0
      %v680 = vadd.f32 0.0, %v679
      %v681 = vpop.f32.mrb[0].mxu0
      %682 = vdwg.mxu0
      %v684 = vsel %vm171, %v289, 0
      %v687 = vsel %vm171, %v290, 0
      %v690 = vsel %vm171, %v291, 0
      %v693 = vsel %vm171, %v292, 0
      %v696 = vsel %vm171, %v293, 0
      %v699 = vsel %vm171, %v294, 0
      %v702 = vsel %vm171, %v295, 0
      %v705 = vsel %vm171, %v296, 0
      %v708 = vsel %vm171, %v297, 0
      %v711 = vsel %vm171, %v298, 0
      %v714 = vsel %vm171, %v299, 0
      %v717 = vsel %vm171, %v300, 0
      %v720 = vsel %vm171, %v301, 0
      %v723 = vsel %vm171, %v302, 0
      %v726 = vsel %vm171, %v303, 0
      %v729 = vsel %vm171, %v304, 0
      %v732 = vsel %vm171, %v305, 0
      %v735 = vsel %vm171, %v306, 0
      %v738 = vsel %vm171, %v307, 0
      %v741 = vsel %vm171, %v308, 0
      %v744 = vsel %vm171, %v309, 0
      %v747 = vsel %vm171, %v310, 0
      %v750 = vsel %vm171, %v311, 0
      %v753 = vsel %vm171, %v312, 0
      %v756 = vsel %vm171, %v313, 0
      %v759 = vsel %vm171, %v314, 0
      %v762 = vsel %vm171, %v315, 0
      %v765 = vsel %vm171, %v316, 0
      %v768 = vsel %vm171, %v317, 0
      %v771 = vsel %vm171, %v318, 0
      %v774 = vsel %vm171, %v319, 0
      %v777 = vsel %vm171, %v320, 0
      %v780 = vsel %vm454, %v322, 0
      %782 = vmatprep.subr.mxu0 0.0
      %783 = vmatpush1.msra.mxu0 %v321
      %784 = vmatprep.subr.mxu0 0.0
      %785 = vmatpush1.msra.mxu0 %v780
      %786 = vmatprep.subr.mxu0 0.0
      %787 = vmatpush1.msra.mxu0 0.0
      %788 = vmatprep.subr.mxu0 0.0
      %789 = vmatpush1.msra.mxu0 0.0
      %790 = vmatprep.subr.mxu0 0.0
      %791 = vmatpush1.msra.mxu0 0.0
      %792 = vmatprep.subr.mxu0 0.0
      %793 = vmatpush1.msra.mxu0 0.0
      %794 = vmatprep.subr.mxu0 0.0
      %795 = vmatpush1.msra.mxu0 0.0
      %796 = vmatprep.subr.mxu0 0.0
      %797 = vmatpush1.msra.mxu0 0.0
      %798 = vmatprep.subr.mxu0 0.0
      %799 = vmatpush1.msra.mxu0 0.0
      %800 = vmatprep.subr.mxu0 0.0
      %801 = vmatpush1.msra.mxu0 0.0
      %802 = vmatprep.subr.mxu0 0.0
      %803 = vmatpush1.msra.mxu0 0.0
      %804 = vmatprep.subr.mxu0 0.0
      %805 = vmatpush1.msra.mxu0 0.0
      %806 = vmatprep.subr.mxu0 0.0
      %807 = vmatpush1.msra.mxu0 0.0
      %808 = vmatprep.subr.mxu0 0.0
      %809 = vmatpush1.msra.mxu0 0.0
      %810 = vmatprep.subr.mxu0 0.0
      %811 = vmatpush1.msra.mxu0 0.0
      %812 = vmatprep.subr.mxu0 0.0
      %813 = vmatpush1.msra.mxu0 0.0
      %814 = vmatprep.subr.mxu0 0.0
      %815 = vmatpush1.msra.mxu0 0.0
      %816 = vmatprep.subr.mxu0 0.0
      %817 = vmatpush1.msra.mxu0 0.0
      %818 = vmatprep.subr.mxu0 0.0
      %819 = vmatpush1.msra.mxu0 0.0
      %820 = vmatprep.subr.mxu0 0.0
      %821 = vmatpush1.msra.mxu0 0.0
      %822 = vmatprep.subr.mxu0 0.0
      %823 = vmatpush1.msra.mxu0 0.0
      %824 = vmatprep.subr.mxu0 0.0
      %825 = vmatpush1.msra.mxu0 0.0
      %826 = vmatprep.subr.mxu0 0.0
      %827 = vmatpush1.msra.mxu0 0.0
      %828 = vmatprep.subr.mxu0 0.0
      %829 = vmatpush1.msra.mxu0 0.0
      %830 = vmatprep.subr.mxu0 0.0
      %831 = vmatpush1.msra.mxu0 0.0
      %832 = vmatprep.subr.mxu0 0.0
      %833 = vmatpush1.msra.mxu0 0.0
      %834 = vmatprep.subr.mxu0 0.0
      %835 = vmatpush1.msra.mxu0 0.0
      %836 = vmatprep.subr.mxu0 0.0
      %837 = vmatpush1.msra.mxu0 0.0
      %838 = vmatprep.subr.mxu0 0.0
      %839 = vmatpush1.msra.mxu0 0.0
      %840 = vmatprep.subr.mxu0 0.0
      %841 = vmatpush1.msra.mxu0 0.0
      %842 = vmatprep.subr.mxu0 0.0
      %843 = vmatpush1.msra.mxu0 0.0
      %844 = vmatprep.subr.mxu0 0.0
      %845 = vmatpush1.msra.mxu0 0.0
      %846 = vmatprep.mubr.f32.mxu0 0.0
      %847 = vmatmul.mubr.f32.gmra.mrb[0].mxu0 %v684
      %v848 = vpop.f32.mrb[0].mxu0
      %v849 = vadd.f32 %v525, %v848
      %v850 = vpop.f32.mrb[0].mxu0
      %851 = vmatprep.mubr.f32.mxu0 0.0
      %852 = vmatmul.mubr.f32.gmra.mrb[0].mxu0 %v687
      %v853 = vpop.f32.mrb[0].mxu0
      %v854 = vadd.f32 %v530, %v853
      %v855 = vpop.f32.mrb[0].mxu0
      %856 = vmatprep.mubr.f32.mxu0 0.0
      %857 = vmatmul.mubr.f32.gmra.mrb[0].mxu0 %v690
      %v858 = vpop.f32.mrb[0].mxu0
      %v859 = vadd.f32 %v535, %v858
      %v860 = vpop.f32.mrb[0].mxu0
      %861 = vmatprep.mubr.f32.mxu0 0.0
      %862 = vmatmul.mubr.f32.gmra.mrb[0].mxu0 %v693
      %v863 = vpop.f32.mrb[0].mxu0
      %v864 = vadd.f32 %v540, %v863
      %v865 = vpop.f32.mrb[0].mxu0
      %866 = vmatprep.mubr.f32.mxu0 0.0
      %867 = vmatmul.mubr.f32.gmra.mrb[0].mxu0 %v696
      %v868 = vpop.f32.mrb[0].mxu0
      %v869 = vadd.f32 %v545, %v868
      %v870 = vpop.f32.mrb[0].mxu0
      %871 = vmatprep.mubr.f32.mxu0 0.0
      %872 = vmatmul.mubr.f32.gmra.mrb[0].mxu0 %v699
      %v873 = vpop.f32.mrb[0].mxu0
      %v874 = vadd.f32 %v550, %v873
      %v875 = vpop.f32.mrb[0].mxu0
      %876 = vmatprep.mubr.f32.mxu0 0.0
      %877 = vmatmul.mubr.f32.gmra.mrb[0].mxu0 %v702
      %v878 = vpop.f32.mrb[0].mxu0
      %v879 = vadd.f32 %v555, %v878
      %v880 = vpop.f32.mrb[0].mxu0
      %881 = vmatprep.mubr.f32.mxu0 0.0
      %882 = vmatmul.mubr.f32.gmra.mrb[0].mxu0 %v705
      %v883 = vpop.f32.mrb[0].mxu0
      %v884 = vadd.f32 %v560, %v883
      %v885 = vpop.f32.mrb[0].mxu0
      %886 = vmatprep.mubr.f32.mxu0 0.0
      %887 = vmatmul.mubr.f32.gmra.mrb[0].mxu0 %v708
      %v888 = vpop.f32.mrb[0].mxu0
      %v889 = vadd.f32 %v565, %v888
      %v890 = vpop.f32.mrb[0].mxu0
      %891 = vmatprep.mubr.f32.mxu0 0.0
      %892 = vmatmul.mubr.f32.gmra.mrb[0].mxu0 %v711
      %v893 = vpop.f32.mrb[0].mxu0
      %v894 = vadd.f32 %v570, %v893
      %v895 = vpop.f32.mrb[0].mxu0
      %896 = vmatprep.mubr.f32.mxu0 0.0
      %897 = vmatmul.mubr.f32.gmra.mrb[0].mxu0 %v714
      %v898 = vpop.f32.mrb[0].mxu0
      %v899 = vadd.f32 %v575, %v898
      %v900 = vpop.f32.mrb[0].mxu0
      %901 = vmatprep.mubr.f32.mxu0 0.0
      %902 = vmatmul.mubr.f32.gmra.mrb[0].mxu0 %v717
      %v903 = vpop.f32.mrb[0].mxu0
      %v904 = vadd.f32 %v580, %v903
      %v905 = vpop.f32.mrb[0].mxu0
      %906 = vmatprep.mubr.f32.mxu0 0.0
      %907 = vmatmul.mubr.f32.gmra.mrb[0].mxu0 %v720
      %v908 = vpop.f32.mrb[0].mxu0
      %v909 = vadd.f32 %v585, %v908
      %v910 = vpop.f32.mrb[0].mxu0
      %911 = vmatprep.mubr.f32.mxu0 0.0
      %912 = vmatmul.mubr.f32.gmra.mrb[0].mxu0 %v723
      %v913 = vpop.f32.mrb[0].mxu0
      %v914 = vadd.f32 %v590, %v913
      %v915 = vpop.f32.mrb[0].mxu0
      %916 = vmatprep.mubr.f32.mxu0 0.0
      %917 = vmatmul.mubr.f32.gmra.mrb[0].mxu0 %v726
      %v918 = vpop.f32.mrb[0].mxu0
      %v919 = vadd.f32 %v595, %v918
      %v920 = vpop.f32.mrb[0].mxu0
      %921 = vmatprep.mubr.f32.mxu0 0.0
      %922 = vmatmul.mubr.f32.gmra.mrb[0].mxu0 %v729
      %v923 = vpop.f32.mrb[0].mxu0
      %v924 = vadd.f32 %v600, %v923
      %v925 = vpop.f32.mrb[0].mxu0
      %926 = vmatprep.mubr.f32.mxu0 0.0
      %927 = vmatmul.mubr.f32.gmra.mrb[0].mxu0 %v732
      %v928 = vpop.f32.mrb[0].mxu0
      %v929 = vadd.f32 %v605, %v928
      %v930 = vpop.f32.mrb[0].mxu0
      %931 = vmatprep.mubr.f32.mxu0 0.0
      %932 = vmatmul.mubr.f32.gmra.mrb[0].mxu0 %v735
      %v933 = vpop.f32.mrb[0].mxu0
      %v934 = vadd.f32 %v610, %v933
      %v935 = vpop.f32.mrb[0].mxu0
      %936 = vmatprep.mubr.f32.mxu0 0.0
      %937 = vmatmul.mubr.f32.gmra.mrb[0].mxu0 %v738
      %v938 = vpop.f32.mrb[0].mxu0
      %v939 = vadd.f32 %v615, %v938
      %v940 = vpop.f32.mrb[0].mxu0
      %941 = vmatprep.mubr.f32.mxu0 0.0
      %942 = vmatmul.mubr.f32.gmra.mrb[0].mxu0 %v741
      %v943 = vpop.f32.mrb[0].mxu0
      %v944 = vadd.f32 %v620, %v943
      %v945 = vpop.f32.mrb[0].mxu0
      %946 = vmatprep.mubr.f32.mxu0 0.0
      %947 = vmatmul.mubr.f32.gmra.mrb[0].mxu0 %v744
      %v948 = vpop.f32.mrb[0].mxu0
      %v949 = vadd.f32 %v625, %v948
      %v950 = vpop.f32.mrb[0].mxu0
      %951 = vmatprep.mubr.f32.mxu0 0.0
      %952 = vmatmul.mubr.f32.gmra.mrb[0].mxu0 %v747
      %v953 = vpop.f32.mrb[0].mxu0
      %v954 = vadd.f32 %v630, %v953
      %v955 = vpop.f32.mrb[0].mxu0
      %956 = vmatprep.mubr.f32.mxu0 0.0
      %957 = vmatmul.mubr.f32.gmra.mrb[0].mxu0 %v750
      %v958 = vpop.f32.mrb[0].mxu0
      %v959 = vadd.f32 %v635, %v958
      %v960 = vpop.f32.mrb[0].mxu0
      %961 = vmatprep.mubr.f32.mxu0 0.0
      %962 = vmatmul.mubr.f32.gmra.mrb[0].mxu0 %v753
      %v963 = vpop.f32.mrb[0].mxu0
      %v964 = vadd.f32 %v640, %v963
      %v965 = vpop.f32.mrb[0].mxu0
      %966 = vmatprep.mubr.f32.mxu0 0.0
      %967 = vmatmul.mubr.f32.gmra.mrb[0].mxu0 %v756
      %v968 = vpop.f32.mrb[0].mxu0
      %v969 = vadd.f32 %v645, %v968
      %v970 = vpop.f32.mrb[0].mxu0
      %971 = vmatprep.mubr.f32.mxu0 0.0
      %972 = vmatmul.mubr.f32.gmra.mrb[0].mxu0 %v759
      %v973 = vpop.f32.mrb[0].mxu0
      %v974 = vadd.f32 %v650, %v973
      %v975 = vpop.f32.mrb[0].mxu0
      %976 = vmatprep.mubr.f32.mxu0 0.0
      %977 = vmatmul.mubr.f32.gmra.mrb[0].mxu0 %v762
      %v978 = vpop.f32.mrb[0].mxu0
      %v979 = vadd.f32 %v655, %v978
      %v980 = vpop.f32.mrb[0].mxu0
      %981 = vmatprep.mubr.f32.mxu0 0.0
      %982 = vmatmul.mubr.f32.gmra.mrb[0].mxu0 %v765
      %v983 = vpop.f32.mrb[0].mxu0
      %v984 = vadd.f32 %v660, %v983
      %v985 = vpop.f32.mrb[0].mxu0
      %986 = vmatprep.mubr.f32.mxu0 0.0
      %987 = vmatmul.mubr.f32.gmra.mrb[0].mxu0 %v768
      %v988 = vpop.f32.mrb[0].mxu0
      %v989 = vadd.f32 %v665, %v988
      %v990 = vpop.f32.mrb[0].mxu0
      %991 = vmatprep.mubr.f32.mxu0 0.0
      %992 = vmatmul.mubr.f32.gmra.mrb[0].mxu0 %v771
      %v993 = vpop.f32.mrb[0].mxu0
      %v994 = vadd.f32 %v670, %v993
      %v995 = vpop.f32.mrb[0].mxu0
      %996 = vmatprep.mubr.f32.mxu0 0.0
      %997 = vmatmul.mubr.f32.gmra.mrb[0].mxu0 %v774
      %v998 = vpop.f32.mrb[0].mxu0
      %v999 = vadd.f32 %v675, %v998
      %v1000 = vpop.f32.mrb[0].mxu0
      %1001 = vmatprep.mubr.f32.mxu0 0.0
      %1002 = vmatmul.mubr.f32.gmra.mrb[0].mxu0 %v777
      %v1003 = vpop.f32.mrb[0].mxu0
      %v1004 = vadd.f32 %v680, %v1003
      %v1005 = vpop.f32.mrb[0].mxu0
      %1006 = vdwg.mxu0
      %v1007 = vld [vmem:[%s256] sm:$0xff]
      %v1008 = vld [vmem:[%s256 + $0x8] sm:$0xff]
      %v1009 = vld [vmem:[%s256 + $0x18] sm:$0xff]
      %v1010 = vld [vmem:[%s256 + $0x20] sm:$0xff]
      %v1011 = vld [vmem:[%s256 + $0x30] sm:$0xff]
      %v1012 = vld [vmem:[%s256 + $0x38] sm:$0xff]
      %v1013 = vld [vmem:[%s256 + $0x48] sm:$0xff]
      %v1014 = vld [vmem:[%s256 + $0x50] sm:$0xff]
      %v1015 = vld [vmem:[%s256 + $0x60] sm:$0xff]
      %v1016 = vld [vmem:[%s256 + $0x68] sm:$0xff]
      %v1017 = vld [vmem:[%s256 + $0x78] sm:$0xff]
      %v1018 = vld [vmem:[%s256 + $0x80] sm:$0xff]
      %v1019 = vld [vmem:[%s256 + $0x90] sm:$0xff]
      %v1020 = vld [vmem:[%s256 + $0x98] sm:$0xff]
      %v1021 = vld [vmem:[%s256 + $0xa8] sm:$0xff]
      %v1022 = vld [vmem:[%s256 + $0xb0] sm:$0xff]
      %v1023 = vld [vmem:[%s256 + $0xc0] sm:$0xff]
      %v1024 = vld [vmem:[%s256 + $0xc8] sm:$0xff]
      %v1025 = vld [vmem:[%s256 + $0xd8] sm:$0xff]
      %v1026 = vld [vmem:[%s256 + $0xe0] sm:$0xff]
      %v1027 = vld [vmem:[%s256 + $0xf0] sm:$0xff]
      %v1028 = vld [vmem:[%s256 + $0xf8] sm:$0xff]
      %v1029 = vld [vmem:[%s256 + $0x108] sm:$0xff]
      %v1030 = vld [vmem:[%s256 + $0x110] sm:$0xff]
      %v1031 = vld [vmem:[%s256 + $0x120] sm:$0xff]
      %v1032 = vld [vmem:[%s256 + $0x128] sm:$0xff]
      %v1033 = vld [vmem:[%s256 + $0x138] sm:$0xff]
      %v1034 = vld [vmem:[%s256 + $0x140] sm:$0xff]
      %v1035 = vld [vmem:[%s256 + $0x150] sm:$0xff]
      %v1036 = vld [vmem:[%s256 + $0x158] sm:$0xff]
      %v1037 = vld [vmem:[%s256 + $0x168] sm:$0xff]
      %v1038 = vld [vmem:[%s256 + $0x170] sm:$0xff]
      %s1039 = scalar_lea.vmem %s1, 32
      %v1040 = vld [vmem:[%s1039] sm:$0xff]
      %v1041 = vld [vmem:[%s1039 + $0x8] sm:$0xf]
      %v1043 = vsel %vm171, %v1007, 0
      %v1046 = vsel %vm171, %v1008, 0
      %v1049 = vsel %vm171, %v1009, 0
      %v1052 = vsel %vm171, %v1010, 0
      %v1055 = vsel %vm171, %v1011, 0
      %v1058 = vsel %vm171, %v1012, 0
      %v1061 = vsel %vm171, %v1013, 0
      %v1064 = vsel %vm171, %v1014, 0
      %v1067 = vsel %vm171, %v1015, 0
      %v1070 = vsel %vm171, %v1016, 0
      %v1073 = vsel %vm171, %v1017, 0
      %v1076 = vsel %vm171, %v1018, 0
      %v1079 = vsel %vm171, %v1019, 0
      %v1082 = vsel %vm171, %v1020, 0
      %v1085 = vsel %vm171, %v1021, 0
      %v1088 = vsel %vm171, %v1022, 0
      %v1091 = vsel %vm171, %v1023, 0
      %v1094 = vsel %vm171, %v1024, 0
      %v1097 = vsel %vm171, %v1025, 0
      %v1100 = vsel %vm171, %v1026, 0
      %v1103 = vsel %vm171, %v1027, 0
      %v1106 = vsel %vm171, %v1028, 0
      %v1109 = vsel %vm171, %v1029, 0
      %v1112 = vsel %vm171, %v1030, 0
      %v1115 = vsel %vm171, %v1031, 0
      %v1118 = vsel %vm171, %v1032, 0
      %v1121 = vsel %vm171, %v1033, 0
      %v1124 = vsel %vm171, %v1034, 0
      %v1127 = vsel %vm171, %v1035, 0
      %v1130 = vsel %vm171, %v1036, 0
      %v1133 = vsel %vm171, %v1037, 0
      %v1136 = vsel %vm171, %v1038, 0
      %v1139 = vsel %vm454, %v1041, 0
      %1141 = vmatprep.subr.mxu0 0.0
      %1142 = vmatpush1.msra.mxu0 %v1040
      %1143 = vmatprep.subr.mxu0 0.0
      %1144 = vmatpush1.msra.mxu0 %v1139
      %1145 = vmatprep.subr.mxu0 0.0
      %1146 = vmatpush1.msra.mxu0 0.0
      %1147 = vmatprep.subr.mxu0 0.0
      %1148 = vmatpush1.msra.mxu0 0.0
      %1149 = vmatprep.subr.mxu0 0.0
      %1150 = vmatpush1.msra.mxu0 0.0
      %1151 = vmatprep.subr.mxu0 0.0
      %1152 = vmatpush1.msra.mxu0 0.0
      %1153 = vmatprep.subr.mxu0 0.0
      %1154 = vmatpush1.msra.mxu0 0.0
      %1155 = vmatprep.subr.mxu0 0.0
      %1156 = vmatpush1.msra.mxu0 0.0
      %1157 = vmatprep.subr.mxu0 0.0
      %1158 = vmatpush1.msra.mxu0 0.0
      %1159 = vmatprep.subr.mxu0 0.0
      %1160 = vmatpush1.msra.mxu0 0.0
      %1161 = vmatprep.subr.mxu0 0.0
      %1162 = vmatpush1.msra.mxu0 0.0
      %1163 = vmatprep.subr.mxu0 0.0
      %1164 = vmatpush1.msra.mxu0 0.0
      %1165 = vmatprep.subr.mxu0 0.0
      %1166 = vmatpush1.msra.mxu0 0.0
      %1167 = vmatprep.subr.mxu0 0.0
      %1168 = vmatpush1.msra.mxu0 0.0
      %1169 = vmatprep.subr.mxu0 0.0
      %1170 = vmatpush1.msra.mxu0 0.0
      %1171 = vmatprep.subr.mxu0 0.0
      %1172 = vmatpush1.msra.mxu0 0.0
      %1173 = vmatprep.subr.mxu0 0.0
      %1174 = vmatpush1.msra.mxu0 0.0
      %1175 = vmatprep.subr.mxu0 0.0
      %1176 = vmatpush1.msra.mxu0 0.0
      %1177 = vmatprep.subr.mxu0 0.0
      %1178 = vmatpush1.msra.mxu0 0.0
      %1179 = vmatprep.subr.mxu0 0.0
      %1180 = vmatpush1.msra.mxu0 0.0
      %1181 = vmatprep.subr.mxu0 0.0
      %1182 = vmatpush1.msra.mxu0 0.0
      %1183 = vmatprep.subr.mxu0 0.0
      %1184 = vmatpush1.msra.mxu0 0.0
      %1185 = vmatprep.subr.mxu0 0.0
      %1186 = vmatpush1.msra.mxu0 0.0
      %1187 = vmatprep.subr.mxu0 0.0
      %1188 = vmatpush1.msra.mxu0 0.0
      %1189 = vmatprep.subr.mxu0 0.0
      %1190 = vmatpush1.msra.mxu0 0.0
      %1191 = vmatprep.subr.mxu0 0.0
      %1192 = vmatpush1.msra.mxu0 0.0
      %1193 = vmatprep.subr.mxu0 0.0
      %1194 = vmatpush1.msra.mxu0 0.0
      %1195 = vmatprep.subr.mxu0 0.0
      %1196 = vmatpush1.msra.mxu0 0.0
      %1197 = vmatprep.subr.mxu0 0.0
      %1198 = vmatpush1.msra.mxu0 0.0
      %1199 = vmatprep.subr.mxu0 0.0
      %1200 = vmatpush1.msra.mxu0 0.0
      %1201 = vmatprep.subr.mxu0 0.0
      %1202 = vmatpush1.msra.mxu0 0.0
      %1203 = vmatprep.subr.mxu0 0.0
      %1204 = vmatpush1.msra.mxu0 0.0
      %1205 = vmatprep.mubr.f32.mxu0 0.0
      %1206 = vmatmul.mubr.f32.gmra.mrb[0].mxu0 %v1043
      %v1207 = vpop.f32.mrb[0].mxu0
      %v1208 = vadd.f32 0.0, %v1207
      %v1209 = vpop.f32.mrb[0].mxu0
      %1210 = vmatprep.mubr.f32.mxu0 0.0
      %1211 = vmatmul.mubr.f32.gmra.mrb[0].mxu0 %v1046
      %v1212 = vpop.f32.mrb[0].mxu0
      %v1213 = vadd.f32 0.0, %v1212
      %v1214 = vpop.f32.mrb[0].mxu0
      %1215 = vmatprep.mubr.f32.mxu0 0.0
      %1216 = vmatmul.mubr.f32.gmra.mrb[0].mxu0 %v1049
      %v1217 = vpop.f32.mrb[0].mxu0
      %v1218 = vadd.f32 0.0, %v1217
      %v1219 = vpop.f32.mrb[0].mxu0
      %1220 = vmatprep.mubr.f32.mxu0 0.0
      %1221 = vmatmul.mubr.f32.gmra.mrb[0].mxu0 %v1052
      %v1222 = vpop.f32.mrb[0].mxu0
      %v1223 = vadd.f32 0.0, %v1222
      %v1224 = vpop.f32.mrb[0].mxu0
      %1225 = vmatprep.mubr.f32.mxu0 0.0
      %1226 = vmatmul.mubr.f32.gmra.mrb[0].mxu0 %v1055
      %v1227 = vpop.f32.mrb[0].mxu0
      %v1228 = vadd.f32 0.0, %v1227
      %v1229 = vpop.f32.mrb[0].mxu0
      %1230 = vmatprep.mubr.f32.mxu0 0.0
      %1231 = vmatmul.mubr.f32.gmra.mrb[0].mxu0 %v1058
      %v1232 = vpop.f32.mrb[0].mxu0
      %v1233 = vadd.f32 0.0, %v1232
      %v1234 = vpop.f32.mrb[0].mxu0
      %1235 = vmatprep.mubr.f32.mxu0 0.0
      %1236 = vmatmul.mubr.f32.gmra.mrb[0].mxu0 %v1061
      %v1237 = vpop.f32.mrb[0].mxu0
      %v1238 = vadd.f32 0.0, %v1237
      %v1239 = vpop.f32.mrb[0].mxu0
      %1240 = vmatprep.mubr.f32.mxu0 0.0
      %1241 = vmatmul.mubr.f32.gmra.mrb[0].mxu0 %v1064
      %v1242 = vpop.f32.mrb[0].mxu0
      %v1243 = vadd.f32 0.0, %v1242
      %v1244 = vpop.f32.mrb[0].mxu0
      %1245 = vmatprep.mubr.f32.mxu0 0.0
      %1246 = vmatmul.mubr.f32.gmra.mrb[0].mxu0 %v1067
      %v1247 = vpop.f32.mrb[0].mxu0
      %v1248 = vadd.f32 0.0, %v1247
      %v1249 = vpop.f32.mrb[0].mxu0
      %1250 = vmatprep.mubr.f32.mxu0 0.0
      %1251 = vmatmul.mubr.f32.gmra.mrb[0].mxu0 %v1070
      %v1252 = vpop.f32.mrb[0].mxu0
      %v1253 = vadd.f32 0.0, %v1252
      %v1254 = vpop.f32.mrb[0].mxu0
      %1255 = vmatprep.mubr.f32.mxu0 0.0
      %1256 = vmatmul.mubr.f32.gmra.mrb[0].mxu0 %v1073
      %v1257 = vpop.f32.mrb[0].mxu0
      %v1258 = vadd.f32 0.0, %v1257
      %v1259 = vpop.f32.mrb[0].mxu0
      %1260 = vmatprep.mubr.f32.mxu0 0.0
      %1261 = vmatmul.mubr.f32.gmra.mrb[0].mxu0 %v1076
      %v1262 = vpop.f32.mrb[0].mxu0
      %v1263 = vadd.f32 0.0, %v1262
      %v1264 = vpop.f32.mrb[0].mxu0
      %1265 = vmatprep.mubr.f32.mxu0 0.0
      %1266 = vmatmul.mubr.f32.gmra.mrb[0].mxu0 %v1079
      %v1267 = vpop.f32.mrb[0].mxu0
      %v1268 = vadd.f32 0.0, %v1267
      %v1269 = vpop.f32.mrb[0].mxu0
      %1270 = vmatprep.mubr.f32.mxu0 0.0
      %1271 = vmatmul.mubr.f32.gmra.mrb[0].mxu0 %v1082
      %v1272 = vpop.f32.mrb[0].mxu0
      %v1273 = vadd.f32 0.0, %v1272
      %v1274 = vpop.f32.mrb[0].mxu0
      %1275 = vmatprep.mubr.f32.mxu0 0.0
      %1276 = vmatmul.mubr.f32.gmra.mrb[0].mxu0 %v1085
      %v1277 = vpop.f32.mrb[0].mxu0
      %v1278 = vadd.f32 0.0, %v1277
      %v1279 = vpop.f32.mrb[0].mxu0
      %1280 = vmatprep.mubr.f32.mxu0 0.0
      %1281 = vmatmul.mubr.f32.gmra.mrb[0].mxu0 %v1088
      %v1282 = vpop.f32.mrb[0].mxu0
      %v1283 = vadd.f32 0.0, %v1282
      %v1284 = vpop.f32.mrb[0].mxu0
      %1285 = vmatprep.mubr.f32.mxu0 0.0
      %1286 = vmatmul.mubr.f32.gmra.mrb[0].mxu0 %v1091
      %v1287 = vpop.f32.mrb[0].mxu0
      %v1288 = vadd.f32 0.0, %v1287
      %v1289 = vpop.f32.mrb[0].mxu0
      %1290 = vmatprep.mubr.f32.mxu0 0.0
      %1291 = vmatmul.mubr.f32.gmra.mrb[0].mxu0 %v1094
      %v1292 = vpop.f32.mrb[0].mxu0
      %v1293 = vadd.f32 0.0, %v1292
      %v1294 = vpop.f32.mrb[0].mxu0
      %1295 = vmatprep.mubr.f32.mxu0 0.0
      %1296 = vmatmul.mubr.f32.gmra.mrb[0].mxu0 %v1097
      %v1297 = vpop.f32.mrb[0].mxu0
      %v1298 = vadd.f32 0.0, %v1297
      %v1299 = vpop.f32.mrb[0].mxu0
      %1300 = vmatprep.mubr.f32.mxu0 0.0
      %1301 = vmatmul.mubr.f32.gmra.mrb[0].mxu0 %v1100
      %v1302 = vpop.f32.mrb[0].mxu0
      %v1303 = vadd.f32 0.0, %v1302
      %v1304 = vpop.f32.mrb[0].mxu0
      %1305 = vmatprep.mubr.f32.mxu0 0.0
      %1306 = vmatmul.mubr.f32.gmra.mrb[0].mxu0 %v1103
      %v1307 = vpop.f32.mrb[0].mxu0
      %v1308 = vadd.f32 0.0, %v1307
      %v1309 = vpop.f32.mrb[0].mxu0
      %1310 = vmatprep.mubr.f32.mxu0 0.0
      %1311 = vmatmul.mubr.f32.gmra.mrb[0].mxu0 %v1106
      %v1312 = vpop.f32.mrb[0].mxu0
      %v1313 = vadd.f32 0.0, %v1312
      %v1314 = vpop.f32.mrb[0].mxu0
      %1315 = vmatprep.mubr.f32.mxu0 0.0
      %1316 = vmatmul.mubr.f32.gmra.mrb[0].mxu0 %v1109
      %v1317 = vpop.f32.mrb[0].mxu0
      %v1318 = vadd.f32 0.0, %v1317
      %v1319 = vpop.f32.mrb[0].mxu0
      %1320 = vmatprep.mubr.f32.mxu0 0.0
      %1321 = vmatmul.mubr.f32.gmra.mrb[0].mxu0 %v1112
      %v1322 = vpop.f32.mrb[0].mxu0
      %v1323 = vadd.f32 0.0, %v1322
      %v1324 = vpop.f32.mrb[0].mxu0
      %1325 = vmatprep.mubr.f32.mxu0 0.0
      %1326 = vmatmul.mubr.f32.gmra.mrb[0].mxu0 %v1115
      %v1327 = vpop.f32.mrb[0].mxu0
      %v1328 = vadd.f32 0.0, %v1327
      %v1329 = vpop.f32.mrb[0].mxu0
      %1330 = vmatprep.mubr.f32.mxu0 0.0
      %1331 = vmatmul.mubr.f32.gmra.mrb[0].mxu0 %v1118
      %v1332 = vpop.f32.mrb[0].mxu0
      %v1333 = vadd.f32 0.0, %v1332
      %v1334 = vpop.f32.mrb[0].mxu0
      %1335 = vmatprep.mubr.f32.mxu0 0.0
      %1336 = vmatmul.mubr.f32.gmra.mrb[0].mxu0 %v1121
      %v1337 = vpop.f32.mrb[0].mxu0
      %v1338 = vadd.f32 0.0, %v1337
      %v1339 = vpop.f32.mrb[0].mxu0
      %1340 = vmatprep.mubr.f32.mxu0 0.0
      %1341 = vmatmul.mubr.f32.gmra.mrb[0].mxu0 %v1124
      %v1342 = vpop.f32.mrb[0].mxu0
      %v1343 = vadd.f32 0.0, %v1342
      %v1344 = vpop.f32.mrb[0].mxu0
      %1345 = vmatprep.mubr.f32.mxu0 0.0
      %1346 = vmatmul.mubr.f32.gmra.mrb[0].mxu0 %v1127
      %v1347 = vpop.f32.mrb[0].mxu0
      %v1348 = vadd.f32 0.0, %v1347
      %v1349 = vpop.f32.mrb[0].mxu0
      %1350 = vmatprep.mubr.f32.mxu0 0.0
      %1351 = vmatmul.mubr.f32.gmra.mrb[0].mxu0 %v1130
      %v1352 = vpop.f32.mrb[0].mxu0
      %v1353 = vadd.f32 0.0, %v1352
      %v1354 = vpop.f32.mrb[0].mxu0
      %1355 = vmatprep.mubr.f32.mxu0 0.0
      %1356 = vmatmul.mubr.f32.gmra.mrb[0].mxu0 %v1133
      %v1357 = vpop.f32.mrb[0].mxu0
      %v1358 = vadd.f32 0.0, %v1357
      %v1359 = vpop.f32.mrb[0].mxu0
      %1360 = vmatprep.mubr.f32.mxu0 0.0
      %1361 = vmatmul.mubr.f32.gmra.mrb[0].mxu0 %v1136
      %v1362 = vpop.f32.mrb[0].mxu0
      %v1363 = vadd.f32 0.0, %v1362
      %v1364 = vpop.f32.mrb[0].mxu0
      %1365 = vdwg.mxu0
      %v1366 = vadd.f32 %v849, %v1208
      %v1367 = vadd.f32 %v854, %v1213
      %v1368 = vadd.f32 %v859, %v1218
      %v1369 = vadd.f32 %v864, %v1223
      %v1370 = vadd.f32 %v869, %v1228
      %v1371 = vadd.f32 %v874, %v1233
      %v1372 = vadd.f32 %v879, %v1238
      %v1373 = vadd.f32 %v884, %v1243
      %v1374 = vadd.f32 %v889, %v1248
      %v1375 = vadd.f32 %v894, %v1253
      %v1376 = vadd.f32 %v899, %v1258
      %v1377 = vadd.f32 %v904, %v1263
      %v1378 = vadd.f32 %v909, %v1268
      %v1379 = vadd.f32 %v914, %v1273
      %v1380 = vadd.f32 %v919, %v1278
      %v1381 = vadd.f32 %v924, %v1283
      %v1382 = vadd.f32 %v929, %v1288
      %v1383 = vadd.f32 %v934, %v1293
      %v1384 = vadd.f32 %v939, %v1298
      %v1385 = vadd.f32 %v944, %v1303
      %v1386 = vadd.f32 %v949, %v1308
      %v1387 = vadd.f32 %v954, %v1313
      %v1388 = vadd.f32 %v959, %v1318
      %v1389 = vadd.f32 %v964, %v1323
      %v1390 = vadd.f32 %v969, %v1328
      %v1391 = vadd.f32 %v974, %v1333
      %v1392 = vadd.f32 %v979, %v1338
      %v1393 = vadd.f32 %v984, %v1343
      %v1394 = vadd.f32 %v989, %v1348
      %v1395 = vadd.f32 %v994, %v1353
      %v1396 = vadd.f32 %v999, %v1358
      %v1397 = vadd.f32 %v1004, %v1363
      %v1398 = vld [vmem:[%s256 + $0x1] sm:$0xff]
      %v1399 = vld [vmem:[%s256 + $0x9] sm:$0xff]
      %v1400 = vld [vmem:[%s256 + $0x19] sm:$0xff]
      %v1401 = vld [vmem:[%s256 + $0x21] sm:$0xff]
      %v1402 = vld [vmem:[%s256 + $0x31] sm:$0xff]
      %v1403 = vld [vmem:[%s256 + $0x39] sm:$0xff]
      %v1404 = vld [vmem:[%s256 + $0x49] sm:$0xff]
      %v1405 = vld [vmem:[%s256 + $0x51] sm:$0xff]
      %v1406 = vld [vmem:[%s256 + $0x61] sm:$0xff]
      %v1407 = vld [vmem:[%s256 + $0x69] sm:$0xff]
      %v1408 = vld [vmem:[%s256 + $0x79] sm:$0xff]
      %v1409 = vld [vmem:[%s256 + $0x81] sm:$0xff]
      %v1410 = vld [vmem:[%s256 + $0x91] sm:$0xff]
      %v1411 = vld [vmem:[%s256 + $0x99] sm:$0xff]
      %v1412 = vld [vmem:[%s256 + $0xa9] sm:$0xff]
      %v1413 = vld [vmem:[%s256 + $0xb1] sm:$0xff]
      %v1414 = vld [vmem:[%s256 + $0xc1] sm:$0xff]
      %v1415 = vld [vmem:[%s256 + $0xc9] sm:$0xff]
      %v1416 = vld [vmem:[%s256 + $0xd9] sm:$0xff]
      %v1417 = vld [vmem:[%s256 + $0xe1] sm:$0xff]
      %v1418 = vld [vmem:[%s256 + $0xf1] sm:$0xff]
      %v1419 = vld [vmem:[%s256 + $0xf9] sm:$0xff]
      %v1420 = vld [vmem:[%s256 + $0x109] sm:$0xff]
      %v1421 = vld [vmem:[%s256 + $0x111] sm:$0xff]
      %v1422 = vld [vmem:[%s256 + $0x121] sm:$0xff]
      %v1423 = vld [vmem:[%s256 + $0x129] sm:$0xff]
      %v1424 = vld [vmem:[%s256 + $0x139] sm:$0xff]
      %v1425 = vld [vmem:[%s256 + $0x141] sm:$0xff]
      %v1426 = vld [vmem:[%s256 + $0x151] sm:$0xff]
      %v1427 = vld [vmem:[%s256 + $0x159] sm:$0xff]
      %v1428 = vld [vmem:[%s256 + $0x169] sm:$0xff]
      %v1429 = vld [vmem:[%s256 + $0x171] sm:$0xff]
      %s1430 = scalar_lea.vmem %s1, 48
      %v1431 = vld [vmem:[%s1430] sm:$0xff]
      %v1432 = vld [vmem:[%s1430 + $0x8] sm:$0xf]
      %v1434 = vsel %vm171, %v1398, 0
      %v1437 = vsel %vm171, %v1399, 0
      %v1440 = vsel %vm171, %v1400, 0
      %v1443 = vsel %vm171, %v1401, 0
      %v1446 = vsel %vm171, %v1402, 0
      %v1449 = vsel %vm171, %v1403, 0
      %v1452 = vsel %vm171, %v1404, 0
      %v1455 = vsel %vm171, %v1405, 0
      %v1458 = vsel %vm171, %v1406, 0
      %v1461 = vsel %vm171, %v1407, 0
      %v1464 = vsel %vm171, %v1408, 0
      %v1467 = vsel %vm171, %v1409, 0
      %v1470 = vsel %vm171, %v1410, 0
      %v1473 = vsel %vm171, %v1411, 0
      %v1476 = vsel %vm171, %v1412, 0
      %v1479 = vsel %vm171, %v1413, 0
      %v1482 = vsel %vm171, %v1414, 0
      %v1485 = vsel %vm171, %v1415, 0
      %v1488 = vsel %vm171, %v1416, 0
      %v1491 = vsel %vm171, %v1417, 0
      %v1494 = vsel %vm171, %v1418, 0
      %v1497 = vsel %vm171, %v1419, 0
      %v1500 = vsel %vm171, %v1420, 0
      %v1503 = vsel %vm171, %v1421, 0
      %v1506 = vsel %vm171, %v1422, 0
      %v1509 = vsel %vm171, %v1423, 0
      %v1512 = vsel %vm171, %v1424, 0
      %v1515 = vsel %vm171, %v1425, 0
      %v1518 = vsel %vm171, %v1426, 0
      %v1521 = vsel %vm171, %v1427, 0
      %v1524 = vsel %vm171, %v1428, 0
      %v1527 = vsel %vm171, %v1429, 0
      %v1530 = vsel %vm454, %v1432, 0
      %1532 = vmatprep.subr.mxu0 0.0
      %1533 = vmatpush1.msra.mxu0 %v1431
      %1534 = vmatprep.subr.mxu0 0.0
      %1535 = vmatpush1.msra.mxu0 %v1530
      %1536 = vmatprep.subr.mxu0 0.0
      %1537 = vmatpush1.msra.mxu0 0.0
      %1538 = vmatprep.subr.mxu0 0.0
      %1539 = vmatpush1.msra.mxu0 0.0
      %1540 = vmatprep.subr.mxu0 0.0
      %1541 = vmatpush1.msra.mxu0 0.0
      %1542 = vmatprep.subr.mxu0 0.0
      %1543 = vmatpush1.msra.mxu0 0.0
      %1544 = vmatprep.subr.mxu0 0.0
      %1545 = vmatpush1.msra.mxu0 0.0
      %1546 = vmatprep.subr.mxu0 0.0
      %1547 = vmatpush1.msra.mxu0 0.0
      %1548 = vmatprep.subr.mxu0 0.0
      %1549 = vmatpush1.msra.mxu0 0.0
      %1550 = vmatprep.subr.mxu0 0.0
      %1551 = vmatpush1.msra.mxu0 0.0
      %1552 = vmatprep.subr.mxu0 0.0
      %1553 = vmatpush1.msra.mxu0 0.0
      %1554 = vmatprep.subr.mxu0 0.0
      %1555 = vmatpush1.msra.mxu0 0.0
      %1556 = vmatprep.subr.mxu0 0.0
      %1557 = vmatpush1.msra.mxu0 0.0
      %1558 = vmatprep.subr.mxu0 0.0
      %1559 = vmatpush1.msra.mxu0 0.0
      %1560 = vmatprep.subr.mxu0 0.0
      %1561 = vmatpush1.msra.mxu0 0.0
      %1562 = vmatprep.subr.mxu0 0.0
      %1563 = vmatpush1.msra.mxu0 0.0
      %1564 = vmatprep.subr.mxu0 0.0
      %1565 = vmatpush1.msra.mxu0 0.0
      %1566 = vmatprep.subr.mxu0 0.0
      %1567 = vmatpush1.msra.mxu0 0.0
      %1568 = vmatprep.subr.mxu0 0.0
      %1569 = vmatpush1.msra.mxu0 0.0
      %1570 = vmatprep.subr.mxu0 0.0
      %1571 = vmatpush1.msra.mxu0 0.0
      %1572 = vmatprep.subr.mxu0 0.0
      %1573 = vmatpush1.msra.mxu0 0.0
      %1574 = vmatprep.subr.mxu0 0.0
      %1575 = vmatpush1.msra.mxu0 0.0
      %1576 = vmatprep.subr.mxu0 0.0
      %1577 = vmatpush1.msra.mxu0 0.0
      %1578 = vmatprep.subr.mxu0 0.0
      %1579 = vmatpush1.msra.mxu0 0.0
      %1580 = vmatprep.subr.mxu0 0.0
      %1581 = vmatpush1.msra.mxu0 0.0
      %1582 = vmatprep.subr.mxu0 0.0
      %1583 = vmatpush1.msra.mxu0 0.0
      %1584 = vmatprep.subr.mxu0 0.0
      %1585 = vmatpush1.msra.mxu0 0.0
      %1586 = vmatprep.subr.mxu0 0.0
      %1587 = vmatpush1.msra.mxu0 0.0
      %1588 = vmatprep.subr.mxu0 0.0
      %1589 = vmatpush1.msra.mxu0 0.0
      %1590 = vmatprep.subr.mxu0 0.0
      %1591 = vmatpush1.msra.mxu0 0.0
      %1592 = vmatprep.subr.mxu0 0.0
      %1593 = vmatpush1.msra.mxu0 0.0
      %1594 = vmatprep.subr.mxu0 0.0
      %1595 = vmatpush1.msra.mxu0 0.0
      %1596 = vmatprep.mubr.f32.mxu0 0.0
      %1597 = vmatmul.mubr.f32.gmra.mrb[0].mxu0 %v1434
      %v1598 = vpop.f32.mrb[0].mxu0
      %v1599 = vadd.f32 0.0, %v1598
      %v1600 = vpop.f32.mrb[0].mxu0
      %1601 = vmatprep.mubr.f32.mxu0 0.0
      %1602 = vmatmul.mubr.f32.gmra.mrb[0].mxu0 %v1437
      %v1603 = vpop.f32.mrb[0].mxu0
      %v1604 = vadd.f32 0.0, %v1603
      %v1605 = vpop.f32.mrb[0].mxu0
      %1606 = vmatprep.mubr.f32.mxu0 0.0
      %1607 = vmatmul.mubr.f32.gmra.mrb[0].mxu0 %v1440
      %v1608 = vpop.f32.mrb[0].mxu0
      %v1609 = vadd.f32 0.0, %v1608
      %v1610 = vpop.f32.mrb[0].mxu0
      %1611 = vmatprep.mubr.f32.mxu0 0.0
      %1612 = vmatmul.mubr.f32.gmra.mrb[0].mxu0 %v1443
      %v1613 = vpop.f32.mrb[0].mxu0
      %v1614 = vadd.f32 0.0, %v1613
      %v1615 = vpop.f32.mrb[0].mxu0
      %1616 = vmatprep.mubr.f32.mxu0 0.0
      %1617 = vmatmul.mubr.f32.gmra.mrb[0].mxu0 %v1446
      %v1618 = vpop.f32.mrb[0].mxu0
      %v1619 = vadd.f32 0.0, %v1618
      %v1620 = vpop.f32.mrb[0].mxu0
      %1621 = vmatprep.mubr.f32.mxu0 0.0
      %1622 = vmatmul.mubr.f32.gmra.mrb[0].mxu0 %v1449
      %v1623 = vpop.f32.mrb[0].mxu0
      %v1624 = vadd.f32 0.0, %v1623
      %v1625 = vpop.f32.mrb[0].mxu0
      %1626 = vmatprep.mubr.f32.mxu0 0.0
      %1627 = vmatmul.mubr.f32.gmra.mrb[0].mxu0 %v1452
      %v1628 = vpop.f32.mrb[0].mxu0
      %v1629 = vadd.f32 0.0, %v1628
      %v1630 = vpop.f32.mrb[0].mxu0
      %1631 = vmatprep.mubr.f32.mxu0 0.0
      %1632 = vmatmul.mubr.f32.gmra.mrb[0].mxu0 %v1455
      %v1633 = vpop.f32.mrb[0].mxu0
      %v1634 = vadd.f32 0.0, %v1633
      %v1635 = vpop.f32.mrb[0].mxu0
      %1636 = vmatprep.mubr.f32.mxu0 0.0
      %1637 = vmatmul.mubr.f32.gmra.mrb[0].mxu0 %v1458
      %v1638 = vpop.f32.mrb[0].mxu0
      %v1639 = vadd.f32 0.0, %v1638
      %v1640 = vpop.f32.mrb[0].mxu0
      %1641 = vmatprep.mubr.f32.mxu0 0.0
      %1642 = vmatmul.mubr.f32.gmra.mrb[0].mxu0 %v1461
      %v1643 = vpop.f32.mrb[0].mxu0
      %v1644 = vadd.f32 0.0, %v1643
      %v1645 = vpop.f32.mrb[0].mxu0
      %1646 = vmatprep.mubr.f32.mxu0 0.0
      %1647 = vmatmul.mubr.f32.gmra.mrb[0].mxu0 %v1464
      %v1648 = vpop.f32.mrb[0].mxu0
      %v1649 = vadd.f32 0.0, %v1648
      %v1650 = vpop.f32.mrb[0].mxu0
      %1651 = vmatprep.mubr.f32.mxu0 0.0
      %1652 = vmatmul.mubr.f32.gmra.mrb[0].mxu0 %v1467
      %v1653 = vpop.f32.mrb[0].mxu0
      %v1654 = vadd.f32 0.0, %v1653
      %v1655 = vpop.f32.mrb[0].mxu0
      %1656 = vmatprep.mubr.f32.mxu0 0.0
      %1657 = vmatmul.mubr.f32.gmra.mrb[0].mxu0 %v1470
      %v1658 = vpop.f32.mrb[0].mxu0
      %v1659 = vadd.f32 0.0, %v1658
      %v1660 = vpop.f32.mrb[0].mxu0
      %1661 = vmatprep.mubr.f32.mxu0 0.0
      %1662 = vmatmul.mubr.f32.gmra.mrb[0].mxu0 %v1473
      %v1663 = vpop.f32.mrb[0].mxu0
      %v1664 = vadd.f32 0.0, %v1663
      %v1665 = vpop.f32.mrb[0].mxu0
      %1666 = vmatprep.mubr.f32.mxu0 0.0
      %1667 = vmatmul.mubr.f32.gmra.mrb[0].mxu0 %v1476
      %v1668 = vpop.f32.mrb[0].mxu0
      %v1669 = vadd.f32 0.0, %v1668
      %v1670 = vpop.f32.mrb[0].mxu0
      %1671 = vmatprep.mubr.f32.mxu0 0.0
      %1672 = vmatmul.mubr.f32.gmra.mrb[0].mxu0 %v1479
      %v1673 = vpop.f32.mrb[0].mxu0
      %v1674 = vadd.f32 0.0, %v1673
      %v1675 = vpop.f32.mrb[0].mxu0
      %1676 = vmatprep.mubr.f32.mxu0 0.0
      %1677 = vmatmul.mubr.f32.gmra.mrb[0].mxu0 %v1482
      %v1678 = vpop.f32.mrb[0].mxu0
      %v1679 = vadd.f32 0.0, %v1678
      %v1680 = vpop.f32.mrb[0].mxu0
      %1681 = vmatprep.mubr.f32.mxu0 0.0
      %1682 = vmatmul.mubr.f32.gmra.mrb[0].mxu0 %v1485
      %v1683 = vpop.f32.mrb[0].mxu0
      %v1684 = vadd.f32 0.0, %v1683
      %v1685 = vpop.f32.mrb[0].mxu0
      %1686 = vmatprep.mubr.f32.mxu0 0.0
      %1687 = vmatmul.mubr.f32.gmra.mrb[0].mxu0 %v1488
      %v1688 = vpop.f32.mrb[0].mxu0
      %v1689 = vadd.f32 0.0, %v1688
      %v1690 = vpop.f32.mrb[0].mxu0
      %1691 = vmatprep.mubr.f32.mxu0 0.0
      %1692 = vmatmul.mubr.f32.gmra.mrb[0].mxu0 %v1491
      %v1693 = vpop.f32.mrb[0].mxu0
      %v1694 = vadd.f32 0.0, %v1693
      %v1695 = vpop.f32.mrb[0].mxu0
      %1696 = vmatprep.mubr.f32.mxu0 0.0
      %1697 = vmatmul.mubr.f32.gmra.mrb[0].mxu0 %v1494
      %v1698 = vpop.f32.mrb[0].mxu0
      %v1699 = vadd.f32 0.0, %v1698
      %v1700 = vpop.f32.mrb[0].mxu0
      %1701 = vmatprep.mubr.f32.mxu0 0.0
      %1702 = vmatmul.mubr.f32.gmra.mrb[0].mxu0 %v1497
      %v1703 = vpop.f32.mrb[0].mxu0
      %v1704 = vadd.f32 0.0, %v1703
      %v1705 = vpop.f32.mrb[0].mxu0
      %1706 = vmatprep.mubr.f32.mxu0 0.0
      %1707 = vmatmul.mubr.f32.gmra.mrb[0].mxu0 %v1500
      %v1708 = vpop.f32.mrb[0].mxu0
      %v1709 = vadd.f32 0.0, %v1708
      %v1710 = vpop.f32.mrb[0].mxu0
      %1711 = vmatprep.mubr.f32.mxu0 0.0
      %1712 = vmatmul.mubr.f32.gmra.mrb[0].mxu0 %v1503
      %v1713 = vpop.f32.mrb[0].mxu0
      %v1714 = vadd.f32 0.0, %v1713
      %v1715 = vpop.f32.mrb[0].mxu0
      %1716 = vmatprep.mubr.f32.mxu0 0.0
      %1717 = vmatmul.mubr.f32.gmra.mrb[0].mxu0 %v1506
      %v1718 = vpop.f32.mrb[0].mxu0
      %v1719 = vadd.f32 0.0, %v1718
      %v1720 = vpop.f32.mrb[0].mxu0
      %1721 = vmatprep.mubr.f32.mxu0 0.0
      %1722 = vmatmul.mubr.f32.gmra.mrb[0].mxu0 %v1509
      %v1723 = vpop.f32.mrb[0].mxu0
      %v1724 = vadd.f32 0.0, %v1723
      %v1725 = vpop.f32.mrb[0].mxu0
      %1726 = vmatprep.mubr.f32.mxu0 0.0
      %1727 = vmatmul.mubr.f32.gmra.mrb[0].mxu0 %v1512
      %v1728 = vpop.f32.mrb[0].mxu0
      %v1729 = vadd.f32 0.0, %v1728
      %v1730 = vpop.f32.mrb[0].mxu0
      %1731 = vmatprep.mubr.f32.mxu0 0.0
      %1732 = vmatmul.mubr.f32.gmra.mrb[0].mxu0 %v1515
      %v1733 = vpop.f32.mrb[0].mxu0
      %v1734 = vadd.f32 0.0, %v1733
      %v1735 = vpop.f32.mrb[0].mxu0
      %1736 = vmatprep.mubr.f32.mxu0 0.0
      %1737 = vmatmul.mubr.f32.gmra.mrb[0].mxu0 %v1518
      %v1738 = vpop.f32.mrb[0].mxu0
      %v1739 = vadd.f32 0.0, %v1738
      %v1740 = vpop.f32.mrb[0].mxu0
      %1741 = vmatprep.mubr.f32.mxu0 0.0
      %1742 = vmatmul.mubr.f32.gmra.mrb[0].mxu0 %v1521
      %v1743 = vpop.f32.mrb[0].mxu0
      %v1744 = vadd.f32 0.0, %v1743
      %v1745 = vpop.f32.mrb[0].mxu0
      %1746 = vmatprep.mubr.f32.mxu0 0.0
      %1747 = vmatmul.mubr.f32.gmra.mrb[0].mxu0 %v1524
      %v1748 = vpop.f32.mrb[0].mxu0
      %v1749 = vadd.f32 0.0, %v1748
      %v1750 = vpop.f32.mrb[0].mxu0
      %1751 = vmatprep.mubr.f32.mxu0 0.0
      %1752 = vmatmul.mubr.f32.gmra.mrb[0].mxu0 %v1527
      %v1753 = vpop.f32.mrb[0].mxu0
      %v1754 = vadd.f32 0.0, %v1753
      %v1755 = vpop.f32.mrb[0].mxu0
      %1756 = vdwg.mxu0
      %v1757 = vadd.f32 %v1366, %v1599
      %v1758 = vadd.f32 %v1367, %v1604
      %v1759 = vadd.f32 %v1368, %v1609
      %v1760 = vadd.f32 %v1369, %v1614
      %v1761 = vadd.f32 %v1370, %v1619
      %v1762 = vadd.f32 %v1371, %v1624
      %v1763 = vadd.f32 %v1372, %v1629
      %v1764 = vadd.f32 %v1373, %v1634
      %v1765 = vadd.f32 %v1374, %v1639
      %v1766 = vadd.f32 %v1375, %v1644
      %v1767 = vadd.f32 %v1376, %v1649
      %v1768 = vadd.f32 %v1377, %v1654
      %v1769 = vadd.f32 %v1378, %v1659
      %v1770 = vadd.f32 %v1379, %v1664
      %v1771 = vadd.f32 %v1380, %v1669
      %v1772 = vadd.f32 %v1381, %v1674
      %v1773 = vadd.f32 %v1382, %v1679
      %v1774 = vadd.f32 %v1383, %v1684
      %v1775 = vadd.f32 %v1384, %v1689
      %v1776 = vadd.f32 %v1385, %v1694
      %v1777 = vadd.f32 %v1386, %v1699
      %v1778 = vadd.f32 %v1387, %v1704
      %v1779 = vadd.f32 %v1388, %v1709
      %v1780 = vadd.f32 %v1389, %v1714
      %v1781 = vadd.f32 %v1390, %v1719
      %v1782 = vadd.f32 %v1391, %v1724
      %v1783 = vadd.f32 %v1392, %v1729
      %v1784 = vadd.f32 %v1393, %v1734
      %v1785 = vadd.f32 %v1394, %v1739
      %v1786 = vadd.f32 %v1395, %v1744
      %v1787 = vadd.f32 %v1396, %v1749
      %v1788 = vadd.f32 %v1397, %v1754
      %v1789 = vld [vmem:[%s2] sm:$0x1]
      %v1791 = vlaneseq
      %v1792 = vshrl.u32 %v1791, 7
      %v1793 = vsub.s32 0, %v1792
      %v1794 = vrot.slane %v1789, %v1793
      %v1796 = vadd.f32 %v1757, %v1794
      %v1797 = vadd.f32 %v1758, %v1794
      %v1798 = vadd.f32 %v1759, %v1794
      %v1799 = vadd.f32 %v1760, %v1794
      %v1800 = vadd.f32 %v1761, %v1794
      %v1801 = vadd.f32 %v1762, %v1794
      %v1802 = vadd.f32 %v1763, %v1794
      %v1803 = vadd.f32 %v1764, %v1794
      %v1804 = vadd.f32 %v1765, %v1794
      %v1805 = vadd.f32 %v1766, %v1794
      %v1806 = vadd.f32 %v1767, %v1794
      %v1807 = vadd.f32 %v1768, %v1794
      %v1808 = vadd.f32 %v1769, %v1794
      %v1809 = vadd.f32 %v1770, %v1794
      %v1810 = vadd.f32 %v1771, %v1794
      %v1811 = vadd.f32 %v1772, %v1794
      %v1812 = vadd.f32 %v1773, %v1794
      %v1813 = vadd.f32 %v1774, %v1794
      %v1814 = vadd.f32 %v1775, %v1794
      %v1815 = vadd.f32 %v1776, %v1794
      %v1816 = vadd.f32 %v1777, %v1794
      %v1817 = vadd.f32 %v1778, %v1794
      %v1818 = vadd.f32 %v1779, %v1794
      %v1819 = vadd.f32 %v1780, %v1794
      %v1820 = vadd.f32 %v1781, %v1794
      %v1821 = vadd.f32 %v1782, %v1794
      %v1822 = vadd.f32 %v1783, %v1794
      %v1823 = vadd.f32 %v1784, %v1794
      %v1824 = vadd.f32 %v1785, %v1794
      %v1825 = vadd.f32 %v1786, %v1794
      %v1826 = vadd.f32 %v1787, %v1794
      %v1827 = vadd.f32 %v1788, %v1794
      %v1828 = vmax.f32 %v1796, 0.0
      %v1829 = vmax.f32 %v1797, 0.0
      %v1830 = vmax.f32 %v1798, 0.0
      %v1831 = vmax.f32 %v1799, 0.0
      %v1832 = vmax.f32 %v1800, 0.0
      %v1833 = vmax.f32 %v1801, 0.0
      %v1834 = vmax.f32 %v1802, 0.0
      %v1835 = vmax.f32 %v1803, 0.0
      %v1836 = vmax.f32 %v1804, 0.0
      %v1837 = vmax.f32 %v1805, 0.0
      %v1838 = vmax.f32 %v1806, 0.0
      %v1839 = vmax.f32 %v1807, 0.0
      %v1840 = vmax.f32 %v1808, 0.0
      %v1841 = vmax.f32 %v1809, 0.0
      %v1842 = vmax.f32 %v1810, 0.0
      %v1843 = vmax.f32 %v1811, 0.0
      %v1844 = vmax.f32 %v1812, 0.0
      %v1845 = vmax.f32 %v1813, 0.0
      %v1846 = vmax.f32 %v1814, 0.0
      %v1847 = vmax.f32 %v1815, 0.0
      %v1848 = vmax.f32 %v1816, 0.0
      %v1849 = vmax.f32 %v1817, 0.0
      %v1850 = vmax.f32 %v1818, 0.0
      %v1851 = vmax.f32 %v1819, 0.0
      %v1852 = vmax.f32 %v1820, 0.0
      %v1853 = vmax.f32 %v1821, 0.0
      %v1854 = vmax.f32 %v1822, 0.0
      %v1855 = vmax.f32 %v1823, 0.0
      %v1856 = vmax.f32 %v1824, 0.0
      %v1857 = vmax.f32 %v1825, 0.0
      %v1858 = vmax.f32 %v1826, 0.0
      %v1859 = vmax.f32 %v1827, 0.0
      %vm1860 = vcmask 195584
      %1861 = vst.msk [vmem:[%s170] sm:$0xff] %vm1860, %v1828
      %1862 = vst.msk [vmem:[%s170 + $0x8] sm:$0xff] %vm1860, %v1829
      %1863 = vst.msk [vmem:[%s170 + $0x10] sm:$0xff] %vm1860, %v1830
      %1864 = vst.msk [vmem:[%s170 + $0x18] sm:$0xff] %vm1860, %v1831
      %1865 = vst.msk [vmem:[%s170 + $0x20] sm:$0xff] %vm1860, %v1832
      %1866 = vst.msk [vmem:[%s170 + $0x28] sm:$0xff] %vm1860, %v1833
      %1867 = vst.msk [vmem:[%s170 + $0x30] sm:$0xff] %vm1860, %v1834
      %1868 = vst.msk [vmem:[%s170 + $0x38] sm:$0xff] %vm1860, %v1835
      %1869 = vst.msk [vmem:[%s170 + $0x40] sm:$0xff] %vm1860, %v1836
      %1870 = vst.msk [vmem:[%s170 + $0x48] sm:$0xff] %vm1860, %v1837
      %1871 = vst.msk [vmem:[%s170 + $0x50] sm:$0xff] %vm1860, %v1838
      %1872 = vst.msk [vmem:[%s170 + $0x58] sm:$0xff] %vm1860, %v1839
      %1873 = vst.msk [vmem:[%s170 + $0x60] sm:$0xff] %vm1860, %v1840
      %1874 = vst.msk [vmem:[%s170 + $0x68] sm:$0xff] %vm1860, %v1841
      %1875 = vst.msk [vmem:[%s170 + $0x70] sm:$0xff] %vm1860, %v1842
      %1876 = vst.msk [vmem:[%s170 + $0x78] sm:$0xff] %vm1860, %v1843
      %1877 = vst.msk [vmem:[%s170 + $0x80] sm:$0xff] %vm1860, %v1844
      %1878 = vst.msk [vmem:[%s170 + $0x88] sm:$0xff] %vm1860, %v1845
      %1879 = vst.msk [vmem:[%s170 + $0x90] sm:$0xff] %vm1860, %v1846
      %1880 = vst.msk [vmem:[%s170 + $0x98] sm:$0xff] %vm1860, %v1847
      %1881 = vst.msk [vmem:[%s170 + $0xa0] sm:$0xff] %vm1860, %v1848
      %1882 = vst.msk [vmem:[%s170 + $0xa8] sm:$0xff] %vm1860, %v1849
      %1883 = vst.msk [vmem:[%s170 + $0xb0] sm:$0xff] %vm1860, %v1850
      %1884 = vst.msk [vmem:[%s170 + $0xb8] sm:$0xff] %vm1860, %v1851
      %1885 = vst.msk [vmem:[%s170 + $0xc0] sm:$0xff] %vm1860, %v1852
      %1886 = vst.msk [vmem:[%s170 + $0xc8] sm:$0xff] %vm1860, %v1853
      %1887 = vst.msk [vmem:[%s170 + $0xd0] sm:$0xff] %vm1860, %v1854
      %1888 = vst.msk [vmem:[%s170 + $0xd8] sm:$0xff] %vm1860, %v1855
      %1889 = vst.msk [vmem:[%s170 + $0xe0] sm:$0xff] %vm1860, %v1856
      %1890 = vst.msk [vmem:[%s170 + $0xe8] sm:$0xff] %vm1860, %v1857
      %1891 = vst.msk [vmem:[%s170 + $0xf0] sm:$0xff] %vm1860, %v1858
      %1892 = vst.msk [vmem:[%s170 + $0xf8] sm:$0xff] %vm1860, %v1859
      %p1893 = scmp.lt.s32.totalorder %s14, 1
      %s1894 = scalar_select %p1893, %s14, 1
      %s1895 = smul.addr %s1894, 32
      %s1896 = smul.addr %s1895, 8
      %s1897 = scalar_lea.vmem %s3, %s1896
      // Predicated region
      $region33: #{shufflenet_fwd.8} parent=31 // pred_check
        %p1898 = pneg %p100
      $region34: #{shufflenet_fwd.8} parent=31 // pred_check_branch
        %1900 = sbr.rel (%p1898) target = $region36
      $region35: #{shufflenet_fwd.8} parent=31 // pred_region
        _
      $region36: #{shufflenet_fwd.8} parent=31 // pred_fallthru
        _
    $region32: #{shufflenet_fwd.8} parent=5 // pred_fallthru
      _
    %p1901 = scmp.le.s32.totalorder 2, %s9
    // Predicated region
    $region37: #{shufflenet_fwd.8} parent=5 // pred_check
      %p1902 = pneg %p1901
    $region38: #{shufflenet_fwd.8} parent=5 // pred_check_branch
      %1904 = sbr.rel (%p1902) target = $region40
    $region39: #{shufflenet_fwd.8} parent=5 // pred_region
      %s1905 = ssub.s32 %s9, 2
      // Predicated region
      $region41: #{shufflenet_fwd.8} parent=39 // pred_check
        %p1906 = pneg %p106
      $region42: #{shufflenet_fwd.8} parent=39 // pred_check_branch
        %1908 = sbr.rel (%p1906) target = $region44
      $region43: #{shufflenet_fwd.8} parent=39 // pred_region
        %p1909 = scmp.lt.s32.totalorder %s15, 1
        %s1910 = scalar_select %p1909, %s15, 1
        %s1911 = smul.addr %s1910, 32
        %s1912 = smul.addr %s1911, 8
        %s1913 = scalar_lea.vmem %s3, %s1912
      $region44: #{shufflenet_fwd.8} parent=39 // pred_fallthru
        _
    $region40: #{shufflenet_fwd.8} parent=5 // pred_fallthru
      _
  $region6: #{shufflenet_fwd.8} parent=0 // loop_footer
    %s13 = sadd.s32 1, %s9
  $region7: #{shufflenet_fwd.8} parent=0 // loop_footer_branch
    %8 = sbr.rel target = $region3
  $region8: #{shufflenet_fwd.8} parent=0 // loop_exit
    _

// kernel: shufflenet_fwd.9
$region0: #{shufflenet_fwd.9}
  #allocation0 [shape = 'u32[]', space=smem, size = 0x4, offset = 0x4, fixed_abs, tag = 'smem constant byte address 0x4 - core index']
  #allocation1 [shape = 'u32[144,128]{1,0:T(1,128)}', space=vmem, size = 0x12000, scoped, tag = 'internal scratch']
  #allocation2 [shape = 'f32[1,9,9,32]{3,2,1,0:T(8,128)}', space=vmem, size = 0x12000, scoped, tag = 'scratch operand']
  #allocation3 [shape = 'f32[1,9,9,96]{3,2,1,0:T(8,128)}', space=vmem, size = 0x12000, scoped, tag = 'scratch operand']
  %s0 = inlined_call_operand.vmem [shape: f32[2,8,8,96], index: 0, kind: input, shape index: {}]
  %s1 = inlined_call_operand.vmem [shape: f32[96,32], index: 1, kind: input, shape index: {}]
  %s2 = inlined_call_operand.vmem [shape: f32[1,32], index: 2, kind: input, shape index: {}]
  %s3 = inlined_call_operand.vmem [shape: f32[9,8], index: 3, kind: input, shape index: {}]
  %s4 = inlined_call_operand.vmem [shape: f32[1,8], index: 4, kind: input, shape index: {}]
  %s5 = inlined_call_operand.vmem [shape: f32[8,8], index: 5, kind: input, shape index: {}]
  %s6 = inlined_call_operand.vmem [shape: f32[1,8], index: 6, kind: input, shape index: {}]
  %s7 = inlined_call_operand.vmem [shape: f32[2,8,8,32], index: 7, kind: output, shape index: {}]
  %s8 = sld [smem:[#allocation0]]
  $region61: #{shufflenet_fwd.9} parent=0
    _
  %s10 = ssub.s32 1, %s8
  %s11 = scalar_select 0, %s10, %s8
  loop: start=0, step=1, limit=4
  $region2: #{shufflenet_fwd.9} parent=0 // loop_pre_header
    _
  $region3: #{shufflenet_fwd.9} parent=0 // loop_header
    %s13 = sphi 0, %s17
    %p14 = scmp.ge.s32.totalorder %s13, 4
    %s23 = sphi 0, %s25
    %s26 = sphi 0, %s23
    %s27 = sphi 0, %s26
    %s43 = sphi 0, %s27
    %s47 = sphi 0, %s47
    %s49 = sphi 0, %s47
    %s50 = sphi 0, %s49
    %s64 = sphi 0, %s50
    %s68 = sphi 0, %s68
    %s70 = sphi 0, %s68
    %s71 = sphi 0, %s70
    %s85 = sphi 0, %s71
    %s89 = sphi 0, %s89
    %s91 = sphi 0, %s89
    %s92 = sphi 0, %s91
    %s106 = sphi 0, %s92
    %s110 = sphi 0, %s110
    %s112 = sphi 0, %s110
    %s113 = sphi 0, %s112
    %s127 = sphi 0, %s113
    %s131 = sphi 0, %s131
    %s133 = sphi 0, %s131
    %s134 = sphi 0, %s133
    %s148 = sphi 0, %s134
    %s152 = sphi 0, %s152
    %s154 = sphi 0, %s152
    %s155 = sphi 0, %s154
    %s169 = sphi 0, %s155
    %s175 = sphi 0, %s177
    %s178 = sphi 0, %s175
    %s179 = sphi 0, %s178
    %s195 = sphi 0, %s179
  $region4: #{shufflenet_fwd.9} parent=0 // loop_header_branch
    %16 = sbr.rel (%p14) target = $region8
  $region5: #{shufflenet_fwd.9} parent=0 // loop_body
    %s18 = ssub.s32 %s13, 1
    %s19 = ssub.s32 %s13, 2
    %s20 = sadd.s32 %s13, 1
    %s21 = ssub.s32 %s13, %s20
    %p22 = scmp.eq.s32.totalorder %s21, 0
    %s24 = sadd.s32 %s23, 1
    %s25 = scalar_select %p22, %s23, %s24
    %p28 = pneg %p22
    %p29 = scmp.eq.s32.totalorder %s13, 1
    %p30 = por %p28, %p29
    %p31 = scmp.ne.s32.totalorder %s23, %s26
    %p32 = scmp.eq.s32.totalorder %s13, 0
    %p33 = por %p31, %p32
    %p34 = scmp.ne.s32.totalorder %s23, %s26
    %p35 = scmp.eq.s32.totalorder %s18, 1
    %p36 = por %p34, %p35
    %p37 = scmp.ne.s32.totalorder %s26, %s27
    %p38 = scmp.eq.s32.totalorder %s18, 0
    %p39 = por %p37, %p38
    %p40 = scmp.ne.s32.totalorder %s26, %s27
    %p41 = scmp.eq.s32.totalorder %s19, 1
    %p42 = por %p40, %p41
    %p44 = scmp.ne.s32.totalorder %s27, %s43
    %p45 = scmp.eq.s32.totalorder %s19, 0
    %p46 = por %p44, %p45
    %s48 = sadd.s32 %s47, 1
    %p51 = scmp.eq.s32.totalorder %s13, 1
    %p52 = scmp.ne.s32.totalorder %s47, %s49
    %p53 = scmp.eq.s32.totalorder %s13, 0
    %p54 = por %p52, %p53
    %p55 = scmp.ne.s32.totalorder %s47, %s49
    %p56 = scmp.eq.s32.totalorder %s18, 1
    %p57 = por %p55, %p56
    %p58 = scmp.ne.s32.totalorder %s49, %s50
    %p59 = scmp.eq.s32.totalorder %s18, 0
    %p60 = por %p58, %p59
    %p61 = scmp.ne.s32.totalorder %s49, %s50
    %p62 = scmp.eq.s32.totalorder %s19, 1
    %p63 = por %p61, %p62
    %p65 = scmp.ne.s32.totalorder %s50, %s64
    %p66 = scmp.eq.s32.totalorder %s19, 0
    %p67 = por %p65, %p66
    %s69 = sadd.s32 %s68, 1
    %p72 = scmp.eq.s32.totalorder %s13, 1
    %p73 = scmp.ne.s32.totalorder %s68, %s70
    %p74 = scmp.eq.s32.totalorder %s13, 0
    %p75 = por %p73, %p74
    %p76 = scmp.ne.s32.totalorder %s68, %s70
    %p77 = scmp.eq.s32.totalorder %s18, 1
    %p78 = por %p76, %p77
    %p79 = scmp.ne.s32.totalorder %s70, %s71
    %p80 = scmp.eq.s32.totalorder %s18, 0
    %p81 = por %p79, %p80
    %p82 = scmp.ne.s32.totalorder %s70, %s71
    %p83 = scmp.eq.s32.totalorder %s19, 1
    %p84 = por %p82, %p83
    %p86 = scmp.ne.s32.totalorder %s71, %s85
    %p87 = scmp.eq.s32.totalorder %s19, 0
    %p88 = por %p86, %p87
    %s90 = sadd.s32 %s89, 1
    %p93 = scmp.eq.s32.totalorder %s13, 1
    %p94 = scmp.ne.s32.totalorder %s89, %s91
    %p95 = scmp.eq.s32.totalorder %s13, 0
    %p96 = por %p94, %p95
    %p97 = scmp.ne.s32.totalorder %s89, %s91
    %p98 = scmp.eq.s32.totalorder %s18, 1
    %p99 = por %p97, %p98
    %p100 = scmp.ne.s32.totalorder %s91, %s92
    %p101 = scmp.eq.s32.totalorder %s18, 0
    %p102 = por %p100, %p101
    %p103 = scmp.ne.s32.totalorder %s91, %s92
    %p104 = scmp.eq.s32.totalorder %s19, 1
    %p105 = por %p103, %p104
    %p107 = scmp.ne.s32.totalorder %s92, %s106
    %p108 = scmp.eq.s32.totalorder %s19, 0
    %p109 = por %p107, %p108
    %s111 = sadd.s32 %s110, 1
    %p114 = scmp.eq.s32.totalorder %s13, 1
    %p115 = scmp.ne.s32.totalorder %s110, %s112
    %p116 = scmp.eq.s32.totalorder %s13, 0
    %p117 = por %p115, %p116
    %p118 = scmp.ne.s32.totalorder %s110, %s112
    %p119 = scmp.eq.s32.totalorder %s18, 1
    %p120 = por %p118, %p119
    %p121 = scmp.ne.s32.totalorder %s112, %s113
    %p122 = scmp.eq.s32.totalorder %s18, 0
    %p123 = por %p121, %p122
    %p124 = scmp.ne.s32.totalorder %s112, %s113
    %p125 = scmp.eq.s32.totalorder %s19, 1
    %p126 = por %p124, %p125
    %p128 = scmp.ne.s32.totalorder %s113, %s127
    %p129 = scmp.eq.s32.totalorder %s19, 0
    %p130 = por %p128, %p129
    %s132 = sadd.s32 %s131, 1
    %p135 = scmp.eq.s32.totalorder %s13, 1
    %p136 = scmp.ne.s32.totalorder %s131, %s133
    %p137 = scmp.eq.s32.totalorder %s13, 0
    %p138 = por %p136, %p137
    %p139 = scmp.ne.s32.totalorder %s131, %s133
    %p140 = scmp.eq.s32.totalorder %s18, 1
    %p141 = por %p139, %p140
    %p142 = scmp.ne.s32.totalorder %s133, %s134
    %p143 = scmp.eq.s32.totalorder %s18, 0
    %p144 = por %p142, %p143
    %p145 = scmp.ne.s32.totalorder %s133, %s134
    %p146 = scmp.eq.s32.totalorder %s19, 1
    %p147 = por %p145, %p146
    %p149 = scmp.ne.s32.totalorder %s134, %s148
    %p150 = scmp.eq.s32.totalorder %s19, 0
    %p151 = por %p149, %p150
    %s153 = sadd.s32 %s152, 1
    %p156 = scmp.eq.s32.totalorder %s13, 1
    %p157 = scmp.ne.s32.totalorder %s152, %s154
    %p158 = scmp.eq.s32.totalorder %s13, 0
    %p159 = por %p157, %p158
    %p160 = scmp.ne.s32.totalorder %s152, %s154
    %p161 = scmp.eq.s32.totalorder %s18, 1
    %p162 = por %p160, %p161
    %p163 = scmp.ne.s32.totalorder %s154, %s155
    %p164 = scmp.eq.s32.totalorder %s18, 0
    %p165 = por %p163, %p164
    %p166 = scmp.ne.s32.totalorder %s154, %s155
    %p167 = scmp.eq.s32.totalorder %s19, 1
    %p168 = por %p166, %p167
    %p170 = scmp.ne.s32.totalorder %s155, %s169
    %p171 = scmp.eq.s32.totalorder %s19, 0
    %p172 = por %p170, %p171
    %s173 = ssub.s32 %s13, %s20
    %p174 = scmp.eq.s32.totalorder %s173, 0
    %s176 = sadd.s32 %s175, 1
    %s177 = scalar_select %p174, %s175, %s176
    %p180 = pneg %p174
    %p181 = scmp.eq.s32.totalorder %s13, 1
    %p182 = por %p180, %p181
    %p183 = scmp.ne.s32.totalorder %s175, %s178
    %p184 = scmp.eq.s32.totalorder %s13, 0
    %p185 = por %p183, %p184
    %p186 = scmp.ne.s32.totalorder %s175, %s178
    %p187 = scmp.eq.s32.totalorder %s18, 1
    %p188 = por %p186, %p187
    %p189 = scmp.ne.s32.totalorder %s178, %s179
    %p190 = scmp.eq.s32.totalorder %s18, 0
    %p191 = por %p189, %p190
    %p192 = scmp.ne.s32.totalorder %s178, %s179
    %p193 = scmp.eq.s32.totalorder %s19, 1
    %p194 = por %p192, %p193
    %p196 = scmp.ne.s32.totalorder %s179, %s195
    %p197 = scmp.eq.s32.totalorder %s19, 0
    %p198 = por %p196, %p197
    %p199 = scmp.le.s32.totalorder 1, %s13
    %p200 = scmp.lt.s32.totalorder %s13, 3
    %p201 = pnand %p199, %p200
    %p202 = pneg %p201
    // Predicated region
    $region9: #{shufflenet_fwd.9} parent=5 // pred_check
      _
    $region10: #{shufflenet_fwd.9} parent=5 // pred_check_branch
      %204 = sbr.rel (%p201) target = $region12
    $region11: #{shufflenet_fwd.9} parent=5 // pred_region
      %s205 = ssub.s32 %s13, 1
      // Predicated region
      $region13: #{shufflenet_fwd.9} parent=11 // pred_check
        %p206 = pneg %p60
      $region14: #{shufflenet_fwd.9} parent=11 // pred_check_branch
        %208 = sbr.rel (%p206) target = $region16
      $region15: #{shufflenet_fwd.9} parent=11 // pred_region
        _
      $region16: #{shufflenet_fwd.9} parent=11 // pred_fallthru
        _
      // Predicated region
      $region17: #{shufflenet_fwd.9} parent=11 // pred_check
        %p209 = pneg %p81
      $region18: #{shufflenet_fwd.9} parent=11 // pred_check_branch
        %211 = sbr.rel (%p209) target = $region20
      $region19: #{shufflenet_fwd.9} parent=11 // pred_region
        _
      $region20: #{shufflenet_fwd.9} parent=11 // pred_fallthru
        _
      // Predicated region
      $region21: #{shufflenet_fwd.9} parent=11 // pred_check
        %p212 = pneg %p102
      $region22: #{shufflenet_fwd.9} parent=11 // pred_check_branch
        %214 = sbr.rel (%p212) target = $region24
      $region23: #{shufflenet_fwd.9} parent=11 // pred_region
        _
      $region24: #{shufflenet_fwd.9} parent=11 // pred_fallthru
        _
      // Predicated region
      $region25: #{shufflenet_fwd.9} parent=11 // pred_check
        %p215 = pneg %p123
      $region26: #{shufflenet_fwd.9} parent=11 // pred_check_branch
        %217 = sbr.rel (%p215) target = $region28
      $region27: #{shufflenet_fwd.9} parent=11 // pred_region
        _
      $region28: #{shufflenet_fwd.9} parent=11 // pred_fallthru
        _
      // Predicated region
      $region29: #{shufflenet_fwd.9} parent=11 // pred_check
        %p218 = pneg %p144
      $region30: #{shufflenet_fwd.9} parent=11 // pred_check_branch
        %220 = sbr.rel (%p218) target = $region32
      $region31: #{shufflenet_fwd.9} parent=11 // pred_region
        _
      $region32: #{shufflenet_fwd.9} parent=11 // pred_fallthru
        _
      // Predicated region
      $region33: #{shufflenet_fwd.9} parent=11 // pred_check
        %p221 = pneg %p165
      $region34: #{shufflenet_fwd.9} parent=11 // pred_check_branch
        %223 = sbr.rel (%p221) target = $region36
      $region35: #{shufflenet_fwd.9} parent=11 // pred_region
        _
      $region36: #{shufflenet_fwd.9} parent=11 // pred_fallthru
        _
    $region12: #{shufflenet_fwd.9} parent=5 // pred_fallthru
      _
    %p224 = scmp.lt.s32.totalorder %s13, 2
    // Predicated region
    $region37: #{shufflenet_fwd.9} parent=5 // pred_check
      %p225 = pneg %p224
    $region38: #{shufflenet_fwd.9} parent=5 // pred_check_branch
      %227 = sbr.rel (%p225) target = $region40
    $region39: #{shufflenet_fwd.9} parent=5 // pred_region
      // Predicated region
      $region41: #{shufflenet_fwd.9} parent=39 // pred_check
        %p228 = pneg %p33
      $region42: #{shufflenet_fwd.9} parent=39 // pred_check_branch
        %230 = sbr.rel (%p228) target = $region44
      $region43: #{shufflenet_fwd.9} parent=39 // pred_region
        %p231 = scmp.lt.s32.totalorder %s13, 1
        %s232 = scalar_select %p231, %s13, 1
        %s233 = smul.addr %s232, 8
        %s234 = smul.addr %s233, 8
        %s235 = scalar_lea.vmem %s0, %s234
      $region44: #{shufflenet_fwd.9} parent=39 // pred_fallthru
        _
    $region40: #{shufflenet_fwd.9} parent=5 // pred_fallthru
      _
    %p236 = scmp.le.s32.totalorder 1, %s13
    %p237 = scmp.lt.s32.totalorder %s13, 3
    %p238 = pnand %p236, %p237
    %p239 = pneg %p238
    // Predicated region
    $region45: #{shufflenet_fwd.9} parent=5 // pred_check
      _
    $region46: #{shufflenet_fwd.9} parent=5 // pred_check_branch
      %241 = sbr.rel (%p238) target = $region48
    $region47: #{shufflenet_fwd.9} parent=5 // pred_region
      %s242 = ssub.s32 %s13, 1
      %p243 = scmp.lt.s32.totalorder %s18, 1
      %s244 = scalar_select %p243, %s18, 1
      %s245 = smul.addr %s244, 8
      %s246 = smul.addr %s245, 8
      %s247 = scalar_lea.vmem %s0, %s246
      %p248 = pneg %p39
      %p249 = pneg %p36
      %p250 = pneg %p60
      %p251 = pneg %p57
      %p252 = pneg %p81
      %p253 = pneg %p78
      %p254 = pneg %p102
      %p255 = pneg %p99
      %p256 = pneg %p123
      %p257 = pneg %p120
      %p258 = pneg %p144
      %p259 = pneg %p141
      %p260 = pneg %p165
      %p261 = pneg %p162
      %p262 = pneg %p191
      %p263 = pneg %p188
      %p264 = scmp.lt.s32.totalorder %s18, 1
      %s265 = scalar_select %p264, %s18, 1
      %s266 = smul.addr %s265, 8
      %s267 = smul.addr %s266, 8
      %s268 = scalar_lea.vmem %s7, %s267
      %p269 = scmp.lt.s32.totalorder %s18, 1
      %s270 = scalar_select %p269, %s18, 1
      %s271 = smul.addr %s270, 8
      %s272 = smul.addr %s271, 8
      %s273 = scalar_lea.vmem %s0, %s272
      %p274 = scmp.lt.s32.totalorder %s18, 1
      %s275 = scalar_select %p274, %s18, 1
      %s276 = smul.addr %s275, 8
      %s277 = smul.addr %s276, 8
      %s278 = scalar_lea.vmem %s7, %s277
      %v279 = vld [vmem:[%s273] sm:$0xff]
      %v280 = vld [vmem:[%s273 + $0x8] sm:$0xff]
      %v281 = vld [vmem:[%s273 + $0x10] sm:$0xff]
      %v282 = vld [vmem:[%s273 + $0x18] sm:$0xff]
      %v283 = vld [vmem:[%s273 + $0x20] sm:$0xff]
      %v284 = vld [vmem:[%s273 + $0x28] sm:$0xff]
      %v285 = vld [vmem:[%s273 + $0x30] sm:$0xff]
      %v286 = vld [vmem:[%s273 + $0x38] sm:$0xff]
      %v287 = vld [vmem:[%s1] sm:$0xff]
      %v288 = vld [vmem:[%s1 + $0x8] sm:$0xff]
      %v289 = vld [vmem:[%s1 + $0x10] sm:$0xff]
      %v290 = vld [vmem:[%s1 + $0x18] sm:$0xff]
      %v291 = vld [vmem:[%s1 + $0x20] sm:$0xff]
      %v292 = vld [vmem:[%s1 + $0x28] sm:$0xff]
      %v293 = vld [vmem:[%s1 + $0x30] sm:$0xff]
      %v294 = vld [vmem:[%s1 + $0x38] sm:$0xff]
      %v295 = vld [vmem:[%s1 + $0x40] sm:$0xff]
      %v296 = vld [vmem:[%s1 + $0x48] sm:$0xff]
      %v297 = vld [vmem:[%s1 + $0x50] sm:$0xff]
      %v298 = vld [vmem:[%s1 + $0x58] sm:$0xff]
      %v299 = vld [vmem:[%s2] sm:$0x1]
      %v301 = vlaneseq
      %v302 = vshrl.u32 %v301, 7
      %v303 = vsub.s32 0, %v302
      %v304 = vrot.slane %v299, %v303
      %vm306 = vcmask 785408
      %v308 = vsel %vm306, %v279, 0
      %v311 = vsel %vm306, %v280, 0
      %v314 = vsel %vm306, %v281, 0
      %v317 = vsel %vm306, %v282, 0
      %v320 = vsel %vm306, %v283, 0
      %v323 = vsel %vm306, %v284, 0
      %v326 = vsel %vm306, %v285, 0
      %v329 = vsel %vm306, %v286, 0
      %331 = vmatprep.subr.mxu0 0.0
      %332 = vmatpush1.msra.mxu0 %v287
      %333 = vmatprep.subr.mxu0 0.0
      %334 = vmatpush1.msra.mxu0 %v288
      %335 = vmatprep.subr.mxu0 0.0
      %336 = vmatpush1.msra.mxu0 %v289
      %337 = vmatprep.subr.mxu0 0.0
      %338 = vmatpush1.msra.mxu0 %v290
      %339 = vmatprep.subr.mxu0 0.0
      %340 = vmatpush1.msra.mxu0 %v291
      %341 = vmatprep.subr.mxu0 0.0
      %342 = vmatpush1.msra.mxu0 %v292
      %343 = vmatprep.subr.mxu0 0.0
      %344 = vmatpush1.msra.mxu0 %v293
      %345 = vmatprep.subr.mxu0 0.0
      %346 = vmatpush1.msra.mxu0 %v294
      %347 = vmatprep.subr.mxu0 0.0
      %348 = vmatpush1.msra.mxu0 %v295
      %349 = vmatprep.subr.mxu0 0.0
      %350 = vmatpush1.msra.mxu0 %v296
      %351 = vmatprep.subr.mxu0 0.0
      %352 = vmatpush1.msra.mxu0 %v297
      %353 = vmatprep.subr.mxu0 0.0
      %354 = vmatpush1.msra.mxu0 %v298
      %355 = vmatprep.subr.mxu0 0.0
      %356 = vmatpush1.msra.mxu0 0.0
      %357 = vmatprep.subr.mxu0 0.0
      %358 = vmatpush1.msra.mxu0 0.0
      %359 = vmatprep.subr.mxu0 0.0
      %360 = vmatpush1.msra.mxu0 0.0
      %361 = vmatprep.subr.mxu0 0.0
      %362 = vmatpush1.msra.mxu0 0.0
      %363 = vmatprep.subr.mxu0 0.0
      %364 = vmatpush1.msra.mxu0 0.0
      %365 = vmatprep.subr.mxu0 0.0
      %366 = vmatpush1.msra.mxu0 0.0
      %367 = vmatprep.subr.mxu0 0.0
      %368 = vmatpush1.msra.mxu0 0.0
      %369 = vmatprep.subr.mxu0 0.0
      %370 = vmatpush1.msra.mxu0 0.0
      %371 = vmatprep.subr.mxu0 0.0
      %372 = vmatpush1.msra.mxu0 0.0
      %373 = vmatprep.subr.mxu0 0.0
      %374 = vmatpush1.msra.mxu0 0.0
      %375 = vmatprep.subr.mxu0 0.0
      %376 = vmatpush1.msra.mxu0 0.0
      %377 = vmatprep.subr.mxu0 0.0
      %378 = vmatpush1.msra.mxu0 0.0
      %379 = vmatprep.subr.mxu0 0.0
      %380 = vmatpush1.msra.mxu0 0.0
      %381 = vmatprep.subr.mxu0 0.0
      %382 = vmatpush1.msra.mxu0 0.0
      %383 = vmatprep.subr.mxu0 0.0
      %384 = vmatpush1.msra.mxu0 0.0
      %385 = vmatprep.subr.mxu0 0.0
      %386 = vmatpush1.msra.mxu0 0.0
      %387 = vmatprep.subr.mxu0 0.0
      %388 = vmatpush1.msra.mxu0 0.0
      %389 = vmatprep.subr.mxu0 0.0
      %390 = vmatpush1.msra.mxu0 0.0
      %391 = vmatprep.subr.mxu0 0.0
      %392 = vmatpush1.msra.mxu0 0.0
      %393 = vmatprep.subr.mxu0 0.0
      %394 = vmatpush1.msra.mxu0 0.0
      %395 = vmatprep.mubr.f32.mxu0 0.0
      %396 = vmatmul.mubr.f32.gmra.mrb[0].mxu0 %v308
      %v397 = vpop.f32.mrb[0].mxu0
      %v398 = vadd.f32 %v304, %v397
      %v399 = vpop.f32.mrb[0].mxu0
      %400 = vmatprep.mubr.f32.mxu0 0.0
      %401 = vmatmul.mubr.f32.gmra.mrb[0].mxu0 %v311
      %v402 = vpop.f32.mrb[0].mxu0
      %v403 = vadd.f32 %v304, %v402
      %v404 = vpop.f32.mrb[0].mxu0
      %405 = vmatprep.mubr.f32.mxu0 0.0
      %406 = vmatmul.mubr.f32.gmra.mrb[0].mxu0 %v314
      %v407 = vpop.f32.mrb[0].mxu0
      %v408 = vadd.f32 %v304, %v407
      %v409 = vpop.f32.mrb[0].mxu0
      %410 = vmatprep.mubr.f32.mxu0 0.0
      %411 = vmatmul.mubr.f32.gmra.mrb[0].mxu0 %v317
      %v412 = vpop.f32.mrb[0].mxu0
      %v413 = vadd.f32 %v304, %v412
      %v414 = vpop.f32.mrb[0].mxu0
      %415 = vmatprep.mubr.f32.mxu0 0.0
      %416 = vmatmul.mubr.f32.gmra.mrb[0].mxu0 %v320
      %v417 = vpop.f32.mrb[0].mxu0
      %v418 = vadd.f32 %v304, %v417
      %v419 = vpop.f32.mrb[0].mxu0
      %420 = vmatprep.mubr.f32.mxu0 0.0
      %421 = vmatmul.mubr.f32.gmra.mrb[0].mxu0 %v323
      %v422 = vpop.f32.mrb[0].mxu0
      %v423 = vadd.f32 %v304, %v422
      %v424 = vpop.f32.mrb[0].mxu0
      %425 = vmatprep.mubr.f32.mxu0 0.0
      %426 = vmatmul.mubr.f32.gmra.mrb[0].mxu0 %v326
      %v427 = vpop.f32.mrb[0].mxu0
      %v428 = vadd.f32 %v304, %v427
      %v429 = vpop.f32.mrb[0].mxu0
      %430 = vmatprep.mubr.f32.mxu0 0.0
      %431 = vmatmul.mubr.f32.gmra.mrb[0].mxu0 %v329
      %v432 = vpop.f32.mrb[0].mxu0
      %v433 = vadd.f32 %v304, %v432
      %v434 = vpop.f32.mrb[0].mxu0
      %435 = vdwg.mxu0
      %v436 = vmax.f32 %v398, 0.0
      %v437 = vmax.f32 %v403, 0.0
      %v438 = vmax.f32 %v408, 0.0
      %v439 = vmax.f32 %v413, 0.0
      %v440 = vmax.f32 %v418, 0.0
      %v441 = vmax.f32 %v423, 0.0
      %v442 = vmax.f32 %v428, 0.0
      %v443 = vmax.f32 %v433, 0.0
      %vm444 = vcmask 261120
      %445 = vst.msk [vmem:[#allocation2] sm:$0xff] %vm444, 0.0
      %vm446 = vcmask 253952
      %447 = vst.msk [vmem:[#allocation2 + $0x8] sm:$0x1] %vm446, 0.0
      %448 = vst.msk [vmem:[#allocation2 + $0x10] sm:$0xff] %vm444, 0.0
      %449 = vst.msk [vmem:[#allocation2 + $0x18] sm:$0x1] %vm446, 0.0
      %450 = vst.msk [vmem:[#allocation2 + $0x20] sm:$0xff] %vm444, 0.0
      %451 = vst.msk [vmem:[#allocation2 + $0x28] sm:$0x1] %vm446, 0.0
      %452 = vst.msk [vmem:[#allocation2 + $0x30] sm:$0xff] %vm444, 0.0
      %453 = vst.msk [vmem:[#allocation2 + $0x38] sm:$0x1] %vm446, 0.0
      %454 = vst.msk [vmem:[#allocation2 + $0x40] sm:$0xff] %vm444, 0.0
      %455 = vst.msk [vmem:[#allocation2 + $0x48] sm:$0x1] %vm446, 0.0
      %456 = vst.msk [vmem:[#allocation2 + $0x50] sm:$0xff] %vm444, 0.0
      %457 = vst.msk [vmem:[#allocation2 + $0x58] sm:$0x1] %vm446, 0.0
      %458 = vst.msk [vmem:[#allocation2 + $0x60] sm:$0xff] %vm444, 0.0
      %459 = vst.msk [vmem:[#allocation2 + $0x68] sm:$0x1] %vm446, 0.0
      %460 = vst.msk [vmem:[#allocation2 + $0x70] sm:$0xff] %vm444, 0.0
      %461 = vst.msk [vmem:[#allocation2 + $0x78] sm:$0x1] %vm446, 0.0
      %462 = vst.msk [vmem:[#allocation2 + $0x80] sm:$0xff] %vm444, 0.0
      %463 = vst.msk [vmem:[#allocation2 + $0x88] sm:$0x1] %vm446, 0.0
      %s464 = scalar_lea.vmem [#allocation2], 16
      %465 = vst.msk [vmem:[%s464 + $0x1] sm:$0xff] %vm444, %v436
      %466 = vst.msk [vmem:[%s464 + $0x11] sm:$0xff] %vm444, %v437
      %467 = vst.msk [vmem:[%s464 + $0x21] sm:$0xff] %vm444, %v438
      %468 = vst.msk [vmem:[%s464 + $0x31] sm:$0xff] %vm444, %v439
      %469 = vst.msk [vmem:[%s464 + $0x41] sm:$0xff] %vm444, %v440
      %470 = vst.msk [vmem:[%s464 + $0x51] sm:$0xff] %vm444, %v441
      %471 = vst.msk [vmem:[%s464 + $0x61] sm:$0xff] %vm444, %v442
      %472 = vst.msk [vmem:[%s464 + $0x71] sm:$0xff] %vm444, %v443
      %473 = vst.msk [vmem:[#allocation3] sm:$0xff] %vm306, 0.0
      %vm474 = vcmask 778240
      %475 = vst.msk [vmem:[#allocation3 + $0x8] sm:$0x1] %vm474, 0.0
      %476 = vst.msk [vmem:[#allocation3 + $0x10] sm:$0xff] %vm306, 0.0
      %477 = vst.msk [vmem:[#allocation3 + $0x18] sm:$0x1] %vm474, 0.0
      %478 = vst.msk [vmem:[#allocation3 + $0x20] sm:$0xff] %vm306, 0.0
      %479 = vst.msk [vmem:[#allocation3 + $0x28] sm:$0x1] %vm474, 0.0
      %480 = vst.msk [vmem:[#allocation3 + $0x30] sm:$0xff] %vm306, 0.0
      %481 = vst.msk [vmem:[#allocation3 + $0x38] sm:$0x1] %vm474, 0.0
      %482 = vst.msk [vmem:[#allocation3 + $0x40] sm:$0xff] %vm306, 0.0
      %483 = vst.msk [vmem:[#allocation3 + $0x48] sm:$0x1] %vm474, 0.0
      %484 = vst.msk [vmem:[#allocation3 + $0x50] sm:$0xff] %vm306, 0.0
      %485 = vst.msk [vmem:[#allocation3 + $0x58] sm:$0x1] %vm474, 0.0
      %486 = vst.msk [vmem:[#allocation3 + $0x60] sm:$0xff] %vm306, 0.0
      %487 = vst.msk [vmem:[#allocation3 + $0x68] sm:$0x1] %vm474, 0.0
      %488 = vst.msk [vmem:[#allocation3 + $0x70] sm:$0xff] %vm306, 0.0
      %489 = vst.msk [vmem:[#allocation3 + $0x78] sm:$0x1] %vm474, 0.0
      %490 = vst.msk [vmem:[#allocation3 + $0x80] sm:$0xff] %vm306, 0.0
      %491 = vst.msk [vmem:[#allocation3 + $0x88] sm:$0x1] %vm474, 0.0
      %s492 = scalar_lea.vmem [#allocation3], 16
      %493 = vst.msk [vmem:[%s492 + $0x1] sm:$0xff] %vm306, %v279
      %494 = vst.msk [vmem:[%s492 + $0x11] sm:$0xff] %vm306, %v280
      %495 = vst.msk [vmem:[%s492 + $0x21] sm:$0xff] %vm306, %v281
      %496 = vst.msk [vmem:[%s492 + $0x31] sm:$0xff] %vm306, %v282
      %497 = vst.msk [vmem:[%s492 + $0x41] sm:$0xff] %vm306, %v283
      %498 = vst.msk [vmem:[%s492 + $0x51] sm:$0xff] %vm306, %v284
      %499 = vst.msk [vmem:[%s492 + $0x61] sm:$0xff] %vm306, %v285
      %500 = vst.msk [vmem:[%s492 + $0x71] sm:$0xff] %vm306, %v286
      %v501 = vld [vmem:[#allocation2] sm:$0xff]
      %v502 = vld [vmem:[#allocation2 + $0x8] sm:$0x1]
      %v503 = vld [vmem:[#allocation2 + $0x10] sm:$0xff]
      %v504 = vld [vmem:[#allocation2 + $0x18] sm:$0x1]
      %v505 = vld [vmem:[#allocation2 + $0x20] sm:$0xff]
      %v506 = vld [vmem:[#allocation2 + $0x28] sm:$0x1]
      %v507 = vld [vmem:[#allocation2 + $0x30] sm:$0xff]
      %v508 = vld [vmem:[#allocation2 + $0x38] sm:$0x1]
      %v509 = vld [vmem:[#allocation2 + $0x40] sm:$0xff]
      %v510 = vld [vmem:[#allocation2 + $0x48] sm:$0x1]
      %v511 = vld [vmem:[#allocation2 + $0x50] sm:$0xff]
      %v512 = vld [vmem:[#allocation2 + $0x58] sm:$0x1]
      %v513 = vld [vmem:[#allocation2 + $0x60] sm:$0xff]
      %v514 = vld [vmem:[#allocation2 + $0x68] sm:$0x1]
      %v515 = vld [vmem:[#allocation2 + $0x70] sm:$0xff]
      %v516 = vld [vmem:[#allocation2 + $0x78] sm:$0x1]
      %v517 = vld [vmem:[#allocation2 + $0x80] sm:$0xff]
      %v518 = vld [vmem:[#allocation2 + $0x88] sm:$0x1]
      %v519 = vld [vmem:[#allocation3] sm:$0xff]
      %v520 = vld [vmem:[#allocation3 + $0x8] sm:$0x1]
      %v521 = vld [vmem:[#allocation3 + $0x10] sm:$0xff]
      %v522 = vld [vmem:[#allocation3 + $0x18] sm:$0x1]
      %v523 = vld [vmem:[#allocation3 + $0x20] sm:$0xff]
      %v524 = vld [vmem:[#allocation3 + $0x28] sm:$0x1]
      %v525 = vld [vmem:[#allocation3 + $0x30] sm:$0xff]
      %v526 = vld [vmem:[#allocation3 + $0x38] sm:$0x1]
      %v527 = vld [vmem:[#allocation3 + $0x40] sm:$0xff]
      %v528 = vld [vmem:[#allocation3 + $0x48] sm:$0x1]
      %v529 = vld [vmem:[#allocation3 + $0x50] sm:$0xff]
      %v530 = vld [vmem:[#allocation3 + $0x58] sm:$0x1]
      %v531 = vld [vmem:[#allocation3 + $0x60] sm:$0xff]
      %v532 = vld [vmem:[#allocation3 + $0x68] sm:$0x1]
      %v533 = vld [vmem:[#allocation3 + $0x70] sm:$0xff]
      %v534 = vld [vmem:[#allocation3 + $0x78] sm:$0x1]
      %v535 = vld [vmem:[#allocation3 + $0x80] sm:$0xff]
      %v536 = vld [vmem:[#allocation3 + $0x88] sm:$0x1]
      %v537 = vld [vmem:[%s3] sm:$0x1]
      %v538 = vlaneseq
      %v539 = vshrl.u32 %v538, 7
      %v540 = vsub.s32 0, %v539
      %v541 = vrot.slane %v537, %v540
      %543 = vrot.lane.b32.xlu0 %v541, 24
      %v544 = vpop.permute.xlu0 %543
      %v546 = vmul.f32 %v501, %v544
      %v547 = vmul.f32 %v503, %v544
      %v548 = vmul.f32 %v505, %v544
      %v549 = vmul.f32 %v507, %v544
      %v550 = vmul.f32 %v509, %v544
      %v551 = vmul.f32 %v511, %v544
      %v552 = vmul.f32 %v513, %v544
      %v553 = vmul.f32 %v515, %v544
      %v554 = vld [vmem:[%s3 + $0x1] sm:$0x1]
      %v555 = vlaneseq
      %v556 = vshrl.u32 %v555, 7
      %v557 = vsub.s32 0, %v556
      %v558 = vrot.slane %v554, %v557
      %560 = vrot.lane.b32.xlu0 %v558, 16
      %v561 = vpop.permute.xlu0 %560
      %v563 = vmul.f32 %v501, %v561
      %v564 = vmul.f32 %v502, %v561
      %v565 = vmul.f32 %v503, %v561
      %v566 = vmul.f32 %v504, %v561
      %v567 = vmul.f32 %v505, %v561
      %v568 = vmul.f32 %v506, %v561
      %v569 = vmul.f32 %v507, %v561
      %v570 = vmul.f32 %v508, %v561
      %v571 = vmul.f32 %v509, %v561
      %v572 = vmul.f32 %v510, %v561
      %v573 = vmul.f32 %v511, %v561
      %v574 = vmul.f32 %v512, %v561
      %v575 = vmul.f32 %v513, %v561
      %v576 = vmul.f32 %v514, %v561
      %v577 = vmul.f32 %v515, %v561
      %v578 = vmul.f32 %v516, %v561
      %vm595 = vcmask 1046528
      %v596 = vrot.slane %v563, 1
      %v597 = vrot.slane %v564, 1
      %v598 = vsel %vm595, %v596, %v597
      %v599 = vrot.slane %v565, 1
      %v600 = vrot.slane %v566, 1
      %v601 = vsel %vm595, %v599, %v600
      %v602 = vrot.slane %v567, 1
      %v603 = vrot.slane %v568, 1
      %v604 = vsel %vm595, %v602, %v603
      %v605 = vrot.slane %v569, 1
      %v606 = vrot.slane %v570, 1
      %v607 = vsel %vm595, %v605, %v606
      %v608 = vrot.slane %v571, 1
      %v609 = vrot.slane %v572, 1
      %v610 = vsel %vm595, %v608, %v609
      %v611 = vrot.slane %v573, 1
      %v612 = vrot.slane %v574, 1
      %v613 = vsel %vm595, %v611, %v612
      %v614 = vrot.slane %v575, 1
      %v615 = vrot.slane %v576, 1
      %v616 = vsel %vm595, %v614, %v615
      %v617 = vrot.slane %v577, 1
      %v618 = vrot.slane %v578, 1
      %v619 = vsel %vm595, %v617, %v618
      %620 = vrot.lane.b32.xlu0 %v598, 8
      %v621 = vpop.permute.xlu0 %620
      %622 = vrot.lane.b32.xlu0 %v601, 8
      %v623 = vpop.permute.xlu0 %622
      %624 = vrot.lane.b32.xlu0 %v604, 8
      %v625 = vpop.permute.xlu0 %624
      %626 = vrot.lane.b32.xlu0 %v607, 8
      %v627 = vpop.permute.xlu0 %626
      %628 = vrot.lane.b32.xlu0 %v610, 8
      %v629 = vpop.permute.xlu0 %628
      %630 = vrot.lane.b32.xlu0 %v613, 8
      %v631 = vpop.permute.xlu0 %630
      %632 = vrot.lane.b32.xlu0 %v616, 8
      %v633 = vpop.permute.xlu0 %632
      %634 = vrot.lane.b32.xlu0 %v619, 8
      %v635 = vpop.permute.xlu0 %634
      %v644 = vadd.f32 %v546, %v621
      %v645 = vadd.f32 %v547, %v623
      %v646 = vadd.f32 %v548, %v625
      %v647 = vadd.f32 %v549, %v627
      %v648 = vadd.f32 %v550, %v629
      %v649 = vadd.f32 %v551, %v631
      %v650 = vadd.f32 %v552, %v633
      %v651 = vadd.f32 %v553, %v635
      %v668 = vrot.slane %v519, 1
      %v669 = vrot.slane %v520, 1
      %v670 = vsel %vm595, %v668, %v669
      %v671 = vrot.slane %v521, 1
      %v672 = vrot.slane %v522, 1
      %v673 = vsel %vm595, %v671, %v672
      %v674 = vrot.slane %v523, 1
      %v675 = vrot.slane %v524, 1
      %v676 = vsel %vm595, %v674, %v675
      %v677 = vrot.slane %v525, 1
      %v678 = vrot.slane %v526, 1
      %v679 = vsel %vm595, %v677, %v678
      %v680 = vrot.slane %v527, 1
      %v681 = vrot.slane %v528, 1
      %v682 = vsel %vm595, %v680, %v681
      %v683 = vrot.slane %v529, 1
      %v684 = vrot.slane %v530, 1
      %v685 = vsel %vm595, %v683, %v684
      %v686 = vrot.slane %v531, 1
      %v687 = vrot.slane %v532, 1
      %v688 = vsel %vm595, %v686, %v687
      %v689 = vrot.slane %v533, 1
      %v690 = vrot.slane %v534, 1
      %v691 = vsel %vm595, %v689, %v690
      %692 = vrot.lane.b32.xlu0 %v670, 24
      %v693 = vpop.permute.xlu0 %692
      %694 = vrot.lane.b32.xlu0 %v673, 24
      %v695 = vpop.permute.xlu0 %694
      %696 = vrot.lane.b32.xlu0 %v676, 24
      %v697 = vpop.permute.xlu0 %696
      %698 = vrot.lane.b32.xlu0 %v679, 24
      %v699 = vpop.permute.xlu0 %698
      %700 = vrot.lane.b32.xlu0 %v682, 24
      %v701 = vpop.permute.xlu0 %700
      %702 = vrot.lane.b32.xlu0 %v685, 24
      %v703 = vpop.permute.xlu0 %702
      %704 = vrot.lane.b32.xlu0 %v688, 24
      %v705 = vpop.permute.xlu0 %704
      %706 = vrot.lane.b32.xlu0 %v691, 24
      %v707 = vpop.permute.xlu0 %706
      %v716 = vadd.f32 %v519, %v693
      %v717 = vadd.f32 %v521, %v695
      %v718 = vadd.f32 %v523, %v697
      %v719 = vadd.f32 %v525, %v699
      %v720 = vadd.f32 %v527, %v701
      %v721 = vadd.f32 %v529, %v703
      %v722 = vadd.f32 %v531, %v705
      %v723 = vadd.f32 %v533, %v707
      %v724 = vld [vmem:[%s3 + $0x2] sm:$0x1]
      %v725 = vlaneseq
      %v726 = vshrl.u32 %v725, 7
      %v727 = vsub.s32 0, %v726
      %v728 = vrot.slane %v724, %v727
      %730 = vrot.lane.b32.xlu0 %v728, 24
      %v731 = vpop.permute.xlu0 %730
      %v733 = vmul.f32 %v501, %v731
      %v734 = vmul.f32 %v502, %v731
      %v735 = vmul.f32 %v503, %v731
      %v736 = vmul.f32 %v504, %v731
      %v737 = vmul.f32 %v505, %v731
      %v738 = vmul.f32 %v506, %v731
      %v739 = vmul.f32 %v507, %v731
      %v740 = vmul.f32 %v508, %v731
      %v741 = vmul.f32 %v509, %v731
      %v742 = vmul.f32 %v510, %v731
      %v743 = vmul.f32 %v511, %v731
      %v744 = vmul.f32 %v512, %v731
      %v745 = vmul.f32 %v513, %v731
      %v746 = vmul.f32 %v514, %v731
      %v747 = vmul.f32 %v515, %v731
      %v748 = vmul.f32 %v516, %v731
      %v765 = vrot.slane %v733, 1
      %v766 = vrot.slane %v734, 1
      %v767 = vsel %vm595, %v765, %v766
      %v768 = vrot.slane %v735, 1
      %v769 = vrot.slane %v736, 1
      %v770 = vsel %vm595, %v768, %v769
      %v771 = vrot.slane %v737, 1
      %v772 = vrot.slane %v738, 1
      %v773 = vsel %vm595, %v771, %v772
      %v774 = vrot.slane %v739, 1
      %v775 = vrot.slane %v740, 1
      %v776 = vsel %vm595, %v774, %v775
      %v777 = vrot.slane %v741, 1
      %v778 = vrot.slane %v742, 1
      %v779 = vsel %vm595, %v777, %v778
      %v780 = vrot.slane %v743, 1
      %v781 = vrot.slane %v744, 1
      %v782 = vsel %vm595, %v780, %v781
      %v783 = vrot.slane %v745, 1
      %v784 = vrot.slane %v746, 1
      %v785 = vsel %vm595, %v783, %v784
      %v786 = vrot.slane %v747, 1
      %v787 = vrot.slane %v748, 1
      %v788 = vsel %vm595, %v786, %v787
      %v797 = vadd.f32 %v644, %v767
      %v798 = vadd.f32 %v645, %v770
      %v799 = vadd.f32 %v646, %v773
      %v800 = vadd.f32 %v647, %v776
      %v801 = vadd.f32 %v648, %v779
      %v802 = vadd.f32 %v649, %v782
      %v803 = vadd.f32 %v650, %v785
      %v804 = vadd.f32 %v651, %v788
      %v813 = vadd.f32 %v716, %v670
      %v814 = vadd.f32 %v717, %v673
      %v815 = vadd.f32 %v718, %v676
      %v816 = vadd.f32 %v719, %v679
      %v817 = vadd.f32 %v720, %v682
      %v818 = vadd.f32 %v721, %v685
      %v819 = vadd.f32 %v722, %v688
      %v820 = vadd.f32 %v723, %v691
      %v821 = vld [vmem:[%s3 + $0x3] sm:$0x1]
      %v822 = vlaneseq
      %v823 = vshrl.u32 %v822, 7
      %v824 = vsub.s32 0, %v823
      %v825 = vrot.slane %v821, %v824
      %827 = vrot.lane.b32.xlu0 %v825, 8
      %v828 = vpop.permute.xlu0 %827
      %v830 = vmul.f32 %v503, %v828
      %v831 = vmul.f32 %v505, %v828
      %v832 = vmul.f32 %v507, %v828
      %v833 = vmul.f32 %v509, %v828
      %v834 = vmul.f32 %v511, %v828
      %v835 = vmul.f32 %v513, %v828
      %v836 = vmul.f32 %v515, %v828
      %v837 = vmul.f32 %v517, %v828
      %846 = vrot.lane.b32.xlu0 %v830, 16
      %v847 = vpop.permute.xlu0 %846
      %848 = vrot.lane.b32.xlu0 %v831, 16
      %v849 = vpop.permute.xlu0 %848
      %850 = vrot.lane.b32.xlu0 %v832, 16
      %v851 = vpop.permute.xlu0 %850
      %852 = vrot.lane.b32.xlu0 %v833, 16
      %v853 = vpop.permute.xlu0 %852
      %854 = vrot.lane.b32.xlu0 %v834, 16
      %v855 = vpop.permute.xlu0 %854
      %856 = vrot.lane.b32.xlu0 %v835, 16
      %v857 = vpop.permute.xlu0 %856
      %858 = vrot.lane.b32.xlu0 %v836, 16
      %v859 = vpop.permute.xlu0 %858
      %860 = vrot.lane.b32.xlu0 %v837, 16
      %v861 = vpop.permute.xlu0 %860
      %v870 = vadd.f32 %v797, %v847
      %v871 = vadd.f32 %v798, %v849
      %v872 = vadd.f32 %v799, %v851
      %v873 = vadd.f32 %v800, %v853
      %v874 = vadd.f32 %v801, %v855
      %v875 = vadd.f32 %v802, %v857
      %v876 = vadd.f32 %v803, %v859
      %v877 = vadd.f32 %v804, %v861
      %879 = vrot.lane.b32.xlu0 %v521, 48
      %v880 = vpop.permute.xlu0 %879
      %881 = vrot.lane.b32.xlu0 %v523, 48
      %v882 = vpop.permute.xlu0 %881
      %883 = vrot.lane.b32.xlu0 %v525, 48
      %v884 = vpop.permute.xlu0 %883
      %885 = vrot.lane.b32.xlu0 %v527, 48
      %v886 = vpop.permute.xlu0 %885
      %887 = vrot.lane.b32.xlu0 %v529, 48
      %v888 = vpop.permute.xlu0 %887
      %889 = vrot.lane.b32.xlu0 %v531, 48
      %v890 = vpop.permute.xlu0 %889
      %891 = vrot.lane.b32.xlu0 %v533, 48
      %v892 = vpop.permute.xlu0 %891
      %893 = vrot.lane.b32.xlu0 %v535, 48
      %v894 = vpop.permute.xlu0 %893
      %v903 = vadd.f32 %v813, %v880
      %v904 = vadd.f32 %v814, %v882
      %v905 = vadd.f32 %v815, %v884
      %v906 = vadd.f32 %v816, %v886
      %v907 = vadd.f32 %v817, %v888
      %v908 = vadd.f32 %v818, %v890
      %v909 = vadd.f32 %v819, %v892
      %v910 = vadd.f32 %v820, %v894
      %v911 = vld [vmem:[%s3 + $0x4] sm:$0x1]
      %v912 = vlaneseq
      %v913 = vshrl.u32 %v912, 7
      %v914 = vsub.s32 0, %v913
      %v915 = vrot.slane %v911, %v914
      %v916 = vmul.f32 %v503, %v915
      %v917 = vmul.f32 %v504, %v915
      %v918 = vmul.f32 %v505, %v915
      %v919 = vmul.f32 %v506, %v915
      %v920 = vmul.f32 %v507, %v915
      %v921 = vmul.f32 %v508, %v915
      %v922 = vmul.f32 %v509, %v915
      %v923 = vmul.f32 %v510, %v915
      %v924 = vmul.f32 %v511, %v915
      %v925 = vmul.f32 %v512, %v915
      %v926 = vmul.f32 %v513, %v915
      %v927 = vmul.f32 %v514, %v915
      %v928 = vmul.f32 %v515, %v915
      %v929 = vmul.f32 %v516, %v915
      %v930 = vmul.f32 %v517, %v915
      %v931 = vmul.f32 %v518, %v915
      %v948 = vrot.slane %v916, 1
      %v949 = vrot.slane %v917, 1
      %v950 = vsel %vm595, %v948, %v949
      %v951 = vrot.slane %v918, 1
      %v952 = vrot.slane %v919, 1
      %v953 = vsel %vm595, %v951, %v952
      %v954 = vrot.slane %v920, 1
      %v955 = vrot.slane %v921, 1
      %v956 = vsel %vm595, %v954, %v955
      %v957 = vrot.slane %v922, 1
      %v958 = vrot.slane %v923, 1
      %v959 = vsel %vm595, %v957, %v958
      %v960 = vrot.slane %v924, 1
      %v961 = vrot.slane %v925, 1
      %v962 = vsel %vm595, %v960, %v961
      %v963 = vrot.slane %v926, 1
      %v964 = vrot.slane %v927, 1
      %v965 = vsel %vm595, %v963, %v964
      %v966 = vrot.slane %v928, 1
      %v967 = vrot.slane %v929, 1
      %v968 = vsel %vm595, %v966, %v967
      %v969 = vrot.slane %v930, 1
      %v970 = vrot.slane %v931, 1
      %v971 = vsel %vm595, %v969, %v970
      %972 = vrot.lane.b32.xlu0 %v950, 24
      %v973 = vpop.permute.xlu0 %972
      %974 = vrot.lane.b32.xlu0 %v953, 24
      %v975 = vpop.permute.xlu0 %974
      %976 = vrot.lane.b32.xlu0 %v956, 24
      %v977 = vpop.permute.xlu0 %976
      %978 = vrot.lane.b32.xlu0 %v959, 24
      %v979 = vpop.permute.xlu0 %978
      %980 = vrot.lane.b32.xlu0 %v962, 24
      %v981 = vpop.permute.xlu0 %980
      %982 = vrot.lane.b32.xlu0 %v965, 24
      %v983 = vpop.permute.xlu0 %982
      %984 = vrot.lane.b32.xlu0 %v968, 24
      %v985 = vpop.permute.xlu0 %984
      %986 = vrot.lane.b32.xlu0 %v971, 24
      %v987 = vpop.permute.xlu0 %986
      %v996 = vadd.f32 %v870, %v973
      %v997 = vadd.f32 %v871, %v975
      %v998 = vadd.f32 %v872, %v977
      %v999 = vadd.f32 %v873, %v979
      %v1000 = vadd.f32 %v874, %v981
      %v1001 = vadd.f32 %v875, %v983
      %v1002 = vadd.f32 %v876, %v985
      %v1003 = vadd.f32 %v877, %v987
      %v1005 = vrot.slane %v535, 1
      %v1006 = vrot.slane %v536, 1
      %v1007 = vsel %vm595, %v1005, %v1006
      %1008 = vrot.lane.b32.xlu0 %v673, 72
      %v1009 = vpop.permute.xlu0 %1008
      %1010 = vrot.lane.b32.xlu0 %v676, 72
      %v1011 = vpop.permute.xlu0 %1010
      %1012 = vrot.lane.b32.xlu0 %v679, 72
      %v1013 = vpop.permute.xlu0 %1012
      %1014 = vrot.lane.b32.xlu0 %v682, 72
      %v1015 = vpop.permute.xlu0 %1014
      %1016 = vrot.lane.b32.xlu0 %v685, 72
      %v1017 = vpop.permute.xlu0 %1016
      %1018 = vrot.lane.b32.xlu0 %v688, 72
      %v1019 = vpop.permute.xlu0 %1018
      %1020 = vrot.lane.b32.xlu0 %v691, 72
      %v1021 = vpop.permute.xlu0 %1020
      %1022 = vrot.lane.b32.xlu0 %v1007, 72
      %v1023 = vpop.permute.xlu0 %1022
      %v1032 = vadd.f32 %v903, %v1009
      %v1033 = vadd.f32 %v904, %v1011
      %v1034 = vadd.f32 %v905, %v1013
      %v1035 = vadd.f32 %v906, %v1015
      %v1036 = vadd.f32 %v907, %v1017
      %v1037 = vadd.f32 %v908, %v1019
      %v1038 = vadd.f32 %v909, %v1021
      %v1039 = vadd.f32 %v910, %v1023
      %v1040 = vld [vmem:[%s3 + $0x5] sm:$0x1]
      %v1041 = vlaneseq
      %v1042 = vshrl.u32 %v1041, 7
      %v1043 = vsub.s32 0, %v1042
      %v1044 = vrot.slane %v1040, %v1043
      %1046 = vrot.lane.b32.xlu0 %v1044, 8
      %v1047 = vpop.permute.xlu0 %1046
      %v1049 = vmul.f32 %v503, %v1047
      %v1050 = vmul.f32 %v504, %v1047
      %v1051 = vmul.f32 %v505, %v1047
      %v1052 = vmul.f32 %v506, %v1047
      %v1053 = vmul.f32 %v507, %v1047
      %v1054 = vmul.f32 %v508, %v1047
      %v1055 = vmul.f32 %v509, %v1047
      %v1056 = vmul.f32 %v510, %v1047
      %v1057 = vmul.f32 %v511, %v1047
      %v1058 = vmul.f32 %v512, %v1047
      %v1059 = vmul.f32 %v513, %v1047
      %v1060 = vmul.f32 %v514, %v1047
      %v1061 = vmul.f32 %v515, %v1047
      %v1062 = vmul.f32 %v516, %v1047
      %v1063 = vmul.f32 %v517, %v1047
      %v1064 = vmul.f32 %v518, %v1047
      %v1081 = vrot.slane %v1049, 1
      %v1082 = vrot.slane %v1050, 1
      %v1083 = vsel %vm595, %v1081, %v1082
      %v1084 = vrot.slane %v1051, 1
      %v1085 = vrot.slane %v1052, 1
      %v1086 = vsel %vm595, %v1084, %v1085
      %v1087 = vrot.slane %v1053, 1
      %v1088 = vrot.slane %v1054, 1
      %v1089 = vsel %vm595, %v1087, %v1088
      %v1090 = vrot.slane %v1055, 1
      %v1091 = vrot.slane %v1056, 1
      %v1092 = vsel %vm595, %v1090, %v1091
      %v1093 = vrot.slane %v1057, 1
      %v1094 = vrot.slane %v1058, 1
      %v1095 = vsel %vm595, %v1093, %v1094
      %v1096 = vrot.slane %v1059, 1
      %v1097 = vrot.slane %v1060, 1
      %v1098 = vsel %vm595, %v1096, %v1097
      %v1099 = vrot.slane %v1061, 1
      %v1100 = vrot.slane %v1062, 1
      %v1101 = vsel %vm595, %v1099, %v1100
      %v1102 = vrot.slane %v1063, 1
      %v1103 = vrot.slane %v1064, 1
      %v1104 = vsel %vm595, %v1102, %v1103
      %1105 = vrot.lane.b32.xlu0 %v1083, 16
      %v1106 = vpop.permute.xlu0 %1105
      %1107 = vrot.lane.b32.xlu0 %v1086, 16
      %v1108 = vpop.permute.xlu0 %1107
      %1109 = vrot.lane.b32.xlu0 %v1089, 16
      %v1110 = vpop.permute.xlu0 %1109
      %1111 = vrot.lane.b32.xlu0 %v1092, 16
      %v1112 = vpop.permute.xlu0 %1111
      %1113 = vrot.lane.b32.xlu0 %v1095, 16
      %v1114 = vpop.permute.xlu0 %1113
      %1115 = vrot.lane.b32.xlu0 %v1098, 16
      %v1116 = vpop.permute.xlu0 %1115
      %1117 = vrot.lane.b32.xlu0 %v1101, 16
      %v1118 = vpop.permute.xlu0 %1117
      %1119 = vrot.lane.b32.xlu0 %v1104, 16
      %v1120 = vpop.permute.xlu0 %1119
      %v1129 = vadd.f32 %v996, %v1106
      %v1130 = vadd.f32 %v997, %v1108
      %v1131 = vadd.f32 %v998, %v1110
      %v1132 = vadd.f32 %v999, %v1112
      %v1133 = vadd.f32 %v1000, %v1114
      %v1134 = vadd.f32 %v1001, %v1116
      %v1135 = vadd.f32 %v1002, %v1118
      %v1136 = vadd.f32 %v1003, %v1120
      %1137 = vrot.lane.b32.xlu0 %v673, 48
      %v1138 = vpop.permute.xlu0 %1137
      %1139 = vrot.lane.b32.xlu0 %v676, 48
      %v1140 = vpop.permute.xlu0 %1139
      %1141 = vrot.lane.b32.xlu0 %v679, 48
      %v1142 = vpop.permute.xlu0 %1141
      %1143 = vrot.lane.b32.xlu0 %v682, 48
      %v1144 = vpop.permute.xlu0 %1143
      %1145 = vrot.lane.b32.xlu0 %v685, 48
      %v1146 = vpop.permute.xlu0 %1145
      %1147 = vrot.lane.b32.xlu0 %v688, 48
      %v1148 = vpop.permute.xlu0 %1147
      %1149 = vrot.lane.b32.xlu0 %v691, 48
      %v1150 = vpop.permute.xlu0 %1149
      %1151 = vrot.lane.b32.xlu0 %v1007, 48
      %v1152 = vpop.permute.xlu0 %1151
      %v1161 = vadd.f32 %v1032, %v1138
      %v1162 = vadd.f32 %v1033, %v1140
      %v1163 = vadd.f32 %v1034, %v1142
      %v1164 = vadd.f32 %v1035, %v1144
      %v1165 = vadd.f32 %v1036, %v1146
      %v1166 = vadd.f32 %v1037, %v1148
      %v1167 = vadd.f32 %v1038, %v1150
      %v1168 = vadd.f32 %v1039, %v1152
      %v1169 = vld [vmem:[%s3 + $0x6] sm:$0x1]
      %v1170 = vlaneseq
      %v1171 = vshrl.u32 %v1170, 7
      %v1172 = vsub.s32 0, %v1171
      %v1173 = vrot.slane %v1169, %v1172
      %1175 = vrot.lane.b32.xlu0 %v1173, 24
      %v1176 = vpop.permute.xlu0 %1175
      %v1178 = vmul.f32 %v503, %v1176
      %v1179 = vmul.f32 %v505, %v1176
      %v1180 = vmul.f32 %v507, %v1176
      %v1181 = vmul.f32 %v509, %v1176
      %v1182 = vmul.f32 %v511, %v1176
      %v1183 = vmul.f32 %v513, %v1176
      %v1184 = vmul.f32 %v515, %v1176
      %v1185 = vmul.f32 %v517, %v1176
      %v1186 = vadd.f32 %v1129, %v1178
      %v1187 = vadd.f32 %v1130, %v1179
      %v1188 = vadd.f32 %v1131, %v1180
      %v1189 = vadd.f32 %v1132, %v1181
      %v1190 = vadd.f32 %v1133, %v1182
      %v1191 = vadd.f32 %v1134, %v1183
      %v1192 = vadd.f32 %v1135, %v1184
      %v1193 = vadd.f32 %v1136, %v1185
      %v1194 = vadd.f32 %v1161, %v521
      %v1195 = vadd.f32 %v1162, %v523
      %v1196 = vadd.f32 %v1163, %v525
      %v1197 = vadd.f32 %v1164, %v527
      %v1198 = vadd.f32 %v1165, %v529
      %v1199 = vadd.f32 %v1166, %v531
      %v1200 = vadd.f32 %v1167, %v533
      %v1201 = vadd.f32 %v1168, %v535
      %v1202 = vld [vmem:[%s3 + $0x7] sm:$0x1]
      %v1203 = vlaneseq
      %v1204 = vshrl.u32 %v1203, 7
      %v1205 = vsub.s32 0, %v1204
      %v1206 = vrot.slane %v1202, %v1205
      %1208 = vrot.lane.b32.xlu0 %v1206, 16
      %v1209 = vpop.permute.xlu0 %1208
      %v1211 = vmul.f32 %v503, %v1209
      %v1212 = vmul.f32 %v504, %v1209
      %v1213 = vmul.f32 %v505, %v1209
      %v1214 = vmul.f32 %v506, %v1209
      %v1215 = vmul.f32 %v507, %v1209
      %v1216 = vmul.f32 %v508, %v1209
      %v1217 = vmul.f32 %v509, %v1209
      %v1218 = vmul.f32 %v510, %v1209
      %v1219 = vmul.f32 %v511, %v1209
      %v1220 = vmul.f32 %v512, %v1209
      %v1221 = vmul.f32 %v513, %v1209
      %v1222 = vmul.f32 %v514, %v1209
      %v1223 = vmul.f32 %v515, %v1209
      %v1224 = vmul.f32 %v516, %v1209
      %v1225 = vmul.f32 %v517, %v1209
      %v1226 = vmul.f32 %v518, %v1209
      %v1243 = vrot.slane %v1211, 1
      %v1244 = vrot.slane %v1212, 1
      %v1245 = vsel %vm595, %v1243, %v1244
      %v1246 = vrot.slane %v1213, 1
      %v1247 = vrot.slane %v1214, 1
      %v1248 = vsel %vm595, %v1246, %v1247
      %v1249 = vrot.slane %v1215, 1
      %v1250 = vrot.slane %v1216, 1
      %v1251 = vsel %vm595, %v1249, %v1250
      %v1252 = vrot.slane %v1217, 1
      %v1253 = vrot.slane %v1218, 1
      %v1254 = vsel %vm595, %v1252, %v1253
      %v1255 = vrot.slane %v1219, 1
      %v1256 = vrot.slane %v1220, 1
      %v1257 = vsel %vm595, %v1255, %v1256
      %v1258 = vrot.slane %v1221, 1
      %v1259 = vrot.slane %v1222, 1
      %v1260 = vsel %vm595, %v1258, %v1259
      %v1261 = vrot.slane %v1223, 1
      %v1262 = vrot.slane %v1224, 1
      %v1263 = vsel %vm595, %v1261, %v1262
      %v1264 = vrot.slane %v1225, 1
      %v1265 = vrot.slane %v1226, 1
      %v1266 = vsel %vm595, %v1264, %v1265
      %1267 = vrot.lane.b32.xlu0 %v1245, 8
      %v1268 = vpop.permute.xlu0 %1267
      %1269 = vrot.lane.b32.xlu0 %v1248, 8
      %v1270 = vpop.permute.xlu0 %1269
      %1271 = vrot.lane.b32.xlu0 %v1251, 8
      %v1272 = vpop.permute.xlu0 %1271
      %1273 = vrot.lane.b32.xlu0 %v1254, 8
      %v1274 = vpop.permute.xlu0 %1273
      %1275 = vrot.lane.b32.xlu0 %v1257, 8
      %v1276 = vpop.permute.xlu0 %1275
      %1277 = vrot.lane.b32.xlu0 %v1260, 8
      %v1278 = vpop.permute.xlu0 %1277
      %1279 = vrot.lane.b32.xlu0 %v1263, 8
      %v1280 = vpop.permute.xlu0 %1279
      %1281 = vrot.lane.b32.xlu0 %v1266, 8
      %v1282 = vpop.permute.xlu0 %1281
      %v1291 = vadd.f32 %v1186, %v1268
      %v1292 = vadd.f32 %v1187, %v1270
      %v1293 = vadd.f32 %v1188, %v1272
      %v1294 = vadd.f32 %v1189, %v1274
      %v1295 = vadd.f32 %v1190, %v1276
      %v1296 = vadd.f32 %v1191, %v1278
      %v1297 = vadd.f32 %v1192, %v1280
      %v1298 = vadd.f32 %v1193, %v1282
      %1299 = vrot.lane.b32.xlu0 %v1007, 24
      %v1300 = vpop.permute.xlu0 %1299
      %v1302 = vadd.f32 %v1194, %v695
      %v1303 = vadd.f32 %v1195, %v697
      %v1304 = vadd.f32 %v1196, %v699
      %v1305 = vadd.f32 %v1197, %v701
      %v1306 = vadd.f32 %v1198, %v703
      %v1307 = vadd.f32 %v1199, %v705
      %v1308 = vadd.f32 %v1200, %v707
      %v1309 = vadd.f32 %v1201, %v1300
      %v1310 = vld [vmem:[%s3 + $0x8] sm:$0x1]
      %v1311 = vlaneseq
      %v1312 = vshrl.u32 %v1311, 7
      %v1313 = vsub.s32 0, %v1312
      %v1314 = vrot.slane %v1310, %v1313
      %1316 = vrot.lane.b32.xlu0 %v1314, 24
      %v1317 = vpop.permute.xlu0 %1316
      %v1319 = vmul.f32 %v503, %v1317
      %v1320 = vmul.f32 %v504, %v1317
      %v1321 = vmul.f32 %v505, %v1317
      %v1322 = vmul.f32 %v506, %v1317
      %v1323 = vmul.f32 %v507, %v1317
      %v1324 = vmul.f32 %v508, %v1317
      %v1325 = vmul.f32 %v509, %v1317
      %v1326 = vmul.f32 %v510, %v1317
      %v1327 = vmul.f32 %v511, %v1317
      %v1328 = vmul.f32 %v512, %v1317
      %v1329 = vmul.f32 %v513, %v1317
      %v1330 = vmul.f32 %v514, %v1317
      %v1331 = vmul.f32 %v515, %v1317
      %v1332 = vmul.f32 %v516, %v1317
      %v1333 = vmul.f32 %v517, %v1317
      %v1334 = vmul.f32 %v518, %v1317
      %v1351 = vrot.slane %v1319, 1
      %v1352 = vrot.slane %v1320, 1
      %v1353 = vsel %vm595, %v1351, %v1352
      %v1354 = vrot.slane %v1321, 1
      %v1355 = vrot.slane %v1322, 1
      %v1356 = vsel %vm595, %v1354, %v1355
      %v1357 = vrot.slane %v1323, 1
      %v1358 = vrot.slane %v1324, 1
      %v1359 = vsel %vm595, %v1357, %v1358
      %v1360 = vrot.slane %v1325, 1
      %v1361 = vrot.slane %v1326, 1
      %v1362 = vsel %vm595, %v1360, %v1361
      %v1363 = vrot.slane %v1327, 1
      %v1364 = vrot.slane %v1328, 1
      %v1365 = vsel %vm595, %v1363, %v1364
      %v1366 = vrot.slane %v1329, 1
      %v1367 = vrot.slane %v1330, 1
      %v1368 = vsel %vm595, %v1366, %v1367
      %v1369 = vrot.slane %v1331, 1
      %v1370 = vrot.slane %v1332, 1
      %v1371 = vsel %vm595, %v1369, %v1370
      %v1372 = vrot.slane %v1333, 1
      %v1373 = vrot.slane %v1334, 1
      %v1374 = vsel %vm595, %v1372, %v1373
      %v1383 = vadd.f32 %v1291, %v1353
      %v1384 = vadd.f32 %v1292, %v1356
      %v1385 = vadd.f32 %v1293, %v1359
      %v1386 = vadd.f32 %v1294, %v1362
      %v1387 = vadd.f32 %v1295, %v1365
      %v1388 = vadd.f32 %v1296, %v1368
      %v1389 = vadd.f32 %v1297, %v1371
      %v1390 = vadd.f32 %v1298, %v1374
      %v1392 = vadd.f32 %v1302, %v673
      %v1393 = vadd.f32 %v1303, %v676
      %v1394 = vadd.f32 %v1304, %v679
      %v1395 = vadd.f32 %v1305, %v682
      %v1396 = vadd.f32 %v1306, %v685
      %v1397 = vadd.f32 %v1307, %v688
      %v1398 = vadd.f32 %v1308, %v691
      %v1399 = vadd.f32 %v1309, %v1007
      %v1400 = vld [vmem:[%s4] sm:$0x1]
      %v1402 = vlaneseq
      %v1403 = vshrl.u32 %v1402, 7
      %v1404 = vsub.s32 0, %v1403
      %v1405 = vrot.slane %v1400, %v1404
      %1406 = vrot.lane.b32.xlu0 %v1405, 24
      %v1407 = vpop.permute.xlu0 %1406
      %v1409 = vadd.f32 %v1383, %v1407
      %v1410 = vadd.f32 %v1384, %v1407
      %v1411 = vadd.f32 %v1385, %v1407
      %v1412 = vadd.f32 %v1386, %v1407
      %v1413 = vadd.f32 %v1387, %v1407
      %v1414 = vadd.f32 %v1388, %v1407
      %v1415 = vadd.f32 %v1389, %v1407
      %v1416 = vadd.f32 %v1390, %v1407
      %v1417 = vmul.f32 %v1392, 0.11111111
      %v1418 = vmul.f32 %v1393, 0.11111111
      %v1419 = vmul.f32 %v1394, 0.11111111
      %v1420 = vmul.f32 %v1395, 0.11111111
      %v1421 = vmul.f32 %v1396, 0.11111111
      %v1422 = vmul.f32 %v1397, 0.11111111
      %v1423 = vmul.f32 %v1398, 0.11111111
      %v1424 = vmul.f32 %v1399, 0.11111111
      %v1425 = vld [vmem:[%s5] sm:$0xff]
      %v1426 = vld [vmem:[%s6] sm:$0x1]
      %v1428 = vlaneseq
      %v1429 = vshrl.u32 %v1428, 7
      %v1430 = vsub.s32 0, %v1429
      %v1431 = vrot.slane %v1426, %v1430
      %1441 = vrot.lane.b32.xlu0 %v1409, 104
      %v1442 = vpop.permute.xlu0 %1441
      %1443 = vrot.lane.b32.xlu0 %v1410, 104
      %v1444 = vpop.permute.xlu0 %1443
      %1445 = vrot.lane.b32.xlu0 %v1411, 104
      %v1446 = vpop.permute.xlu0 %1445
      %1447 = vrot.lane.b32.xlu0 %v1412, 104
      %v1448 = vpop.permute.xlu0 %1447
      %1449 = vrot.lane.b32.xlu0 %v1413, 104
      %v1450 = vpop.permute.xlu0 %1449
      %1451 = vrot.lane.b32.xlu0 %v1414, 104
      %v1452 = vpop.permute.xlu0 %1451
      %1453 = vrot.lane.b32.xlu0 %v1415, 104
      %v1454 = vpop.permute.xlu0 %1453
      %1455 = vrot.lane.b32.xlu0 %v1416, 104
      %v1456 = vpop.permute.xlu0 %1455
      %vm1457 = vcmask 64512
      %v1458 = vsel %vm1457, %v1442, 0
      %v1460 = vsel %vm1457, %v1444, 0
      %v1462 = vsel %vm1457, %v1446, 0
      %v1464 = vsel %vm1457, %v1448, 0
      %v1466 = vsel %vm1457, %v1450, 0
      %v1468 = vsel %vm1457, %v1452, 0
      %v1470 = vsel %vm1457, %v1454, 0
      %v1472 = vsel %vm1457, %v1456, 0
      %1474 = vmatprep.subr.mxu0 0.0
      %1475 = vmatpush1.msra.mxu0 %v1425
      %1476 = vmatprep.subr.mxu0 0.0
      %1477 = vmatpush1.msra.mxu0 0.0
      %1478 = vmatprep.subr.mxu0 0.0
      %1479 = vmatpush1.msra.mxu0 0.0
      %1480 = vmatprep.subr.mxu0 0.0
      %1481 = vmatpush1.msra.mxu0 0.0
      %1482 = vmatprep.subr.mxu0 0.0
      %1483 = vmatpush1.msra.mxu0 0.0
      %1484 = vmatprep.subr.mxu0 0.0
      %1485 = vmatpush1.msra.mxu0 0.0
      %1486 = vmatprep.subr.mxu0 0.0
      %1487 = vmatpush1.msra.mxu0 0.0
      %1488 = vmatprep.subr.mxu0 0.0
      %1489 = vmatpush1.msra.mxu0 0.0
      %1490 = vmatprep.subr.mxu0 0.0
      %1491 = vmatpush1.msra.mxu0 0.0
      %1492 = vmatprep.subr.mxu0 0.0
      %1493 = vmatpush1.msra.mxu0 0.0
      %1494 = vmatprep.subr.mxu0 0.0
      %1495 = vmatpush1.msra.mxu0 0.0
      %1496 = vmatprep.subr.mxu0 0.0
      %1497 = vmatpush1.msra.mxu0 0.0
      %1498 = vmatprep.subr.mxu0 0.0
      %1499 = vmatpush1.msra.mxu0 0.0
      %1500 = vmatprep.subr.mxu0 0.0
      %1501 = vmatpush1.msra.mxu0 0.0
      %1502 = vmatprep.subr.mxu0 0.0
      %1503 = vmatpush1.msra.mxu0 0.0
      %1504 = vmatprep.subr.mxu0 0.0
      %1505 = vmatpush1.msra.mxu0 0.0
      %1506 = vmatprep.subr.mxu0 0.0
      %1507 = vmatpush1.msra.mxu0 0.0
      %1508 = vmatprep.subr.mxu0 0.0
      %1509 = vmatpush1.msra.mxu0 0.0
      %1510 = vmatprep.subr.mxu0 0.0
      %1511 = vmatpush1.msra.mxu0 0.0
      %1512 = vmatprep.subr.mxu0 0.0
      %1513 = vmatpush1.msra.mxu0 0.0
      %1514 = vmatprep.subr.mxu0 0.0
      %1515 = vmatpush1.msra.mxu0 0.0
      %1516 = vmatprep.subr.mxu0 0.0
      %1517 = vmatpush1.msra.mxu0 0.0
      %1518 = vmatprep.subr.mxu0 0.0
      %1519 = vmatpush1.msra.mxu0 0.0
      %1520 = vmatprep.subr.mxu0 0.0
      %1521 = vmatpush1.msra.mxu0 0.0
      %1522 = vmatprep.subr.mxu0 0.0
      %1523 = vmatpush1.msra.mxu0 0.0
      %1524 = vmatprep.subr.mxu0 0.0
      %1525 = vmatpush1.msra.mxu0 0.0
      %1526 = vmatprep.subr.mxu0 0.0
      %1527 = vmatpush1.msra.mxu0 0.0
      %1528 = vmatprep.subr.mxu0 0.0
      %1529 = vmatpush1.msra.mxu0 0.0
      %1530 = vmatprep.subr.mxu0 0.0
      %1531 = vmatpush1.msra.mxu0 0.0
      %1532 = vmatprep.subr.mxu0 0.0
      %1533 = vmatpush1.msra.mxu0 0.0
      %1534 = vmatprep.subr.mxu0 0.0
      %1535 = vmatpush1.msra.mxu0 0.0
      %1536 = vmatprep.subr.mxu0 0.0
      %1537 = vmatpush1.msra.mxu0 0.0
      %1538 = vmatprep.mubr.f32.mxu0 0.0
      %1539 = vmatmul.mubr.f32.gmra.mrb[0].mxu0 %v1458
      %v1540 = vpop.f32.mrb[0].mxu0
      %v1541 = vadd.f32 %v1431, %v1540
      %v1542 = vpop.f32.mrb[0].mxu0
      %1543 = vmatprep.mubr.f32.mxu0 0.0
      %1544 = vmatmul.mubr.f32.gmra.mrb[0].mxu0 %v1460
      %v1545 = vpop.f32.mrb[0].mxu0
      %v1546 = vadd.f32 %v1431, %v1545
      %v1547 = vpop.f32.mrb[0].mxu0
      %1548 = vmatprep.mubr.f32.mxu0 0.0
      %1549 = vmatmul.mubr.f32.gmra.mrb[0].mxu0 %v1462
      %v1550 = vpop.f32.mrb[0].mxu0
      %v1551 = vadd.f32 %v1431, %v1550
      %v1552 = vpop.f32.mrb[0].mxu0
      %1553 = vmatprep.mubr.f32.mxu0 0.0
      %1554 = vmatmul.mubr.f32.gmra.mrb[0].mxu0 %v1464
      %v1555 = vpop.f32.mrb[0].mxu0
      %v1556 = vadd.f32 %v1431, %v1555
      %v1557 = vpop.f32.mrb[0].mxu0
      %1558 = vmatprep.mubr.f32.mxu0 0.0
      %1559 = vmatmul.mubr.f32.gmra.mrb[0].mxu0 %v1466
      %v1560 = vpop.f32.mrb[0].mxu0
      %v1561 = vadd.f32 %v1431, %v1560
      %v1562 = vpop.f32.mrb[0].mxu0
      %1563 = vmatprep.mubr.f32.mxu0 0.0
      %1564 = vmatmul.mubr.f32.gmra.mrb[0].mxu0 %v1468
      %v1565 = vpop.f32.mrb[0].mxu0
      %v1566 = vadd.f32 %v1431, %v1565
      %v1567 = vpop.f32.mrb[0].mxu0
      %1568 = vmatprep.mubr.f32.mxu0 0.0
      %1569 = vmatmul.mubr.f32.gmra.mrb[0].mxu0 %v1470
      %v1570 = vpop.f32.mrb[0].mxu0
      %v1571 = vadd.f32 %v1431, %v1570
      %v1572 = vpop.f32.mrb[0].mxu0
      %1573 = vmatprep.mubr.f32.mxu0 0.0
      %1574 = vmatmul.mubr.f32.gmra.mrb[0].mxu0 %v1472
      %v1575 = vpop.f32.mrb[0].mxu0
      %v1576 = vadd.f32 %v1431, %v1575
      %v1577 = vpop.f32.mrb[0].mxu0
      %1578 = vdwg.mxu0
      %1587 = vrot.lane.b32.xlu0 %v1417, 64
      %v1588 = vpop.permute.xlu0 %1587
      %1589 = vrot.lane.b32.xlu0 %v1418, 64
      %v1590 = vpop.permute.xlu0 %1589
      %1591 = vrot.lane.b32.xlu0 %v1419, 64
      %v1592 = vpop.permute.xlu0 %1591
      %1593 = vrot.lane.b32.xlu0 %v1420, 64
      %v1594 = vpop.permute.xlu0 %1593
      %1595 = vrot.lane.b32.xlu0 %v1421, 64
      %v1596 = vpop.permute.xlu0 %1595
      %1597 = vrot.lane.b32.xlu0 %v1422, 64
      %v1598 = vpop.permute.xlu0 %1597
      %1599 = vrot.lane.b32.xlu0 %v1423, 64
      %v1600 = vpop.permute.xlu0 %1599
      %1601 = vrot.lane.b32.xlu0 %v1424, 64
      %v1602 = vpop.permute.xlu0 %1601
      %v1611 = vsel %vm1457, %v1541, %v1588
      %v1612 = vsel %vm1457, %v1546, %v1590
      %v1613 = vsel %vm1457, %v1551, %v1592
      %v1614 = vsel %vm1457, %v1556, %v1594
      %v1615 = vsel %vm1457, %v1561, %v1596
      %v1616 = vsel %vm1457, %v1566, %v1598
      %v1617 = vsel %vm1457, %v1571, %v1600
      %v1618 = vsel %vm1457, %v1576, %v1602
      %v1619 = vmax.f32 %v1611, 0.0
      %v1620 = vmax.f32 %v1612, 0.0
      %v1621 = vmax.f32 %v1613, 0.0
      %v1622 = vmax.f32 %v1614, 0.0
      %v1623 = vmax.f32 %v1615, 0.0
      %v1624 = vmax.f32 %v1616, 0.0
      %v1625 = vmax.f32 %v1617, 0.0
      %v1626 = vmax.f32 %v1618, 0.0
      %1627 = vst.msk [vmem:[%s278] sm:$0xff] %vm444, %v1619
      %1628 = vst.msk [vmem:[%s278 + $0x8] sm:$0xff] %vm444, %v1620
      %1629 = vst.msk [vmem:[%s278 + $0x10] sm:$0xff] %vm444, %v1621
      %1630 = vst.msk [vmem:[%s278 + $0x18] sm:$0xff] %vm444, %v1622
      %1631 = vst.msk [vmem:[%s278 + $0x20] sm:$0xff] %vm444, %v1623
      %1632 = vst.msk [vmem:[%s278 + $0x28] sm:$0xff] %vm444, %v1624
      %1633 = vst.msk [vmem:[%s278 + $0x30] sm:$0xff] %vm444, %v1625
      %1634 = vst.msk [vmem:[%s278 + $0x38] sm:$0xff] %vm444, %v1626
      %p1635 = scmp.lt.s32.totalorder %s18, 1
      %s1636 = scalar_select %p1635, %s18, 1
      %s1637 = smul.addr %s1636, 8
      %s1638 = smul.addr %s1637, 8
      %s1639 = scalar_lea.vmem %s7, %s1638
      // Predicated region
      $region49: #{shufflenet_fwd.9} parent=47 // pred_check
        %p1640 = pneg %p188
      $region50: #{shufflenet_fwd.9} parent=47 // pred_check_branch
        %1642 = sbr.rel (%p1640) target = $region52
      $region51: #{shufflenet_fwd.9} parent=47 // pred_region
        _
      $region52: #{shufflenet_fwd.9} parent=47 // pred_fallthru
        _
    $region48: #{shufflenet_fwd.9} parent=5 // pred_fallthru
      _
    %p1643 = scmp.le.s32.totalorder 2, %s13
    // Predicated region
    $region53: #{shufflenet_fwd.9} parent=5 // pred_check
      %p1644 = pneg %p1643
    $region54: #{shufflenet_fwd.9} parent=5 // pred_check_branch
      %1646 = sbr.rel (%p1644) target = $region56
    $region55: #{shufflenet_fwd.9} parent=5 // pred_region
      %s1647 = ssub.s32 %s13, 2
      // Predicated region
      $region57: #{shufflenet_fwd.9} parent=55 // pred_check
        %p1648 = pneg %p194
      $region58: #{shufflenet_fwd.9} parent=55 // pred_check_branch
        %1650 = sbr.rel (%p1648) target = $region60
      $region59: #{shufflenet_fwd.9} parent=55 // pred_region
        %p1651 = scmp.lt.s32.totalorder %s19, 1
        %s1652 = scalar_select %p1651, %s19, 1
        %s1653 = smul.addr %s1652, 8
        %s1654 = smul.addr %s1653, 8
        %s1655 = scalar_lea.vmem %s7, %s1654
      $region60: #{shufflenet_fwd.9} parent=55 // pred_fallthru
        _
    $region56: #{shufflenet_fwd.9} parent=5 // pred_fallthru
      _
  $region6: #{shufflenet_fwd.9} parent=0 // loop_footer
    %s17 = sadd.s32 1, %s13
  $region7: #{shufflenet_fwd.9} parent=0 // loop_footer_branch
    %12 = sbr.rel target = $region3
  $region8: #{shufflenet_fwd.9} parent=0 // loop_exit
    _

// kernel: shufflenet_fwd.10
$region0: #{shufflenet_fwd.10}
  #allocation0 [shape = 'u32[]', space=smem, size = 0x4, offset = 0x4, fixed_abs, tag = 'smem constant byte address 0x4 - core index']
  #allocation1 [shape = 'u32[144,128]{1,0:T(1,128)}', space=vmem, size = 0x12000, scoped, tag = 'internal scratch']
  #allocation2 [shape = 'f32[1,10,10,8]{3,2,1,0:T(8,128)}', space=vmem, size = 0x14000, scoped, tag = 'scratch operand']
  %s0 = inlined_call_operand.vmem [shape: f32[2,8,8,32], index: 0, kind: input, shape index: {}]
  %s1 = inlined_call_operand.vmem [shape: f32[32,8], index: 1, kind: input, shape index: {}]
  %s2 = inlined_call_operand.vmem [shape: f32[1,8], index: 2, kind: input, shape index: {}]
  %s3 = inlined_call_operand.vmem [shape: f32[9,8], index: 3, kind: input, shape index: {}]
  %s4 = inlined_call_operand.vmem [shape: f32[1,8], index: 4, kind: input, shape index: {}]
  %s5 = inlined_call_operand.vmem [shape: f32[8,32], index: 5, kind: input, shape index: {}]
  %s6 = inlined_call_operand.vmem [shape: f32[1,32], index: 6, kind: input, shape index: {}]
  %s7 = inlined_call_operand.vmem [shape: f32[2,8,8,32], index: 7, kind: output, shape index: {}]
  %s8 = sld [smem:[#allocation0]]
  $region61: #{shufflenet_fwd.10} parent=0
    _
  %s10 = ssub.s32 1, %s8
  %s11 = scalar_select 0, %s10, %s8
  loop: start=0, step=1, limit=4
  $region2: #{shufflenet_fwd.10} parent=0 // loop_pre_header
    _
  $region3: #{shufflenet_fwd.10} parent=0 // loop_header
    %s13 = sphi 0, %s17
    %p14 = scmp.ge.s32.totalorder %s13, 4
    %s23 = sphi 0, %s25
    %s26 = sphi 0, %s23
    %s27 = sphi 0, %s26
    %s43 = sphi 0, %s27
    %s47 = sphi 0, %s47
    %s49 = sphi 0, %s47
    %s50 = sphi 0, %s49
    %s64 = sphi 0, %s50
    %s68 = sphi 0, %s68
    %s70 = sphi 0, %s68
    %s71 = sphi 0, %s70
    %s85 = sphi 0, %s71
    %s89 = sphi 0, %s89
    %s91 = sphi 0, %s89
    %s92 = sphi 0, %s91
    %s106 = sphi 0, %s92
    %s110 = sphi 0, %s110
    %s112 = sphi 0, %s110
    %s113 = sphi 0, %s112
    %s127 = sphi 0, %s113
    %s131 = sphi 0, %s131
    %s133 = sphi 0, %s131
    %s134 = sphi 0, %s133
    %s148 = sphi 0, %s134
    %s152 = sphi 0, %s152
    %s154 = sphi 0, %s152
    %s155 = sphi 0, %s154
    %s169 = sphi 0, %s155
    %s175 = sphi 0, %s177
    %s178 = sphi 0, %s175
    %s179 = sphi 0, %s178
    %s195 = sphi 0, %s179
  $region4: #{shufflenet_fwd.10} parent=0 // loop_header_branch
    %16 = sbr.rel (%p14) target = $region8
  $region5: #{shufflenet_fwd.10} parent=0 // loop_body
    %s18 = ssub.s32 %s13, 1
    %s19 = ssub.s32 %s13, 2
    %s20 = sadd.s32 %s13, 1
    %s21 = ssub.s32 %s13, %s20
    %p22 = scmp.eq.s32.totalorder %s21, 0
    %s24 = sadd.s32 %s23, 1
    %s25 = scalar_select %p22, %s23, %s24
    %p28 = pneg %p22
    %p29 = scmp.eq.s32.totalorder %s13, 1
    %p30 = por %p28, %p29
    %p31 = scmp.ne.s32.totalorder %s23, %s26
    %p32 = scmp.eq.s32.totalorder %s13, 0
    %p33 = por %p31, %p32
    %p34 = scmp.ne.s32.totalorder %s23, %s26
    %p35 = scmp.eq.s32.totalorder %s18, 1
    %p36 = por %p34, %p35
    %p37 = scmp.ne.s32.totalorder %s26, %s27
    %p38 = scmp.eq.s32.totalorder %s18, 0
    %p39 = por %p37, %p38
    %p40 = scmp.ne.s32.totalorder %s26, %s27
    %p41 = scmp.eq.s32.totalorder %s19, 1
    %p42 = por %p40, %p41
    %p44 = scmp.ne.s32.totalorder %s27, %s43
    %p45 = scmp.eq.s32.totalorder %s19, 0
    %p46 = por %p44, %p45
    %s48 = sadd.s32 %s47, 1
    %p51 = scmp.eq.s32.totalorder %s13, 1
    %p52 = scmp.ne.s32.totalorder %s47, %s49
    %p53 = scmp.eq.s32.totalorder %s13, 0
    %p54 = por %p52, %p53
    %p55 = scmp.ne.s32.totalorder %s47, %s49
    %p56 = scmp.eq.s32.totalorder %s18, 1
    %p57 = por %p55, %p56
    %p58 = scmp.ne.s32.totalorder %s49, %s50
    %p59 = scmp.eq.s32.totalorder %s18, 0
    %p60 = por %p58, %p59
    %p61 = scmp.ne.s32.totalorder %s49, %s50
    %p62 = scmp.eq.s32.totalorder %s19, 1
    %p63 = por %p61, %p62
    %p65 = scmp.ne.s32.totalorder %s50, %s64
    %p66 = scmp.eq.s32.totalorder %s19, 0
    %p67 = por %p65, %p66
    %s69 = sadd.s32 %s68, 1
    %p72 = scmp.eq.s32.totalorder %s13, 1
    %p73 = scmp.ne.s32.totalorder %s68, %s70
    %p74 = scmp.eq.s32.totalorder %s13, 0
    %p75 = por %p73, %p74
    %p76 = scmp.ne.s32.totalorder %s68, %s70
    %p77 = scmp.eq.s32.totalorder %s18, 1
    %p78 = por %p76, %p77
    %p79 = scmp.ne.s32.totalorder %s70, %s71
    %p80 = scmp.eq.s32.totalorder %s18, 0
    %p81 = por %p79, %p80
    %p82 = scmp.ne.s32.totalorder %s70, %s71
    %p83 = scmp.eq.s32.totalorder %s19, 1
    %p84 = por %p82, %p83
    %p86 = scmp.ne.s32.totalorder %s71, %s85
    %p87 = scmp.eq.s32.totalorder %s19, 0
    %p88 = por %p86, %p87
    %s90 = sadd.s32 %s89, 1
    %p93 = scmp.eq.s32.totalorder %s13, 1
    %p94 = scmp.ne.s32.totalorder %s89, %s91
    %p95 = scmp.eq.s32.totalorder %s13, 0
    %p96 = por %p94, %p95
    %p97 = scmp.ne.s32.totalorder %s89, %s91
    %p98 = scmp.eq.s32.totalorder %s18, 1
    %p99 = por %p97, %p98
    %p100 = scmp.ne.s32.totalorder %s91, %s92
    %p101 = scmp.eq.s32.totalorder %s18, 0
    %p102 = por %p100, %p101
    %p103 = scmp.ne.s32.totalorder %s91, %s92
    %p104 = scmp.eq.s32.totalorder %s19, 1
    %p105 = por %p103, %p104
    %p107 = scmp.ne.s32.totalorder %s92, %s106
    %p108 = scmp.eq.s32.totalorder %s19, 0
    %p109 = por %p107, %p108
    %s111 = sadd.s32 %s110, 1
    %p114 = scmp.eq.s32.totalorder %s13, 1
    %p115 = scmp.ne.s32.totalorder %s110, %s112
    %p116 = scmp.eq.s32.totalorder %s13, 0
    %p117 = por %p115, %p116
    %p118 = scmp.ne.s32.totalorder %s110, %s112
    %p119 = scmp.eq.s32.totalorder %s18, 1
    %p120 = por %p118, %p119
    %p121 = scmp.ne.s32.totalorder %s112, %s113
    %p122 = scmp.eq.s32.totalorder %s18, 0
    %p123 = por %p121, %p122
    %p124 = scmp.ne.s32.totalorder %s112, %s113
    %p125 = scmp.eq.s32.totalorder %s19, 1
    %p126 = por %p124, %p125
    %p128 = scmp.ne.s32.totalorder %s113, %s127
    %p129 = scmp.eq.s32.totalorder %s19, 0
    %p130 = por %p128, %p129
    %s132 = sadd.s32 %s131, 1
    %p135 = scmp.eq.s32.totalorder %s13, 1
    %p136 = scmp.ne.s32.totalorder %s131, %s133
    %p137 = scmp.eq.s32.totalorder %s13, 0
    %p138 = por %p136, %p137
    %p139 = scmp.ne.s32.totalorder %s131, %s133
    %p140 = scmp.eq.s32.totalorder %s18, 1
    %p141 = por %p139, %p140
    %p142 = scmp.ne.s32.totalorder %s133, %s134
    %p143 = scmp.eq.s32.totalorder %s18, 0
    %p144 = por %p142, %p143
    %p145 = scmp.ne.s32.totalorder %s133, %s134
    %p146 = scmp.eq.s32.totalorder %s19, 1
    %p147 = por %p145, %p146
    %p149 = scmp.ne.s32.totalorder %s134, %s148
    %p150 = scmp.eq.s32.totalorder %s19, 0
    %p151 = por %p149, %p150
    %s153 = sadd.s32 %s152, 1
    %p156 = scmp.eq.s32.totalorder %s13, 1
    %p157 = scmp.ne.s32.totalorder %s152, %s154
    %p158 = scmp.eq.s32.totalorder %s13, 0
    %p159 = por %p157, %p158
    %p160 = scmp.ne.s32.totalorder %s152, %s154
    %p161 = scmp.eq.s32.totalorder %s18, 1
    %p162 = por %p160, %p161
    %p163 = scmp.ne.s32.totalorder %s154, %s155
    %p164 = scmp.eq.s32.totalorder %s18, 0
    %p165 = por %p163, %p164
    %p166 = scmp.ne.s32.totalorder %s154, %s155
    %p167 = scmp.eq.s32.totalorder %s19, 1
    %p168 = por %p166, %p167
    %p170 = scmp.ne.s32.totalorder %s155, %s169
    %p171 = scmp.eq.s32.totalorder %s19, 0
    %p172 = por %p170, %p171
    %s173 = ssub.s32 %s13, %s20
    %p174 = scmp.eq.s32.totalorder %s173, 0
    %s176 = sadd.s32 %s175, 1
    %s177 = scalar_select %p174, %s175, %s176
    %p180 = pneg %p174
    %p181 = scmp.eq.s32.totalorder %s13, 1
    %p182 = por %p180, %p181
    %p183 = scmp.ne.s32.totalorder %s175, %s178
    %p184 = scmp.eq.s32.totalorder %s13, 0
    %p185 = por %p183, %p184
    %p186 = scmp.ne.s32.totalorder %s175, %s178
    %p187 = scmp.eq.s32.totalorder %s18, 1
    %p188 = por %p186, %p187
    %p189 = scmp.ne.s32.totalorder %s178, %s179
    %p190 = scmp.eq.s32.totalorder %s18, 0
    %p191 = por %p189, %p190
    %p192 = scmp.ne.s32.totalorder %s178, %s179
    %p193 = scmp.eq.s32.totalorder %s19, 1
    %p194 = por %p192, %p193
    %p196 = scmp.ne.s32.totalorder %s179, %s195
    %p197 = scmp.eq.s32.totalorder %s19, 0
    %p198 = por %p196, %p197
    %p199 = scmp.le.s32.totalorder 1, %s13
    %p200 = scmp.lt.s32.totalorder %s13, 3
    %p201 = pnand %p199, %p200
    %p202 = pneg %p201
    // Predicated region
    $region9: #{shufflenet_fwd.10} parent=5 // pred_check
      _
    $region10: #{shufflenet_fwd.10} parent=5 // pred_check_branch
      %204 = sbr.rel (%p201) target = $region12
    $region11: #{shufflenet_fwd.10} parent=5 // pred_region
      %s205 = ssub.s32 %s13, 1
      // Predicated region
      $region13: #{shufflenet_fwd.10} parent=11 // pred_check
        %p206 = pneg %p60
      $region14: #{shufflenet_fwd.10} parent=11 // pred_check_branch
        %208 = sbr.rel (%p206) target = $region16
      $region15: #{shufflenet_fwd.10} parent=11 // pred_region
        _
      $region16: #{shufflenet_fwd.10} parent=11 // pred_fallthru
        _
      // Predicated region
      $region17: #{shufflenet_fwd.10} parent=11 // pred_check
        %p209 = pneg %p81
      $region18: #{shufflenet_fwd.10} parent=11 // pred_check_branch
        %211 = sbr.rel (%p209) target = $region20
      $region19: #{shufflenet_fwd.10} parent=11 // pred_region
        _
      $region20: #{shufflenet_fwd.10} parent=11 // pred_fallthru
        _
      // Predicated region
      $region21: #{shufflenet_fwd.10} parent=11 // pred_check
        %p212 = pneg %p102
      $region22: #{shufflenet_fwd.10} parent=11 // pred_check_branch
        %214 = sbr.rel (%p212) target = $region24
      $region23: #{shufflenet_fwd.10} parent=11 // pred_region
        _
      $region24: #{shufflenet_fwd.10} parent=11 // pred_fallthru
        _
      // Predicated region
      $region25: #{shufflenet_fwd.10} parent=11 // pred_check
        %p215 = pneg %p123
      $region26: #{shufflenet_fwd.10} parent=11 // pred_check_branch
        %217 = sbr.rel (%p215) target = $region28
      $region27: #{shufflenet_fwd.10} parent=11 // pred_region
        _
      $region28: #{shufflenet_fwd.10} parent=11 // pred_fallthru
        _
      // Predicated region
      $region29: #{shufflenet_fwd.10} parent=11 // pred_check
        %p218 = pneg %p144
      $region30: #{shufflenet_fwd.10} parent=11 // pred_check_branch
        %220 = sbr.rel (%p218) target = $region32
      $region31: #{shufflenet_fwd.10} parent=11 // pred_region
        _
      $region32: #{shufflenet_fwd.10} parent=11 // pred_fallthru
        _
      // Predicated region
      $region33: #{shufflenet_fwd.10} parent=11 // pred_check
        %p221 = pneg %p165
      $region34: #{shufflenet_fwd.10} parent=11 // pred_check_branch
        %223 = sbr.rel (%p221) target = $region36
      $region35: #{shufflenet_fwd.10} parent=11 // pred_region
        _
      $region36: #{shufflenet_fwd.10} parent=11 // pred_fallthru
        _
    $region12: #{shufflenet_fwd.10} parent=5 // pred_fallthru
      _
    %p224 = scmp.lt.s32.totalorder %s13, 2
    // Predicated region
    $region37: #{shufflenet_fwd.10} parent=5 // pred_check
      %p225 = pneg %p224
    $region38: #{shufflenet_fwd.10} parent=5 // pred_check_branch
      %227 = sbr.rel (%p225) target = $region40
    $region39: #{shufflenet_fwd.10} parent=5 // pred_region
      // Predicated region
      $region41: #{shufflenet_fwd.10} parent=39 // pred_check
        %p228 = pneg %p33
      $region42: #{shufflenet_fwd.10} parent=39 // pred_check_branch
        %230 = sbr.rel (%p228) target = $region44
      $region43: #{shufflenet_fwd.10} parent=39 // pred_region
        %p231 = scmp.lt.s32.totalorder %s13, 1
        %s232 = scalar_select %p231, %s13, 1
        %s233 = smul.addr %s232, 8
        %s234 = smul.addr %s233, 8
        %s235 = scalar_lea.vmem %s0, %s234
      $region44: #{shufflenet_fwd.10} parent=39 // pred_fallthru
        _
    $region40: #{shufflenet_fwd.10} parent=5 // pred_fallthru
      _
    %p236 = scmp.le.s32.totalorder 1, %s13
    %p237 = scmp.lt.s32.totalorder %s13, 3
    %p238 = pnand %p236, %p237
    %p239 = pneg %p238
    // Predicated region
    $region45: #{shufflenet_fwd.10} parent=5 // pred_check
      _
    $region46: #{shufflenet_fwd.10} parent=5 // pred_check_branch
      %241 = sbr.rel (%p238) target = $region48
    $region47: #{shufflenet_fwd.10} parent=5 // pred_region
      %s242 = ssub.s32 %s13, 1
      %p243 = scmp.lt.s32.totalorder %s18, 1
      %s244 = scalar_select %p243, %s18, 1
      %s245 = smul.addr %s244, 8
      %s246 = smul.addr %s245, 8
      %s247 = scalar_lea.vmem %s0, %s246
      %p248 = pneg %p39
      %p249 = pneg %p36
      %p250 = pneg %p60
      %p251 = pneg %p57
      %p252 = pneg %p81
      %p253 = pneg %p78
      %p254 = pneg %p102
      %p255 = pneg %p99
      %p256 = pneg %p123
      %p257 = pneg %p120
      %p258 = pneg %p144
      %p259 = pneg %p141
      %p260 = pneg %p165
      %p261 = pneg %p162
      %p262 = pneg %p191
      %p263 = pneg %p188
      %p264 = scmp.lt.s32.totalorder %s18, 1
      %s265 = scalar_select %p264, %s18, 1
      %s266 = smul.addr %s265, 8
      %s267 = smul.addr %s266, 8
      %s268 = scalar_lea.vmem %s7, %s267
      %p269 = scmp.lt.s32.totalorder %s18, 1
      %s270 = scalar_select %p269, %s18, 1
      %s271 = smul.addr %s270, 8
      %s272 = smul.addr %s271, 8
      %s273 = scalar_lea.vmem %s0, %s272
      %p274 = scmp.lt.s32.totalorder %s18, 1
      %s275 = scalar_select %p274, %s18, 1
      %s276 = smul.addr %s275, 8
      %s277 = smul.addr %s276, 8
      %s278 = scalar_lea.vmem %s7, %s277
      %v279 = vld [vmem:[%s273] sm:$0xff]
      %v280 = vld [vmem:[%s273 + $0x8] sm:$0xff]
      %v281 = vld [vmem:[%s273 + $0x10] sm:$0xff]
      %v282 = vld [vmem:[%s273 + $0x18] sm:$0xff]
      %v283 = vld [vmem:[%s273 + $0x20] sm:$0xff]
      %v284 = vld [vmem:[%s273 + $0x28] sm:$0xff]
      %v285 = vld [vmem:[%s273 + $0x30] sm:$0xff]
      %v286 = vld [vmem:[%s273 + $0x38] sm:$0xff]
      %v287 = vld [vmem:[%s1] sm:$0xff]
      %v288 = vld [vmem:[%s1 + $0x8] sm:$0xff]
      %v289 = vld [vmem:[%s1 + $0x10] sm:$0xff]
      %v290 = vld [vmem:[%s1 + $0x18] sm:$0xff]
      %v291 = vld [vmem:[%s2] sm:$0x1]
      %v293 = vlaneseq
      %v294 = vshrl.u32 %v293, 7
      %v295 = vsub.s32 0, %v294
      %v296 = vrot.slane %v291, %v295
      %vm298 = vcmask 261120
      %v300 = vsel %vm298, %v279, 0
      %v303 = vsel %vm298, %v280, 0
      %v306 = vsel %vm298, %v281, 0
      %v309 = vsel %vm298, %v282, 0
      %v312 = vsel %vm298, %v283, 0
      %v315 = vsel %vm298, %v284, 0
      %v318 = vsel %vm298, %v285, 0
      %v321 = vsel %vm298, %v286, 0
      %323 = vmatprep.subr.mxu0 0.0
      %324 = vmatpush1.msra.mxu0 %v287
      %325 = vmatprep.subr.mxu0 0.0
      %326 = vmatpush1.msra.mxu0 %v288
      %327 = vmatprep.subr.mxu0 0.0
      %328 = vmatpush1.msra.mxu0 %v289
      %329 = vmatprep.subr.mxu0 0.0
      %330 = vmatpush1.msra.mxu0 %v290
      %331 = vmatprep.subr.mxu0 0.0
      %332 = vmatpush1.msra.mxu0 0.0
      %333 = vmatprep.subr.mxu0 0.0
      %334 = vmatpush1.msra.mxu0 0.0
      %335 = vmatprep.subr.mxu0 0.0
      %336 = vmatpush1.msra.mxu0 0.0
      %337 = vmatprep.subr.mxu0 0.0
      %338 = vmatpush1.msra.mxu0 0.0
      %339 = vmatprep.subr.mxu0 0.0
      %340 = vmatpush1.msra.mxu0 0.0
      %341 = vmatprep.subr.mxu0 0.0
      %342 = vmatpush1.msra.mxu0 0.0
      %343 = vmatprep.subr.mxu0 0.0
      %344 = vmatpush1.msra.mxu0 0.0
      %345 = vmatprep.subr.mxu0 0.0
      %346 = vmatpush1.msra.mxu0 0.0
      %347 = vmatprep.subr.mxu0 0.0
      %348 = vmatpush1.msra.mxu0 0.0
      %349 = vmatprep.subr.mxu0 0.0
      %350 = vmatpush1.msra.mxu0 0.0
      %351 = vmatprep.subr.mxu0 0.0
      %352 = vmatpush1.msra.mxu0 0.0
      %353 = vmatprep.subr.mxu0 0.0
      %354 = vmatpush1.msra.mxu0 0.0
      %355 = vmatprep.subr.mxu0 0.0
      %356 = vmatpush1.msra.mxu0 0.0
      %357 = vmatprep.subr.mxu0 0.0
      %358 = vmatpush1.msra.mxu0 0.0
      %359 = vmatprep.subr.mxu0 0.0
      %360 = vmatpush1.msra.mxu0 0.0
      %361 = vmatprep.subr.mxu0 0.0
      %362 = vmatpush1.msra.mxu0 0.0
      %363 = vmatprep.subr.mxu0 0.0
      %364 = vmatpush1.msra.mxu0 0.0
      %365 = vmatprep.subr.mxu0 0.0
      %366 = vmatpush1.msra.mxu0 0.0
      %367 = vmatprep.subr.mxu0 0.0
      %368 = vmatpush1.msra.mxu0 0.0
      %369 = vmatprep.subr.mxu0 0.0
      %370 = vmatpush1.msra.mxu0 0.0
      %371 = vmatprep.subr.mxu0 0.0
      %372 = vmatpush1.msra.mxu0 0.0
      %373 = vmatprep.subr.mxu0 0.0
      %374 = vmatpush1.msra.mxu0 0.0
      %375 = vmatprep.subr.mxu0 0.0
      %376 = vmatpush1.msra.mxu0 0.0
      %377 = vmatprep.subr.mxu0 0.0
      %378 = vmatpush1.msra.mxu0 0.0
      %379 = vmatprep.subr.mxu0 0.0
      %380 = vmatpush1.msra.mxu0 0.0
      %381 = vmatprep.subr.mxu0 0.0
      %382 = vmatpush1.msra.mxu0 0.0
      %383 = vmatprep.subr.mxu0 0.0
      %384 = vmatpush1.msra.mxu0 0.0
      %385 = vmatprep.subr.mxu0 0.0
      %386 = vmatpush1.msra.mxu0 0.0
      %387 = vmatprep.mubr.f32.mxu0 0.0
      %388 = vmatmul.mubr.f32.gmra.mrb[0].mxu0 %v300
      %v389 = vpop.f32.mrb[0].mxu0
      %v390 = vadd.f32 %v296, %v389
      %v391 = vpop.f32.mrb[0].mxu0
      %392 = vmatprep.mubr.f32.mxu0 0.0
      %393 = vmatmul.mubr.f32.gmra.mrb[0].mxu0 %v303
      %v394 = vpop.f32.mrb[0].mxu0
      %v395 = vadd.f32 %v296, %v394
      %v396 = vpop.f32.mrb[0].mxu0
      %397 = vmatprep.mubr.f32.mxu0 0.0
      %398 = vmatmul.mubr.f32.gmra.mrb[0].mxu0 %v306
      %v399 = vpop.f32.mrb[0].mxu0
      %v400 = vadd.f32 %v296, %v399
      %v401 = vpop.f32.mrb[0].mxu0
      %402 = vmatprep.mubr.f32.mxu0 0.0
      %403 = vmatmul.mubr.f32.gmra.mrb[0].mxu0 %v309
      %v404 = vpop.f32.mrb[0].mxu0
      %v405 = vadd.f32 %v296, %v404
      %v406 = vpop.f32.mrb[0].mxu0
      %407 = vmatprep.mubr.f32.mxu0 0.0
      %408 = vmatmul.mubr.f32.gmra.mrb[0].mxu0 %v312
      %v409 = vpop.f32.mrb[0].mxu0
      %v410 = vadd.f32 %v296, %v409
      %v411 = vpop.f32.mrb[0].mxu0
      %412 = vmatprep.mubr.f32.mxu0 0.0
      %413 = vmatmul.mubr.f32.gmra.mrb[0].mxu0 %v315
      %v414 = vpop.f32.mrb[0].mxu0
      %v415 = vadd.f32 %v296, %v414
      %v416 = vpop.f32.mrb[0].mxu0
      %417 = vmatprep.mubr.f32.mxu0 0.0
      %418 = vmatmul.mubr.f32.gmra.mrb[0].mxu0 %v318
      %v419 = vpop.f32.mrb[0].mxu0
      %v420 = vadd.f32 %v296, %v419
      %v421 = vpop.f32.mrb[0].mxu0
      %422 = vmatprep.mubr.f32.mxu0 0.0
      %423 = vmatmul.mubr.f32.gmra.mrb[0].mxu0 %v321
      %v424 = vpop.f32.mrb[0].mxu0
      %v425 = vadd.f32 %v296, %v424
      %v426 = vpop.f32.mrb[0].mxu0
      %427 = vdwg.mxu0
      %v428 = vmax.f32 %v390, 0.0
      %v429 = vmax.f32 %v395, 0.0
      %v430 = vmax.f32 %v400, 0.0
      %v431 = vmax.f32 %v405, 0.0
      %v432 = vmax.f32 %v410, 0.0
      %v433 = vmax.f32 %v415, 0.0
      %v434 = vmax.f32 %v420, 0.0
      %v435 = vmax.f32 %v425, 0.0
      %vm436 = vcmask 64512
      %437 = vst.msk [vmem:[#allocation2] sm:$0xff] %vm436, 0.0
      %vm438 = vcmask 58368
      %439 = vst.msk [vmem:[#allocation2 + $0x8] sm:$0x3] %vm438, 0.0
      %440 = vst.msk [vmem:[#allocation2 + $0x10] sm:$0xff] %vm436, 0.0
      %441 = vst.msk [vmem:[#allocation2 + $0x18] sm:$0x3] %vm438, 0.0
      %442 = vst.msk [vmem:[#allocation2 + $0x20] sm:$0xff] %vm436, 0.0
      %443 = vst.msk [vmem:[#allocation2 + $0x28] sm:$0x3] %vm438, 0.0
      %444 = vst.msk [vmem:[#allocation2 + $0x30] sm:$0xff] %vm436, 0.0
      %445 = vst.msk [vmem:[#allocation2 + $0x38] sm:$0x3] %vm438, 0.0
      %446 = vst.msk [vmem:[#allocation2 + $0x40] sm:$0xff] %vm436, 0.0
      %447 = vst.msk [vmem:[#allocation2 + $0x48] sm:$0x3] %vm438, 0.0
      %448 = vst.msk [vmem:[#allocation2 + $0x50] sm:$0xff] %vm436, 0.0
      %449 = vst.msk [vmem:[#allocation2 + $0x58] sm:$0x3] %vm438, 0.0
      %450 = vst.msk [vmem:[#allocation2 + $0x60] sm:$0xff] %vm436, 0.0
      %451 = vst.msk [vmem:[#allocation2 + $0x68] sm:$0x3] %vm438, 0.0
      %452 = vst.msk [vmem:[#allocation2 + $0x70] sm:$0xff] %vm436, 0.0
      %453 = vst.msk [vmem:[#allocation2 + $0x78] sm:$0x3] %vm438, 0.0
      %454 = vst.msk [vmem:[#allocation2 + $0x80] sm:$0xff] %vm436, 0.0
      %455 = vst.msk [vmem:[#allocation2 + $0x88] sm:$0x3] %vm438, 0.0
      %456 = vst.msk [vmem:[#allocation2 + $0x90] sm:$0xff] %vm436, 0.0
      %457 = vst.msk [vmem:[#allocation2 + $0x98] sm:$0x3] %vm438, 0.0
      %s458 = scalar_lea.vmem [#allocation2], 16
      %459 = vst.msk [vmem:[%s458 + $0x1] sm:$0xff] %vm436, %v428
      %460 = vst.msk [vmem:[%s458 + $0x11] sm:$0xff] %vm436, %v429
      %461 = vst.msk [vmem:[%s458 + $0x21] sm:$0xff] %vm436, %v430
      %462 = vst.msk [vmem:[%s458 + $0x31] sm:$0xff] %vm436, %v431
      %463 = vst.msk [vmem:[%s458 + $0x41] sm:$0xff] %vm436, %v432
      %464 = vst.msk [vmem:[%s458 + $0x51] sm:$0xff] %vm436, %v433
      %465 = vst.msk [vmem:[%s458 + $0x61] sm:$0xff] %vm436, %v434
      %466 = vst.msk [vmem:[%s458 + $0x71] sm:$0xff] %vm436, %v435
      %v467 = vld [vmem:[#allocation2] sm:$0xff]
      %v468 = vld [vmem:[#allocation2 + $0x10] sm:$0xff]
      %v469 = vld [vmem:[#allocation2 + $0x20] sm:$0xff]
      %v470 = vld [vmem:[#allocation2 + $0x30] sm:$0xff]
      %v471 = vld [vmem:[#allocation2 + $0x40] sm:$0xff]
      %v472 = vld [vmem:[#allocation2 + $0x50] sm:$0xff]
      %v473 = vld [vmem:[#allocation2 + $0x60] sm:$0xff]
      %v474 = vld [vmem:[#allocation2 + $0x70] sm:$0xff]
      %v475 = vld [vmem:[%s3] sm:$0x1]
      %v476 = vlaneseq
      %v477 = vshrl.u32 %v476, 7
      %v478 = vsub.s32 0, %v477
      %v479 = vrot.slane %v475, %v478
      %v480 = vmul.f32 %v467, %v479
      %v481 = vmul.f32 %v468, %v479
      %v482 = vmul.f32 %v469, %v479
      %v483 = vmul.f32 %v470, %v479
      %v484 = vmul.f32 %v471, %v479
      %v485 = vmul.f32 %v472, %v479
      %v486 = vmul.f32 %v473, %v479
      %v487 = vmul.f32 %v474, %v479
      %v488 = vld [vmem:[#allocation2 + $0x1] sm:$0xff]
      %v489 = vld [vmem:[#allocation2 + $0x11] sm:$0xff]
      %v490 = vld [vmem:[#allocation2 + $0x21] sm:$0xff]
      %v491 = vld [vmem:[#allocation2 + $0x31] sm:$0xff]
      %v492 = vld [vmem:[#allocation2 + $0x41] sm:$0xff]
      %v493 = vld [vmem:[#allocation2 + $0x51] sm:$0xff]
      %v494 = vld [vmem:[#allocation2 + $0x61] sm:$0xff]
      %v495 = vld [vmem:[#allocation2 + $0x71] sm:$0xff]
      %v496 = vld [vmem:[%s3 + $0x1] sm:$0x1]
      %v497 = vlaneseq
      %v498 = vshrl.u32 %v497, 7
      %v499 = vsub.s32 0, %v498
      %v500 = vrot.slane %v496, %v499
      %v501 = vmul.f32 %v488, %v500
      %v502 = vmul.f32 %v489, %v500
      %v503 = vmul.f32 %v490, %v500
      %v504 = vmul.f32 %v491, %v500
      %v505 = vmul.f32 %v492, %v500
      %v506 = vmul.f32 %v493, %v500
      %v507 = vmul.f32 %v494, %v500
      %v508 = vmul.f32 %v495, %v500
      %v509 = vadd.f32 %v480, %v501
      %v510 = vadd.f32 %v481, %v502
      %v511 = vadd.f32 %v482, %v503
      %v512 = vadd.f32 %v483, %v504
      %v513 = vadd.f32 %v484, %v505
      %v514 = vadd.f32 %v485, %v506
      %v515 = vadd.f32 %v486, %v507
      %v516 = vadd.f32 %v487, %v508
      %v517 = vld [vmem:[#allocation2 + $0x2] sm:$0xff]
      %v518 = vld [vmem:[#allocation2 + $0x12] sm:$0xff]
      %v519 = vld [vmem:[#allocation2 + $0x22] sm:$0xff]
      %v520 = vld [vmem:[#allocation2 + $0x32] sm:$0xff]
      %v521 = vld [vmem:[#allocation2 + $0x42] sm:$0xff]
      %v522 = vld [vmem:[#allocation2 + $0x52] sm:$0xff]
      %v523 = vld [vmem:[#allocation2 + $0x62] sm:$0xff]
      %v524 = vld [vmem:[#allocation2 + $0x72] sm:$0xff]
      %v525 = vld [vmem:[%s3 + $0x2] sm:$0x1]
      %v526 = vlaneseq
      %v527 = vshrl.u32 %v526, 7
      %v528 = vsub.s32 0, %v527
      %v529 = vrot.slane %v525, %v528
      %v530 = vmul.f32 %v517, %v529
      %v531 = vmul.f32 %v518, %v529
      %v532 = vmul.f32 %v519, %v529
      %v533 = vmul.f32 %v520, %v529
      %v534 = vmul.f32 %v521, %v529
      %v535 = vmul.f32 %v522, %v529
      %v536 = vmul.f32 %v523, %v529
      %v537 = vmul.f32 %v524, %v529
      %v538 = vadd.f32 %v509, %v530
      %v539 = vadd.f32 %v510, %v531
      %v540 = vadd.f32 %v511, %v532
      %v541 = vadd.f32 %v512, %v533
      %v542 = vadd.f32 %v513, %v534
      %v543 = vadd.f32 %v514, %v535
      %v544 = vadd.f32 %v515, %v536
      %v545 = vadd.f32 %v516, %v537
      %v546 = vld [vmem:[%s458] sm:$0xff]
      %v547 = vld [vmem:[%s458 + $0x10] sm:$0xff]
      %v548 = vld [vmem:[%s458 + $0x20] sm:$0xff]
      %v549 = vld [vmem:[%s458 + $0x30] sm:$0xff]
      %v550 = vld [vmem:[%s458 + $0x40] sm:$0xff]
      %v551 = vld [vmem:[%s458 + $0x50] sm:$0xff]
      %v552 = vld [vmem:[%s458 + $0x60] sm:$0xff]
      %v553 = vld [vmem:[%s458 + $0x70] sm:$0xff]
      %v554 = vld [vmem:[%s3 + $0x3] sm:$0x1]
      %v555 = vlaneseq
      %v556 = vshrl.u32 %v555, 7
      %v557 = vsub.s32 0, %v556
      %v558 = vrot.slane %v554, %v557
      %v559 = vmul.f32 %v546, %v558
      %v560 = vmul.f32 %v547, %v558
      %v561 = vmul.f32 %v548, %v558
      %v562 = vmul.f32 %v549, %v558
      %v563 = vmul.f32 %v550, %v558
      %v564 = vmul.f32 %v551, %v558
      %v565 = vmul.f32 %v552, %v558
      %v566 = vmul.f32 %v553, %v558
      %v567 = vadd.f32 %v538, %v559
      %v568 = vadd.f32 %v539, %v560
      %v569 = vadd.f32 %v540, %v561
      %v570 = vadd.f32 %v541, %v562
      %v571 = vadd.f32 %v542, %v563
      %v572 = vadd.f32 %v543, %v564
      %v573 = vadd.f32 %v544, %v565
      %v574 = vadd.f32 %v545, %v566
      %v575 = vld [vmem:[%s458 + $0x1] sm:$0xff]
      %v576 = vld [vmem:[%s458 + $0x11] sm:$0xff]
      %v577 = vld [vmem:[%s458 + $0x21] sm:$0xff]
      %v578 = vld [vmem:[%s458 + $0x31] sm:$0xff]
      %v579 = vld [vmem:[%s458 + $0x41] sm:$0xff]
      %v580 = vld [vmem:[%s458 + $0x51] sm:$0xff]
      %v581 = vld [vmem:[%s458 + $0x61] sm:$0xff]
      %v582 = vld [vmem:[%s458 + $0x71] sm:$0xff]
      %v583 = vld [vmem:[%s3 + $0x4] sm:$0x1]
      %v584 = vlaneseq
      %v585 = vshrl.u32 %v584, 7
      %v586 = vsub.s32 0, %v585
      %v587 = vrot.slane %v583, %v586
      %v588 = vmul.f32 %v575, %v587
      %v589 = vmul.f32 %v576, %v587
      %v590 = vmul.f32 %v577, %v587
      %v591 = vmul.f32 %v578, %v587
      %v592 = vmul.f32 %v579, %v587
      %v593 = vmul.f32 %v580, %v587
      %v594 = vmul.f32 %v581, %v587
      %v595 = vmul.f32 %v582, %v587
      %v596 = vadd.f32 %v567, %v588
      %v597 = vadd.f32 %v568, %v589
      %v598 = vadd.f32 %v569, %v590
      %v599 = vadd.f32 %v570, %v591
      %v600 = vadd.f32 %v571, %v592
      %v601 = vadd.f32 %v572, %v593
      %v602 = vadd.f32 %v573, %v594
      %v603 = vadd.f32 %v574, %v595
      %v604 = vld [vmem:[%s458 + $0x2] sm:$0xff]
      %v605 = vld [vmem:[%s458 + $0x12] sm:$0xff]
      %v606 = vld [vmem:[%s458 + $0x22] sm:$0xff]
      %v607 = vld [vmem:[%s458 + $0x32] sm:$0xff]
      %v608 = vld [vmem:[%s458 + $0x42] sm:$0xff]
      %v609 = vld [vmem:[%s458 + $0x52] sm:$0xff]
      %v610 = vld [vmem:[%s458 + $0x62] sm:$0xff]
      %v611 = vld [vmem:[%s458 + $0x72] sm:$0xff]
      %v612 = vld [vmem:[%s3 + $0x5] sm:$0x1]
      %v613 = vlaneseq
      %v614 = vshrl.u32 %v613, 7
      %v615 = vsub.s32 0, %v614
      %v616 = vrot.slane %v612, %v615
      %v617 = vmul.f32 %v604, %v616
      %v618 = vmul.f32 %v605, %v616
      %v619 = vmul.f32 %v606, %v616
      %v620 = vmul.f32 %v607, %v616
      %v621 = vmul.f32 %v608, %v616
      %v622 = vmul.f32 %v609, %v616
      %v623 = vmul.f32 %v610, %v616
      %v624 = vmul.f32 %v611, %v616
      %v625 = vadd.f32 %v596, %v617
      %v626 = vadd.f32 %v597, %v618
      %v627 = vadd.f32 %v598, %v619
      %v628 = vadd.f32 %v599, %v620
      %v629 = vadd.f32 %v600, %v621
      %v630 = vadd.f32 %v601, %v622
      %v631 = vadd.f32 %v602, %v623
      %v632 = vadd.f32 %v603, %v624
      %s633 = scalar_lea.vmem [#allocation2], 32
      %v634 = vld [vmem:[%s633] sm:$0xff]
      %v635 = vld [vmem:[%s633 + $0x10] sm:$0xff]
      %v636 = vld [vmem:[%s633 + $0x20] sm:$0xff]
      %v637 = vld [vmem:[%s633 + $0x30] sm:$0xff]
      %v638 = vld [vmem:[%s633 + $0x40] sm:$0xff]
      %v639 = vld [vmem:[%s633 + $0x50] sm:$0xff]
      %v640 = vld [vmem:[%s633 + $0x60] sm:$0xff]
      %v641 = vld [vmem:[%s633 + $0x70] sm:$0xff]
      %v642 = vld [vmem:[%s3 + $0x6] sm:$0x1]
      %v643 = vlaneseq
      %v644 = vshrl.u32 %v643, 7
      %v645 = vsub.s32 0, %v644
      %v646 = vrot.slane %v642, %v645
      %v647 = vmul.f32 %v634, %v646
      %v648 = vmul.f32 %v635, %v646
      %v649 = vmul.f32 %v636, %v646
      %v650 = vmul.f32 %v637, %v646
      %v651 = vmul.f32 %v638, %v646
      %v652 = vmul.f32 %v639, %v646
      %v653 = vmul.f32 %v640, %v646
      %v654 = vmul.f32 %v641, %v646
      %v655 = vadd.f32 %v625, %v647
      %v656 = vadd.f32 %v626, %v648
      %v657 = vadd.f32 %v627, %v649
      %v658 = vadd.f32 %v628, %v650
      %v659 = vadd.f32 %v629, %v651
      %v660 = vadd.f32 %v630, %v652
      %v661 = vadd.f32 %v631, %v653
      %v662 = vadd.f32 %v632, %v654
      %v663 = vld [vmem:[%s633 + $0x1] sm:$0xff]
      %v664 = vld [vmem:[%s633 + $0x11] sm:$0xff]
      %v665 = vld [vmem:[%s633 + $0x21] sm:$0xff]
      %v666 = vld [vmem:[%s633 + $0x31] sm:$0xff]
      %v667 = vld [vmem:[%s633 + $0x41] sm:$0xff]
      %v668 = vld [vmem:[%s633 + $0x51] sm:$0xff]
      %v669 = vld [vmem:[%s633 + $0x61] sm:$0xff]
      %v670 = vld [vmem:[%s633 + $0x71] sm:$0xff]
      %v671 = vld [vmem:[%s3 + $0x7] sm:$0x1]
      %v672 = vlaneseq
      %v673 = vshrl.u32 %v672, 7
      %v674 = vsub.s32 0, %v673
      %v675 = vrot.slane %v671, %v674
      %v676 = vmul.f32 %v663, %v675
      %v677 = vmul.f32 %v664, %v675
      %v678 = vmul.f32 %v665, %v675
      %v679 = vmul.f32 %v666, %v675
      %v680 = vmul.f32 %v667, %v675
      %v681 = vmul.f32 %v668, %v675
      %v682 = vmul.f32 %v669, %v675
      %v683 = vmul.f32 %v670, %v675
      %v684 = vadd.f32 %v655, %v676
      %v685 = vadd.f32 %v656, %v677
      %v686 = vadd.f32 %v657, %v678
      %v687 = vadd.f32 %v658, %v679
      %v688 = vadd.f32 %v659, %v680
      %v689 = vadd.f32 %v660, %v681
      %v690 = vadd.f32 %v661, %v682
      %v691 = vadd.f32 %v662, %v683
      %v692 = vld [vmem:[%s633 + $0x2] sm:$0xff]
      %v693 = vld [vmem:[%s633 + $0x12] sm:$0xff]
      %v694 = vld [vmem:[%s633 + $0x22] sm:$0xff]
      %v695 = vld [vmem:[%s633 + $0x32] sm:$0xff]
      %v696 = vld [vmem:[%s633 + $0x42] sm:$0xff]
      %v697 = vld [vmem:[%s633 + $0x52] sm:$0xff]
      %v698 = vld [vmem:[%s633 + $0x62] sm:$0xff]
      %v699 = vld [vmem:[%s633 + $0x72] sm:$0xff]
      %v700 = vld [vmem:[%s3 + $0x8] sm:$0x1]
      %v701 = vlaneseq
      %v702 = vshrl.u32 %v701, 7
      %v703 = vsub.s32 0, %v702
      %v704 = vrot.slane %v700, %v703
      %v705 = vmul.f32 %v692, %v704
      %v706 = vmul.f32 %v693, %v704
      %v707 = vmul.f32 %v694, %v704
      %v708 = vmul.f32 %v695, %v704
      %v709 = vmul.f32 %v696, %v704
      %v710 = vmul.f32 %v697, %v704
      %v711 = vmul.f32 %v698, %v704
      %v712 = vmul.f32 %v699, %v704
      %v713 = vadd.f32 %v684, %v705
      %v714 = vadd.f32 %v685, %v706
      %v715 = vadd.f32 %v686, %v707
      %v716 = vadd.f32 %v687, %v708
      %v717 = vadd.f32 %v688, %v709
      %v718 = vadd.f32 %v689, %v710
      %v719 = vadd.f32 %v690, %v711
      %v720 = vadd.f32 %v691, %v712
      %v721 = vld [vmem:[%s4] sm:$0x1]
      %v723 = vlaneseq
      %v724 = vshrl.u32 %v723, 7
      %v725 = vsub.s32 0, %v724
      %v726 = vrot.slane %v721, %v725
      %v728 = vadd.f32 %v713, %v726
      %v729 = vadd.f32 %v714, %v726
      %v730 = vadd.f32 %v715, %v726
      %v731 = vadd.f32 %v716, %v726
      %v732 = vadd.f32 %v717, %v726
      %v733 = vadd.f32 %v718, %v726
      %v734 = vadd.f32 %v719, %v726
      %v735 = vadd.f32 %v720, %v726
      %v736 = vld [vmem:[%s5] sm:$0xff]
      %v737 = vld [vmem:[%s6] sm:$0x1]
      %v739 = vlaneseq
      %v740 = vshrl.u32 %v739, 7
      %v741 = vsub.s32 0, %v740
      %v742 = vrot.slane %v737, %v741
      %v745 = vsel %vm436, %v728, 0
      %v748 = vsel %vm436, %v729, 0
      %v751 = vsel %vm436, %v730, 0
      %v754 = vsel %vm436, %v731, 0
      %v757 = vsel %vm436, %v732, 0
      %v760 = vsel %vm436, %v733, 0
      %v763 = vsel %vm436, %v734, 0
      %v766 = vsel %vm436, %v735, 0
      %768 = vmatprep.subr.mxu0 0.0
      %769 = vmatpush1.msra.mxu0 %v736
      %770 = vmatprep.subr.mxu0 0.0
      %771 = vmatpush1.msra.mxu0 0.0
      %772 = vmatprep.subr.mxu0 0.0
      %773 = vmatpush1.msra.mxu0 0.0
      %774 = vmatprep.subr.mxu0 0.0
      %775 = vmatpush1.msra.mxu0 0.0
      %776 = vmatprep.subr.mxu0 0.0
      %777 = vmatpush1.msra.mxu0 0.0
      %778 = vmatprep.subr.mxu0 0.0
      %779 = vmatpush1.msra.mxu0 0.0
      %780 = vmatprep.subr.mxu0 0.0
      %781 = vmatpush1.msra.mxu0 0.0
      %782 = vmatprep.subr.mxu0 0.0
      %783 = vmatpush1.msra.mxu0 0.0
      %784 = vmatprep.subr.mxu0 0.0
      %785 = vmatpush1.msra.mxu0 0.0
      %786 = vmatprep.subr.mxu0 0.0
      %787 = vmatpush1.msra.mxu0 0.0
      %788 = vmatprep.subr.mxu0 0.0
      %789 = vmatpush1.msra.mxu0 0.0
      %790 = vmatprep.subr.mxu0 0.0
      %791 = vmatpush1.msra.mxu0 0.0
      %792 = vmatprep.subr.mxu0 0.0
      %793 = vmatpush1.msra.mxu0 0.0
      %794 = vmatprep.subr.mxu0 0.0
      %795 = vmatpush1.msra.mxu0 0.0
      %796 = vmatprep.subr.mxu0 0.0
      %797 = vmatpush1.msra.mxu0 0.0
      %798 = vmatprep.subr.mxu0 0.0
      %799 = vmatpush1.msra.mxu0 0.0
      %800 = vmatprep.subr.mxu0 0.0
      %801 = vmatpush1.msra.mxu0 0.0
      %802 = vmatprep.subr.mxu0 0.0
      %803 = vmatpush1.msra.mxu0 0.0
      %804 = vmatprep.subr.mxu0 0.0
      %805 = vmatpush1.msra.mxu0 0.0
      %806 = vmatprep.subr.mxu0 0.0
      %807 = vmatpush1.msra.mxu0 0.0
      %808 = vmatprep.subr.mxu0 0.0
      %809 = vmatpush1.msra.mxu0 0.0
      %810 = vmatprep.subr.mxu0 0.0
      %811 = vmatpush1.msra.mxu0 0.0
      %812 = vmatprep.subr.mxu0 0.0
      %813 = vmatpush1.msra.mxu0 0.0
      %814 = vmatprep.subr.mxu0 0.0
      %815 = vmatpush1.msra.mxu0 0.0
      %816 = vmatprep.subr.mxu0 0.0
      %817 = vmatpush1.msra.mxu0 0.0
      %818 = vmatprep.subr.mxu0 0.0
      %819 = vmatpush1.msra.mxu0 0.0
      %820 = vmatprep.subr.mxu0 0.0
      %821 = vmatpush1.msra.mxu0 0.0
      %822 = vmatprep.subr.mxu0 0.0
      %823 = vmatpush1.msra.mxu0 0.0
      %824 = vmatprep.subr.mxu0 0.0
      %825 = vmatpush1.msra.mxu0 0.0
      %826 = vmatprep.subr.mxu0 0.0
      %827 = vmatpush1.msra.mxu0 0.0
      %828 = vmatprep.subr.mxu0 0.0
      %829 = vmatpush1.msra.mxu0 0.0
      %830 = vmatprep.subr.mxu0 0.0
      %831 = vmatpush1.msra.mxu0 0.0
      %832 = vmatprep.mubr.f32.mxu0 0.0
      %833 = vmatmul.mubr.f32.gmra.mrb[0].mxu0 %v745
      %v834 = vpop.f32.mrb[0].mxu0
      %v835 = vadd.f32 %v742, %v834
      %v836 = vpop.f32.mrb[0].mxu0
      %837 = vmatprep.mubr.f32.mxu0 0.0
      %838 = vmatmul.mubr.f32.gmra.mrb[0].mxu0 %v748
      %v839 = vpop.f32.mrb[0].mxu0
      %v840 = vadd.f32 %v742, %v839
      %v841 = vpop.f32.mrb[0].mxu0
      %842 = vmatprep.mubr.f32.mxu0 0.0
      %843 = vmatmul.mubr.f32.gmra.mrb[0].mxu0 %v751
      %v844 = vpop.f32.mrb[0].mxu0
      %v845 = vadd.f32 %v742, %v844
      %v846 = vpop.f32.mrb[0].mxu0
      %847 = vmatprep.mubr.f32.mxu0 0.0
      %848 = vmatmul.mubr.f32.gmra.mrb[0].mxu0 %v754
      %v849 = vpop.f32.mrb[0].mxu0
      %v850 = vadd.f32 %v742, %v849
      %v851 = vpop.f32.mrb[0].mxu0
      %852 = vmatprep.mubr.f32.mxu0 0.0
      %853 = vmatmul.mubr.f32.gmra.mrb[0].mxu0 %v757
      %v854 = vpop.f32.mrb[0].mxu0
      %v855 = vadd.f32 %v742, %v854
      %v856 = vpop.f32.mrb[0].mxu0
      %857 = vmatprep.mubr.f32.mxu0 0.0
      %858 = vmatmul.mubr.f32.gmra.mrb[0].mxu0 %v760
      %v859 = vpop.f32.mrb[0].mxu0
      %v860 = vadd.f32 %v742, %v859
      %v861 = vpop.f32.mrb[0].mxu0
      %862 = vmatprep.mubr.f32.mxu0 0.0
      %863 = vmatmul.mubr.f32.gmra.mrb[0].mxu0 %v763
      %v864 = vpop.f32.mrb[0].mxu0
      %v865 = vadd.f32 %v742, %v864
      %v866 = vpop.f32.mrb[0].mxu0
      %867 = vmatprep.mubr.f32.mxu0 0.0
      %868 = vmatmul.mubr.f32.gmra.mrb[0].mxu0 %v766
      %v869 = vpop.f32.mrb[0].mxu0
      %v870 = vadd.f32 %v742, %v869
      %v871 = vpop.f32.mrb[0].mxu0
      %872 = vdwg.mxu0
      %v873 = vadd.f32 %v835, %v279
      %v874 = vadd.f32 %v840, %v280
      %v875 = vadd.f32 %v845, %v281
      %v876 = vadd.f32 %v850, %v282
      %v877 = vadd.f32 %v855, %v283
      %v878 = vadd.f32 %v860, %v284
      %v879 = vadd.f32 %v865, %v285
      %v880 = vadd.f32 %v870, %v286
      %v881 = vmax.f32 %v873, 0.0
      %v882 = vmax.f32 %v874, 0.0
      %v883 = vmax.f32 %v875, 0.0
      %v884 = vmax.f32 %v876, 0.0
      %v885 = vmax.f32 %v877, 0.0
      %v886 = vmax.f32 %v878, 0.0
      %v887 = vmax.f32 %v879, 0.0
      %v888 = vmax.f32 %v880, 0.0
      %889 = vst.msk [vmem:[%s278] sm:$0xff] %vm298, %v881
      %890 = vst.msk [vmem:[%s278 + $0x8] sm:$0xff] %vm298, %v882
      %891 = vst.msk [vmem:[%s278 + $0x10] sm:$0xff] %vm298, %v883
      %892 = vst.msk [vmem:[%s278 + $0x18] sm:$0xff] %vm298, %v884
      %893 = vst.msk [vmem:[%s278 + $0x20] sm:$0xff] %vm298, %v885
      %894 = vst.msk [vmem:[%s278 + $0x28] sm:$0xff] %vm298, %v886
      %895 = vst.msk [vmem:[%s278 + $0x30] sm:$0xff] %vm298, %v887
      %896 = vst.msk [vmem:[%s278 + $0x38] sm:$0xff] %vm298, %v888
      %p897 = scmp.lt.s32.totalorder %s18, 1
      %s898 = scalar_select %p897, %s18, 1
      %s899 = smul.addr %s898, 8
      %s900 = smul.addr %s899, 8
      %s901 = scalar_lea.vmem %s7, %s900
      // Predicated region
      $region49: #{shufflenet_fwd.10} parent=47 // pred_check
        %p902 = pneg %p188
      $region50: #{shufflenet_fwd.10} parent=47 // pred_check_branch
        %904 = sbr.rel (%p902) target = $region52
      $region51: #{shufflenet_fwd.10} parent=47 // pred_region
        _
      $region52: #{shufflenet_fwd.10} parent=47 // pred_fallthru
        _
    $region48: #{shufflenet_fwd.10} parent=5 // pred_fallthru
      _
    %p905 = scmp.le.s32.totalorder 2, %s13
    // Predicated region
    $region53: #{shufflenet_fwd.10} parent=5 // pred_check
      %p906 = pneg %p905
    $region54: #{shufflenet_fwd.10} parent=5 // pred_check_branch
      %908 = sbr.rel (%p906) target = $region56
    $region55: #{shufflenet_fwd.10} parent=5 // pred_region
      %s909 = ssub.s32 %s13, 2
      // Predicated region
      $region57: #{shufflenet_fwd.10} parent=55 // pred_check
        %p910 = pneg %p194
      $region58: #{shufflenet_fwd.10} parent=55 // pred_check_branch
        %912 = sbr.rel (%p910) target = $region60
      $region59: #{shufflenet_fwd.10} parent=55 // pred_region
        %p913 = scmp.lt.s32.totalorder %s19, 1
        %s914 = scalar_select %p913, %s19, 1
        %s915 = smul.addr %s914, 8
        %s916 = smul.addr %s915, 8
        %s917 = scalar_lea.vmem %s7, %s916
      $region60: #{shufflenet_fwd.10} parent=55 // pred_fallthru
        _
    $region56: #{shufflenet_fwd.10} parent=5 // pred_fallthru
      _
  $region6: #{shufflenet_fwd.10} parent=0 // loop_footer
    %s17 = sadd.s32 1, %s13
  $region7: #{shufflenet_fwd.10} parent=0 // loop_footer_branch
    %12 = sbr.rel target = $region3
  $region8: #{shufflenet_fwd.10} parent=0 // loop_exit
    _

// kernel: shufflenet_fwd.11
$region0: #{shufflenet_fwd.11}
  #allocation0 [shape = 'u32[]', space=smem, size = 0x4, offset = 0x4, fixed_abs, tag = 'smem constant byte address 0x4 - core index']
  #allocation1 [shape = 'u32[144,128]{1,0:T(1,128)}', space=vmem, size = 0x12000, scoped, tag = 'internal scratch']
  #allocation2 [shape = 'f32[1,5,5,64]{3,2,1,0:T(8,128)}', space=vmem, size = 0x5000, scoped, tag = 'scratch operand']
  #allocation3 [shape = 'f32[1,5,5,128]{3,2,1,0:T(8,128)}', space=vmem, size = 0x5000, scoped, tag = 'scratch operand']
  %s0 = inlined_call_operand.vmem [shape: f32[2,4,4,128], index: 0, kind: input, shape index: {}]
  %s1 = inlined_call_operand.vmem [shape: f32[128,64], index: 1, kind: input, shape index: {}]
  %s2 = inlined_call_operand.vmem [shape: f32[1,64], index: 2, kind: input, shape index: {}]
  %s3 = inlined_call_operand.vmem [shape: f32[9,16], index: 3, kind: input, shape index: {}]
  %s4 = inlined_call_operand.vmem [shape: f32[1,16], index: 4, kind: input, shape index: {}]
  %s5 = inlined_call_operand.vmem [shape: f32[16,32], index: 5, kind: input, shape index: {}]
  %s6 = inlined_call_operand.vmem [shape: f32[1,32], index: 6, kind: input, shape index: {}]
  %s7 = inlined_call_operand.vmem [shape: f32[2,4,4,64], index: 7, kind: output, shape index: {}]
  %s8 = sld [smem:[#allocation0]]
  $region61: #{shufflenet_fwd.11} parent=0
    _
  %s10 = ssub.s32 1, %s8
  %s11 = scalar_select 0, %s10, %s8
  loop: start=0, step=1, limit=4
  $region2: #{shufflenet_fwd.11} parent=0 // loop_pre_header
    _
  $region3: #{shufflenet_fwd.11} parent=0 // loop_header
    %s13 = sphi 0, %s17
    %p14 = scmp.ge.s32.totalorder %s13, 4
    %s23 = sphi 0, %s25
    %s26 = sphi 0, %s23
    %s27 = sphi 0, %s26
    %s43 = sphi 0, %s27
    %s47 = sphi 0, %s47
    %s49 = sphi 0, %s47
    %s50 = sphi 0, %s49
    %s64 = sphi 0, %s50
    %s68 = sphi 0, %s68
    %s70 = sphi 0, %s68
    %s71 = sphi 0, %s70
    %s85 = sphi 0, %s71
    %s89 = sphi 0, %s89
    %s91 = sphi 0, %s89
    %s92 = sphi 0, %s91
    %s106 = sphi 0, %s92
    %s110 = sphi 0, %s110
    %s112 = sphi 0, %s110
    %s113 = sphi 0, %s112
    %s127 = sphi 0, %s113
    %s131 = sphi 0, %s131
    %s133 = sphi 0, %s131
    %s134 = sphi 0, %s133
    %s148 = sphi 0, %s134
    %s152 = sphi 0, %s152
    %s154 = sphi 0, %s152
    %s155 = sphi 0, %s154
    %s169 = sphi 0, %s155
    %s175 = sphi 0, %s177
    %s178 = sphi 0, %s175
    %s179 = sphi 0, %s178
    %s195 = sphi 0, %s179
  $region4: #{shufflenet_fwd.11} parent=0 // loop_header_branch
    %16 = sbr.rel (%p14) target = $region8
  $region5: #{shufflenet_fwd.11} parent=0 // loop_body
    %s18 = ssub.s32 %s13, 1
    %s19 = ssub.s32 %s13, 2
    %s20 = sadd.s32 %s13, 1
    %s21 = ssub.s32 %s13, %s20
    %p22 = scmp.eq.s32.totalorder %s21, 0
    %s24 = sadd.s32 %s23, 1
    %s25 = scalar_select %p22, %s23, %s24
    %p28 = pneg %p22
    %p29 = scmp.eq.s32.totalorder %s13, 1
    %p30 = por %p28, %p29
    %p31 = scmp.ne.s32.totalorder %s23, %s26
    %p32 = scmp.eq.s32.totalorder %s13, 0
    %p33 = por %p31, %p32
    %p34 = scmp.ne.s32.totalorder %s23, %s26
    %p35 = scmp.eq.s32.totalorder %s18, 1
    %p36 = por %p34, %p35
    %p37 = scmp.ne.s32.totalorder %s26, %s27
    %p38 = scmp.eq.s32.totalorder %s18, 0
    %p39 = por %p37, %p38
    %p40 = scmp.ne.s32.totalorder %s26, %s27
    %p41 = scmp.eq.s32.totalorder %s19, 1
    %p42 = por %p40, %p41
    %p44 = scmp.ne.s32.totalorder %s27, %s43
    %p45 = scmp.eq.s32.totalorder %s19, 0
    %p46 = por %p44, %p45
    %s48 = sadd.s32 %s47, 1
    %p51 = scmp.eq.s32.totalorder %s13, 1
    %p52 = scmp.ne.s32.totalorder %s47, %s49
    %p53 = scmp.eq.s32.totalorder %s13, 0
    %p54 = por %p52, %p53
    %p55 = scmp.ne.s32.totalorder %s47, %s49
    %p56 = scmp.eq.s32.totalorder %s18, 1
    %p57 = por %p55, %p56
    %p58 = scmp.ne.s32.totalorder %s49, %s50
    %p59 = scmp.eq.s32.totalorder %s18, 0
    %p60 = por %p58, %p59
    %p61 = scmp.ne.s32.totalorder %s49, %s50
    %p62 = scmp.eq.s32.totalorder %s19, 1
    %p63 = por %p61, %p62
    %p65 = scmp.ne.s32.totalorder %s50, %s64
    %p66 = scmp.eq.s32.totalorder %s19, 0
    %p67 = por %p65, %p66
    %s69 = sadd.s32 %s68, 1
    %p72 = scmp.eq.s32.totalorder %s13, 1
    %p73 = scmp.ne.s32.totalorder %s68, %s70
    %p74 = scmp.eq.s32.totalorder %s13, 0
    %p75 = por %p73, %p74
    %p76 = scmp.ne.s32.totalorder %s68, %s70
    %p77 = scmp.eq.s32.totalorder %s18, 1
    %p78 = por %p76, %p77
    %p79 = scmp.ne.s32.totalorder %s70, %s71
    %p80 = scmp.eq.s32.totalorder %s18, 0
    %p81 = por %p79, %p80
    %p82 = scmp.ne.s32.totalorder %s70, %s71
    %p83 = scmp.eq.s32.totalorder %s19, 1
    %p84 = por %p82, %p83
    %p86 = scmp.ne.s32.totalorder %s71, %s85
    %p87 = scmp.eq.s32.totalorder %s19, 0
    %p88 = por %p86, %p87
    %s90 = sadd.s32 %s89, 1
    %p93 = scmp.eq.s32.totalorder %s13, 1
    %p94 = scmp.ne.s32.totalorder %s89, %s91
    %p95 = scmp.eq.s32.totalorder %s13, 0
    %p96 = por %p94, %p95
    %p97 = scmp.ne.s32.totalorder %s89, %s91
    %p98 = scmp.eq.s32.totalorder %s18, 1
    %p99 = por %p97, %p98
    %p100 = scmp.ne.s32.totalorder %s91, %s92
    %p101 = scmp.eq.s32.totalorder %s18, 0
    %p102 = por %p100, %p101
    %p103 = scmp.ne.s32.totalorder %s91, %s92
    %p104 = scmp.eq.s32.totalorder %s19, 1
    %p105 = por %p103, %p104
    %p107 = scmp.ne.s32.totalorder %s92, %s106
    %p108 = scmp.eq.s32.totalorder %s19, 0
    %p109 = por %p107, %p108
    %s111 = sadd.s32 %s110, 1
    %p114 = scmp.eq.s32.totalorder %s13, 1
    %p115 = scmp.ne.s32.totalorder %s110, %s112
    %p116 = scmp.eq.s32.totalorder %s13, 0
    %p117 = por %p115, %p116
    %p118 = scmp.ne.s32.totalorder %s110, %s112
    %p119 = scmp.eq.s32.totalorder %s18, 1
    %p120 = por %p118, %p119
    %p121 = scmp.ne.s32.totalorder %s112, %s113
    %p122 = scmp.eq.s32.totalorder %s18, 0
    %p123 = por %p121, %p122
    %p124 = scmp.ne.s32.totalorder %s112, %s113
    %p125 = scmp.eq.s32.totalorder %s19, 1
    %p126 = por %p124, %p125
    %p128 = scmp.ne.s32.totalorder %s113, %s127
    %p129 = scmp.eq.s32.totalorder %s19, 0
    %p130 = por %p128, %p129
    %s132 = sadd.s32 %s131, 1
    %p135 = scmp.eq.s32.totalorder %s13, 1
    %p136 = scmp.ne.s32.totalorder %s131, %s133
    %p137 = scmp.eq.s32.totalorder %s13, 0
    %p138 = por %p136, %p137
    %p139 = scmp.ne.s32.totalorder %s131, %s133
    %p140 = scmp.eq.s32.totalorder %s18, 1
    %p141 = por %p139, %p140
    %p142 = scmp.ne.s32.totalorder %s133, %s134
    %p143 = scmp.eq.s32.totalorder %s18, 0
    %p144 = por %p142, %p143
    %p145 = scmp.ne.s32.totalorder %s133, %s134
    %p146 = scmp.eq.s32.totalorder %s19, 1
    %p147 = por %p145, %p146
    %p149 = scmp.ne.s32.totalorder %s134, %s148
    %p150 = scmp.eq.s32.totalorder %s19, 0
    %p151 = por %p149, %p150
    %s153 = sadd.s32 %s152, 1
    %p156 = scmp.eq.s32.totalorder %s13, 1
    %p157 = scmp.ne.s32.totalorder %s152, %s154
    %p158 = scmp.eq.s32.totalorder %s13, 0
    %p159 = por %p157, %p158
    %p160 = scmp.ne.s32.totalorder %s152, %s154
    %p161 = scmp.eq.s32.totalorder %s18, 1
    %p162 = por %p160, %p161
    %p163 = scmp.ne.s32.totalorder %s154, %s155
    %p164 = scmp.eq.s32.totalorder %s18, 0
    %p165 = por %p163, %p164
    %p166 = scmp.ne.s32.totalorder %s154, %s155
    %p167 = scmp.eq.s32.totalorder %s19, 1
    %p168 = por %p166, %p167
    %p170 = scmp.ne.s32.totalorder %s155, %s169
    %p171 = scmp.eq.s32.totalorder %s19, 0
    %p172 = por %p170, %p171
    %s173 = ssub.s32 %s13, %s20
    %p174 = scmp.eq.s32.totalorder %s173, 0
    %s176 = sadd.s32 %s175, 1
    %s177 = scalar_select %p174, %s175, %s176
    %p180 = pneg %p174
    %p181 = scmp.eq.s32.totalorder %s13, 1
    %p182 = por %p180, %p181
    %p183 = scmp.ne.s32.totalorder %s175, %s178
    %p184 = scmp.eq.s32.totalorder %s13, 0
    %p185 = por %p183, %p184
    %p186 = scmp.ne.s32.totalorder %s175, %s178
    %p187 = scmp.eq.s32.totalorder %s18, 1
    %p188 = por %p186, %p187
    %p189 = scmp.ne.s32.totalorder %s178, %s179
    %p190 = scmp.eq.s32.totalorder %s18, 0
    %p191 = por %p189, %p190
    %p192 = scmp.ne.s32.totalorder %s178, %s179
    %p193 = scmp.eq.s32.totalorder %s19, 1
    %p194 = por %p192, %p193
    %p196 = scmp.ne.s32.totalorder %s179, %s195
    %p197 = scmp.eq.s32.totalorder %s19, 0
    %p198 = por %p196, %p197
    %p199 = scmp.le.s32.totalorder 1, %s13
    %p200 = scmp.lt.s32.totalorder %s13, 3
    %p201 = pnand %p199, %p200
    %p202 = pneg %p201
    // Predicated region
    $region9: #{shufflenet_fwd.11} parent=5 // pred_check
      _
    $region10: #{shufflenet_fwd.11} parent=5 // pred_check_branch
      %204 = sbr.rel (%p201) target = $region12
    $region11: #{shufflenet_fwd.11} parent=5 // pred_region
      %s205 = ssub.s32 %s13, 1
      // Predicated region
      $region13: #{shufflenet_fwd.11} parent=11 // pred_check
        %p206 = pneg %p60
      $region14: #{shufflenet_fwd.11} parent=11 // pred_check_branch
        %208 = sbr.rel (%p206) target = $region16
      $region15: #{shufflenet_fwd.11} parent=11 // pred_region
        _
      $region16: #{shufflenet_fwd.11} parent=11 // pred_fallthru
        _
      // Predicated region
      $region17: #{shufflenet_fwd.11} parent=11 // pred_check
        %p209 = pneg %p81
      $region18: #{shufflenet_fwd.11} parent=11 // pred_check_branch
        %211 = sbr.rel (%p209) target = $region20
      $region19: #{shufflenet_fwd.11} parent=11 // pred_region
        _
      $region20: #{shufflenet_fwd.11} parent=11 // pred_fallthru
        _
      // Predicated region
      $region21: #{shufflenet_fwd.11} parent=11 // pred_check
        %p212 = pneg %p102
      $region22: #{shufflenet_fwd.11} parent=11 // pred_check_branch
        %214 = sbr.rel (%p212) target = $region24
      $region23: #{shufflenet_fwd.11} parent=11 // pred_region
        _
      $region24: #{shufflenet_fwd.11} parent=11 // pred_fallthru
        _
      // Predicated region
      $region25: #{shufflenet_fwd.11} parent=11 // pred_check
        %p215 = pneg %p123
      $region26: #{shufflenet_fwd.11} parent=11 // pred_check_branch
        %217 = sbr.rel (%p215) target = $region28
      $region27: #{shufflenet_fwd.11} parent=11 // pred_region
        _
      $region28: #{shufflenet_fwd.11} parent=11 // pred_fallthru
        _
      // Predicated region
      $region29: #{shufflenet_fwd.11} parent=11 // pred_check
        %p218 = pneg %p144
      $region30: #{shufflenet_fwd.11} parent=11 // pred_check_branch
        %220 = sbr.rel (%p218) target = $region32
      $region31: #{shufflenet_fwd.11} parent=11 // pred_region
        _
      $region32: #{shufflenet_fwd.11} parent=11 // pred_fallthru
        _
      // Predicated region
      $region33: #{shufflenet_fwd.11} parent=11 // pred_check
        %p221 = pneg %p165
      $region34: #{shufflenet_fwd.11} parent=11 // pred_check_branch
        %223 = sbr.rel (%p221) target = $region36
      $region35: #{shufflenet_fwd.11} parent=11 // pred_region
        _
      $region36: #{shufflenet_fwd.11} parent=11 // pred_fallthru
        _
    $region12: #{shufflenet_fwd.11} parent=5 // pred_fallthru
      _
    %p224 = scmp.lt.s32.totalorder %s13, 2
    // Predicated region
    $region37: #{shufflenet_fwd.11} parent=5 // pred_check
      %p225 = pneg %p224
    $region38: #{shufflenet_fwd.11} parent=5 // pred_check_branch
      %227 = sbr.rel (%p225) target = $region40
    $region39: #{shufflenet_fwd.11} parent=5 // pred_region
      // Predicated region
      $region41: #{shufflenet_fwd.11} parent=39 // pred_check
        %p228 = pneg %p33
      $region42: #{shufflenet_fwd.11} parent=39 // pred_check_branch
        %230 = sbr.rel (%p228) target = $region44
      $region43: #{shufflenet_fwd.11} parent=39 // pred_region
        %p231 = scmp.lt.s32.totalorder %s13, 1
        %s232 = scalar_select %p231, %s13, 1
        %s233 = smul.addr %s232, 4
        %s234 = smul.addr %s233, 4
        %s235 = scalar_lea.vmem %s0, %s234
      $region44: #{shufflenet_fwd.11} parent=39 // pred_fallthru
        _
    $region40: #{shufflenet_fwd.11} parent=5 // pred_fallthru
      _
    %p236 = scmp.le.s32.totalorder 1, %s13
    %p237 = scmp.lt.s32.totalorder %s13, 3
    %p238 = pnand %p236, %p237
    %p239 = pneg %p238
    // Predicated region
    $region45: #{shufflenet_fwd.11} parent=5 // pred_check
      _
    $region46: #{shufflenet_fwd.11} parent=5 // pred_check_branch
      %241 = sbr.rel (%p238) target = $region48
    $region47: #{shufflenet_fwd.11} parent=5 // pred_region
      %s242 = ssub.s32 %s13, 1
      %p243 = scmp.lt.s32.totalorder %s18, 1
      %s244 = scalar_select %p243, %s18, 1
      %s245 = smul.addr %s244, 4
      %s246 = smul.addr %s245, 4
      %s247 = scalar_lea.vmem %s0, %s246
      %p248 = pneg %p39
      %p249 = pneg %p36
      %p250 = pneg %p60
      %p251 = pneg %p57
      %p252 = pneg %p81
      %p253 = pneg %p78
      %p254 = pneg %p102
      %p255 = pneg %p99
      %p256 = pneg %p123
      %p257 = pneg %p120
      %p258 = pneg %p144
      %p259 = pneg %p141
      %p260 = pneg %p165
      %p261 = pneg %p162
      %p262 = pneg %p191
      %p263 = pneg %p188
      %p264 = scmp.lt.s32.totalorder %s18, 1
      %s265 = scalar_select %p264, %s18, 1
      %s266 = smul.addr %s265, 4
      %s267 = smul.addr %s266, 4
      %s268 = scalar_lea.vmem %s7, %s267
      %p269 = scmp.lt.s32.totalorder %s18, 1
      %s270 = scalar_select %p269, %s18, 1
      %s271 = smul.addr %s270, 4
      %s272 = smul.addr %s271, 4
      %s273 = scalar_lea.vmem %s0, %s272
      %p274 = scmp.lt.s32.totalorder %s18, 1
      %s275 = scalar_select %p274, %s18, 1
      %s276 = smul.addr %s275, 4
      %s277 = smul.addr %s276, 4
      %s278 = scalar_lea.vmem %s7, %s277
      %v279 = vld [vmem:[%s273] sm:$0xf]
      %v280 = vld [vmem:[%s273 + $0x4] sm:$0xf]
      %v281 = vld [vmem:[%s273 + $0x8] sm:$0xf]
      %v282 = vld [vmem:[%s273 + $0xc] sm:$0xf]
      %v283 = vld [vmem:[%s1] sm:$0xff]
      %v284 = vld [vmem:[%s1 + $0x8] sm:$0xff]
      %v285 = vld [vmem:[%s1 + $0x10] sm:$0xff]
      %v286 = vld [vmem:[%s1 + $0x18] sm:$0xff]
      %v287 = vld [vmem:[%s1 + $0x20] sm:$0xff]
      %v288 = vld [vmem:[%s1 + $0x28] sm:$0xff]
      %v289 = vld [vmem:[%s1 + $0x30] sm:$0xff]
      %v290 = vld [vmem:[%s1 + $0x38] sm:$0xff]
      %v291 = vld [vmem:[%s1 + $0x40] sm:$0xff]
      %v292 = vld [vmem:[%s1 + $0x48] sm:$0xff]
      %v293 = vld [vmem:[%s1 + $0x50] sm:$0xff]
      %v294 = vld [vmem:[%s1 + $0x58] sm:$0xff]
      %v295 = vld [vmem:[%s1 + $0x60] sm:$0xff]
      %v296 = vld [vmem:[%s1 + $0x68] sm:$0xff]
      %v297 = vld [vmem:[%s1 + $0x70] sm:$0xff]
      %v298 = vld [vmem:[%s1 + $0x78] sm:$0xff]
      %v299 = vld [vmem:[%s2] sm:$0x1]
      %v301 = vlaneseq
      %v302 = vshrl.u32 %v301, 7
      %v303 = vsub.s32 0, %v302
      %v304 = vrot.slane %v299, %v303
      %v309 = vcombine.low %v279, %v280
      %v310 = vcombine.low %v281, %v282
      %v313 = vcombine.low %v304, %v304
      %315 = vmatprep.subr.mxu0 0.0
      %316 = vmatpush1.msra.mxu0 %v283
      %317 = vmatprep.subr.mxu0 0.0
      %318 = vmatpush1.msra.mxu0 %v284
      %319 = vmatprep.subr.mxu0 0.0
      %320 = vmatpush1.msra.mxu0 %v285
      %321 = vmatprep.subr.mxu0 0.0
      %322 = vmatpush1.msra.mxu0 %v286
      %323 = vmatprep.subr.mxu0 0.0
      %324 = vmatpush1.msra.mxu0 %v287
      %325 = vmatprep.subr.mxu0 0.0
      %326 = vmatpush1.msra.mxu0 %v288
      %327 = vmatprep.subr.mxu0 0.0
      %328 = vmatpush1.msra.mxu0 %v289
      %329 = vmatprep.subr.mxu0 0.0
      %330 = vmatpush1.msra.mxu0 %v290
      %331 = vmatprep.subr.mxu0 0.0
      %332 = vmatpush1.msra.mxu0 %v291
      %333 = vmatprep.subr.mxu0 0.0
      %334 = vmatpush1.msra.mxu0 %v292
      %335 = vmatprep.subr.mxu0 0.0
      %336 = vmatpush1.msra.mxu0 %v293
      %337 = vmatprep.subr.mxu0 0.0
      %338 = vmatpush1.msra.mxu0 %v294
      %339 = vmatprep.subr.mxu0 0.0
      %340 = vmatpush1.msra.mxu0 %v295
      %341 = vmatprep.subr.mxu0 0.0
      %342 = vmatpush1.msra.mxu0 %v296
      %343 = vmatprep.subr.mxu0 0.0
      %344 = vmatpush1.msra.mxu0 %v297
      %345 = vmatprep.subr.mxu0 0.0
      %346 = vmatpush1.msra.mxu0 %v298
      %347 = vmatprep.subr.mxu0 0.0
      %348 = vmatpush1.msra.mxu0 0.0
      %349 = vmatprep.subr.mxu0 0.0
      %350 = vmatpush1.msra.mxu0 0.0
      %351 = vmatprep.subr.mxu0 0.0
      %352 = vmatpush1.msra.mxu0 0.0
      %353 = vmatprep.subr.mxu0 0.0
      %354 = vmatpush1.msra.mxu0 0.0
      %355 = vmatprep.subr.mxu0 0.0
      %356 = vmatpush1.msra.mxu0 0.0
      %357 = vmatprep.subr.mxu0 0.0
      %358 = vmatpush1.msra.mxu0 0.0
      %359 = vmatprep.subr.mxu0 0.0
      %360 = vmatpush1.msra.mxu0 0.0
      %361 = vmatprep.subr.mxu0 0.0
      %362 = vmatpush1.msra.mxu0 0.0
      %363 = vmatprep.subr.mxu0 0.0
      %364 = vmatpush1.msra.mxu0 0.0
      %365 = vmatprep.subr.mxu0 0.0
      %366 = vmatpush1.msra.mxu0 0.0
      %367 = vmatprep.subr.mxu0 0.0
      %368 = vmatpush1.msra.mxu0 0.0
      %369 = vmatprep.subr.mxu0 0.0
      %370 = vmatpush1.msra.mxu0 0.0
      %371 = vmatprep.subr.mxu0 0.0
      %372 = vmatpush1.msra.mxu0 0.0
      %373 = vmatprep.subr.mxu0 0.0
      %374 = vmatpush1.msra.mxu0 0.0
      %375 = vmatprep.subr.mxu0 0.0
      %376 = vmatpush1.msra.mxu0 0.0
      %377 = vmatprep.subr.mxu0 0.0
      %378 = vmatpush1.msra.mxu0 0.0
      %379 = vmatprep.mubr.f32.mxu0 0.0
      %380 = vmatmul.mubr.f32.gmra.mrb[0].mxu0 %v309
      %v381 = vpop.f32.mrb[0].mxu0
      %v382 = vadd.f32 %v313, %v381
      %v383 = vpop.f32.mrb[0].mxu0
      %384 = vmatprep.mubr.f32.mxu0 0.0
      %385 = vmatmul.mubr.f32.gmra.mrb[0].mxu0 %v310
      %v386 = vpop.f32.mrb[0].mxu0
      %v387 = vadd.f32 %v313, %v386
      %v388 = vpop.f32.mrb[0].mxu0
      %389 = vdwg.mxu0
      %v392 = vcombine.high %v382, %v382
      %v393 = vcombine.high %v387, %v387
      %v396 = vmax.f32 %v382, 0.0
      %v397 = vmax.f32 %v392, 0.0
      %v398 = vmax.f32 %v387, 0.0
      %v399 = vmax.f32 %v393, 0.0
      %vm400 = vcmask 520192
      %401 = vst.msk [vmem:[#allocation2] sm:$0x1f] %vm400, 0.0
      %402 = vst.msk [vmem:[#allocation2 + $0x8] sm:$0x1f] %vm400, 0.0
      %403 = vst.msk [vmem:[#allocation2 + $0x10] sm:$0x1f] %vm400, 0.0
      %404 = vst.msk [vmem:[#allocation2 + $0x18] sm:$0x1f] %vm400, 0.0
      %405 = vst.msk [vmem:[#allocation2 + $0x20] sm:$0x1f] %vm400, 0.0
      %s406 = scalar_lea.vmem [#allocation2], 8
      %vm407 = vcmask 519168
      %408 = vst.msk [vmem:[%s406 + $0x1] sm:$0xf] %vm407, %v396
      %409 = vst.msk [vmem:[%s406 + $0x9] sm:$0xf] %vm407, %v397
      %410 = vst.msk [vmem:[%s406 + $0x11] sm:$0xf] %vm407, %v398
      %411 = vst.msk [vmem:[%s406 + $0x19] sm:$0xf] %vm407, %v399
      %412 = vst [vmem:[#allocation3] sm:$0x1f] 0.0
      %413 = vst [vmem:[#allocation3 + $0x8] sm:$0x1f] 0.0
      %414 = vst [vmem:[#allocation3 + $0x10] sm:$0x1f] 0.0
      %415 = vst [vmem:[#allocation3 + $0x18] sm:$0x1f] 0.0
      %416 = vst [vmem:[#allocation3 + $0x20] sm:$0x1f] 0.0
      %s417 = scalar_lea.vmem [#allocation3], 8
      %418 = vst [vmem:[%s417 + $0x1] sm:$0xf] %v279
      %419 = vst [vmem:[%s417 + $0x9] sm:$0xf] %v280
      %420 = vst [vmem:[%s417 + $0x11] sm:$0xf] %v281
      %421 = vst [vmem:[%s417 + $0x19] sm:$0xf] %v282
      %v422 = vld [vmem:[#allocation2] sm:$0x1f]
      %v423 = vld [vmem:[#allocation2 + $0x8] sm:$0x1f]
      %v424 = vld [vmem:[#allocation2 + $0x10] sm:$0x1f]
      %v425 = vld [vmem:[#allocation2 + $0x18] sm:$0x1f]
      %v426 = vld [vmem:[#allocation2 + $0x20] sm:$0x1f]
      %v427 = vld [vmem:[#allocation3] sm:$0x1f]
      %v428 = vld [vmem:[#allocation3 + $0x8] sm:$0x1f]
      %v429 = vld [vmem:[#allocation3 + $0x10] sm:$0x1f]
      %v430 = vld [vmem:[#allocation3 + $0x18] sm:$0x1f]
      %v431 = vld [vmem:[#allocation3 + $0x20] sm:$0x1f]
      %v432 = vld [vmem:[%s3] sm:$0x1]
      %v433 = vlaneseq
      %v434 = vshrl.u32 %v433, 7
      %v435 = vsub.s32 0, %v434
      %v436 = vrot.slane %v432, %v435
      %438 = vrot.lane.b32.xlu0 %v436, 48
      %v439 = vpop.permute.xlu0 %438
      %v441 = vmul.f32 %v422, %v439
      %v442 = vmul.f32 %v423, %v439
      %v443 = vmul.f32 %v424, %v439
      %v444 = vmul.f32 %v425, %v439
      %v445 = vld [vmem:[%s3 + $0x1] sm:$0x1]
      %v446 = vlaneseq
      %v447 = vshrl.u32 %v446, 7
      %v448 = vsub.s32 0, %v447
      %v449 = vrot.slane %v445, %v448
      %451 = vrot.lane.b32.xlu0 %v449, 32
      %v452 = vpop.permute.xlu0 %451
      %v454 = vmul.f32 %v422, %v452
      %v455 = vmul.f32 %v423, %v452
      %v456 = vmul.f32 %v424, %v452
      %v457 = vmul.f32 %v425, %v452
      %v462 = vrot.slane %v454, 1
      %v463 = vrot.slane %v455, 1
      %v464 = vrot.slane %v456, 1
      %v465 = vrot.slane %v457, 1
      %466 = vrot.lane.b32.xlu0 %v462, 16
      %v467 = vpop.permute.xlu0 %466
      %468 = vrot.lane.b32.xlu0 %v463, 16
      %v469 = vpop.permute.xlu0 %468
      %470 = vrot.lane.b32.xlu0 %v464, 16
      %v471 = vpop.permute.xlu0 %470
      %472 = vrot.lane.b32.xlu0 %v465, 16
      %v473 = vpop.permute.xlu0 %472
      %v478 = vadd.f32 %v441, %v467
      %v479 = vadd.f32 %v442, %v469
      %v480 = vadd.f32 %v443, %v471
      %v481 = vadd.f32 %v444, %v473
      %v486 = vrot.slane %v427, 1
      %v487 = vrot.slane %v428, 1
      %v488 = vrot.slane %v429, 1
      %v489 = vrot.slane %v430, 1
      %490 = vrot.lane.b32.xlu0 %v486, 32
      %v491 = vpop.permute.xlu0 %490
      %492 = vrot.lane.b32.xlu0 %v487, 32
      %v493 = vpop.permute.xlu0 %492
      %494 = vrot.lane.b32.xlu0 %v488, 32
      %v495 = vpop.permute.xlu0 %494
      %496 = vrot.lane.b32.xlu0 %v489, 32
      %v497 = vpop.permute.xlu0 %496
      %v502 = vadd.f32 %v427, %v491
      %v503 = vadd.f32 %v428, %v493
      %v504 = vadd.f32 %v429, %v495
      %v505 = vadd.f32 %v430, %v497
      %v506 = vld [vmem:[%s3 + $0x2] sm:$0x1]
      %v507 = vlaneseq
      %v508 = vshrl.u32 %v507, 7
      %v509 = vsub.s32 0, %v508
      %v510 = vrot.slane %v506, %v509
      %512 = vrot.lane.b32.xlu0 %v510, 48
      %v513 = vpop.permute.xlu0 %512
      %v515 = vmul.f32 %v422, %v513
      %v516 = vmul.f32 %v423, %v513
      %v517 = vmul.f32 %v424, %v513
      %v518 = vmul.f32 %v425, %v513
      %v523 = vrot.slane %v515, 1
      %v524 = vrot.slane %v516, 1
      %v525 = vrot.slane %v517, 1
      %v526 = vrot.slane %v518, 1
      %v531 = vadd.f32 %v478, %v523
      %v532 = vadd.f32 %v479, %v524
      %v533 = vadd.f32 %v480, %v525
      %v534 = vadd.f32 %v481, %v526
      %v539 = vadd.f32 %v502, %v486
      %v540 = vadd.f32 %v503, %v487
      %v541 = vadd.f32 %v504, %v488
      %v542 = vadd.f32 %v505, %v489
      %v543 = vld [vmem:[%s3 + $0x3] sm:$0x1]
      %v544 = vlaneseq
      %v545 = vshrl.u32 %v544, 7
      %v546 = vsub.s32 0, %v545
      %v547 = vrot.slane %v543, %v546
      %549 = vrot.lane.b32.xlu0 %v547, 16
      %v550 = vpop.permute.xlu0 %549
      %v552 = vmul.f32 %v423, %v550
      %v553 = vmul.f32 %v424, %v550
      %v554 = vmul.f32 %v425, %v550
      %v555 = vmul.f32 %v426, %v550
      %560 = vrot.lane.b32.xlu0 %v552, 32
      %v561 = vpop.permute.xlu0 %560
      %562 = vrot.lane.b32.xlu0 %v553, 32
      %v563 = vpop.permute.xlu0 %562
      %564 = vrot.lane.b32.xlu0 %v554, 32
      %v565 = vpop.permute.xlu0 %564
      %566 = vrot.lane.b32.xlu0 %v555, 32
      %v567 = vpop.permute.xlu0 %566
      %v572 = vadd.f32 %v531, %v561
      %v573 = vadd.f32 %v532, %v563
      %v574 = vadd.f32 %v533, %v565
      %v575 = vadd.f32 %v534, %v567
      %577 = vrot.lane.b32.xlu0 %v428, 64
      %v578 = vpop.permute.xlu0 %577
      %579 = vrot.lane.b32.xlu0 %v429, 64
      %v580 = vpop.permute.xlu0 %579
      %581 = vrot.lane.b32.xlu0 %v430, 64
      %v582 = vpop.permute.xlu0 %581
      %583 = vrot.lane.b32.xlu0 %v431, 64
      %v584 = vpop.permute.xlu0 %583
      %v589 = vadd.f32 %v539, %v578
      %v590 = vadd.f32 %v540, %v580
      %v591 = vadd.f32 %v541, %v582
      %v592 = vadd.f32 %v542, %v584
      %v593 = vld [vmem:[%s3 + $0x4] sm:$0x1]
      %v594 = vlaneseq
      %v595 = vshrl.u32 %v594, 7
      %v596 = vsub.s32 0, %v595
      %v597 = vrot.slane %v593, %v596
      %v598 = vmul.f32 %v423, %v597
      %v599 = vmul.f32 %v424, %v597
      %v600 = vmul.f32 %v425, %v597
      %v601 = vmul.f32 %v426, %v597
      %v606 = vrot.slane %v598, 1
      %v607 = vrot.slane %v599, 1
      %v608 = vrot.slane %v600, 1
      %v609 = vrot.slane %v601, 1
      %610 = vrot.lane.b32.xlu0 %v606, 48
      %v611 = vpop.permute.xlu0 %610
      %612 = vrot.lane.b32.xlu0 %v607, 48
      %v613 = vpop.permute.xlu0 %612
      %614 = vrot.lane.b32.xlu0 %v608, 48
      %v615 = vpop.permute.xlu0 %614
      %616 = vrot.lane.b32.xlu0 %v609, 48
      %v617 = vpop.permute.xlu0 %616
      %v622 = vadd.f32 %v572, %v611
      %v623 = vadd.f32 %v573, %v613
      %v624 = vadd.f32 %v574, %v615
      %v625 = vadd.f32 %v575, %v617
      %v626 = vrot.slane %v431, 1
      %627 = vrot.lane.b32.xlu0 %v487, 96
      %v628 = vpop.permute.xlu0 %627
      %629 = vrot.lane.b32.xlu0 %v488, 96
      %v630 = vpop.permute.xlu0 %629
      %631 = vrot.lane.b32.xlu0 %v489, 96
      %v632 = vpop.permute.xlu0 %631
      %633 = vrot.lane.b32.xlu0 %v626, 96
      %v634 = vpop.permute.xlu0 %633
      %v639 = vadd.f32 %v589, %v628
      %v640 = vadd.f32 %v590, %v630
      %v641 = vadd.f32 %v591, %v632
      %v642 = vadd.f32 %v592, %v634
      %v643 = vld [vmem:[%s3 + $0x5] sm:$0x1]
      %v644 = vlaneseq
      %v645 = vshrl.u32 %v644, 7
      %v646 = vsub.s32 0, %v645
      %v647 = vrot.slane %v643, %v646
      %649 = vrot.lane.b32.xlu0 %v647, 16
      %v650 = vpop.permute.xlu0 %649
      %v652 = vmul.f32 %v423, %v650
      %v653 = vmul.f32 %v424, %v650
      %v654 = vmul.f32 %v425, %v650
      %v655 = vmul.f32 %v426, %v650
      %v660 = vrot.slane %v652, 1
      %v661 = vrot.slane %v653, 1
      %v662 = vrot.slane %v654, 1
      %v663 = vrot.slane %v655, 1
      %664 = vrot.lane.b32.xlu0 %v660, 32
      %v665 = vpop.permute.xlu0 %664
      %666 = vrot.lane.b32.xlu0 %v661, 32
      %v667 = vpop.permute.xlu0 %666
      %668 = vrot.lane.b32.xlu0 %v662, 32
      %v669 = vpop.permute.xlu0 %668
      %670 = vrot.lane.b32.xlu0 %v663, 32
      %v671 = vpop.permute.xlu0 %670
      %v676 = vadd.f32 %v622, %v665
      %v677 = vadd.f32 %v623, %v667
      %v678 = vadd.f32 %v624, %v669
      %v679 = vadd.f32 %v625, %v671
      %680 = vrot.lane.b32.xlu0 %v487, 64
      %v681 = vpop.permute.xlu0 %680
      %682 = vrot.lane.b32.xlu0 %v488, 64
      %v683 = vpop.permute.xlu0 %682
      %684 = vrot.lane.b32.xlu0 %v489, 64
      %v685 = vpop.permute.xlu0 %684
      %686 = vrot.lane.b32.xlu0 %v626, 64
      %v687 = vpop.permute.xlu0 %686
      %v692 = vadd.f32 %v639, %v681
      %v693 = vadd.f32 %v640, %v683
      %v694 = vadd.f32 %v641, %v685
      %v695 = vadd.f32 %v642, %v687
      %v696 = vld [vmem:[%s3 + $0x6] sm:$0x1]
      %v697 = vlaneseq
      %v698 = vshrl.u32 %v697, 7
      %v699 = vsub.s32 0, %v698
      %v700 = vrot.slane %v696, %v699
      %702 = vrot.lane.b32.xlu0 %v700, 48
      %v703 = vpop.permute.xlu0 %702
      %v705 = vmul.f32 %v423, %v703
      %v706 = vmul.f32 %v424, %v703
      %v707 = vmul.f32 %v425, %v703
      %v708 = vmul.f32 %v426, %v703
      %v709 = vadd.f32 %v676, %v705
      %v710 = vadd.f32 %v677, %v706
      %v711 = vadd.f32 %v678, %v707
      %v712 = vadd.f32 %v679, %v708
      %v713 = vadd.f32 %v692, %v428
      %v714 = vadd.f32 %v693, %v429
      %v715 = vadd.f32 %v694, %v430
      %v716 = vadd.f32 %v695, %v431
      %v717 = vld [vmem:[%s3 + $0x7] sm:$0x1]
      %v718 = vlaneseq
      %v719 = vshrl.u32 %v718, 7
      %v720 = vsub.s32 0, %v719
      %v721 = vrot.slane %v717, %v720
      %723 = vrot.lane.b32.xlu0 %v721, 32
      %v724 = vpop.permute.xlu0 %723
      %v726 = vmul.f32 %v423, %v724
      %v727 = vmul.f32 %v424, %v724
      %v728 = vmul.f32 %v425, %v724
      %v729 = vmul.f32 %v426, %v724
      %v734 = vrot.slane %v726, 1
      %v735 = vrot.slane %v727, 1
      %v736 = vrot.slane %v728, 1
      %v737 = vrot.slane %v729, 1
      %738 = vrot.lane.b32.xlu0 %v734, 16
      %v739 = vpop.permute.xlu0 %738
      %740 = vrot.lane.b32.xlu0 %v735, 16
      %v741 = vpop.permute.xlu0 %740
      %742 = vrot.lane.b32.xlu0 %v736, 16
      %v743 = vpop.permute.xlu0 %742
      %744 = vrot.lane.b32.xlu0 %v737, 16
      %v745 = vpop.permute.xlu0 %744
      %v750 = vadd.f32 %v709, %v739
      %v751 = vadd.f32 %v710, %v741
      %v752 = vadd.f32 %v711, %v743
      %v753 = vadd.f32 %v712, %v745
      %754 = vrot.lane.b32.xlu0 %v626, 32
      %v755 = vpop.permute.xlu0 %754
      %v757 = vadd.f32 %v713, %v493
      %v758 = vadd.f32 %v714, %v495
      %v759 = vadd.f32 %v715, %v497
      %v760 = vadd.f32 %v716, %v755
      %v761 = vld [vmem:[%s3 + $0x8] sm:$0x1]
      %v762 = vlaneseq
      %v763 = vshrl.u32 %v762, 7
      %v764 = vsub.s32 0, %v763
      %v765 = vrot.slane %v761, %v764
      %767 = vrot.lane.b32.xlu0 %v765, 48
      %v768 = vpop.permute.xlu0 %767
      %v770 = vmul.f32 %v423, %v768
      %v771 = vmul.f32 %v424, %v768
      %v772 = vmul.f32 %v425, %v768
      %v773 = vmul.f32 %v426, %v768
      %v778 = vrot.slane %v770, 1
      %v779 = vrot.slane %v771, 1
      %v780 = vrot.slane %v772, 1
      %v781 = vrot.slane %v773, 1
      %v786 = vadd.f32 %v750, %v778
      %v787 = vadd.f32 %v751, %v779
      %v788 = vadd.f32 %v752, %v780
      %v789 = vadd.f32 %v753, %v781
      %v791 = vadd.f32 %v757, %v487
      %v792 = vadd.f32 %v758, %v488
      %v793 = vadd.f32 %v759, %v489
      %v794 = vadd.f32 %v760, %v626
      %v795 = vld [vmem:[%s4] sm:$0x1]
      %v797 = vlaneseq
      %v798 = vshrl.u32 %v797, 7
      %v799 = vsub.s32 0, %v798
      %v800 = vrot.slane %v795, %v799
      %801 = vrot.lane.b32.xlu0 %v800, 48
      %v802 = vpop.permute.xlu0 %801
      %v804 = vadd.f32 %v786, %v802
      %v805 = vadd.f32 %v787, %v802
      %v806 = vadd.f32 %v788, %v802
      %v807 = vadd.f32 %v789, %v802
      %v808 = vmul.f32 %v791, 0.11111111
      %v809 = vmul.f32 %v792, 0.11111111
      %v810 = vmul.f32 %v793, 0.11111111
      %v811 = vmul.f32 %v794, 0.11111111
      %v812 = vld [vmem:[%s5] sm:$0xff]
      %v813 = vld [vmem:[%s5 + $0x8] sm:$0xff]
      %v814 = vld [vmem:[%s6] sm:$0x1]
      %v816 = vlaneseq
      %v817 = vshrl.u32 %v816, 7
      %v818 = vsub.s32 0, %v817
      %v819 = vrot.slane %v814, %v818
      %v824 = vcombine.low %v804, %v805
      %v825 = vcombine.low %v806, %v807
      %826 = vrot.lane.b32.xlu0 %v824, 80
      %v827 = vpop.permute.xlu0 %826
      %828 = vrot.lane.b32.xlu0 %v825, 80
      %v829 = vpop.permute.xlu0 %828
      %v830 = vcombine.low %v819, %v819
      %vm832 = vcmask 130048
      %v833 = vsel %vm832, %v827, 0
      %v835 = vsel %vm832, %v829, 0
      %837 = vmatprep.subr.mxu0 0.0
      %838 = vmatpush1.msra.mxu0 %v812
      %839 = vmatprep.subr.mxu0 0.0
      %840 = vmatpush1.msra.mxu0 %v813
      %841 = vmatprep.subr.mxu0 0.0
      %842 = vmatpush1.msra.mxu0 0.0
      %843 = vmatprep.subr.mxu0 0.0
      %844 = vmatpush1.msra.mxu0 0.0
      %845 = vmatprep.subr.mxu0 0.0
      %846 = vmatpush1.msra.mxu0 0.0
      %847 = vmatprep.subr.mxu0 0.0
      %848 = vmatpush1.msra.mxu0 0.0
      %849 = vmatprep.subr.mxu0 0.0
      %850 = vmatpush1.msra.mxu0 0.0
      %851 = vmatprep.subr.mxu0 0.0
      %852 = vmatpush1.msra.mxu0 0.0
      %853 = vmatprep.subr.mxu0 0.0
      %854 = vmatpush1.msra.mxu0 0.0
      %855 = vmatprep.subr.mxu0 0.0
      %856 = vmatpush1.msra.mxu0 0.0
      %857 = vmatprep.subr.mxu0 0.0
      %858 = vmatpush1.msra.mxu0 0.0
      %859 = vmatprep.subr.mxu0 0.0
      %860 = vmatpush1.msra.mxu0 0.0
      %861 = vmatprep.subr.mxu0 0.0
      %862 = vmatpush1.msra.mxu0 0.0
      %863 = vmatprep.subr.mxu0 0.0
      %864 = vmatpush1.msra.mxu0 0.0
      %865 = vmatprep.subr.mxu0 0.0
      %866 = vmatpush1.msra.mxu0 0.0
      %867 = vmatprep.subr.mxu0 0.0
      %868 = vmatpush1.msra.mxu0 0.0
      %869 = vmatprep.subr.mxu0 0.0
      %870 = vmatpush1.msra.mxu0 0.0
      %871 = vmatprep.subr.mxu0 0.0
      %872 = vmatpush1.msra.mxu0 0.0
      %873 = vmatprep.subr.mxu0 0.0
      %874 = vmatpush1.msra.mxu0 0.0
      %875 = vmatprep.subr.mxu0 0.0
      %876 = vmatpush1.msra.mxu0 0.0
      %877 = vmatprep.subr.mxu0 0.0
      %878 = vmatpush1.msra.mxu0 0.0
      %879 = vmatprep.subr.mxu0 0.0
      %880 = vmatpush1.msra.mxu0 0.0
      %881 = vmatprep.subr.mxu0 0.0
      %882 = vmatpush1.msra.mxu0 0.0
      %883 = vmatprep.subr.mxu0 0.0
      %884 = vmatpush1.msra.mxu0 0.0
      %885 = vmatprep.subr.mxu0 0.0
      %886 = vmatpush1.msra.mxu0 0.0
      %887 = vmatprep.subr.mxu0 0.0
      %888 = vmatpush1.msra.mxu0 0.0
      %889 = vmatprep.subr.mxu0 0.0
      %890 = vmatpush1.msra.mxu0 0.0
      %891 = vmatprep.subr.mxu0 0.0
      %892 = vmatpush1.msra.mxu0 0.0
      %893 = vmatprep.subr.mxu0 0.0
      %894 = vmatpush1.msra.mxu0 0.0
      %895 = vmatprep.subr.mxu0 0.0
      %896 = vmatpush1.msra.mxu0 0.0
      %897 = vmatprep.subr.mxu0 0.0
      %898 = vmatpush1.msra.mxu0 0.0
      %899 = vmatprep.subr.mxu0 0.0
      %900 = vmatpush1.msra.mxu0 0.0
      %901 = vmatprep.mubr.f32.mxu0 0.0
      %902 = vmatmul.mubr.f32.gmra.mrb[0].mxu0 %v833
      %v903 = vpop.f32.mrb[0].mxu0
      %v904 = vadd.f32 %v830, %v903
      %v905 = vpop.f32.mrb[0].mxu0
      %906 = vmatprep.mubr.f32.mxu0 0.0
      %907 = vmatmul.mubr.f32.gmra.mrb[0].mxu0 %v835
      %v908 = vpop.f32.mrb[0].mxu0
      %v909 = vadd.f32 %v830, %v908
      %v910 = vpop.f32.mrb[0].mxu0
      %911 = vdwg.mxu0
      %v914 = vcombine.high %v904, %v904
      %v915 = vcombine.high %v909, %v909
      %922 = vrot.lane.b32.xlu0 %v808, 64
      %v923 = vpop.permute.xlu0 %922
      %924 = vrot.lane.b32.xlu0 %v809, 64
      %v925 = vpop.permute.xlu0 %924
      %926 = vrot.lane.b32.xlu0 %v810, 64
      %v927 = vpop.permute.xlu0 %926
      %928 = vrot.lane.b32.xlu0 %v811, 64
      %v929 = vpop.permute.xlu0 %928
      %vm934 = vcmask 261120
      %v935 = vsel %vm934, %v904, %v923
      %v936 = vsel %vm934, %v914, %v925
      %v937 = vsel %vm934, %v909, %v927
      %v938 = vsel %vm934, %v915, %v929
      %v939 = vmax.f32 %v935, 0.0
      %v940 = vmax.f32 %v936, 0.0
      %v941 = vmax.f32 %v937, 0.0
      %v942 = vmax.f32 %v938, 0.0
      %943 = vst.msk [vmem:[%s278] sm:$0xf] %vm407, %v939
      %944 = vst.msk [vmem:[%s278 + $0x4] sm:$0xf] %vm407, %v940
      %945 = vst.msk [vmem:[%s278 + $0x8] sm:$0xf] %vm407, %v941
      %946 = vst.msk [vmem:[%s278 + $0xc] sm:$0xf] %vm407, %v942
      %p947 = scmp.lt.s32.totalorder %s18, 1
      %s948 = scalar_select %p947, %s18, 1
      %s949 = smul.addr %s948, 4
      %s950 = smul.addr %s949, 4
      %s951 = scalar_lea.vmem %s7, %s950
      // Predicated region
      $region49: #{shufflenet_fwd.11} parent=47 // pred_check
        %p952 = pneg %p188
      $region50: #{shufflenet_fwd.11} parent=47 // pred_check_branch
        %954 = sbr.rel (%p952) target = $region52
      $region51: #{shufflenet_fwd.11} parent=47 // pred_region
        _
      $region52: #{shufflenet_fwd.11} parent=47 // pred_fallthru
        _
    $region48: #{shufflenet_fwd.11} parent=5 // pred_fallthru
      _
    %p955 = scmp.le.s32.totalorder 2, %s13
    // Predicated region
    $region53: #{shufflenet_fwd.11} parent=5 // pred_check
      %p956 = pneg %p955
    $region54: #{shufflenet_fwd.11} parent=5 // pred_check_branch
      %958 = sbr.rel (%p956) target = $region56
    $region55: #{shufflenet_fwd.11} parent=5 // pred_region
      %s959 = ssub.s32 %s13, 2
      // Predicated region
      $region57: #{shufflenet_fwd.11} parent=55 // pred_check
        %p960 = pneg %p194
      $region58: #{shufflenet_fwd.11} parent=55 // pred_check_branch
        %962 = sbr.rel (%p960) target = $region60
      $region59: #{shufflenet_fwd.11} parent=55 // pred_region
        %p963 = scmp.lt.s32.totalorder %s19, 1
        %s964 = scalar_select %p963, %s19, 1
        %s965 = smul.addr %s964, 4
        %s966 = smul.addr %s965, 4
        %s967 = scalar_lea.vmem %s7, %s966
      $region60: #{shufflenet_fwd.11} parent=55 // pred_fallthru
        _
    $region56: #{shufflenet_fwd.11} parent=5 // pred_fallthru
      _
  $region6: #{shufflenet_fwd.11} parent=0 // loop_footer
    %s17 = sadd.s32 1, %s13
  $region7: #{shufflenet_fwd.11} parent=0 // loop_footer_branch
    %12 = sbr.rel target = $region3
  $region8: #{shufflenet_fwd.11} parent=0 // loop_exit
    _

// kernel: shufflenet_fwd.12
$region0: #{shufflenet_fwd.12}
  #allocation0 [shape = 'u32[]', space=smem, size = 0x4, offset = 0x4, fixed_abs, tag = 'smem constant byte address 0x4 - core index']
  #allocation1 [shape = 'u32[144,128]{1,0:T(1,128)}', space=vmem, size = 0x12000, scoped, tag = 'internal scratch']
  #allocation2 [shape = 'f32[1,6,6,16]{3,2,1,0:T(8,128)}', space=vmem, size = 0x6000, scoped, tag = 'scratch operand']
  %s0 = inlined_call_operand.vmem [shape: f32[2,4,4,64], index: 0, kind: input, shape index: {}]
  %s1 = inlined_call_operand.vmem [shape: f32[64,16], index: 1, kind: input, shape index: {}]
  %s2 = inlined_call_operand.vmem [shape: f32[1,16], index: 2, kind: input, shape index: {}]
  %s3 = inlined_call_operand.vmem [shape: f32[9,16], index: 3, kind: input, shape index: {}]
  %s4 = inlined_call_operand.vmem [shape: f32[1,16], index: 4, kind: input, shape index: {}]
  %s5 = inlined_call_operand.vmem [shape: f32[16,64], index: 5, kind: input, shape index: {}]
  %s6 = inlined_call_operand.vmem [shape: f32[1,64], index: 6, kind: input, shape index: {}]
  %s7 = inlined_call_operand.vmem [shape: f32[2,4,4,64], index: 7, kind: output, shape index: {}]
  %s8 = sld [smem:[#allocation0]]
  $region61: #{shufflenet_fwd.12} parent=0
    _
  %s10 = ssub.s32 1, %s8
  %s11 = scalar_select 0, %s10, %s8
  loop: start=0, step=1, limit=4
  $region2: #{shufflenet_fwd.12} parent=0 // loop_pre_header
    _
  $region3: #{shufflenet_fwd.12} parent=0 // loop_header
    %s13 = sphi 0, %s17
    %p14 = scmp.ge.s32.totalorder %s13, 4
    %s23 = sphi 0, %s25
    %s26 = sphi 0, %s23
    %s27 = sphi 0, %s26
    %s43 = sphi 0, %s27
    %s47 = sphi 0, %s47
    %s49 = sphi 0, %s47
    %s50 = sphi 0, %s49
    %s64 = sphi 0, %s50
    %s68 = sphi 0, %s68
    %s70 = sphi 0, %s68
    %s71 = sphi 0, %s70
    %s85 = sphi 0, %s71
    %s89 = sphi 0, %s89
    %s91 = sphi 0, %s89
    %s92 = sphi 0, %s91
    %s106 = sphi 0, %s92
    %s110 = sphi 0, %s110
    %s112 = sphi 0, %s110
    %s113 = sphi 0, %s112
    %s127 = sphi 0, %s113
    %s131 = sphi 0, %s131
    %s133 = sphi 0, %s131
    %s134 = sphi 0, %s133
    %s148 = sphi 0, %s134
    %s152 = sphi 0, %s152
    %s154 = sphi 0, %s152
    %s155 = sphi 0, %s154
    %s169 = sphi 0, %s155
    %s175 = sphi 0, %s177
    %s178 = sphi 0, %s175
    %s179 = sphi 0, %s178
    %s195 = sphi 0, %s179
  $region4: #{shufflenet_fwd.12} parent=0 // loop_header_branch
    %16 = sbr.rel (%p14) target = $region8
  $region5: #{shufflenet_fwd.12} parent=0 // loop_body
    %s18 = ssub.s32 %s13, 1
    %s19 = ssub.s32 %s13, 2
    %s20 = sadd.s32 %s13, 1
    %s21 = ssub.s32 %s13, %s20
    %p22 = scmp.eq.s32.totalorder %s21, 0
    %s24 = sadd.s32 %s23, 1
    %s25 = scalar_select %p22, %s23, %s24
    %p28 = pneg %p22
    %p29 = scmp.eq.s32.totalorder %s13, 1
    %p30 = por %p28, %p29
    %p31 = scmp.ne.s32.totalorder %s23, %s26
    %p32 = scmp.eq.s32.totalorder %s13, 0
    %p33 = por %p31, %p32
    %p34 = scmp.ne.s32.totalorder %s23, %s26
    %p35 = scmp.eq.s32.totalorder %s18, 1
    %p36 = por %p34, %p35
    %p37 = scmp.ne.s32.totalorder %s26, %s27
    %p38 = scmp.eq.s32.totalorder %s18, 0
    %p39 = por %p37, %p38
    %p40 = scmp.ne.s32.totalorder %s26, %s27
    %p41 = scmp.eq.s32.totalorder %s19, 1
    %p42 = por %p40, %p41
    %p44 = scmp.ne.s32.totalorder %s27, %s43
    %p45 = scmp.eq.s32.totalorder %s19, 0
    %p46 = por %p44, %p45
    %s48 = sadd.s32 %s47, 1
    %p51 = scmp.eq.s32.totalorder %s13, 1
    %p52 = scmp.ne.s32.totalorder %s47, %s49
    %p53 = scmp.eq.s32.totalorder %s13, 0
    %p54 = por %p52, %p53
    %p55 = scmp.ne.s32.totalorder %s47, %s49
    %p56 = scmp.eq.s32.totalorder %s18, 1
    %p57 = por %p55, %p56
    %p58 = scmp.ne.s32.totalorder %s49, %s50
    %p59 = scmp.eq.s32.totalorder %s18, 0
    %p60 = por %p58, %p59
    %p61 = scmp.ne.s32.totalorder %s49, %s50
    %p62 = scmp.eq.s32.totalorder %s19, 1
    %p63 = por %p61, %p62
    %p65 = scmp.ne.s32.totalorder %s50, %s64
    %p66 = scmp.eq.s32.totalorder %s19, 0
    %p67 = por %p65, %p66
    %s69 = sadd.s32 %s68, 1
    %p72 = scmp.eq.s32.totalorder %s13, 1
    %p73 = scmp.ne.s32.totalorder %s68, %s70
    %p74 = scmp.eq.s32.totalorder %s13, 0
    %p75 = por %p73, %p74
    %p76 = scmp.ne.s32.totalorder %s68, %s70
    %p77 = scmp.eq.s32.totalorder %s18, 1
    %p78 = por %p76, %p77
    %p79 = scmp.ne.s32.totalorder %s70, %s71
    %p80 = scmp.eq.s32.totalorder %s18, 0
    %p81 = por %p79, %p80
    %p82 = scmp.ne.s32.totalorder %s70, %s71
    %p83 = scmp.eq.s32.totalorder %s19, 1
    %p84 = por %p82, %p83
    %p86 = scmp.ne.s32.totalorder %s71, %s85
    %p87 = scmp.eq.s32.totalorder %s19, 0
    %p88 = por %p86, %p87
    %s90 = sadd.s32 %s89, 1
    %p93 = scmp.eq.s32.totalorder %s13, 1
    %p94 = scmp.ne.s32.totalorder %s89, %s91
    %p95 = scmp.eq.s32.totalorder %s13, 0
    %p96 = por %p94, %p95
    %p97 = scmp.ne.s32.totalorder %s89, %s91
    %p98 = scmp.eq.s32.totalorder %s18, 1
    %p99 = por %p97, %p98
    %p100 = scmp.ne.s32.totalorder %s91, %s92
    %p101 = scmp.eq.s32.totalorder %s18, 0
    %p102 = por %p100, %p101
    %p103 = scmp.ne.s32.totalorder %s91, %s92
    %p104 = scmp.eq.s32.totalorder %s19, 1
    %p105 = por %p103, %p104
    %p107 = scmp.ne.s32.totalorder %s92, %s106
    %p108 = scmp.eq.s32.totalorder %s19, 0
    %p109 = por %p107, %p108
    %s111 = sadd.s32 %s110, 1
    %p114 = scmp.eq.s32.totalorder %s13, 1
    %p115 = scmp.ne.s32.totalorder %s110, %s112
    %p116 = scmp.eq.s32.totalorder %s13, 0
    %p117 = por %p115, %p116
    %p118 = scmp.ne.s32.totalorder %s110, %s112
    %p119 = scmp.eq.s32.totalorder %s18, 1
    %p120 = por %p118, %p119
    %p121 = scmp.ne.s32.totalorder %s112, %s113
    %p122 = scmp.eq.s32.totalorder %s18, 0
    %p123 = por %p121, %p122
    %p124 = scmp.ne.s32.totalorder %s112, %s113
    %p125 = scmp.eq.s32.totalorder %s19, 1
    %p126 = por %p124, %p125
    %p128 = scmp.ne.s32.totalorder %s113, %s127
    %p129 = scmp.eq.s32.totalorder %s19, 0
    %p130 = por %p128, %p129
    %s132 = sadd.s32 %s131, 1
    %p135 = scmp.eq.s32.totalorder %s13, 1
    %p136 = scmp.ne.s32.totalorder %s131, %s133
    %p137 = scmp.eq.s32.totalorder %s13, 0
    %p138 = por %p136, %p137
    %p139 = scmp.ne.s32.totalorder %s131, %s133
    %p140 = scmp.eq.s32.totalorder %s18, 1
    %p141 = por %p139, %p140
    %p142 = scmp.ne.s32.totalorder %s133, %s134
    %p143 = scmp.eq.s32.totalorder %s18, 0
    %p144 = por %p142, %p143
    %p145 = scmp.ne.s32.totalorder %s133, %s134
    %p146 = scmp.eq.s32.totalorder %s19, 1
    %p147 = por %p145, %p146
    %p149 = scmp.ne.s32.totalorder %s134, %s148
    %p150 = scmp.eq.s32.totalorder %s19, 0
    %p151 = por %p149, %p150
    %s153 = sadd.s32 %s152, 1
    %p156 = scmp.eq.s32.totalorder %s13, 1
    %p157 = scmp.ne.s32.totalorder %s152, %s154
    %p158 = scmp.eq.s32.totalorder %s13, 0
    %p159 = por %p157, %p158
    %p160 = scmp.ne.s32.totalorder %s152, %s154
    %p161 = scmp.eq.s32.totalorder %s18, 1
    %p162 = por %p160, %p161
    %p163 = scmp.ne.s32.totalorder %s154, %s155
    %p164 = scmp.eq.s32.totalorder %s18, 0
    %p165 = por %p163, %p164
    %p166 = scmp.ne.s32.totalorder %s154, %s155
    %p167 = scmp.eq.s32.totalorder %s19, 1
    %p168 = por %p166, %p167
    %p170 = scmp.ne.s32.totalorder %s155, %s169
    %p171 = scmp.eq.s32.totalorder %s19, 0
    %p172 = por %p170, %p171
    %s173 = ssub.s32 %s13, %s20
    %p174 = scmp.eq.s32.totalorder %s173, 0
    %s176 = sadd.s32 %s175, 1
    %s177 = scalar_select %p174, %s175, %s176
    %p180 = pneg %p174
    %p181 = scmp.eq.s32.totalorder %s13, 1
    %p182 = por %p180, %p181
    %p183 = scmp.ne.s32.totalorder %s175, %s178
    %p184 = scmp.eq.s32.totalorder %s13, 0
    %p185 = por %p183, %p184
    %p186 = scmp.ne.s32.totalorder %s175, %s178
    %p187 = scmp.eq.s32.totalorder %s18, 1
    %p188 = por %p186, %p187
    %p189 = scmp.ne.s32.totalorder %s178, %s179
    %p190 = scmp.eq.s32.totalorder %s18, 0
    %p191 = por %p189, %p190
    %p192 = scmp.ne.s32.totalorder %s178, %s179
    %p193 = scmp.eq.s32.totalorder %s19, 1
    %p194 = por %p192, %p193
    %p196 = scmp.ne.s32.totalorder %s179, %s195
    %p197 = scmp.eq.s32.totalorder %s19, 0
    %p198 = por %p196, %p197
    %p199 = scmp.le.s32.totalorder 1, %s13
    %p200 = scmp.lt.s32.totalorder %s13, 3
    %p201 = pnand %p199, %p200
    %p202 = pneg %p201
    // Predicated region
    $region9: #{shufflenet_fwd.12} parent=5 // pred_check
      _
    $region10: #{shufflenet_fwd.12} parent=5 // pred_check_branch
      %204 = sbr.rel (%p201) target = $region12
    $region11: #{shufflenet_fwd.12} parent=5 // pred_region
      %s205 = ssub.s32 %s13, 1
      // Predicated region
      $region13: #{shufflenet_fwd.12} parent=11 // pred_check
        %p206 = pneg %p60
      $region14: #{shufflenet_fwd.12} parent=11 // pred_check_branch
        %208 = sbr.rel (%p206) target = $region16
      $region15: #{shufflenet_fwd.12} parent=11 // pred_region
        _
      $region16: #{shufflenet_fwd.12} parent=11 // pred_fallthru
        _
      // Predicated region
      $region17: #{shufflenet_fwd.12} parent=11 // pred_check
        %p209 = pneg %p81
      $region18: #{shufflenet_fwd.12} parent=11 // pred_check_branch
        %211 = sbr.rel (%p209) target = $region20
      $region19: #{shufflenet_fwd.12} parent=11 // pred_region
        _
      $region20: #{shufflenet_fwd.12} parent=11 // pred_fallthru
        _
      // Predicated region
      $region21: #{shufflenet_fwd.12} parent=11 // pred_check
        %p212 = pneg %p102
      $region22: #{shufflenet_fwd.12} parent=11 // pred_check_branch
        %214 = sbr.rel (%p212) target = $region24
      $region23: #{shufflenet_fwd.12} parent=11 // pred_region
        _
      $region24: #{shufflenet_fwd.12} parent=11 // pred_fallthru
        _
      // Predicated region
      $region25: #{shufflenet_fwd.12} parent=11 // pred_check
        %p215 = pneg %p123
      $region26: #{shufflenet_fwd.12} parent=11 // pred_check_branch
        %217 = sbr.rel (%p215) target = $region28
      $region27: #{shufflenet_fwd.12} parent=11 // pred_region
        _
      $region28: #{shufflenet_fwd.12} parent=11 // pred_fallthru
        _
      // Predicated region
      $region29: #{shufflenet_fwd.12} parent=11 // pred_check
        %p218 = pneg %p144
      $region30: #{shufflenet_fwd.12} parent=11 // pred_check_branch
        %220 = sbr.rel (%p218) target = $region32
      $region31: #{shufflenet_fwd.12} parent=11 // pred_region
        _
      $region32: #{shufflenet_fwd.12} parent=11 // pred_fallthru
        _
      // Predicated region
      $region33: #{shufflenet_fwd.12} parent=11 // pred_check
        %p221 = pneg %p165
      $region34: #{shufflenet_fwd.12} parent=11 // pred_check_branch
        %223 = sbr.rel (%p221) target = $region36
      $region35: #{shufflenet_fwd.12} parent=11 // pred_region
        _
      $region36: #{shufflenet_fwd.12} parent=11 // pred_fallthru
        _
    $region12: #{shufflenet_fwd.12} parent=5 // pred_fallthru
      _
    %p224 = scmp.lt.s32.totalorder %s13, 2
    // Predicated region
    $region37: #{shufflenet_fwd.12} parent=5 // pred_check
      %p225 = pneg %p224
    $region38: #{shufflenet_fwd.12} parent=5 // pred_check_branch
      %227 = sbr.rel (%p225) target = $region40
    $region39: #{shufflenet_fwd.12} parent=5 // pred_region
      // Predicated region
      $region41: #{shufflenet_fwd.12} parent=39 // pred_check
        %p228 = pneg %p33
      $region42: #{shufflenet_fwd.12} parent=39 // pred_check_branch
        %230 = sbr.rel (%p228) target = $region44
      $region43: #{shufflenet_fwd.12} parent=39 // pred_region
        %p231 = scmp.lt.s32.totalorder %s13, 1
        %s232 = scalar_select %p231, %s13, 1
        %s233 = smul.addr %s232, 4
        %s234 = smul.addr %s233, 4
        %s235 = scalar_lea.vmem %s0, %s234
      $region44: #{shufflenet_fwd.12} parent=39 // pred_fallthru
        _
    $region40: #{shufflenet_fwd.12} parent=5 // pred_fallthru
      _
    %p236 = scmp.le.s32.totalorder 1, %s13
    %p237 = scmp.lt.s32.totalorder %s13, 3
    %p238 = pnand %p236, %p237
    %p239 = pneg %p238
    // Predicated region
    $region45: #{shufflenet_fwd.12} parent=5 // pred_check
      _
    $region46: #{shufflenet_fwd.12} parent=5 // pred_check_branch
      %241 = sbr.rel (%p238) target = $region48
    $region47: #{shufflenet_fwd.12} parent=5 // pred_region
      %s242 = ssub.s32 %s13, 1
      %p243 = scmp.lt.s32.totalorder %s18, 1
      %s244 = scalar_select %p243, %s18, 1
      %s245 = smul.addr %s244, 4
      %s246 = smul.addr %s245, 4
      %s247 = scalar_lea.vmem %s0, %s246
      %p248 = pneg %p39
      %p249 = pneg %p36
      %p250 = pneg %p60
      %p251 = pneg %p57
      %p252 = pneg %p81
      %p253 = pneg %p78
      %p254 = pneg %p102
      %p255 = pneg %p99
      %p256 = pneg %p123
      %p257 = pneg %p120
      %p258 = pneg %p144
      %p259 = pneg %p141
      %p260 = pneg %p165
      %p261 = pneg %p162
      %p262 = pneg %p191
      %p263 = pneg %p188
      %p264 = scmp.lt.s32.totalorder %s18, 1
      %s265 = scalar_select %p264, %s18, 1
      %s266 = smul.addr %s265, 4
      %s267 = smul.addr %s266, 4
      %s268 = scalar_lea.vmem %s7, %s267
      %p269 = scmp.lt.s32.totalorder %s18, 1
      %s270 = scalar_select %p269, %s18, 1
      %s271 = smul.addr %s270, 4
      %s272 = smul.addr %s271, 4
      %s273 = scalar_lea.vmem %s0, %s272
      %p274 = scmp.lt.s32.totalorder %s18, 1
      %s275 = scalar_select %p274, %s18, 1
      %s276 = smul.addr %s275, 4
      %s277 = smul.addr %s276, 4
      %s278 = scalar_lea.vmem %s7, %s277
      %v279 = vld [vmem:[%s273] sm:$0xf]
      %v280 = vld [vmem:[%s273 + $0x4] sm:$0xf]
      %v281 = vld [vmem:[%s273 + $0x8] sm:$0xf]
      %v282 = vld [vmem:[%s273 + $0xc] sm:$0xf]
      %v283 = vld [vmem:[%s1] sm:$0xff]
      %v284 = vld [vmem:[%s1 + $0x8] sm:$0xff]
      %v285 = vld [vmem:[%s1 + $0x10] sm:$0xff]
      %v286 = vld [vmem:[%s1 + $0x18] sm:$0xff]
      %v287 = vld [vmem:[%s1 + $0x20] sm:$0xff]
      %v288 = vld [vmem:[%s1 + $0x28] sm:$0xff]
      %v289 = vld [vmem:[%s1 + $0x30] sm:$0xff]
      %v290 = vld [vmem:[%s1 + $0x38] sm:$0xff]
      %v291 = vld [vmem:[%s2] sm:$0x1]
      %v293 = vlaneseq
      %v294 = vshrl.u32 %v293, 7
      %v295 = vsub.s32 0, %v294
      %v296 = vrot.slane %v291, %v295
      %v301 = vcombine.low %v279, %v280
      %v302 = vcombine.low %v281, %v282
      %v303 = vcombine.low %v296, %v296
      %vm305 = vcmask 523264
      %v306 = vsel %vm305, %v301, 0
      %v308 = vsel %vm305, %v302, 0
      %310 = vmatprep.subr.mxu0 0.0
      %311 = vmatpush1.msra.mxu0 %v283
      %312 = vmatprep.subr.mxu0 0.0
      %313 = vmatpush1.msra.mxu0 %v284
      %314 = vmatprep.subr.mxu0 0.0
      %315 = vmatpush1.msra.mxu0 %v285
      %316 = vmatprep.subr.mxu0 0.0
      %317 = vmatpush1.msra.mxu0 %v286
      %318 = vmatprep.subr.mxu0 0.0
      %319 = vmatpush1.msra.mxu0 %v287
      %320 = vmatprep.subr.mxu0 0.0
      %321 = vmatpush1.msra.mxu0 %v288
      %322 = vmatprep.subr.mxu0 0.0
      %323 = vmatpush1.msra.mxu0 %v289
      %324 = vmatprep.subr.mxu0 0.0
      %325 = vmatpush1.msra.mxu0 %v290
      %326 = vmatprep.subr.mxu0 0.0
      %327 = vmatpush1.msra.mxu0 0.0
      %328 = vmatprep.subr.mxu0 0.0
      %329 = vmatpush1.msra.mxu0 0.0
      %330 = vmatprep.subr.mxu0 0.0
      %331 = vmatpush1.msra.mxu0 0.0
      %332 = vmatprep.subr.mxu0 0.0
      %333 = vmatpush1.msra.mxu0 0.0
      %334 = vmatprep.subr.mxu0 0.0
      %335 = vmatpush1.msra.mxu0 0.0
      %336 = vmatprep.subr.mxu0 0.0
      %337 = vmatpush1.msra.mxu0 0.0
      %338 = vmatprep.subr.mxu0 0.0
      %339 = vmatpush1.msra.mxu0 0.0
      %340 = vmatprep.subr.mxu0 0.0
      %341 = vmatpush1.msra.mxu0 0.0
      %342 = vmatprep.subr.mxu0 0.0
      %343 = vmatpush1.msra.mxu0 0.0
      %344 = vmatprep.subr.mxu0 0.0
      %345 = vmatpush1.msra.mxu0 0.0
      %346 = vmatprep.subr.mxu0 0.0
      %347 = vmatpush1.msra.mxu0 0.0
      %348 = vmatprep.subr.mxu0 0.0
      %349 = vmatpush1.msra.mxu0 0.0
      %350 = vmatprep.subr.mxu0 0.0
      %351 = vmatpush1.msra.mxu0 0.0
      %352 = vmatprep.subr.mxu0 0.0
      %353 = vmatpush1.msra.mxu0 0.0
      %354 = vmatprep.subr.mxu0 0.0
      %355 = vmatpush1.msra.mxu0 0.0
      %356 = vmatprep.subr.mxu0 0.0
      %357 = vmatpush1.msra.mxu0 0.0
      %358 = vmatprep.subr.mxu0 0.0
      %359 = vmatpush1.msra.mxu0 0.0
      %360 = vmatprep.subr.mxu0 0.0
      %361 = vmatpush1.msra.mxu0 0.0
      %362 = vmatprep.subr.mxu0 0.0
      %363 = vmatpush1.msra.mxu0 0.0
      %364 = vmatprep.subr.mxu0 0.0
      %365 = vmatpush1.msra.mxu0 0.0
      %366 = vmatprep.subr.mxu0 0.0
      %367 = vmatpush1.msra.mxu0 0.0
      %368 = vmatprep.subr.mxu0 0.0
      %369 = vmatpush1.msra.mxu0 0.0
      %370 = vmatprep.subr.mxu0 0.0
      %371 = vmatpush1.msra.mxu0 0.0
      %372 = vmatprep.subr.mxu0 0.0
      %373 = vmatpush1.msra.mxu0 0.0
      %374 = vmatprep.mubr.f32.mxu0 0.0
      %375 = vmatmul.mubr.f32.gmra.mrb[0].mxu0 %v306
      %v376 = vpop.f32.mrb[0].mxu0
      %v377 = vadd.f32 %v303, %v376
      %v378 = vpop.f32.mrb[0].mxu0
      %379 = vmatprep.mubr.f32.mxu0 0.0
      %380 = vmatmul.mubr.f32.gmra.mrb[0].mxu0 %v308
      %v381 = vpop.f32.mrb[0].mxu0
      %v382 = vadd.f32 %v303, %v381
      %v383 = vpop.f32.mrb[0].mxu0
      %384 = vdwg.mxu0
      %v387 = vcombine.high %v377, %v377
      %v388 = vcombine.high %v382, %v382
      %v391 = vmax.f32 %v377, 0.0
      %v392 = vmax.f32 %v387, 0.0
      %v393 = vmax.f32 %v382, 0.0
      %v394 = vmax.f32 %v388, 0.0
      %vm395 = vcmask 128000
      %396 = vst.msk [vmem:[#allocation2] sm:$0x3f] %vm395, 0.0
      %397 = vst.msk [vmem:[#allocation2 + $0x8] sm:$0x3f] %vm395, 0.0
      %398 = vst.msk [vmem:[#allocation2 + $0x10] sm:$0x3f] %vm395, 0.0
      %399 = vst.msk [vmem:[#allocation2 + $0x18] sm:$0x3f] %vm395, 0.0
      %400 = vst.msk [vmem:[#allocation2 + $0x20] sm:$0x3f] %vm395, 0.0
      %401 = vst.msk [vmem:[#allocation2 + $0x28] sm:$0x3f] %vm395, 0.0
      %s402 = scalar_lea.vmem [#allocation2], 8
      %vm403 = vcmask 125952
      %404 = vst.msk [vmem:[%s402 + $0x1] sm:$0xf] %vm403, %v391
      %405 = vst.msk [vmem:[%s402 + $0x9] sm:$0xf] %vm403, %v392
      %406 = vst.msk [vmem:[%s402 + $0x11] sm:$0xf] %vm403, %v393
      %407 = vst.msk [vmem:[%s402 + $0x19] sm:$0xf] %vm403, %v394
      %v408 = vld [vmem:[#allocation2] sm:$0xf]
      %v409 = vld [vmem:[#allocation2 + $0x8] sm:$0xf]
      %v410 = vld [vmem:[#allocation2 + $0x10] sm:$0xf]
      %v411 = vld [vmem:[#allocation2 + $0x18] sm:$0xf]
      %v412 = vld [vmem:[%s3] sm:$0x1]
      %v413 = vlaneseq
      %v414 = vshrl.u32 %v413, 7
      %v415 = vsub.s32 0, %v414
      %v416 = vrot.slane %v412, %v415
      %v417 = vmul.f32 %v408, %v416
      %v418 = vmul.f32 %v409, %v416
      %v419 = vmul.f32 %v410, %v416
      %v420 = vmul.f32 %v411, %v416
      %v421 = vld [vmem:[#allocation2 + $0x1] sm:$0xf]
      %v422 = vld [vmem:[#allocation2 + $0x9] sm:$0xf]
      %v423 = vld [vmem:[#allocation2 + $0x11] sm:$0xf]
      %v424 = vld [vmem:[#allocation2 + $0x19] sm:$0xf]
      %v425 = vld [vmem:[%s3 + $0x1] sm:$0x1]
      %v426 = vlaneseq
      %v427 = vshrl.u32 %v426, 7
      %v428 = vsub.s32 0, %v427
      %v429 = vrot.slane %v425, %v428
      %v430 = vmul.f32 %v421, %v429
      %v431 = vmul.f32 %v422, %v429
      %v432 = vmul.f32 %v423, %v429
      %v433 = vmul.f32 %v424, %v429
      %v434 = vadd.f32 %v417, %v430
      %v435 = vadd.f32 %v418, %v431
      %v436 = vadd.f32 %v419, %v432
      %v437 = vadd.f32 %v420, %v433
      %v438 = vld [vmem:[#allocation2 + $0x2] sm:$0xf]
      %v439 = vld [vmem:[#allocation2 + $0xa] sm:$0xf]
      %v440 = vld [vmem:[#allocation2 + $0x12] sm:$0xf]
      %v441 = vld [vmem:[#allocation2 + $0x1a] sm:$0xf]
      %v442 = vld [vmem:[%s3 + $0x2] sm:$0x1]
      %v443 = vlaneseq
      %v444 = vshrl.u32 %v443, 7
      %v445 = vsub.s32 0, %v444
      %v446 = vrot.slane %v442, %v445
      %v447 = vmul.f32 %v438, %v446
      %v448 = vmul.f32 %v439, %v446
      %v449 = vmul.f32 %v440, %v446
      %v450 = vmul.f32 %v441, %v446
      %v451 = vadd.f32 %v434, %v447
      %v452 = vadd.f32 %v435, %v448
      %v453 = vadd.f32 %v436, %v449
      %v454 = vadd.f32 %v437, %v450
      %v455 = vld [vmem:[%s402] sm:$0xf]
      %v456 = vld [vmem:[%s402 + $0x8] sm:$0xf]
      %v457 = vld [vmem:[%s402 + $0x10] sm:$0xf]
      %v458 = vld [vmem:[%s402 + $0x18] sm:$0xf]
      %v459 = vld [vmem:[%s3 + $0x3] sm:$0x1]
      %v460 = vlaneseq
      %v461 = vshrl.u32 %v460, 7
      %v462 = vsub.s32 0, %v461
      %v463 = vrot.slane %v459, %v462
      %v464 = vmul.f32 %v455, %v463
      %v465 = vmul.f32 %v456, %v463
      %v466 = vmul.f32 %v457, %v463
      %v467 = vmul.f32 %v458, %v463
      %v468 = vadd.f32 %v451, %v464
      %v469 = vadd.f32 %v452, %v465
      %v470 = vadd.f32 %v453, %v466
      %v471 = vadd.f32 %v454, %v467
      %v472 = vld [vmem:[%s402 + $0x1] sm:$0xf]
      %v473 = vld [vmem:[%s402 + $0x9] sm:$0xf]
      %v474 = vld [vmem:[%s402 + $0x11] sm:$0xf]
      %v475 = vld [vmem:[%s402 + $0x19] sm:$0xf]
      %v476 = vld [vmem:[%s3 + $0x4] sm:$0x1]
      %v477 = vlaneseq
      %v478 = vshrl.u32 %v477, 7
      %v479 = vsub.s32 0, %v478
      %v480 = vrot.slane %v476, %v479
      %v481 = vmul.f32 %v472, %v480
      %v482 = vmul.f32 %v473, %v480
      %v483 = vmul.f32 %v474, %v480
      %v484 = vmul.f32 %v475, %v480
      %v485 = vadd.f32 %v468, %v481
      %v486 = vadd.f32 %v469, %v482
      %v487 = vadd.f32 %v470, %v483
      %v488 = vadd.f32 %v471, %v484
      %v489 = vld [vmem:[%s402 + $0x2] sm:$0xf]
      %v490 = vld [vmem:[%s402 + $0xa] sm:$0xf]
      %v491 = vld [vmem:[%s402 + $0x12] sm:$0xf]
      %v492 = vld [vmem:[%s402 + $0x1a] sm:$0xf]
      %v493 = vld [vmem:[%s3 + $0x5] sm:$0x1]
      %v494 = vlaneseq
      %v495 = vshrl.u32 %v494, 7
      %v496 = vsub.s32 0, %v495
      %v497 = vrot.slane %v493, %v496
      %v498 = vmul.f32 %v489, %v497
      %v499 = vmul.f32 %v490, %v497
      %v500 = vmul.f32 %v491, %v497
      %v501 = vmul.f32 %v492, %v497
      %v502 = vadd.f32 %v485, %v498
      %v503 = vadd.f32 %v486, %v499
      %v504 = vadd.f32 %v487, %v500
      %v505 = vadd.f32 %v488, %v501
      %s506 = scalar_lea.vmem [#allocation2], 16
      %v507 = vld [vmem:[%s506] sm:$0xf]
      %v508 = vld [vmem:[%s506 + $0x8] sm:$0xf]
      %v509 = vld [vmem:[%s506 + $0x10] sm:$0xf]
      %v510 = vld [vmem:[%s506 + $0x18] sm:$0xf]
      %v511 = vld [vmem:[%s3 + $0x6] sm:$0x1]
      %v512 = vlaneseq
      %v513 = vshrl.u32 %v512, 7
      %v514 = vsub.s32 0, %v513
      %v515 = vrot.slane %v511, %v514
      %v516 = vmul.f32 %v507, %v515
      %v517 = vmul.f32 %v508, %v515
      %v518 = vmul.f32 %v509, %v515
      %v519 = vmul.f32 %v510, %v515
      %v520 = vadd.f32 %v502, %v516
      %v521 = vadd.f32 %v503, %v517
      %v522 = vadd.f32 %v504, %v518
      %v523 = vadd.f32 %v505, %v519
      %v524 = vld [vmem:[%s506 + $0x1] sm:$0xf]
      %v525 = vld [vmem:[%s506 + $0x9] sm:$0xf]
      %v526 = vld [vmem:[%s506 + $0x11] sm:$0xf]
      %v527 = vld [vmem:[%s506 + $0x19] sm:$0xf]
      %v528 = vld [vmem:[%s3 + $0x7] sm:$0x1]
      %v529 = vlaneseq
      %v530 = vshrl.u32 %v529, 7
      %v531 = vsub.s32 0, %v530
      %v532 = vrot.slane %v528, %v531
      %v533 = vmul.f32 %v524, %v532
      %v534 = vmul.f32 %v525, %v532
      %v535 = vmul.f32 %v526, %v532
      %v536 = vmul.f32 %v527, %v532
      %v537 = vadd.f32 %v520, %v533
      %v538 = vadd.f32 %v521, %v534
      %v539 = vadd.f32 %v522, %v535
      %v540 = vadd.f32 %v523, %v536
      %v541 = vld [vmem:[%s506 + $0x2] sm:$0xf]
      %v542 = vld [vmem:[%s506 + $0xa] sm:$0xf]
      %v543 = vld [vmem:[%s506 + $0x12] sm:$0xf]
      %v544 = vld [vmem:[%s506 + $0x1a] sm:$0xf]
      %v545 = vld [vmem:[%s3 + $0x8] sm:$0x1]
      %v546 = vlaneseq
      %v547 = vshrl.u32 %v546, 7
      %v548 = vsub.s32 0, %v547
      %v549 = vrot.slane %v545, %v548
      %v550 = vmul.f32 %v541, %v549
      %v551 = vmul.f32 %v542, %v549
      %v552 = vmul.f32 %v543, %v549
      %v553 = vmul.f32 %v544, %v549
      %v554 = vadd.f32 %v537, %v550
      %v555 = vadd.f32 %v538, %v551
      %v556 = vadd.f32 %v539, %v552
      %v557 = vadd.f32 %v540, %v553
      %v558 = vld [vmem:[%s4] sm:$0x1]
      %v560 = vlaneseq
      %v561 = vshrl.u32 %v560, 7
      %v562 = vsub.s32 0, %v561
      %v563 = vrot.slane %v558, %v562
      %v565 = vadd.f32 %v554, %v563
      %v566 = vadd.f32 %v555, %v563
      %v567 = vadd.f32 %v556, %v563
      %v568 = vadd.f32 %v557, %v563
      %v569 = vld [vmem:[%s5] sm:$0xff]
      %v570 = vld [vmem:[%s5 + $0x8] sm:$0xff]
      %v571 = vld [vmem:[%s6] sm:$0x1]
      %v573 = vlaneseq
      %v574 = vshrl.u32 %v573, 7
      %v575 = vsub.s32 0, %v574
      %v576 = vrot.slane %v571, %v575
      %v581 = vcombine.low %v565, %v566
      %v582 = vcombine.low %v567, %v568
      %v583 = vcombine.low %v576, %v576
      %vm585 = vcmask 130048
      %v586 = vsel %vm585, %v581, 0
      %v588 = vsel %vm585, %v582, 0
      %590 = vmatprep.subr.mxu0 0.0
      %591 = vmatpush1.msra.mxu0 %v569
      %592 = vmatprep.subr.mxu0 0.0
      %593 = vmatpush1.msra.mxu0 %v570
      %594 = vmatprep.subr.mxu0 0.0
      %595 = vmatpush1.msra.mxu0 0.0
      %596 = vmatprep.subr.mxu0 0.0
      %597 = vmatpush1.msra.mxu0 0.0
      %598 = vmatprep.subr.mxu0 0.0
      %599 = vmatpush1.msra.mxu0 0.0
      %600 = vmatprep.subr.mxu0 0.0
      %601 = vmatpush1.msra.mxu0 0.0
      %602 = vmatprep.subr.mxu0 0.0
      %603 = vmatpush1.msra.mxu0 0.0
      %604 = vmatprep.subr.mxu0 0.0
      %605 = vmatpush1.msra.mxu0 0.0
      %606 = vmatprep.subr.mxu0 0.0
      %607 = vmatpush1.msra.mxu0 0.0
      %608 = vmatprep.subr.mxu0 0.0
      %609 = vmatpush1.msra.mxu0 0.0
      %610 = vmatprep.subr.mxu0 0.0
      %611 = vmatpush1.msra.mxu0 0.0
      %612 = vmatprep.subr.mxu0 0.0
      %613 = vmatpush1.msra.mxu0 0.0
      %614 = vmatprep.subr.mxu0 0.0
      %615 = vmatpush1.msra.mxu0 0.0
      %616 = vmatprep.subr.mxu0 0.0
      %617 = vmatpush1.msra.mxu0 0.0
      %618 = vmatprep.subr.mxu0 0.0
      %619 = vmatpush1.msra.mxu0 0.0
      %620 = vmatprep.subr.mxu0 0.0
      %621 = vmatpush1.msra.mxu0 0.0
      %622 = vmatprep.subr.mxu0 0.0
      %623 = vmatpush1.msra.mxu0 0.0
      %624 = vmatprep.subr.mxu0 0.0
      %625 = vmatpush1.msra.mxu0 0.0
      %626 = vmatprep.subr.mxu0 0.0
      %627 = vmatpush1.msra.mxu0 0.0
      %628 = vmatprep.subr.mxu0 0.0
      %629 = vmatpush1.msra.mxu0 0.0
      %630 = vmatprep.subr.mxu0 0.0
      %631 = vmatpush1.msra.mxu0 0.0
      %632 = vmatprep.subr.mxu0 0.0
      %633 = vmatpush1.msra.mxu0 0.0
      %634 = vmatprep.subr.mxu0 0.0
      %635 = vmatpush1.msra.mxu0 0.0
      %636 = vmatprep.subr.mxu0 0.0
      %637 = vmatpush1.msra.mxu0 0.0
      %638 = vmatprep.subr.mxu0 0.0
      %639 = vmatpush1.msra.mxu0 0.0
      %640 = vmatprep.subr.mxu0 0.0
      %641 = vmatpush1.msra.mxu0 0.0
      %642 = vmatprep.subr.mxu0 0.0
      %643 = vmatpush1.msra.mxu0 0.0
      %644 = vmatprep.subr.mxu0 0.0
      %645 = vmatpush1.msra.mxu0 0.0
      %646 = vmatprep.subr.mxu0 0.0
      %647 = vmatpush1.msra.mxu0 0.0
      %648 = vmatprep.subr.mxu0 0.0
      %649 = vmatpush1.msra.mxu0 0.0
      %650 = vmatprep.subr.mxu0 0.0
      %651 = vmatpush1.msra.mxu0 0.0
      %652 = vmatprep.subr.mxu0 0.0
      %653 = vmatpush1.msra.mxu0 0.0
      %654 = vmatprep.mubr.f32.mxu0 0.0
      %655 = vmatmul.mubr.f32.gmra.mrb[0].mxu0 %v586
      %v656 = vpop.f32.mrb[0].mxu0
      %v657 = vadd.f32 %v583, %v656
      %v658 = vpop.f32.mrb[0].mxu0
      %659 = vmatprep.mubr.f32.mxu0 0.0
      %660 = vmatmul.mubr.f32.gmra.mrb[0].mxu0 %v588
      %v661 = vpop.f32.mrb[0].mxu0
      %v662 = vadd.f32 %v583, %v661
      %v663 = vpop.f32.mrb[0].mxu0
      %664 = vdwg.mxu0
      %v667 = vcombine.high %v657, %v657
      %v668 = vcombine.high %v662, %v662
      %v671 = vadd.f32 %v657, %v279
      %v672 = vadd.f32 %v667, %v280
      %v673 = vadd.f32 %v662, %v281
      %v674 = vadd.f32 %v668, %v282
      %v675 = vmax.f32 %v671, 0.0
      %v676 = vmax.f32 %v672, 0.0
      %v677 = vmax.f32 %v673, 0.0
      %v678 = vmax.f32 %v674, 0.0
      %vm679 = vcmask 519168
      %680 = vst.msk [vmem:[%s278] sm:$0xf] %vm679, %v675
      %681 = vst.msk [vmem:[%s278 + $0x4] sm:$0xf] %vm679, %v676
      %682 = vst.msk [vmem:[%s278 + $0x8] sm:$0xf] %vm679, %v677
      %683 = vst.msk [vmem:[%s278 + $0xc] sm:$0xf] %vm679, %v678
      %p684 = scmp.lt.s32.totalorder %s18, 1
      %s685 = scalar_select %p684, %s18, 1
      %s686 = smul.addr %s685, 4
      %s687 = smul.addr %s686, 4
      %s688 = scalar_lea.vmem %s7, %s687
      // Predicated region
      $region49: #{shufflenet_fwd.12} parent=47 // pred_check
        %p689 = pneg %p188
      $region50: #{shufflenet_fwd.12} parent=47 // pred_check_branch
        %691 = sbr.rel (%p689) target = $region52
      $region51: #{shufflenet_fwd.12} parent=47 // pred_region
        _
      $region52: #{shufflenet_fwd.12} parent=47 // pred_fallthru
        _
    $region48: #{shufflenet_fwd.12} parent=5 // pred_fallthru
      _
    %p692 = scmp.le.s32.totalorder 2, %s13
    // Predicated region
    $region53: #{shufflenet_fwd.12} parent=5 // pred_check
      %p693 = pneg %p692
    $region54: #{shufflenet_fwd.12} parent=5 // pred_check_branch
      %695 = sbr.rel (%p693) target = $region56
    $region55: #{shufflenet_fwd.12} parent=5 // pred_region
      %s696 = ssub.s32 %s13, 2
      // Predicated region
      $region57: #{shufflenet_fwd.12} parent=55 // pred_check
        %p697 = pneg %p194
      $region58: #{shufflenet_fwd.12} parent=55 // pred_check_branch
        %699 = sbr.rel (%p697) target = $region60
      $region59: #{shufflenet_fwd.12} parent=55 // pred_region
        %p700 = scmp.lt.s32.totalorder %s19, 1
        %s701 = scalar_select %p700, %s19, 1
        %s702 = smul.addr %s701, 4
        %s703 = smul.addr %s702, 4
        %s704 = scalar_lea.vmem %s7, %s703
      $region60: #{shufflenet_fwd.12} parent=55 // pred_fallthru
        _
    $region56: #{shufflenet_fwd.12} parent=5 // pred_fallthru
      _
  $region6: #{shufflenet_fwd.12} parent=0 // loop_footer
    %s17 = sadd.s32 1, %s13
  $region7: #{shufflenet_fwd.12} parent=0 // loop_footer_branch
    %12 = sbr.rel target = $region3
  $region8: #{shufflenet_fwd.12} parent=0 // loop_exit
    _

// kernel: shufflenet_fwd.15
$region0: #{shufflenet_fwd.15}
  #allocation0 [shape = 'u32[]', space=smem, size = 0x4, offset = 0x4, fixed_abs, tag = 'smem constant byte address 0x4 - core index']
  #allocation1 [shape = 'u32[144,128]{1,0:T(1,128)}', space=vmem, size = 0x12000, scoped, tag = 'internal scratch']
  %s0 = inlined_call_operand.vmem [shape: f32[2,4,128], index: 0, kind: input, shape index: {}]
  %s1 = inlined_call_operand.vmem [shape: f32[128,10], index: 1, kind: input, shape index: {}]
  %s2 = inlined_call_operand.vmem [shape: f32[1,10], index: 2, kind: input, shape index: {}]
  %s3 = inlined_call_operand.hbm [shape: f32[2,10], index: 3, kind: output, shape index: {}]
  %s4 = sld [smem:[#allocation0]]
  $region22: #{shufflenet_fwd.15} parent=0
    _
  %s6 = ssub.s32 1, %s4
  %s7 = scalar_select 0, %s6, %s4
  $region1: #{shufflenet_fwd.15} parent=0
    #allocation2 [shape = 'u8[1024]{0}', space=vmem, size = 0x400, scoped, tag = 'output window, operand 0, single buffered']
    #allocation3 [shape = 's32[1]{0}', space=sflag, size = 0x4, scoped, tag = 'scoped memory for shufflenet_fwd.15']
    %8 = vsyncpa [#allocation3], 0
    // Predicated region
    $region2: #{shufflenet_fwd.15} parent=1 // pred_check
      _
    $region3: #{shufflenet_fwd.15} parent=1 // pred_check_branch
      %10 = sbr.rel (0) target = $region5
    $region4: #{shufflenet_fwd.15} parent=1 // pred_region
      _
    $region5: #{shufflenet_fwd.15} parent=1 // pred_fallthru
      _
    // Predicated region
    $region6: #{shufflenet_fwd.15} parent=1 // pred_check
      _
    $region7: #{shufflenet_fwd.15} parent=1 // pred_check_branch
      %12 = sbr.rel (0) target = $region9
    $region8: #{shufflenet_fwd.15} parent=1 // pred_region
      _
    $region9: #{shufflenet_fwd.15} parent=1 // pred_fallthru
      _
    // Predicated region
    $region10: #{shufflenet_fwd.15} parent=1 // pred_check
      _
    $region11: #{shufflenet_fwd.15} parent=1 // pred_check_branch
      %14 = sbr.rel (0) target = $region13
    $region12: #{shufflenet_fwd.15} parent=1 // pred_region
      _
    $region13: #{shufflenet_fwd.15} parent=1 // pred_fallthru
      _
    %v15 = vld [vmem:[%s0] sm:$0xf]
    %v16 = vld [vmem:[%s0 + $0x4] sm:$0xf]
    %vm17 = vcmask 1043456
    %v18 = vsel %vm17, %v15, 0.0
    %v19 = vrot.slane %v18, 4
    %v20 = vadd.f32 %v18, %v19
    %v21 = vrot.slane %v20, 2
    %v22 = vadd.f32 %v20, %v21
    %v23 = vrot.slane %v22, 1
    %v24 = vadd.f32 %v22, %v23
    %v25 = vsel %vm17, %v16, 0.0
    %v26 = vrot.slane %v25, 4
    %v27 = vadd.f32 %v25, %v26
    %v28 = vrot.slane %v27, 2
    %v29 = vadd.f32 %v27, %v28
    %v30 = vrot.slane %v29, 1
    %v31 = vadd.f32 %v29, %v30
    %v32 = vrcp.pop 4.0
    %v33 = vmul.f32 %v24, %v32
    %v34 = vmul.f32 %v31, %v32
    %v35 = vld [vmem:[%s1] sm:$0xff]
    %v36 = vld [vmem:[%s1 + $0x8] sm:$0xff]
    %v37 = vld [vmem:[%s1 + $0x10] sm:$0xff]
    %v38 = vld [vmem:[%s1 + $0x18] sm:$0xff]
    %v39 = vld [vmem:[%s1 + $0x20] sm:$0xff]
    %v40 = vld [vmem:[%s1 + $0x28] sm:$0xff]
    %v41 = vld [vmem:[%s1 + $0x30] sm:$0xff]
    %v42 = vld [vmem:[%s1 + $0x38] sm:$0xff]
    %v43 = vld [vmem:[%s1 + $0x40] sm:$0xff]
    %v44 = vld [vmem:[%s1 + $0x48] sm:$0xff]
    %v45 = vld [vmem:[%s1 + $0x50] sm:$0xff]
    %v46 = vld [vmem:[%s1 + $0x58] sm:$0xff]
    %v47 = vld [vmem:[%s1 + $0x60] sm:$0xff]
    %v48 = vld [vmem:[%s1 + $0x68] sm:$0xff]
    %v49 = vld [vmem:[%s1 + $0x70] sm:$0xff]
    %v50 = vld [vmem:[%s1 + $0x78] sm:$0xff]
    %v51 = vld [vmem:[%s2] sm:$0x1]
    %v53 = vlaneseq
    %v54 = vshrl.u32 %v53, 7
    %v55 = vsub.s32 0, %v54
    %v56 = vrot.slane %v51, %v55
    %vm60 = vcmask 1041409
    %v61 = vsel %vm60, %v34, %v33
    %63 = vmatprep.subr.mxu0 0.0
    %64 = vmatpush1.msra.mxu0 %v35
    %65 = vmatprep.subr.mxu0 0.0
    %66 = vmatpush1.msra.mxu0 %v36
    %67 = vmatprep.subr.mxu0 0.0
    %68 = vmatpush1.msra.mxu0 %v37
    %69 = vmatprep.subr.mxu0 0.0
    %70 = vmatpush1.msra.mxu0 %v38
    %71 = vmatprep.subr.mxu0 0.0
    %72 = vmatpush1.msra.mxu0 %v39
    %73 = vmatprep.subr.mxu0 0.0
    %74 = vmatpush1.msra.mxu0 %v40
    %75 = vmatprep.subr.mxu0 0.0
    %76 = vmatpush1.msra.mxu0 %v41
    %77 = vmatprep.subr.mxu0 0.0
    %78 = vmatpush1.msra.mxu0 %v42
    %79 = vmatprep.subr.mxu0 0.0
    %80 = vmatpush1.msra.mxu0 %v43
    %81 = vmatprep.subr.mxu0 0.0
    %82 = vmatpush1.msra.mxu0 %v44
    %83 = vmatprep.subr.mxu0 0.0
    %84 = vmatpush1.msra.mxu0 %v45
    %85 = vmatprep.subr.mxu0 0.0
    %86 = vmatpush1.msra.mxu0 %v46
    %87 = vmatprep.subr.mxu0 0.0
    %88 = vmatpush1.msra.mxu0 %v47
    %89 = vmatprep.subr.mxu0 0.0
    %90 = vmatpush1.msra.mxu0 %v48
    %91 = vmatprep.subr.mxu0 0.0
    %92 = vmatpush1.msra.mxu0 %v49
    %93 = vmatprep.subr.mxu0 0.0
    %94 = vmatpush1.msra.mxu0 %v50
    %95 = vmatprep.subr.mxu0 0.0
    %96 = vmatpush1.msra.mxu0 0.0
    %97 = vmatprep.subr.mxu0 0.0
    %98 = vmatpush1.msra.mxu0 0.0
    %99 = vmatprep.subr.mxu0 0.0
    %100 = vmatpush1.msra.mxu0 0.0
    %101 = vmatprep.subr.mxu0 0.0
    %102 = vmatpush1.msra.mxu0 0.0
    %103 = vmatprep.subr.mxu0 0.0
    %104 = vmatpush1.msra.mxu0 0.0
    %105 = vmatprep.subr.mxu0 0.0
    %106 = vmatpush1.msra.mxu0 0.0
    %107 = vmatprep.subr.mxu0 0.0
    %108 = vmatpush1.msra.mxu0 0.0
    %109 = vmatprep.subr.mxu0 0.0
    %110 = vmatpush1.msra.mxu0 0.0
    %111 = vmatprep.subr.mxu0 0.0
    %112 = vmatpush1.msra.mxu0 0.0
    %113 = vmatprep.subr.mxu0 0.0
    %114 = vmatpush1.msra.mxu0 0.0
    %115 = vmatprep.subr.mxu0 0.0
    %116 = vmatpush1.msra.mxu0 0.0
    %117 = vmatprep.subr.mxu0 0.0
    %118 = vmatpush1.msra.mxu0 0.0
    %119 = vmatprep.subr.mxu0 0.0
    %120 = vmatpush1.msra.mxu0 0.0
    %121 = vmatprep.subr.mxu0 0.0
    %122 = vmatpush1.msra.mxu0 0.0
    %123 = vmatprep.subr.mxu0 0.0
    %124 = vmatpush1.msra.mxu0 0.0
    %125 = vmatprep.subr.mxu0 0.0
    %126 = vmatpush1.msra.mxu0 0.0
    %127 = vmatprep.mubr.f32.mxu0 0.0
    %128 = vmatmul.mubr.f32.gmra.mrb[0].mxu0 %v61
    %v129 = vpop.f32.mrb[0].mxu0
    %v130 = vadd.f32 %v56, %v129
    %v131 = vpop.f32.mrb[0].mxu0
    %132 = vdwg.mxu0
    %vm133 = vcmask 74752
    %134 = vst.msk [vmem:[#allocation2] sm:$0x3] %vm133, %v130
    // Predicated region
    $region14: #{shufflenet_fwd.15} parent=1 // pred_check
      _
    $region15: #{shufflenet_fwd.15} parent=1 // pred_check_branch
      %136 = sbr.rel (0) target = $region17
    $region16: #{shufflenet_fwd.15} parent=1 // pred_region
      %s138 = ssub.s32 32, 32
      %139 = vsyncadd [#allocation3], %s138
      %s141 = sshll.u32 [#allocation2], 4
      %s142 = int_to_ptr.vmem [resolvable:$true] %s141
      %144 = dma.vmem_to_hbm [thread:$0]  %s142, 32, %s3, [#allocation3]
    $region17: #{shufflenet_fwd.15} parent=1 // pred_fallthru
      _
    // Predicated region
    $region18: #{shufflenet_fwd.15} parent=1 // pred_check
      _
    $region19: #{shufflenet_fwd.15} parent=1 // pred_check_branch
      %146 = sbr.rel (0) target = $region21
    $region20: #{shufflenet_fwd.15} parent=1 // pred_region
      %147 = dma.done [#allocation3], 32
    $region21: #{shufflenet_fwd.15} parent=1 // pred_fallthru
      _
    %148 = vsyncpa [#allocation3], 1

// kernel: shufflenet_fwd.14
$region0: #{shufflenet_fwd.14}
  #allocation0 [shape = 'u32[]', space=smem, size = 0x4, offset = 0x4, fixed_abs, tag = 'smem constant byte address 0x4 - core index']
  #allocation1 [shape = 'u32[144,128]{1,0:T(1,128)}', space=vmem, size = 0x12000, scoped, tag = 'internal scratch']
  #allocation2 [shape = 'f32[1,4,4,32]{3,2,1,0:T(4,128)}', space=vmem, size = 0x2000, scoped, tag = 'scratch operand']
  %s0 = inlined_call_operand.vmem [shape: f32[2,2,2,128], index: 0, kind: input, shape index: {}]
  %s1 = inlined_call_operand.vmem [shape: f32[128,32], index: 1, kind: input, shape index: {}]
  %s2 = inlined_call_operand.vmem [shape: f32[1,32], index: 2, kind: input, shape index: {}]
  %s3 = inlined_call_operand.vmem [shape: f32[9,32], index: 3, kind: input, shape index: {}]
  %s4 = inlined_call_operand.vmem [shape: f32[1,32], index: 4, kind: input, shape index: {}]
  %s5 = inlined_call_operand.vmem [shape: f32[32,128], index: 5, kind: input, shape index: {}]
  %s6 = inlined_call_operand.vmem [shape: f32[1,128], index: 6, kind: input, shape index: {}]
  %s7 = inlined_call_operand.vmem [shape: f32[2,2,2,128], index: 7, kind: output, shape index: {}]
  %s8 = sld [smem:[#allocation0]]
  $region61: #{shufflenet_fwd.14} parent=0
    _
  %s10 = ssub.s32 1, %s8
  %s11 = scalar_select 0, %s10, %s8
  loop: start=0, step=1, limit=4
  $region2: #{shufflenet_fwd.14} parent=0 // loop_pre_header
    _
  $region3: #{shufflenet_fwd.14} parent=0 // loop_header
    %s13 = sphi 0, %s17
    %p14 = scmp.ge.s32.totalorder %s13, 4
    %s23 = sphi 0, %s25
    %s26 = sphi 0, %s23
    %s27 = sphi 0, %s26
    %s43 = sphi 0, %s27
    %s47 = sphi 0, %s47
    %s49 = sphi 0, %s47
    %s50 = sphi 0, %s49
    %s64 = sphi 0, %s50
    %s68 = sphi 0, %s68
    %s70 = sphi 0, %s68
    %s71 = sphi 0, %s70
    %s85 = sphi 0, %s71
    %s89 = sphi 0, %s89
    %s91 = sphi 0, %s89
    %s92 = sphi 0, %s91
    %s106 = sphi 0, %s92
    %s110 = sphi 0, %s110
    %s112 = sphi 0, %s110
    %s113 = sphi 0, %s112
    %s127 = sphi 0, %s113
    %s131 = sphi 0, %s131
    %s133 = sphi 0, %s131
    %s134 = sphi 0, %s133
    %s148 = sphi 0, %s134
    %s152 = sphi 0, %s152
    %s154 = sphi 0, %s152
    %s155 = sphi 0, %s154
    %s169 = sphi 0, %s155
    %s175 = sphi 0, %s177
    %s178 = sphi 0, %s175
    %s179 = sphi 0, %s178
    %s195 = sphi 0, %s179
  $region4: #{shufflenet_fwd.14} parent=0 // loop_header_branch
    %16 = sbr.rel (%p14) target = $region8
  $region5: #{shufflenet_fwd.14} parent=0 // loop_body
    %s18 = ssub.s32 %s13, 1
    %s19 = ssub.s32 %s13, 2
    %s20 = sadd.s32 %s13, 1
    %s21 = ssub.s32 %s13, %s20
    %p22 = scmp.eq.s32.totalorder %s21, 0
    %s24 = sadd.s32 %s23, 1
    %s25 = scalar_select %p22, %s23, %s24
    %p28 = pneg %p22
    %p29 = scmp.eq.s32.totalorder %s13, 1
    %p30 = por %p28, %p29
    %p31 = scmp.ne.s32.totalorder %s23, %s26
    %p32 = scmp.eq.s32.totalorder %s13, 0
    %p33 = por %p31, %p32
    %p34 = scmp.ne.s32.totalorder %s23, %s26
    %p35 = scmp.eq.s32.totalorder %s18, 1
    %p36 = por %p34, %p35
    %p37 = scmp.ne.s32.totalorder %s26, %s27
    %p38 = scmp.eq.s32.totalorder %s18, 0
    %p39 = por %p37, %p38
    %p40 = scmp.ne.s32.totalorder %s26, %s27
    %p41 = scmp.eq.s32.totalorder %s19, 1
    %p42 = por %p40, %p41
    %p44 = scmp.ne.s32.totalorder %s27, %s43
    %p45 = scmp.eq.s32.totalorder %s19, 0
    %p46 = por %p44, %p45
    %s48 = sadd.s32 %s47, 1
    %p51 = scmp.eq.s32.totalorder %s13, 1
    %p52 = scmp.ne.s32.totalorder %s47, %s49
    %p53 = scmp.eq.s32.totalorder %s13, 0
    %p54 = por %p52, %p53
    %p55 = scmp.ne.s32.totalorder %s47, %s49
    %p56 = scmp.eq.s32.totalorder %s18, 1
    %p57 = por %p55, %p56
    %p58 = scmp.ne.s32.totalorder %s49, %s50
    %p59 = scmp.eq.s32.totalorder %s18, 0
    %p60 = por %p58, %p59
    %p61 = scmp.ne.s32.totalorder %s49, %s50
    %p62 = scmp.eq.s32.totalorder %s19, 1
    %p63 = por %p61, %p62
    %p65 = scmp.ne.s32.totalorder %s50, %s64
    %p66 = scmp.eq.s32.totalorder %s19, 0
    %p67 = por %p65, %p66
    %s69 = sadd.s32 %s68, 1
    %p72 = scmp.eq.s32.totalorder %s13, 1
    %p73 = scmp.ne.s32.totalorder %s68, %s70
    %p74 = scmp.eq.s32.totalorder %s13, 0
    %p75 = por %p73, %p74
    %p76 = scmp.ne.s32.totalorder %s68, %s70
    %p77 = scmp.eq.s32.totalorder %s18, 1
    %p78 = por %p76, %p77
    %p79 = scmp.ne.s32.totalorder %s70, %s71
    %p80 = scmp.eq.s32.totalorder %s18, 0
    %p81 = por %p79, %p80
    %p82 = scmp.ne.s32.totalorder %s70, %s71
    %p83 = scmp.eq.s32.totalorder %s19, 1
    %p84 = por %p82, %p83
    %p86 = scmp.ne.s32.totalorder %s71, %s85
    %p87 = scmp.eq.s32.totalorder %s19, 0
    %p88 = por %p86, %p87
    %s90 = sadd.s32 %s89, 1
    %p93 = scmp.eq.s32.totalorder %s13, 1
    %p94 = scmp.ne.s32.totalorder %s89, %s91
    %p95 = scmp.eq.s32.totalorder %s13, 0
    %p96 = por %p94, %p95
    %p97 = scmp.ne.s32.totalorder %s89, %s91
    %p98 = scmp.eq.s32.totalorder %s18, 1
    %p99 = por %p97, %p98
    %p100 = scmp.ne.s32.totalorder %s91, %s92
    %p101 = scmp.eq.s32.totalorder %s18, 0
    %p102 = por %p100, %p101
    %p103 = scmp.ne.s32.totalorder %s91, %s92
    %p104 = scmp.eq.s32.totalorder %s19, 1
    %p105 = por %p103, %p104
    %p107 = scmp.ne.s32.totalorder %s92, %s106
    %p108 = scmp.eq.s32.totalorder %s19, 0
    %p109 = por %p107, %p108
    %s111 = sadd.s32 %s110, 1
    %p114 = scmp.eq.s32.totalorder %s13, 1
    %p115 = scmp.ne.s32.totalorder %s110, %s112
    %p116 = scmp.eq.s32.totalorder %s13, 0
    %p117 = por %p115, %p116
    %p118 = scmp.ne.s32.totalorder %s110, %s112
    %p119 = scmp.eq.s32.totalorder %s18, 1
    %p120 = por %p118, %p119
    %p121 = scmp.ne.s32.totalorder %s112, %s113
    %p122 = scmp.eq.s32.totalorder %s18, 0
    %p123 = por %p121, %p122
    %p124 = scmp.ne.s32.totalorder %s112, %s113
    %p125 = scmp.eq.s32.totalorder %s19, 1
    %p126 = por %p124, %p125
    %p128 = scmp.ne.s32.totalorder %s113, %s127
    %p129 = scmp.eq.s32.totalorder %s19, 0
    %p130 = por %p128, %p129
    %s132 = sadd.s32 %s131, 1
    %p135 = scmp.eq.s32.totalorder %s13, 1
    %p136 = scmp.ne.s32.totalorder %s131, %s133
    %p137 = scmp.eq.s32.totalorder %s13, 0
    %p138 = por %p136, %p137
    %p139 = scmp.ne.s32.totalorder %s131, %s133
    %p140 = scmp.eq.s32.totalorder %s18, 1
    %p141 = por %p139, %p140
    %p142 = scmp.ne.s32.totalorder %s133, %s134
    %p143 = scmp.eq.s32.totalorder %s18, 0
    %p144 = por %p142, %p143
    %p145 = scmp.ne.s32.totalorder %s133, %s134
    %p146 = scmp.eq.s32.totalorder %s19, 1
    %p147 = por %p145, %p146
    %p149 = scmp.ne.s32.totalorder %s134, %s148
    %p150 = scmp.eq.s32.totalorder %s19, 0
    %p151 = por %p149, %p150
    %s153 = sadd.s32 %s152, 1
    %p156 = scmp.eq.s32.totalorder %s13, 1
    %p157 = scmp.ne.s32.totalorder %s152, %s154
    %p158 = scmp.eq.s32.totalorder %s13, 0
    %p159 = por %p157, %p158
    %p160 = scmp.ne.s32.totalorder %s152, %s154
    %p161 = scmp.eq.s32.totalorder %s18, 1
    %p162 = por %p160, %p161
    %p163 = scmp.ne.s32.totalorder %s154, %s155
    %p164 = scmp.eq.s32.totalorder %s18, 0
    %p165 = por %p163, %p164
    %p166 = scmp.ne.s32.totalorder %s154, %s155
    %p167 = scmp.eq.s32.totalorder %s19, 1
    %p168 = por %p166, %p167
    %p170 = scmp.ne.s32.totalorder %s155, %s169
    %p171 = scmp.eq.s32.totalorder %s19, 0
    %p172 = por %p170, %p171
    %s173 = ssub.s32 %s13, %s20
    %p174 = scmp.eq.s32.totalorder %s173, 0
    %s176 = sadd.s32 %s175, 1
    %s177 = scalar_select %p174, %s175, %s176
    %p180 = pneg %p174
    %p181 = scmp.eq.s32.totalorder %s13, 1
    %p182 = por %p180, %p181
    %p183 = scmp.ne.s32.totalorder %s175, %s178
    %p184 = scmp.eq.s32.totalorder %s13, 0
    %p185 = por %p183, %p184
    %p186 = scmp.ne.s32.totalorder %s175, %s178
    %p187 = scmp.eq.s32.totalorder %s18, 1
    %p188 = por %p186, %p187
    %p189 = scmp.ne.s32.totalorder %s178, %s179
    %p190 = scmp.eq.s32.totalorder %s18, 0
    %p191 = por %p189, %p190
    %p192 = scmp.ne.s32.totalorder %s178, %s179
    %p193 = scmp.eq.s32.totalorder %s19, 1
    %p194 = por %p192, %p193
    %p196 = scmp.ne.s32.totalorder %s179, %s195
    %p197 = scmp.eq.s32.totalorder %s19, 0
    %p198 = por %p196, %p197
    %p199 = scmp.le.s32.totalorder 1, %s13
    %p200 = scmp.lt.s32.totalorder %s13, 3
    %p201 = pnand %p199, %p200
    %p202 = pneg %p201
    // Predicated region
    $region9: #{shufflenet_fwd.14} parent=5 // pred_check
      _
    $region10: #{shufflenet_fwd.14} parent=5 // pred_check_branch
      %204 = sbr.rel (%p201) target = $region12
    $region11: #{shufflenet_fwd.14} parent=5 // pred_region
      %s205 = ssub.s32 %s13, 1
      // Predicated region
      $region13: #{shufflenet_fwd.14} parent=11 // pred_check
        %p206 = pneg %p60
      $region14: #{shufflenet_fwd.14} parent=11 // pred_check_branch
        %208 = sbr.rel (%p206) target = $region16
      $region15: #{shufflenet_fwd.14} parent=11 // pred_region
        _
      $region16: #{shufflenet_fwd.14} parent=11 // pred_fallthru
        _
      // Predicated region
      $region17: #{shufflenet_fwd.14} parent=11 // pred_check
        %p209 = pneg %p81
      $region18: #{shufflenet_fwd.14} parent=11 // pred_check_branch
        %211 = sbr.rel (%p209) target = $region20
      $region19: #{shufflenet_fwd.14} parent=11 // pred_region
        _
      $region20: #{shufflenet_fwd.14} parent=11 // pred_fallthru
        _
      // Predicated region
      $region21: #{shufflenet_fwd.14} parent=11 // pred_check
        %p212 = pneg %p102
      $region22: #{shufflenet_fwd.14} parent=11 // pred_check_branch
        %214 = sbr.rel (%p212) target = $region24
      $region23: #{shufflenet_fwd.14} parent=11 // pred_region
        _
      $region24: #{shufflenet_fwd.14} parent=11 // pred_fallthru
        _
      // Predicated region
      $region25: #{shufflenet_fwd.14} parent=11 // pred_check
        %p215 = pneg %p123
      $region26: #{shufflenet_fwd.14} parent=11 // pred_check_branch
        %217 = sbr.rel (%p215) target = $region28
      $region27: #{shufflenet_fwd.14} parent=11 // pred_region
        _
      $region28: #{shufflenet_fwd.14} parent=11 // pred_fallthru
        _
      // Predicated region
      $region29: #{shufflenet_fwd.14} parent=11 // pred_check
        %p218 = pneg %p144
      $region30: #{shufflenet_fwd.14} parent=11 // pred_check_branch
        %220 = sbr.rel (%p218) target = $region32
      $region31: #{shufflenet_fwd.14} parent=11 // pred_region
        _
      $region32: #{shufflenet_fwd.14} parent=11 // pred_fallthru
        _
      // Predicated region
      $region33: #{shufflenet_fwd.14} parent=11 // pred_check
        %p221 = pneg %p165
      $region34: #{shufflenet_fwd.14} parent=11 // pred_check_branch
        %223 = sbr.rel (%p221) target = $region36
      $region35: #{shufflenet_fwd.14} parent=11 // pred_region
        _
      $region36: #{shufflenet_fwd.14} parent=11 // pred_fallthru
        _
    $region12: #{shufflenet_fwd.14} parent=5 // pred_fallthru
      _
    %p224 = scmp.lt.s32.totalorder %s13, 2
    // Predicated region
    $region37: #{shufflenet_fwd.14} parent=5 // pred_check
      %p225 = pneg %p224
    $region38: #{shufflenet_fwd.14} parent=5 // pred_check_branch
      %227 = sbr.rel (%p225) target = $region40
    $region39: #{shufflenet_fwd.14} parent=5 // pred_region
      // Predicated region
      $region41: #{shufflenet_fwd.14} parent=39 // pred_check
        %p228 = pneg %p33
      $region42: #{shufflenet_fwd.14} parent=39 // pred_check_branch
        %230 = sbr.rel (%p228) target = $region44
      $region43: #{shufflenet_fwd.14} parent=39 // pred_region
        %p231 = scmp.lt.s32.totalorder %s13, 1
        %s232 = scalar_select %p231, %s13, 1
        %s233 = smul.addr %s232, 2
        %s234 = smul.addr %s233, 2
        %s235 = scalar_lea.vmem %s0, %s234
      $region44: #{shufflenet_fwd.14} parent=39 // pred_fallthru
        _
    $region40: #{shufflenet_fwd.14} parent=5 // pred_fallthru
      _
    %p236 = scmp.le.s32.totalorder 1, %s13
    %p237 = scmp.lt.s32.totalorder %s13, 3
    %p238 = pnand %p236, %p237
    %p239 = pneg %p238
    // Predicated region
    $region45: #{shufflenet_fwd.14} parent=5 // pred_check
      _
    $region46: #{shufflenet_fwd.14} parent=5 // pred_check_branch
      %241 = sbr.rel (%p238) target = $region48
    $region47: #{shufflenet_fwd.14} parent=5 // pred_region
      %s242 = ssub.s32 %s13, 1
      %p243 = scmp.lt.s32.totalorder %s18, 1
      %s244 = scalar_select %p243, %s18, 1
      %s245 = smul.addr %s244, 2
      %s246 = smul.addr %s245, 2
      %s247 = scalar_lea.vmem %s0, %s246
      %p248 = pneg %p39
      %p249 = pneg %p36
      %p250 = pneg %p60
      %p251 = pneg %p57
      %p252 = pneg %p81
      %p253 = pneg %p78
      %p254 = pneg %p102
      %p255 = pneg %p99
      %p256 = pneg %p123
      %p257 = pneg %p120
      %p258 = pneg %p144
      %p259 = pneg %p141
      %p260 = pneg %p165
      %p261 = pneg %p162
      %p262 = pneg %p191
      %p263 = pneg %p188
      %p264 = scmp.lt.s32.totalorder %s18, 1
      %s265 = scalar_select %p264, %s18, 1
      %s266 = smul.addr %s265, 2
      %s267 = smul.addr %s266, 2
      %s268 = scalar_lea.vmem %s7, %s267
      %p269 = scmp.lt.s32.totalorder %s18, 1
      %s270 = scalar_select %p269, %s18, 1
      %s271 = smul.addr %s270, 2
      %s272 = smul.addr %s271, 2
      %s273 = scalar_lea.vmem %s0, %s272
      %p274 = scmp.lt.s32.totalorder %s18, 1
      %s275 = scalar_select %p274, %s18, 1
      %s276 = smul.addr %s275, 2
      %s277 = smul.addr %s276, 2
      %s278 = scalar_lea.vmem %s7, %s277
      %v279 = vld [vmem:[%s273] sm:$0x3]
      %v280 = vld [vmem:[%s273 + $0x2] sm:$0x3]
      %v281 = vld [vmem:[%s1] sm:$0xff]
      %v282 = vld [vmem:[%s1 + $0x8] sm:$0xff]
      %v283 = vld [vmem:[%s1 + $0x10] sm:$0xff]
      %v284 = vld [vmem:[%s1 + $0x18] sm:$0xff]
      %v285 = vld [vmem:[%s1 + $0x20] sm:$0xff]
      %v286 = vld [vmem:[%s1 + $0x28] sm:$0xff]
      %v287 = vld [vmem:[%s1 + $0x30] sm:$0xff]
      %v288 = vld [vmem:[%s1 + $0x38] sm:$0xff]
      %v289 = vld [vmem:[%s1 + $0x40] sm:$0xff]
      %v290 = vld [vmem:[%s1 + $0x48] sm:$0xff]
      %v291 = vld [vmem:[%s1 + $0x50] sm:$0xff]
      %v292 = vld [vmem:[%s1 + $0x58] sm:$0xff]
      %v293 = vld [vmem:[%s1 + $0x60] sm:$0xff]
      %v294 = vld [vmem:[%s1 + $0x68] sm:$0xff]
      %v295 = vld [vmem:[%s1 + $0x70] sm:$0xff]
      %v296 = vld [vmem:[%s1 + $0x78] sm:$0xff]
      %v297 = vld [vmem:[%s2] sm:$0x1]
      %v299 = vlaneseq
      %v300 = vshrl.u32 %v299, 7
      %v301 = vsub.s32 0, %v300
      %v302 = vrot.slane %v297, %v301
      %v305 = vcombine.low %v279, %v280
      %v307 = vunpack.c.l.s4 1983009808
      %v308 = vunpack.c.0.s8 %v307
      %v309 = vlaneseq
      %v310 = vshrl.u32 %v309, 7
      %v311 = vsub.s32 %v308, %v310
      %v312 = vrot.slane %v305, %v311
      %v314 = vcombine.low %v302, %v302
      %v316 = vunpack.c.l.s4 1983009808
      %v317 = vunpack.c.0.s8 %v316
      %v318 = vlaneseq
      %v319 = vshrl.u32 %v318, 7
      %v320 = vsub.s32 %v317, %v319
      %v321 = vrot.slane %v314, %v320
      %323 = vmatprep.subr.mxu0 0.0
      %324 = vmatpush1.msra.mxu0 %v281
      %325 = vmatprep.subr.mxu0 0.0
      %326 = vmatpush1.msra.mxu0 %v282
      %327 = vmatprep.subr.mxu0 0.0
      %328 = vmatpush1.msra.mxu0 %v283
      %329 = vmatprep.subr.mxu0 0.0
      %330 = vmatpush1.msra.mxu0 %v284
      %331 = vmatprep.subr.mxu0 0.0
      %332 = vmatpush1.msra.mxu0 %v285
      %333 = vmatprep.subr.mxu0 0.0
      %334 = vmatpush1.msra.mxu0 %v286
      %335 = vmatprep.subr.mxu0 0.0
      %336 = vmatpush1.msra.mxu0 %v287
      %337 = vmatprep.subr.mxu0 0.0
      %338 = vmatpush1.msra.mxu0 %v288
      %339 = vmatprep.subr.mxu0 0.0
      %340 = vmatpush1.msra.mxu0 %v289
      %341 = vmatprep.subr.mxu0 0.0
      %342 = vmatpush1.msra.mxu0 %v290
      %343 = vmatprep.subr.mxu0 0.0
      %344 = vmatpush1.msra.mxu0 %v291
      %345 = vmatprep.subr.mxu0 0.0
      %346 = vmatpush1.msra.mxu0 %v292
      %347 = vmatprep.subr.mxu0 0.0
      %348 = vmatpush1.msra.mxu0 %v293
      %349 = vmatprep.subr.mxu0 0.0
      %350 = vmatpush1.msra.mxu0 %v294
      %351 = vmatprep.subr.mxu0 0.0
      %352 = vmatpush1.msra.mxu0 %v295
      %353 = vmatprep.subr.mxu0 0.0
      %354 = vmatpush1.msra.mxu0 %v296
      %355 = vmatprep.subr.mxu0 0.0
      %356 = vmatpush1.msra.mxu0 0.0
      %357 = vmatprep.subr.mxu0 0.0
      %358 = vmatpush1.msra.mxu0 0.0
      %359 = vmatprep.subr.mxu0 0.0
      %360 = vmatpush1.msra.mxu0 0.0
      %361 = vmatprep.subr.mxu0 0.0
      %362 = vmatpush1.msra.mxu0 0.0
      %363 = vmatprep.subr.mxu0 0.0
      %364 = vmatpush1.msra.mxu0 0.0
      %365 = vmatprep.subr.mxu0 0.0
      %366 = vmatpush1.msra.mxu0 0.0
      %367 = vmatprep.subr.mxu0 0.0
      %368 = vmatpush1.msra.mxu0 0.0
      %369 = vmatprep.subr.mxu0 0.0
      %370 = vmatpush1.msra.mxu0 0.0
      %371 = vmatprep.subr.mxu0 0.0
      %372 = vmatpush1.msra.mxu0 0.0
      %373 = vmatprep.subr.mxu0 0.0
      %374 = vmatpush1.msra.mxu0 0.0
      %375 = vmatprep.subr.mxu0 0.0
      %376 = vmatpush1.msra.mxu0 0.0
      %377 = vmatprep.subr.mxu0 0.0
      %378 = vmatpush1.msra.mxu0 0.0
      %379 = vmatprep.subr.mxu0 0.0
      %380 = vmatpush1.msra.mxu0 0.0
      %381 = vmatprep.subr.mxu0 0.0
      %382 = vmatpush1.msra.mxu0 0.0
      %383 = vmatprep.subr.mxu0 0.0
      %384 = vmatpush1.msra.mxu0 0.0
      %385 = vmatprep.subr.mxu0 0.0
      %386 = vmatpush1.msra.mxu0 0.0
      %387 = vmatprep.mubr.f32.mxu0 0.0
      %388 = vmatmul.mubr.f32.gmra.mrb[0].mxu0 %v312
      %v389 = vpop.f32.mrb[0].mxu0
      %v390 = vadd.f32 %v321, %v389
      %v391 = vpop.f32.mrb[0].mxu0
      %392 = vdwg.mxu0
      %v395 = vunpack.c.l.s4 1983009808
      %v396 = vunpack.c.0.s8 %v395
      %v397 = vlaneseq
      %v398 = vshrl.u32 %v397, 7
      %v399 = vsub.s32 %v396, %v398
      %v400 = vrot.slane %v390, %v399
      %v401 = vcombine.high %v400, %v400
      %v404 = vmax.f32 %v400, 0.0
      %v405 = vmax.f32 %v401, 0.0
      %vm406 = vcmask 257024
      %407 = vst.msk [vmem:[#allocation2] sm:$0xf] %vm406, 0.0
      %408 = vst.msk [vmem:[#allocation2 + $0x4] sm:$0xf] %vm406, 0.0
      %409 = vst.msk [vmem:[#allocation2 + $0x8] sm:$0xf] %vm406, 0.0
      %410 = vst.msk [vmem:[#allocation2 + $0xc] sm:$0xf] %vm406, 0.0
      %s411 = scalar_lea.vmem [#allocation2], 4
      %vm412 = vcmask 254976
      %413 = vst.msk [vmem:[%s411 + $0x1] sm:$0x3] %vm412, %v404
      %414 = vst.msk [vmem:[%s411 + $0x5] sm:$0x3] %vm412, %v405
      %v415 = vld [vmem:[#allocation2] sm:$0x3]
      %v416 = vld [vmem:[#allocation2 + $0x4] sm:$0x3]
      %v417 = vld [vmem:[%s3] sm:$0x1]
      %v418 = vlaneseq
      %v419 = vshrl.u32 %v418, 7
      %v420 = vsub.s32 0, %v419
      %v421 = vrot.slane %v417, %v420
      %v422 = vmul.f32 %v415, %v421
      %v423 = vmul.f32 %v416, %v421
      %v424 = vld [vmem:[#allocation2 + $0x1] sm:$0x3]
      %v425 = vld [vmem:[#allocation2 + $0x5] sm:$0x3]
      %v426 = vld [vmem:[%s3 + $0x1] sm:$0x1]
      %v427 = vlaneseq
      %v428 = vshrl.u32 %v427, 7
      %v429 = vsub.s32 0, %v428
      %v430 = vrot.slane %v426, %v429
      %v431 = vmul.f32 %v424, %v430
      %v432 = vmul.f32 %v425, %v430
      %v433 = vadd.f32 %v422, %v431
      %v434 = vadd.f32 %v423, %v432
      %v435 = vld [vmem:[#allocation2 + $0x2] sm:$0x3]
      %v436 = vld [vmem:[#allocation2 + $0x6] sm:$0x3]
      %v437 = vld [vmem:[%s3 + $0x2] sm:$0x1]
      %v438 = vlaneseq
      %v439 = vshrl.u32 %v438, 7
      %v440 = vsub.s32 0, %v439
      %v441 = vrot.slane %v437, %v440
      %v442 = vmul.f32 %v435, %v441
      %v443 = vmul.f32 %v436, %v441
      %v444 = vadd.f32 %v433, %v442
      %v445 = vadd.f32 %v434, %v443
      %v446 = vld [vmem:[%s411] sm:$0x3]
      %v447 = vld [vmem:[%s411 + $0x4] sm:$0x3]
      %v448 = vld [vmem:[%s3 + $0x3] sm:$0x1]
      %v449 = vlaneseq
      %v450 = vshrl.u32 %v449, 7
      %v451 = vsub.s32 0, %v450
      %v452 = vrot.slane %v448, %v451
      %v453 = vmul.f32 %v446, %v452
      %v454 = vmul.f32 %v447, %v452
      %v455 = vadd.f32 %v444, %v453
      %v456 = vadd.f32 %v445, %v454
      %v457 = vld [vmem:[%s411 + $0x1] sm:$0x3]
      %v458 = vld [vmem:[%s411 + $0x5] sm:$0x3]
      %v459 = vld [vmem:[%s3 + $0x4] sm:$0x1]
      %v460 = vlaneseq
      %v461 = vshrl.u32 %v460, 7
      %v462 = vsub.s32 0, %v461
      %v463 = vrot.slane %v459, %v462
      %v464 = vmul.f32 %v457, %v463
      %v465 = vmul.f32 %v458, %v463
      %v466 = vadd.f32 %v455, %v464
      %v467 = vadd.f32 %v456, %v465
      %v468 = vld [vmem:[%s411 + $0x2] sm:$0x3]
      %v469 = vld [vmem:[%s411 + $0x6] sm:$0x3]
      %v470 = vld [vmem:[%s3 + $0x5] sm:$0x1]
      %v471 = vlaneseq
      %v472 = vshrl.u32 %v471, 7
      %v473 = vsub.s32 0, %v472
      %v474 = vrot.slane %v470, %v473
      %v475 = vmul.f32 %v468, %v474
      %v476 = vmul.f32 %v469, %v474
      %v477 = vadd.f32 %v466, %v475
      %v478 = vadd.f32 %v467, %v476
      %s479 = scalar_lea.vmem [#allocation2], 8
      %v480 = vld [vmem:[%s479] sm:$0x3]
      %v481 = vld [vmem:[%s479 + $0x4] sm:$0x3]
      %v482 = vld [vmem:[%s3 + $0x6] sm:$0x1]
      %v483 = vlaneseq
      %v484 = vshrl.u32 %v483, 7
      %v485 = vsub.s32 0, %v484
      %v486 = vrot.slane %v482, %v485
      %v487 = vmul.f32 %v480, %v486
      %v488 = vmul.f32 %v481, %v486
      %v489 = vadd.f32 %v477, %v487
      %v490 = vadd.f32 %v478, %v488
      %v491 = vld [vmem:[%s479 + $0x1] sm:$0x3]
      %v492 = vld [vmem:[%s479 + $0x5] sm:$0x3]
      %v493 = vld [vmem:[%s3 + $0x7] sm:$0x1]
      %v494 = vlaneseq
      %v495 = vshrl.u32 %v494, 7
      %v496 = vsub.s32 0, %v495
      %v497 = vrot.slane %v493, %v496
      %v498 = vmul.f32 %v491, %v497
      %v499 = vmul.f32 %v492, %v497
      %v500 = vadd.f32 %v489, %v498
      %v501 = vadd.f32 %v490, %v499
      %v502 = vld [vmem:[%s479 + $0x2] sm:$0x3]
      %v503 = vld [vmem:[%s479 + $0x6] sm:$0x3]
      %v504 = vld [vmem:[%s3 + $0x8] sm:$0x1]
      %v505 = vlaneseq
      %v506 = vshrl.u32 %v505, 7
      %v507 = vsub.s32 0, %v506
      %v508 = vrot.slane %v504, %v507
      %v509 = vmul.f32 %v502, %v508
      %v510 = vmul.f32 %v503, %v508
      %v511 = vadd.f32 %v500, %v509
      %v512 = vadd.f32 %v501, %v510
      %v513 = vld [vmem:[%s4] sm:$0x1]
      %v515 = vlaneseq
      %v516 = vshrl.u32 %v515, 7
      %v517 = vsub.s32 0, %v516
      %v518 = vrot.slane %v513, %v517
      %v520 = vadd.f32 %v511, %v518
      %v521 = vadd.f32 %v512, %v518
      %v522 = vld [vmem:[%s5] sm:$0xff]
      %v523 = vld [vmem:[%s5 + $0x8] sm:$0xff]
      %v524 = vld [vmem:[%s5 + $0x10] sm:$0xff]
      %v525 = vld [vmem:[%s5 + $0x18] sm:$0xff]
      %v526 = vld [vmem:[%s6] sm:$0x1]
      %v528 = vlaneseq
      %v529 = vshrl.u32 %v528, 7
      %v530 = vsub.s32 0, %v529
      %v531 = vrot.slane %v526, %v530
      %v534 = vcombine.low %v520, %v521
      %v536 = vunpack.c.l.s4 1983009808
      %v537 = vunpack.c.0.s8 %v536
      %v538 = vlaneseq
      %v539 = vshrl.u32 %v538, 7
      %v540 = vsub.s32 %v537, %v539
      %v541 = vrot.slane %v534, %v540
      %v542 = vcombine.low %v531, %v531
      %v544 = vunpack.c.l.s4 1983009808
      %v545 = vunpack.c.0.s8 %v544
      %v546 = vlaneseq
      %v547 = vshrl.u32 %v546, 7
      %v548 = vsub.s32 %v545, %v547
      %v549 = vrot.slane %v542, %v548
      %vm551 = vcmask 261120
      %v552 = vsel %vm551, %v541, 0
      %554 = vmatprep.subr.mxu0 0.0
      %555 = vmatpush1.msra.mxu0 %v522
      %556 = vmatprep.subr.mxu0 0.0
      %557 = vmatpush1.msra.mxu0 %v523
      %558 = vmatprep.subr.mxu0 0.0
      %559 = vmatpush1.msra.mxu0 %v524
      %560 = vmatprep.subr.mxu0 0.0
      %561 = vmatpush1.msra.mxu0 %v525
      %562 = vmatprep.subr.mxu0 0.0
      %563 = vmatpush1.msra.mxu0 0.0
      %564 = vmatprep.subr.mxu0 0.0
      %565 = vmatpush1.msra.mxu0 0.0
      %566 = vmatprep.subr.mxu0 0.0
      %567 = vmatpush1.msra.mxu0 0.0
      %568 = vmatprep.subr.mxu0 0.0
      %569 = vmatpush1.msra.mxu0 0.0
      %570 = vmatprep.subr.mxu0 0.0
      %571 = vmatpush1.msra.mxu0 0.0
      %572 = vmatprep.subr.mxu0 0.0
      %573 = vmatpush1.msra.mxu0 0.0
      %574 = vmatprep.subr.mxu0 0.0
      %575 = vmatpush1.msra.mxu0 0.0
      %576 = vmatprep.subr.mxu0 0.0
      %577 = vmatpush1.msra.mxu0 0.0
      %578 = vmatprep.subr.mxu0 0.0
      %579 = vmatpush1.msra.mxu0 0.0
      %580 = vmatprep.subr.mxu0 0.0
      %581 = vmatpush1.msra.mxu0 0.0
      %582 = vmatprep.subr.mxu0 0.0
      %583 = vmatpush1.msra.mxu0 0.0
      %584 = vmatprep.subr.mxu0 0.0
      %585 = vmatpush1.msra.mxu0 0.0
      %586 = vmatprep.subr.mxu0 0.0
      %587 = vmatpush1.msra.mxu0 0.0
      %588 = vmatprep.subr.mxu0 0.0
      %589 = vmatpush1.msra.mxu0 0.0
      %590 = vmatprep.subr.mxu0 0.0
      %591 = vmatpush1.msra.mxu0 0.0
      %592 = vmatprep.subr.mxu0 0.0
      %593 = vmatpush1.msra.mxu0 0.0
      %594 = vmatprep.subr.mxu0 0.0
      %595 = vmatpush1.msra.mxu0 0.0
      %596 = vmatprep.subr.mxu0 0.0
      %597 = vmatpush1.msra.mxu0 0.0
      %598 = vmatprep.subr.mxu0 0.0
      %599 = vmatpush1.msra.mxu0 0.0
      %600 = vmatprep.subr.mxu0 0.0
      %601 = vmatpush1.msra.mxu0 0.0
      %602 = vmatprep.subr.mxu0 0.0
      %603 = vmatpush1.msra.mxu0 0.0
      %604 = vmatprep.subr.mxu0 0.0
      %605 = vmatpush1.msra.mxu0 0.0
      %606 = vmatprep.subr.mxu0 0.0
      %607 = vmatpush1.msra.mxu0 0.0
      %608 = vmatprep.subr.mxu0 0.0
      %609 = vmatpush1.msra.mxu0 0.0
      %610 = vmatprep.subr.mxu0 0.0
      %611 = vmatpush1.msra.mxu0 0.0
      %612 = vmatprep.subr.mxu0 0.0
      %613 = vmatpush1.msra.mxu0 0.0
      %614 = vmatprep.subr.mxu0 0.0
      %615 = vmatpush1.msra.mxu0 0.0
      %616 = vmatprep.subr.mxu0 0.0
      %617 = vmatpush1.msra.mxu0 0.0
      %618 = vmatprep.mubr.f32.mxu0 0.0
      %619 = vmatmul.mubr.f32.gmra.mrb[0].mxu0 %v552
      %v620 = vpop.f32.mrb[0].mxu0
      %v621 = vadd.f32 %v549, %v620
      %v622 = vpop.f32.mrb[0].mxu0
      %623 = vdwg.mxu0
      %v626 = vunpack.c.l.s4 1983009808
      %v627 = vunpack.c.0.s8 %v626
      %v628 = vlaneseq
      %v629 = vshrl.u32 %v628, 7
      %v630 = vsub.s32 %v627, %v629
      %v631 = vrot.slane %v621, %v630
      %v632 = vcombine.high %v631, %v631
      %v635 = vadd.f32 %v631, %v279
      %v636 = vadd.f32 %v632, %v280
      %v637 = vmax.f32 %v635, 0.0
      %v638 = vmax.f32 %v636, 0.0
      %639 = vst [vmem:[%s278] sm:$0x3] %v637
      %640 = vst [vmem:[%s278 + $0x2] sm:$0x3] %v638
      %p641 = scmp.lt.s32.totalorder %s18, 1
      %s642 = scalar_select %p641, %s18, 1
      %s643 = smul.addr %s642, 2
      %s644 = smul.addr %s643, 2
      %s645 = scalar_lea.vmem %s7, %s644
      // Predicated region
      $region49: #{shufflenet_fwd.14} parent=47 // pred_check
        %p646 = pneg %p188
      $region50: #{shufflenet_fwd.14} parent=47 // pred_check_branch
        %648 = sbr.rel (%p646) target = $region52
      $region51: #{shufflenet_fwd.14} parent=47 // pred_region
        _
      $region52: #{shufflenet_fwd.14} parent=47 // pred_fallthru
        _
    $region48: #{shufflenet_fwd.14} parent=5 // pred_fallthru
      _
    %p649 = scmp.le.s32.totalorder 2, %s13
    // Predicated region
    $region53: #{shufflenet_fwd.14} parent=5 // pred_check
      %p650 = pneg %p649
    $region54: #{shufflenet_fwd.14} parent=5 // pred_check_branch
      %652 = sbr.rel (%p650) target = $region56
    $region55: #{shufflenet_fwd.14} parent=5 // pred_region
      %s653 = ssub.s32 %s13, 2
      // Predicated region
      $region57: #{shufflenet_fwd.14} parent=55 // pred_check
        %p654 = pneg %p194
      $region58: #{shufflenet_fwd.14} parent=55 // pred_check_branch
        %656 = sbr.rel (%p654) target = $region60
      $region59: #{shufflenet_fwd.14} parent=55 // pred_region
        %p657 = scmp.lt.s32.totalorder %s19, 1
        %s658 = scalar_select %p657, %s19, 1
        %s659 = smul.addr %s658, 2
        %s660 = smul.addr %s659, 2
        %s661 = scalar_lea.vmem %s7, %s660
      $region60: #{shufflenet_fwd.14} parent=55 // pred_fallthru
        _
    $region56: #{shufflenet_fwd.14} parent=5 // pred_fallthru
      _
  $region6: #{shufflenet_fwd.14} parent=0 // loop_footer
    %s17 = sadd.s32 1, %s13
  $region7: #{shufflenet_fwd.14} parent=0 // loop_footer_branch
    %12 = sbr.rel target = $region3
  $region8: #{shufflenet_fwd.14} parent=0 // loop_exit
    _

// kernel: shufflenet_fwd.13
$region0: #{shufflenet_fwd.13}
  #allocation0 [shape = 'u32[]', space=smem, size = 0x4, offset = 0x4, fixed_abs, tag = 'smem constant byte address 0x4 - core index']
  #allocation1 [shape = 'u32[144,128]{1,0:T(1,128)}', space=vmem, size = 0x12000, scoped, tag = 'internal scratch']
  #allocation2 [shape = 'f32[1,3,3,128]{3,2,1,0:T(4,128)}', space=vmem, size = 0x1800, scoped, tag = 'scratch operand']
  #allocation3 [shape = 'f32[1,3,3,256]{3,2,1,0:T(4,128)}', space=vmem, size = 0x3000, scoped, tag = 'scratch operand']
  %s0 = inlined_call_operand.vmem [shape: f32[2,2,2,256], index: 0, kind: input, shape index: {}]
  %s1 = inlined_call_operand.vmem [shape: f32[256,128], index: 1, kind: input, shape index: {}]
  %s2 = inlined_call_operand.vmem [shape: f32[1,128], index: 2, kind: input, shape index: {}]
  %s3 = inlined_call_operand.vmem [shape: f32[9,32], index: 3, kind: input, shape index: {}]
  %s4 = inlined_call_operand.vmem [shape: f32[1,32], index: 4, kind: input, shape index: {}]
  %s5 = inlined_call_operand.vmem [shape: f32[32,64], index: 5, kind: input, shape index: {}]
  %s6 = inlined_call_operand.vmem [shape: f32[1,64], index: 6, kind: input, shape index: {}]
  %s7 = inlined_call_operand.vmem [shape: f32[2,2,2,128], index: 7, kind: output, shape index: {}]
  %s8 = sld [smem:[#allocation0]]
  $region61: #{shufflenet_fwd.13} parent=0
    _
  %s10 = ssub.s32 1, %s8
  %s11 = scalar_select 0, %s10, %s8
  loop: start=0, step=1, limit=4
  $region2: #{shufflenet_fwd.13} parent=0 // loop_pre_header
    _
  $region3: #{shufflenet_fwd.13} parent=0 // loop_header
    %s13 = sphi 0, %s17
    %p14 = scmp.ge.s32.totalorder %s13, 4
    %s23 = sphi 0, %s25
    %s26 = sphi 0, %s23
    %s27 = sphi 0, %s26
    %s43 = sphi 0, %s27
    %s47 = sphi 0, %s47
    %s49 = sphi 0, %s47
    %s50 = sphi 0, %s49
    %s64 = sphi 0, %s50
    %s68 = sphi 0, %s68
    %s70 = sphi 0, %s68
    %s71 = sphi 0, %s70
    %s85 = sphi 0, %s71
    %s89 = sphi 0, %s89
    %s91 = sphi 0, %s89
    %s92 = sphi 0, %s91
    %s106 = sphi 0, %s92
    %s110 = sphi 0, %s110
    %s112 = sphi 0, %s110
    %s113 = sphi 0, %s112
    %s127 = sphi 0, %s113
    %s131 = sphi 0, %s131
    %s133 = sphi 0, %s131
    %s134 = sphi 0, %s133
    %s148 = sphi 0, %s134
    %s152 = sphi 0, %s152
    %s154 = sphi 0, %s152
    %s155 = sphi 0, %s154
    %s169 = sphi 0, %s155
    %s175 = sphi 0, %s177
    %s178 = sphi 0, %s175
    %s179 = sphi 0, %s178
    %s195 = sphi 0, %s179
  $region4: #{shufflenet_fwd.13} parent=0 // loop_header_branch
    %16 = sbr.rel (%p14) target = $region8
  $region5: #{shufflenet_fwd.13} parent=0 // loop_body
    %s18 = ssub.s32 %s13, 1
    %s19 = ssub.s32 %s13, 2
    %s20 = sadd.s32 %s13, 1
    %s21 = ssub.s32 %s13, %s20
    %p22 = scmp.eq.s32.totalorder %s21, 0
    %s24 = sadd.s32 %s23, 1
    %s25 = scalar_select %p22, %s23, %s24
    %p28 = pneg %p22
    %p29 = scmp.eq.s32.totalorder %s13, 1
    %p30 = por %p28, %p29
    %p31 = scmp.ne.s32.totalorder %s23, %s26
    %p32 = scmp.eq.s32.totalorder %s13, 0
    %p33 = por %p31, %p32
    %p34 = scmp.ne.s32.totalorder %s23, %s26
    %p35 = scmp.eq.s32.totalorder %s18, 1
    %p36 = por %p34, %p35
    %p37 = scmp.ne.s32.totalorder %s26, %s27
    %p38 = scmp.eq.s32.totalorder %s18, 0
    %p39 = por %p37, %p38
    %p40 = scmp.ne.s32.totalorder %s26, %s27
    %p41 = scmp.eq.s32.totalorder %s19, 1
    %p42 = por %p40, %p41
    %p44 = scmp.ne.s32.totalorder %s27, %s43
    %p45 = scmp.eq.s32.totalorder %s19, 0
    %p46 = por %p44, %p45
    %s48 = sadd.s32 %s47, 1
    %p51 = scmp.eq.s32.totalorder %s13, 1
    %p52 = scmp.ne.s32.totalorder %s47, %s49
    %p53 = scmp.eq.s32.totalorder %s13, 0
    %p54 = por %p52, %p53
    %p55 = scmp.ne.s32.totalorder %s47, %s49
    %p56 = scmp.eq.s32.totalorder %s18, 1
    %p57 = por %p55, %p56
    %p58 = scmp.ne.s32.totalorder %s49, %s50
    %p59 = scmp.eq.s32.totalorder %s18, 0
    %p60 = por %p58, %p59
    %p61 = scmp.ne.s32.totalorder %s49, %s50
    %p62 = scmp.eq.s32.totalorder %s19, 1
    %p63 = por %p61, %p62
    %p65 = scmp.ne.s32.totalorder %s50, %s64
    %p66 = scmp.eq.s32.totalorder %s19, 0
    %p67 = por %p65, %p66
    %s69 = sadd.s32 %s68, 1
    %p72 = scmp.eq.s32.totalorder %s13, 1
    %p73 = scmp.ne.s32.totalorder %s68, %s70
    %p74 = scmp.eq.s32.totalorder %s13, 0
    %p75 = por %p73, %p74
    %p76 = scmp.ne.s32.totalorder %s68, %s70
    %p77 = scmp.eq.s32.totalorder %s18, 1
    %p78 = por %p76, %p77
    %p79 = scmp.ne.s32.totalorder %s70, %s71
    %p80 = scmp.eq.s32.totalorder %s18, 0
    %p81 = por %p79, %p80
    %p82 = scmp.ne.s32.totalorder %s70, %s71
    %p83 = scmp.eq.s32.totalorder %s19, 1
    %p84 = por %p82, %p83
    %p86 = scmp.ne.s32.totalorder %s71, %s85
    %p87 = scmp.eq.s32.totalorder %s19, 0
    %p88 = por %p86, %p87
    %s90 = sadd.s32 %s89, 1
    %p93 = scmp.eq.s32.totalorder %s13, 1
    %p94 = scmp.ne.s32.totalorder %s89, %s91
    %p95 = scmp.eq.s32.totalorder %s13, 0
    %p96 = por %p94, %p95
    %p97 = scmp.ne.s32.totalorder %s89, %s91
    %p98 = scmp.eq.s32.totalorder %s18, 1
    %p99 = por %p97, %p98
    %p100 = scmp.ne.s32.totalorder %s91, %s92
    %p101 = scmp.eq.s32.totalorder %s18, 0
    %p102 = por %p100, %p101
    %p103 = scmp.ne.s32.totalorder %s91, %s92
    %p104 = scmp.eq.s32.totalorder %s19, 1
    %p105 = por %p103, %p104
    %p107 = scmp.ne.s32.totalorder %s92, %s106
    %p108 = scmp.eq.s32.totalorder %s19, 0
    %p109 = por %p107, %p108
    %s111 = sadd.s32 %s110, 1
    %p114 = scmp.eq.s32.totalorder %s13, 1
    %p115 = scmp.ne.s32.totalorder %s110, %s112
    %p116 = scmp.eq.s32.totalorder %s13, 0
    %p117 = por %p115, %p116
    %p118 = scmp.ne.s32.totalorder %s110, %s112
    %p119 = scmp.eq.s32.totalorder %s18, 1
    %p120 = por %p118, %p119
    %p121 = scmp.ne.s32.totalorder %s112, %s113
    %p122 = scmp.eq.s32.totalorder %s18, 0
    %p123 = por %p121, %p122
    %p124 = scmp.ne.s32.totalorder %s112, %s113
    %p125 = scmp.eq.s32.totalorder %s19, 1
    %p126 = por %p124, %p125
    %p128 = scmp.ne.s32.totalorder %s113, %s127
    %p129 = scmp.eq.s32.totalorder %s19, 0
    %p130 = por %p128, %p129
    %s132 = sadd.s32 %s131, 1
    %p135 = scmp.eq.s32.totalorder %s13, 1
    %p136 = scmp.ne.s32.totalorder %s131, %s133
    %p137 = scmp.eq.s32.totalorder %s13, 0
    %p138 = por %p136, %p137
    %p139 = scmp.ne.s32.totalorder %s131, %s133
    %p140 = scmp.eq.s32.totalorder %s18, 1
    %p141 = por %p139, %p140
    %p142 = scmp.ne.s32.totalorder %s133, %s134
    %p143 = scmp.eq.s32.totalorder %s18, 0
    %p144 = por %p142, %p143
    %p145 = scmp.ne.s32.totalorder %s133, %s134
    %p146 = scmp.eq.s32.totalorder %s19, 1
    %p147 = por %p145, %p146
    %p149 = scmp.ne.s32.totalorder %s134, %s148
    %p150 = scmp.eq.s32.totalorder %s19, 0
    %p151 = por %p149, %p150
    %s153 = sadd.s32 %s152, 1
    %p156 = scmp.eq.s32.totalorder %s13, 1
    %p157 = scmp.ne.s32.totalorder %s152, %s154
    %p158 = scmp.eq.s32.totalorder %s13, 0
    %p159 = por %p157, %p158
    %p160 = scmp.ne.s32.totalorder %s152, %s154
    %p161 = scmp.eq.s32.totalorder %s18, 1
    %p162 = por %p160, %p161
    %p163 = scmp.ne.s32.totalorder %s154, %s155
    %p164 = scmp.eq.s32.totalorder %s18, 0
    %p165 = por %p163, %p164
    %p166 = scmp.ne.s32.totalorder %s154, %s155
    %p167 = scmp.eq.s32.totalorder %s19, 1
    %p168 = por %p166, %p167
    %p170 = scmp.ne.s32.totalorder %s155, %s169
    %p171 = scmp.eq.s32.totalorder %s19, 0
    %p172 = por %p170, %p171
    %s173 = ssub.s32 %s13, %s20
    %p174 = scmp.eq.s32.totalorder %s173, 0
    %s176 = sadd.s32 %s175, 1
    %s177 = scalar_select %p174, %s175, %s176
    %p180 = pneg %p174
    %p181 = scmp.eq.s32.totalorder %s13, 1
    %p182 = por %p180, %p181
    %p183 = scmp.ne.s32.totalorder %s175, %s178
    %p184 = scmp.eq.s32.totalorder %s13, 0
    %p185 = por %p183, %p184
    %p186 = scmp.ne.s32.totalorder %s175, %s178
    %p187 = scmp.eq.s32.totalorder %s18, 1
    %p188 = por %p186, %p187
    %p189 = scmp.ne.s32.totalorder %s178, %s179
    %p190 = scmp.eq.s32.totalorder %s18, 0
    %p191 = por %p189, %p190
    %p192 = scmp.ne.s32.totalorder %s178, %s179
    %p193 = scmp.eq.s32.totalorder %s19, 1
    %p194 = por %p192, %p193
    %p196 = scmp.ne.s32.totalorder %s179, %s195
    %p197 = scmp.eq.s32.totalorder %s19, 0
    %p198 = por %p196, %p197
    %p199 = scmp.le.s32.totalorder 1, %s13
    %p200 = scmp.lt.s32.totalorder %s13, 3
    %p201 = pnand %p199, %p200
    %p202 = pneg %p201
    // Predicated region
    $region9: #{shufflenet_fwd.13} parent=5 // pred_check
      _
    $region10: #{shufflenet_fwd.13} parent=5 // pred_check_branch
      %204 = sbr.rel (%p201) target = $region12
    $region11: #{shufflenet_fwd.13} parent=5 // pred_region
      %s205 = ssub.s32 %s13, 1
      // Predicated region
      $region13: #{shufflenet_fwd.13} parent=11 // pred_check
        %p206 = pneg %p60
      $region14: #{shufflenet_fwd.13} parent=11 // pred_check_branch
        %208 = sbr.rel (%p206) target = $region16
      $region15: #{shufflenet_fwd.13} parent=11 // pred_region
        _
      $region16: #{shufflenet_fwd.13} parent=11 // pred_fallthru
        _
      // Predicated region
      $region17: #{shufflenet_fwd.13} parent=11 // pred_check
        %p209 = pneg %p81
      $region18: #{shufflenet_fwd.13} parent=11 // pred_check_branch
        %211 = sbr.rel (%p209) target = $region20
      $region19: #{shufflenet_fwd.13} parent=11 // pred_region
        _
      $region20: #{shufflenet_fwd.13} parent=11 // pred_fallthru
        _
      // Predicated region
      $region21: #{shufflenet_fwd.13} parent=11 // pred_check
        %p212 = pneg %p102
      $region22: #{shufflenet_fwd.13} parent=11 // pred_check_branch
        %214 = sbr.rel (%p212) target = $region24
      $region23: #{shufflenet_fwd.13} parent=11 // pred_region
        _
      $region24: #{shufflenet_fwd.13} parent=11 // pred_fallthru
        _
      // Predicated region
      $region25: #{shufflenet_fwd.13} parent=11 // pred_check
        %p215 = pneg %p123
      $region26: #{shufflenet_fwd.13} parent=11 // pred_check_branch
        %217 = sbr.rel (%p215) target = $region28
      $region27: #{shufflenet_fwd.13} parent=11 // pred_region
        _
      $region28: #{shufflenet_fwd.13} parent=11 // pred_fallthru
        _
      // Predicated region
      $region29: #{shufflenet_fwd.13} parent=11 // pred_check
        %p218 = pneg %p144
      $region30: #{shufflenet_fwd.13} parent=11 // pred_check_branch
        %220 = sbr.rel (%p218) target = $region32
      $region31: #{shufflenet_fwd.13} parent=11 // pred_region
        _
      $region32: #{shufflenet_fwd.13} parent=11 // pred_fallthru
        _
      // Predicated region
      $region33: #{shufflenet_fwd.13} parent=11 // pred_check
        %p221 = pneg %p165
      $region34: #{shufflenet_fwd.13} parent=11 // pred_check_branch
        %223 = sbr.rel (%p221) target = $region36
      $region35: #{shufflenet_fwd.13} parent=11 // pred_region
        _
      $region36: #{shufflenet_fwd.13} parent=11 // pred_fallthru
        _
    $region12: #{shufflenet_fwd.13} parent=5 // pred_fallthru
      _
    %p224 = scmp.lt.s32.totalorder %s13, 2
    // Predicated region
    $region37: #{shufflenet_fwd.13} parent=5 // pred_check
      %p225 = pneg %p224
    $region38: #{shufflenet_fwd.13} parent=5 // pred_check_branch
      %227 = sbr.rel (%p225) target = $region40
    $region39: #{shufflenet_fwd.13} parent=5 // pred_region
      // Predicated region
      $region41: #{shufflenet_fwd.13} parent=39 // pred_check
        %p228 = pneg %p33
      $region42: #{shufflenet_fwd.13} parent=39 // pred_check_branch
        %230 = sbr.rel (%p228) target = $region44
      $region43: #{shufflenet_fwd.13} parent=39 // pred_region
        %p231 = scmp.lt.s32.totalorder %s13, 1
        %s232 = scalar_select %p231, %s13, 1
        %s233 = smul.addr %s232, 4
        %s234 = smul.addr %s233, 2
        %s235 = scalar_lea.vmem %s0, %s234
      $region44: #{shufflenet_fwd.13} parent=39 // pred_fallthru
        _
    $region40: #{shufflenet_fwd.13} parent=5 // pred_fallthru
      _
    %p236 = scmp.le.s32.totalorder 1, %s13
    %p237 = scmp.lt.s32.totalorder %s13, 3
    %p238 = pnand %p236, %p237
    %p239 = pneg %p238
    // Predicated region
    $region45: #{shufflenet_fwd.13} parent=5 // pred_check
      _
    $region46: #{shufflenet_fwd.13} parent=5 // pred_check_branch
      %241 = sbr.rel (%p238) target = $region48
    $region47: #{shufflenet_fwd.13} parent=5 // pred_region
      %s242 = ssub.s32 %s13, 1
      %p243 = scmp.lt.s32.totalorder %s18, 1
      %s244 = scalar_select %p243, %s18, 1
      %s245 = smul.addr %s244, 4
      %s246 = smul.addr %s245, 2
      %s247 = scalar_lea.vmem %s0, %s246
      %p248 = pneg %p39
      %p249 = pneg %p36
      %p250 = pneg %p60
      %p251 = pneg %p57
      %p252 = pneg %p81
      %p253 = pneg %p78
      %p254 = pneg %p102
      %p255 = pneg %p99
      %p256 = pneg %p123
      %p257 = pneg %p120
      %p258 = pneg %p144
      %p259 = pneg %p141
      %p260 = pneg %p165
      %p261 = pneg %p162
      %p262 = pneg %p191
      %p263 = pneg %p188
      %p264 = scmp.lt.s32.totalorder %s18, 1
      %s265 = scalar_select %p264, %s18, 1
      %s266 = smul.addr %s265, 2
      %s267 = smul.addr %s266, 2
      %s268 = scalar_lea.vmem %s7, %s267
      %p269 = scmp.lt.s32.totalorder %s18, 1
      %s270 = scalar_select %p269, %s18, 1
      %s271 = smul.addr %s270, 4
      %s272 = smul.addr %s271, 2
      %s273 = scalar_lea.vmem %s0, %s272
      %p274 = scmp.lt.s32.totalorder %s18, 1
      %s275 = scalar_select %p274, %s18, 1
      %s276 = smul.addr %s275, 2
      %s277 = smul.addr %s276, 2
      %s278 = scalar_lea.vmem %s7, %s277
      %v279 = vld [vmem:[%s273] sm:$0xf]
      %v280 = vld [vmem:[%s273 + $0x4] sm:$0xf]
      %v281 = vld [vmem:[%s1] sm:$0xff]
      %v282 = vld [vmem:[%s1 + $0x8] sm:$0xff]
      %v283 = vld [vmem:[%s1 + $0x10] sm:$0xff]
      %v284 = vld [vmem:[%s1 + $0x18] sm:$0xff]
      %v285 = vld [vmem:[%s1 + $0x20] sm:$0xff]
      %v286 = vld [vmem:[%s1 + $0x28] sm:$0xff]
      %v287 = vld [vmem:[%s1 + $0x30] sm:$0xff]
      %v288 = vld [vmem:[%s1 + $0x38] sm:$0xff]
      %v289 = vld [vmem:[%s1 + $0x40] sm:$0xff]
      %v290 = vld [vmem:[%s1 + $0x48] sm:$0xff]
      %v291 = vld [vmem:[%s1 + $0x50] sm:$0xff]
      %v292 = vld [vmem:[%s1 + $0x58] sm:$0xff]
      %v293 = vld [vmem:[%s1 + $0x60] sm:$0xff]
      %v294 = vld [vmem:[%s1 + $0x68] sm:$0xff]
      %v295 = vld [vmem:[%s1 + $0x70] sm:$0xff]
      %v296 = vld [vmem:[%s1 + $0x78] sm:$0xff]
      %v297 = vld [vmem:[%s1 + $0x80] sm:$0xff]
      %v298 = vld [vmem:[%s1 + $0x88] sm:$0xff]
      %v299 = vld [vmem:[%s1 + $0x90] sm:$0xff]
      %v300 = vld [vmem:[%s1 + $0x98] sm:$0xff]
      %v301 = vld [vmem:[%s1 + $0xa0] sm:$0xff]
      %v302 = vld [vmem:[%s1 + $0xa8] sm:$0xff]
      %v303 = vld [vmem:[%s1 + $0xb0] sm:$0xff]
      %v304 = vld [vmem:[%s1 + $0xb8] sm:$0xff]
      %v305 = vld [vmem:[%s1 + $0xc0] sm:$0xff]
      %v306 = vld [vmem:[%s1 + $0xc8] sm:$0xff]
      %v307 = vld [vmem:[%s1 + $0xd0] sm:$0xff]
      %v308 = vld [vmem:[%s1 + $0xd8] sm:$0xff]
      %v309 = vld [vmem:[%s1 + $0xe0] sm:$0xff]
      %v310 = vld [vmem:[%s1 + $0xe8] sm:$0xff]
      %v311 = vld [vmem:[%s1 + $0xf0] sm:$0xff]
      %v312 = vld [vmem:[%s1 + $0xf8] sm:$0xff]
      %v313 = vld [vmem:[%s2] sm:$0x1]
      %v315 = vlaneseq
      %v316 = vshrl.u32 %v315, 7
      %v317 = vsub.s32 0, %v316
      %v318 = vrot.slane %v313, %v317
      %v321 = vcombine.low %v279, %v280
      %v323 = vunpack.c.l.s4 1983009808
      %v324 = vunpack.c.0.s8 %v323
      %v325 = vlaneseq
      %v326 = vshrl.u32 %v325, 7
      %v327 = vsub.s32 %v324, %v326
      %v328 = vrot.slane %v321, %v327
      %v329 = vcombine.high %v328, %v328
      %v332 = vcombine.low %v318, %v318
      %v334 = vunpack.c.l.s4 1983009808
      %v335 = vunpack.c.0.s8 %v334
      %v336 = vlaneseq
      %v337 = vshrl.u32 %v336, 7
      %v338 = vsub.s32 %v335, %v337
      %v339 = vrot.slane %v332, %v338
      %341 = vmatprep.subr.mxu0 0.0
      %342 = vmatpush1.msra.mxu0 %v281
      %343 = vmatprep.subr.mxu0 0.0
      %344 = vmatpush1.msra.mxu0 %v282
      %345 = vmatprep.subr.mxu0 0.0
      %346 = vmatpush1.msra.mxu0 %v283
      %347 = vmatprep.subr.mxu0 0.0
      %348 = vmatpush1.msra.mxu0 %v284
      %349 = vmatprep.subr.mxu0 0.0
      %350 = vmatpush1.msra.mxu0 %v285
      %351 = vmatprep.subr.mxu0 0.0
      %352 = vmatpush1.msra.mxu0 %v286
      %353 = vmatprep.subr.mxu0 0.0
      %354 = vmatpush1.msra.mxu0 %v287
      %355 = vmatprep.subr.mxu0 0.0
      %356 = vmatpush1.msra.mxu0 %v288
      %357 = vmatprep.subr.mxu0 0.0
      %358 = vmatpush1.msra.mxu0 %v289
      %359 = vmatprep.subr.mxu0 0.0
      %360 = vmatpush1.msra.mxu0 %v290
      %361 = vmatprep.subr.mxu0 0.0
      %362 = vmatpush1.msra.mxu0 %v291
      %363 = vmatprep.subr.mxu0 0.0
      %364 = vmatpush1.msra.mxu0 %v292
      %365 = vmatprep.subr.mxu0 0.0
      %366 = vmatpush1.msra.mxu0 %v293
      %367 = vmatprep.subr.mxu0 0.0
      %368 = vmatpush1.msra.mxu0 %v294
      %369 = vmatprep.subr.mxu0 0.0
      %370 = vmatpush1.msra.mxu0 %v295
      %371 = vmatprep.subr.mxu0 0.0
      %372 = vmatpush1.msra.mxu0 %v296
      %373 = vmatprep.subr.mxu0 0.0
      %374 = vmatpush1.msra.mxu0 %v297
      %375 = vmatprep.subr.mxu0 0.0
      %376 = vmatpush1.msra.mxu0 %v298
      %377 = vmatprep.subr.mxu0 0.0
      %378 = vmatpush1.msra.mxu0 %v299
      %379 = vmatprep.subr.mxu0 0.0
      %380 = vmatpush1.msra.mxu0 %v300
      %381 = vmatprep.subr.mxu0 0.0
      %382 = vmatpush1.msra.mxu0 %v301
      %383 = vmatprep.subr.mxu0 0.0
      %384 = vmatpush1.msra.mxu0 %v302
      %385 = vmatprep.subr.mxu0 0.0
      %386 = vmatpush1.msra.mxu0 %v303
      %387 = vmatprep.subr.mxu0 0.0
      %388 = vmatpush1.msra.mxu0 %v304
      %389 = vmatprep.subr.mxu0 0.0
      %390 = vmatpush1.msra.mxu0 %v305
      %391 = vmatprep.subr.mxu0 0.0
      %392 = vmatpush1.msra.mxu0 %v306
      %393 = vmatprep.subr.mxu0 0.0
      %394 = vmatpush1.msra.mxu0 %v307
      %395 = vmatprep.subr.mxu0 0.0
      %396 = vmatpush1.msra.mxu0 %v308
      %397 = vmatprep.subr.mxu0 0.0
      %398 = vmatpush1.msra.mxu0 %v309
      %399 = vmatprep.subr.mxu0 0.0
      %400 = vmatpush1.msra.mxu0 %v310
      %401 = vmatprep.subr.mxu0 0.0
      %402 = vmatpush1.msra.mxu0 %v311
      %403 = vmatprep.subr.mxu0 0.0
      %404 = vmatpush1.msra.mxu0 %v312
      %405 = vmatprep.mubr.f32.mxu0 %v329
      %406 = vmatmul.mubr.f32.gmra.mrb[0].mxu0 %v328
      %v407 = vpop.f32.mrb[0].mxu0
      %v408 = vadd.f32 %v339, %v407
      %v409 = vpop.f32.mrb[0].mxu0
      %410 = vdwg.mxu0
      %v413 = vunpack.c.l.s4 1983009808
      %v414 = vunpack.c.0.s8 %v413
      %v415 = vlaneseq
      %v416 = vshrl.u32 %v415, 7
      %v417 = vsub.s32 %v414, %v416
      %v418 = vrot.slane %v408, %v417
      %v419 = vcombine.high %v418, %v418
      %v422 = vmax.f32 %v418, 0.0
      %v423 = vmax.f32 %v419, 0.0
      %424 = vst [vmem:[#allocation2] sm:$0x7] 0.0
      %425 = vst [vmem:[#allocation2 + $0x4] sm:$0x7] 0.0
      %426 = vst [vmem:[#allocation2 + $0x8] sm:$0x7] 0.0
      %s427 = scalar_lea.vmem [#allocation2], 4
      %428 = vst [vmem:[%s427 + $0x1] sm:$0x3] %v422
      %429 = vst [vmem:[%s427 + $0x5] sm:$0x3] %v423
      %430 = vst [vmem:[#allocation3] sm:$0x77] 0.0
      %431 = vst [vmem:[#allocation3 + $0x8] sm:$0x77] 0.0
      %432 = vst [vmem:[#allocation3 + $0x10] sm:$0x77] 0.0
      %v434 = vunpack.c.l.s4 1983009808
      %v435 = vunpack.c.0.s8 %v434
      %v436 = vlaneseq
      %v437 = vshrl.u32 %v436, 7
      %v438 = vsub.s32 %v435, %v437
      %v439 = vrot.slane %v279, %v438
      %v441 = vunpack.c.l.s4 1983009808
      %v442 = vunpack.c.0.s8 %v441
      %v443 = vlaneseq
      %v444 = vshrl.u32 %v443, 7
      %v445 = vsub.s32 %v442, %v444
      %v446 = vrot.slane %v280, %v445
      %v447 = vrot.slane %v439, 7
      %v448 = vrot.slane %v446, 7
      %s451 = scalar_lea.vmem [#allocation3], 8
      %452 = vst [vmem:[%s451] sm:$0x66] %v447
      %453 = vst [vmem:[%s451 + $0x8] sm:$0x66] %v448
      %v454 = vld [vmem:[#allocation2] sm:$0x7]
      %v455 = vld [vmem:[#allocation2 + $0x4] sm:$0x7]
      %v456 = vld [vmem:[#allocation2 + $0x8] sm:$0x7]
      %v457 = vld [vmem:[#allocation3] sm:$0x77]
      %v458 = vld [vmem:[#allocation3 + $0x8] sm:$0x77]
      %v459 = vld [vmem:[#allocation3 + $0x10] sm:$0x77]
      %v460 = vld [vmem:[%s3] sm:$0x1]
      %v461 = vlaneseq
      %v462 = vshrl.u32 %v461, 7
      %v463 = vsub.s32 0, %v462
      %v464 = vrot.slane %v460, %v463
      %466 = vrot.lane.b32.xlu0 %v464, 96
      %v467 = vpop.permute.xlu0 %466
      %v469 = vmul.f32 %v454, %v467
      %v470 = vmul.f32 %v455, %v467
      %v471 = vld [vmem:[%s3 + $0x1] sm:$0x1]
      %v472 = vlaneseq
      %v473 = vshrl.u32 %v472, 7
      %v474 = vsub.s32 0, %v473
      %v475 = vrot.slane %v471, %v474
      %477 = vrot.lane.b32.xlu0 %v475, 64
      %v478 = vpop.permute.xlu0 %477
      %v480 = vmul.f32 %v454, %v478
      %v481 = vmul.f32 %v455, %v478
      %v484 = vrot.slane %v480, 1
      %v485 = vrot.slane %v481, 1
      %486 = vrot.lane.b32.xlu0 %v484, 32
      %v487 = vpop.permute.xlu0 %486
      %488 = vrot.lane.b32.xlu0 %v485, 32
      %v489 = vpop.permute.xlu0 %488
      %v492 = vadd.f32 %v469, %v487
      %v493 = vadd.f32 %v470, %v489
      %496 = vrot.lane.b32.xlu0 %v457, 64
      %v497 = vpop.permute.xlu0 %496
      %498 = vrot.lane.b32.xlu0 %v458, 64
      %v499 = vpop.permute.xlu0 %498
      %v500 = vrot.slane %v497, 4
      %v501 = vrot.slane %v499, 4
      %v504 = vrot.slane %v457, 5
      %v505 = vrot.slane %v504, 4
      %v506 = vrot.slane %v458, 5
      %v507 = vrot.slane %v506, 4
      %v508 = vrot.slane %v505, 4
      %v509 = vrot.slane %v507, 4
      %v512 = vadd.f32 %v500, %v508
      %v513 = vadd.f32 %v501, %v509
      %v514 = vld [vmem:[%s3 + $0x2] sm:$0x1]
      %v515 = vlaneseq
      %v516 = vshrl.u32 %v515, 7
      %v517 = vsub.s32 0, %v516
      %v518 = vrot.slane %v514, %v517
      %520 = vrot.lane.b32.xlu0 %v518, 96
      %v521 = vpop.permute.xlu0 %520
      %v523 = vmul.f32 %v454, %v521
      %v524 = vmul.f32 %v455, %v521
      %v527 = vrot.slane %v523, 1
      %v528 = vrot.slane %v524, 1
      %v531 = vadd.f32 %v492, %v527
      %v532 = vadd.f32 %v493, %v528
      %533 = vrot.lane.b32.xlu0 %v505, 64
      %v534 = vpop.permute.xlu0 %533
      %535 = vrot.lane.b32.xlu0 %v507, 64
      %v536 = vpop.permute.xlu0 %535
      %v537 = vrot.slane %v534, 4
      %v538 = vrot.slane %v536, 4
      %v541 = vadd.f32 %v512, %v537
      %v542 = vadd.f32 %v513, %v538
      %v543 = vld [vmem:[%s3 + $0x3] sm:$0x1]
      %v544 = vlaneseq
      %v545 = vshrl.u32 %v544, 7
      %v546 = vsub.s32 0, %v545
      %v547 = vrot.slane %v543, %v546
      %549 = vrot.lane.b32.xlu0 %v547, 32
      %v550 = vpop.permute.xlu0 %549
      %v552 = vmul.f32 %v455, %v550
      %v553 = vmul.f32 %v456, %v550
      %556 = vrot.lane.b32.xlu0 %v552, 64
      %v557 = vpop.permute.xlu0 %556
      %558 = vrot.lane.b32.xlu0 %v553, 64
      %v559 = vpop.permute.xlu0 %558
      %v562 = vadd.f32 %v531, %v557
      %v563 = vadd.f32 %v532, %v559
      %565 = vrot.lane.b32.xlu0 %v459, 64
      %v566 = vpop.permute.xlu0 %565
      %v569 = vadd.f32 %v541, %v499
      %v570 = vadd.f32 %v542, %v566
      %v571 = vld [vmem:[%s3 + $0x4] sm:$0x1]
      %v572 = vlaneseq
      %v573 = vshrl.u32 %v572, 7
      %v574 = vsub.s32 0, %v573
      %v575 = vrot.slane %v571, %v574
      %v576 = vmul.f32 %v455, %v575
      %v577 = vmul.f32 %v456, %v575
      %v580 = vrot.slane %v576, 1
      %v581 = vrot.slane %v577, 1
      %582 = vrot.lane.b32.xlu0 %v580, 96
      %v583 = vpop.permute.xlu0 %582
      %584 = vrot.lane.b32.xlu0 %v581, 96
      %v585 = vpop.permute.xlu0 %584
      %v588 = vadd.f32 %v562, %v583
      %v589 = vadd.f32 %v563, %v585
      %v590 = vrot.slane %v459, 5
      %v591 = vrot.slane %v590, 4
      %v594 = vadd.f32 %v569, %v507
      %v595 = vadd.f32 %v570, %v591
      %v596 = vld [vmem:[%s3 + $0x5] sm:$0x1]
      %v597 = vlaneseq
      %v598 = vshrl.u32 %v597, 7
      %v599 = vsub.s32 0, %v598
      %v600 = vrot.slane %v596, %v599
      %602 = vrot.lane.b32.xlu0 %v600, 32
      %v603 = vpop.permute.xlu0 %602
      %v605 = vmul.f32 %v455, %v603
      %v606 = vmul.f32 %v456, %v603
      %v609 = vrot.slane %v605, 1
      %v610 = vrot.slane %v606, 1
      %611 = vrot.lane.b32.xlu0 %v609, 64
      %v612 = vpop.permute.xlu0 %611
      %613 = vrot.lane.b32.xlu0 %v610, 64
      %v614 = vpop.permute.xlu0 %613
      %v617 = vadd.f32 %v588, %v612
      %v618 = vadd.f32 %v589, %v614
      %619 = vrot.lane.b32.xlu0 %v591, 64
      %v620 = vpop.permute.xlu0 %619
      %v623 = vadd.f32 %v594, %v536
      %v624 = vadd.f32 %v595, %v620
      %v625 = vld [vmem:[%s3 + $0x6] sm:$0x1]
      %v626 = vlaneseq
      %v627 = vshrl.u32 %v626, 7
      %v628 = vsub.s32 0, %v627
      %v629 = vrot.slane %v625, %v628
      %631 = vrot.lane.b32.xlu0 %v629, 96
      %v632 = vpop.permute.xlu0 %631
      %v634 = vmul.f32 %v455, %v632
      %v635 = vmul.f32 %v456, %v632
      %v636 = vadd.f32 %v617, %v634
      %v637 = vadd.f32 %v618, %v635
      %v638 = vrot.slane %v566, 4
      %v640 = vadd.f32 %v623, %v501
      %v641 = vadd.f32 %v624, %v638
      %v642 = vld [vmem:[%s3 + $0x7] sm:$0x1]
      %v643 = vlaneseq
      %v644 = vshrl.u32 %v643, 7
      %v645 = vsub.s32 0, %v644
      %v646 = vrot.slane %v642, %v645
      %648 = vrot.lane.b32.xlu0 %v646, 64
      %v649 = vpop.permute.xlu0 %648
      %v651 = vmul.f32 %v455, %v649
      %v652 = vmul.f32 %v456, %v649
      %v655 = vrot.slane %v651, 1
      %v656 = vrot.slane %v652, 1
      %657 = vrot.lane.b32.xlu0 %v655, 32
      %v658 = vpop.permute.xlu0 %657
      %659 = vrot.lane.b32.xlu0 %v656, 32
      %v660 = vpop.permute.xlu0 %659
      %v663 = vadd.f32 %v636, %v658
      %v664 = vadd.f32 %v637, %v660
      %v665 = vrot.slane %v591, 4
      %v667 = vadd.f32 %v640, %v509
      %v668 = vadd.f32 %v641, %v665
      %v669 = vld [vmem:[%s3 + $0x8] sm:$0x1]
      %v670 = vlaneseq
      %v671 = vshrl.u32 %v670, 7
      %v672 = vsub.s32 0, %v671
      %v673 = vrot.slane %v669, %v672
      %675 = vrot.lane.b32.xlu0 %v673, 96
      %v676 = vpop.permute.xlu0 %675
      %v678 = vmul.f32 %v455, %v676
      %v679 = vmul.f32 %v456, %v676
      %v682 = vrot.slane %v678, 1
      %v683 = vrot.slane %v679, 1
      %v686 = vadd.f32 %v663, %v682
      %v687 = vadd.f32 %v664, %v683
      %v688 = vrot.slane %v620, 4
      %v690 = vadd.f32 %v667, %v538
      %v691 = vadd.f32 %v668, %v688
      %v692 = vld [vmem:[%s4] sm:$0x1]
      %v694 = vlaneseq
      %v695 = vshrl.u32 %v694, 7
      %v696 = vsub.s32 0, %v695
      %v697 = vrot.slane %v692, %v696
      %698 = vrot.lane.b32.xlu0 %v697, 96
      %v699 = vpop.permute.xlu0 %698
      %v701 = vadd.f32 %v686, %v699
      %v702 = vadd.f32 %v687, %v699
      %v703 = vmul.f32 %v690, 0.11111111
      %v704 = vmul.f32 %v691, 0.11111111
      %v705 = vld [vmem:[%s5] sm:$0xff]
      %v706 = vld [vmem:[%s5 + $0x8] sm:$0xff]
      %v707 = vld [vmem:[%s5 + $0x10] sm:$0xff]
      %v708 = vld [vmem:[%s5 + $0x18] sm:$0xff]
      %v709 = vld [vmem:[%s6] sm:$0x1]
      %v711 = vlaneseq
      %v712 = vshrl.u32 %v711, 7
      %v713 = vsub.s32 0, %v712
      %v714 = vrot.slane %v709, %v713
      %v717 = vcombine.low %v701, %v702
      %v719 = vunpack.c.l.s4 1983009808
      %v720 = vunpack.c.0.s8 %v719
      %v721 = vlaneseq
      %v722 = vshrl.u32 %v721, 7
      %v723 = vsub.s32 %v720, %v722
      %v724 = vrot.slane %v717, %v723
      %725 = vrot.lane.b32.xlu0 %v724, 32
      %v726 = vpop.permute.xlu0 %725
      %v727 = vcombine.low %v714, %v714
      %v729 = vunpack.c.l.s4 1983009808
      %v730 = vunpack.c.0.s8 %v729
      %v731 = vlaneseq
      %v732 = vshrl.u32 %v731, 7
      %v733 = vsub.s32 %v730, %v732
      %v734 = vrot.slane %v727, %v733
      %vm736 = vcmask 261120
      %v737 = vsel %vm736, %v726, 0
      %739 = vmatprep.subr.mxu0 0.0
      %740 = vmatpush1.msra.mxu0 %v705
      %741 = vmatprep.subr.mxu0 0.0
      %742 = vmatpush1.msra.mxu0 %v706
      %743 = vmatprep.subr.mxu0 0.0
      %744 = vmatpush1.msra.mxu0 %v707
      %745 = vmatprep.subr.mxu0 0.0
      %746 = vmatpush1.msra.mxu0 %v708
      %747 = vmatprep.subr.mxu0 0.0
      %748 = vmatpush1.msra.mxu0 0.0
      %749 = vmatprep.subr.mxu0 0.0
      %750 = vmatpush1.msra.mxu0 0.0
      %751 = vmatprep.subr.mxu0 0.0
      %752 = vmatpush1.msra.mxu0 0.0
      %753 = vmatprep.subr.mxu0 0.0
      %754 = vmatpush1.msra.mxu0 0.0
      %755 = vmatprep.subr.mxu0 0.0
      %756 = vmatpush1.msra.mxu0 0.0
      %757 = vmatprep.subr.mxu0 0.0
      %758 = vmatpush1.msra.mxu0 0.0
      %759 = vmatprep.subr.mxu0 0.0
      %760 = vmatpush1.msra.mxu0 0.0
      %761 = vmatprep.subr.mxu0 0.0
      %762 = vmatpush1.msra.mxu0 0.0
      %763 = vmatprep.subr.mxu0 0.0
      %764 = vmatpush1.msra.mxu0 0.0
      %765 = vmatprep.subr.mxu0 0.0
      %766 = vmatpush1.msra.mxu0 0.0
      %767 = vmatprep.subr.mxu0 0.0
      %768 = vmatpush1.msra.mxu0 0.0
      %769 = vmatprep.subr.mxu0 0.0
      %770 = vmatpush1.msra.mxu0 0.0
      %771 = vmatprep.subr.mxu0 0.0
      %772 = vmatpush1.msra.mxu0 0.0
      %773 = vmatprep.subr.mxu0 0.0
      %774 = vmatpush1.msra.mxu0 0.0
      %775 = vmatprep.subr.mxu0 0.0
      %776 = vmatpush1.msra.mxu0 0.0
      %777 = vmatprep.subr.mxu0 0.0
      %778 = vmatpush1.msra.mxu0 0.0
      %779 = vmatprep.subr.mxu0 0.0
      %780 = vmatpush1.msra.mxu0 0.0
      %781 = vmatprep.subr.mxu0 0.0
      %782 = vmatpush1.msra.mxu0 0.0
      %783 = vmatprep.subr.mxu0 0.0
      %784 = vmatpush1.msra.mxu0 0.0
      %785 = vmatprep.subr.mxu0 0.0
      %786 = vmatpush1.msra.mxu0 0.0
      %787 = vmatprep.subr.mxu0 0.0
      %788 = vmatpush1.msra.mxu0 0.0
      %789 = vmatprep.subr.mxu0 0.0
      %790 = vmatpush1.msra.mxu0 0.0
      %791 = vmatprep.subr.mxu0 0.0
      %792 = vmatpush1.msra.mxu0 0.0
      %793 = vmatprep.subr.mxu0 0.0
      %794 = vmatpush1.msra.mxu0 0.0
      %795 = vmatprep.subr.mxu0 0.0
      %796 = vmatpush1.msra.mxu0 0.0
      %797 = vmatprep.subr.mxu0 0.0
      %798 = vmatpush1.msra.mxu0 0.0
      %799 = vmatprep.subr.mxu0 0.0
      %800 = vmatpush1.msra.mxu0 0.0
      %801 = vmatprep.subr.mxu0 0.0
      %802 = vmatpush1.msra.mxu0 0.0
      %803 = vmatprep.mubr.f32.mxu0 0.0
      %804 = vmatmul.mubr.f32.gmra.mrb[0].mxu0 %v737
      %v805 = vpop.f32.mrb[0].mxu0
      %v806 = vadd.f32 %v734, %v805
      %v807 = vpop.f32.mrb[0].mxu0
      %808 = vdwg.mxu0
      %v811 = vunpack.c.l.s4 1983009808
      %v812 = vunpack.c.0.s8 %v811
      %v813 = vlaneseq
      %v814 = vshrl.u32 %v813, 7
      %v815 = vsub.s32 %v812, %v814
      %v816 = vrot.slane %v806, %v815
      %v817 = vcombine.high %v816, %v816
      %822 = vrot.lane.b32.xlu0 %v703, 64
      %v823 = vpop.permute.xlu0 %822
      %824 = vrot.lane.b32.xlu0 %v704, 64
      %v825 = vpop.permute.xlu0 %824
      %vm828 = vcmask 523264
      %v829 = vsel %vm828, %v816, %v823
      %v830 = vsel %vm828, %v817, %v825
      %v831 = vmax.f32 %v829, 0.0
      %v832 = vmax.f32 %v830, 0.0
      %833 = vst [vmem:[%s278] sm:$0x3] %v831
      %834 = vst [vmem:[%s278 + $0x2] sm:$0x3] %v832
      %p835 = scmp.lt.s32.totalorder %s18, 1
      %s836 = scalar_select %p835, %s18, 1
      %s837 = smul.addr %s836, 2
      %s838 = smul.addr %s837, 2
      %s839 = scalar_lea.vmem %s7, %s838
      // Predicated region
      $region49: #{shufflenet_fwd.13} parent=47 // pred_check
        %p840 = pneg %p188
      $region50: #{shufflenet_fwd.13} parent=47 // pred_check_branch
        %842 = sbr.rel (%p840) target = $region52
      $region51: #{shufflenet_fwd.13} parent=47 // pred_region
        _
      $region52: #{shufflenet_fwd.13} parent=47 // pred_fallthru
        _
    $region48: #{shufflenet_fwd.13} parent=5 // pred_fallthru
      _
    %p843 = scmp.le.s32.totalorder 2, %s13
    // Predicated region
    $region53: #{shufflenet_fwd.13} parent=5 // pred_check
      %p844 = pneg %p843
    $region54: #{shufflenet_fwd.13} parent=5 // pred_check_branch
      %846 = sbr.rel (%p844) target = $region56
    $region55: #{shufflenet_fwd.13} parent=5 // pred_region
      %s847 = ssub.s32 %s13, 2
      // Predicated region
      $region57: #{shufflenet_fwd.13} parent=55 // pred_check
        %p848 = pneg %p194
      $region58: #{shufflenet_fwd.13} parent=55 // pred_check_branch
        %850 = sbr.rel (%p848) target = $region60
      $region59: #{shufflenet_fwd.13} parent=55 // pred_region
        %p851 = scmp.lt.s32.totalorder %s19, 1
        %s852 = scalar_select %p851, %s19, 1
        %s853 = smul.addr %s852, 2
        %s854 = smul.addr %s853, 2
        %s855 = scalar_lea.vmem %s7, %s854
      $region60: #{shufflenet_fwd.13} parent=55 // pred_fallthru
        _
    $region56: #{shufflenet_fwd.13} parent=5 // pred_fallthru
      _
  $region6: #{shufflenet_fwd.13} parent=0 // loop_footer
    %s17 = sadd.s32 1, %s13
  $region7: #{shufflenet_fwd.13} parent=0 // loop_footer_branch
    %12 = sbr.rel target = $region3
  $region8: #{shufflenet_fwd.13} parent=0 // loop_exit
    _

</llo_original>
